<compile_context>
chip_gen: v5e
topology: v5e:2x2
jax: 0.10.0
libtpu: 0.0.40
codegen_flags: <defaults>
</compile_context>

<pallas_src>
import functools

import jax
import jax.numpy as jnp
from jax.experimental import pallas as pl
from jax.experimental.pallas import tpu as pltpu

BF16 = jnp.bfloat16


# ----------------------------------------------------------------------------
# In-kernel helpers: combine of packed 3x3 conv tap outputs.
# ----------------------------------------------------------------------------
def _shift_rows(x, d):
    """b[p, :] = x[p + d, :] as a cyclic roll (XLU); callers mask the rows
    where the shift wraps or crosses a feature-map border."""
    return pltpu.roll(x, (-d) % x.shape[0], axis=0)


def _kx_combine(z, m_left, m_right, cout):
    """z: (L, 9*cout) packed conv outputs, columns ordered (kx, ky, cout).
    Returns the width-tap combination (L, 3*cout), columns ordered (ky, cout)."""
    k3 = 3 * cout
    left = jnp.where(m_left, _shift_rows(z[:, 0:k3], -1), 0.0)            # w-1
    right = jnp.where(m_right, _shift_rows(z[:, 2 * k3:3 * k3], 1), 0.0)  # w+1
    return left + z[:, k3:2 * k3] + right


def _ky_combine(s, m_up, m_down, W, l_out, cout):
    """s: (l_out + 2*W, 3*cout), columns (ky, cout); s row i is one image row
    (W pixels) above output row i.  Returns (l_out, cout)."""
    up = jnp.where(m_up, s[0:l_out, 0:cout], 0.0)
    mid = s[W:W + l_out, cout:2 * cout]
    down = jnp.where(m_down, s[2 * W:2 * W + l_out, 2 * cout:3 * cout], 0.0)
    return up + mid + down


# ----------------------------------------------------------------------------
# Pallas kernel: per-(batch, row-tile) gating hot path.
# ----------------------------------------------------------------------------
def _gating_kernel(Hp, W, rt, x_ref, xu_ref, xd_ref, cw_ref, cmask_ref,
                   wpx_ref, bpx_ref, wcv_ref, bcv_ref, o_ref):
    CT = x_ref.shape[-1]
    T = bpx_ref.shape[-1]
    C = bcv_ref.shape[-1]
    chunk = CT // T
    Lb = rt * W               # output pixel-rows of this tile
    L1 = Lb + 2 * W           # tile + 1 halo image row per side
    L2 = Lb + 4 * W           # tile + 2 halo image rows per side

    row0 = pl.program_id(1) * rt          # global image row of tile row 0
    cw = cw_ref[0]                        # (1, CT) precomputed channel gate

    # Channel-gated activations over the 2-halo-row extended block (bf16).
    x_e2 = jnp.concatenate([xu_ref[0], x_ref[0], xd_ref[0]], axis=0)   # (L2, CT)
    feat_e2 = (x_e2.astype(jnp.float32) * cw).astype(BF16)             # (L2, CT)

    # Border masks.  Column masks are tile-independent (host constant); row
    # masks come from the true global image row via iota + scalar thresholds.
    m_left2 = cmask_ref[:, 0:1] > 0.0
    m_right2 = cmask_ref[:, 1:2] > 0.0
    m_left1, m_right1 = m_left2[0:L1], m_right2[0:L1]
    q1 = jax.lax.broadcasted_iota(jnp.int32, (L1, 1), 0)   # ext1 pixel index
    qb = jax.lax.broadcasted_iota(jnp.int32, (Lb, 1), 0)   # tile pixel index
    m_up1 = q1 >= (2 - row0) * W          # ext1 pixel: (row - 1) >= 0
    m_dn1 = q1 < (Hp - row0) * W          # ext1 pixel: (row + 1) <= Hp - 1
    m_upb = qb >= (1 - row0) * W          # tile pixel: (row - 1) >= 0
    m_dnb = qb < (Hp - 1 - row0) * W      # tile pixel: (row + 1) <= Hp - 1

    # ---- Pixel gate: 3x3 conv CT -> T as ONE packed matmul + tap combine.
    zpx = jnp.dot(feat_e2, wpx_ref[...],
                  preferred_element_type=jnp.float32)                 # (L2, 9T)
    spx = _kx_combine(zpx, m_left2, m_right2, T)                      # (L2, 3T)
    px = _ky_combine(spx, m_up1, m_dn1, W, L1, T)                     # (L1, T)
    pw = jax.nn.sigmoid(px + bpx_ref[...])                            # (L1, T)

    # ---- Per-temporal-chunk pixel gating fused into K-chunked accumulating
    #      matmuls (no (rows, CT) gate temporary is materialized).
    feat_e1 = feat_e2[W:W + L1]                                       # (L1, CT)
    zcv = jnp.zeros((L1, 9 * C), jnp.float32)
    for t in range(T):
        g_t = (feat_e1[:, t * chunk:(t + 1) * chunk]
               * pw[:, t:t + 1]).astype(BF16)                         # (L1, chunk)
        zcv = zcv + jnp.dot(g_t, wcv_ref[t * chunk:(t + 1) * chunk, :],
                            preferred_element_type=jnp.float32)       # (L1, 9C)

    # ---- Output 3x3 conv tap combine + bias + ReLU.
    scv = _kx_combine(zcv, m_left1, m_right1, C)                      # (L1, 3C)
    out = _ky_combine(scv, m_upb, m_dnb, W, Lb, C)                    # (Lb, C)
    o_ref[0] = jnp.maximum(out + bcv_ref[...], 0.0).astype(o_ref.dtype)


# ----------------------------------------------------------------------------
# Host-side helpers.
# ----------------------------------------------------------------------------
def _pack_conv3x3(w):
    """(3, 3, Cin, Cout) [ky, kx, cin, cout] -> (Cin, 9*Cout) bf16, columns
    ordered (kx, ky, cout) to match the tap-combine helpers."""
    kh, kw, cin, cout = w.shape
    return jnp.transpose(w, (2, 1, 0, 3)).reshape(cin, kh * kw * cout).astype(BF16)


def _choose_rt(H, W, target_rows):
    """Image rows per tile: ~target_rows pixel rows, even (so the 2-row halo
    blocks and rt*W stay 8-aligned when W % 4 == 0)."""
    rt = max(1, target_rows // W)
    rt = min(rt, H)
    if rt % 2:
        rt += 1
    return rt


def _vmem_limit_bytes():
    """Generation-aware scoped-VMEM limit: ~48 MiB on 64-MiB parts (v7x),
    ~100 MiB on 128-MiB parts (v5e/v6e)."""
    try:
        cap = int(pltpu.get_tpu_info().vmem_capacity_bytes)
    except Exception:
        return 48 * 1024 * 1024
    if cap <= 64 * 1024 * 1024:
        return 48 * 1024 * 1024
    return 100 * 1024 * 1024


def pixel_gating_scale(feat_cat, p, *, row_tile_target=512):
    """feat_cat: (N, H, W, C*T) NHWC, already concatenated over the sequence."""
    N, H, W, CT = feat_cat.shape
    T = p["wpx"].shape[3]
    C = p["wcv"].shape[3]
    if W % 4:
        # TODO(synk): pad W on the host for production widths (38/19/10/5/3/1).
        raise NotImplementedError("pixel_gating_scale requires W % 4 == 0")

    # ---- Channel gate (global avg/max pool + fused 1x1 convs + sigmoid).
    # Global reduction is hoisted out of the row-tiled kernel (tiny, plain XLA).
    wcg = jnp.concatenate([p["wavg"], p["wmax"]], axis=0).astype(BF16)  # (2CT, CT)
    bcg = p["bavg"] + p["bmax"]                                         # (1, CT)
    avg = feat_cat.mean(axis=(1, 2))                                    # (N, CT)
    mx = feat_cat.max(axis=(1, 2))                                      # (N, CT)
    pooled = jnp.concatenate([avg, mx], axis=1).astype(BF16)            # (N, 2CT)
    cw = jax.nn.sigmoid(
        jnp.dot(pooled, wcg, preferred_element_type=jnp.float32) + bcg)
    cw = cw[:, None, :]                                                 # (N, 1, CT)

    # ---- Row tiling.  Zero-padding extra image rows is exact: 'same' conv
    # pads with zeros and zero features stay zero through both gates.
    rt = _choose_rt(H, W, row_tile_target)
    n_tiles = -(-H // rt)
    Hp = n_tiles * rt
    Lb, L2 = rt * W, (rt + 4) * W

    xf = feat_cat.astype(BF16).reshape(N, H * W, CT)
    if Hp != H:
        xf = jnp.pad(xf, ((0, 0), (0, (Hp - H) * W), (0, 0)))

    # Packed 3x3 conv weights (bf16 MXU operands).
    wpx = _pack_conv3x3(p["wpx"])                                       # (CT, 9T)
    wcv = _pack_conv3x3(p["wcv"])                                       # (CT, 9C)

    # Tile-invariant column-border masks for the widest extended block.
    col = jnp.arange(L2, dtype=jnp.int32) % W
    cmask = jnp.stack([col >= 1, col < W - 1], axis=1).astype(jnp.float32)

    def _run(single_buffer_consts):
        def const_spec(shape):
            idx = lambda n, r, _nd=len(shape): (0,) * _nd
            if single_buffer_consts:
                return pl.BlockSpec(shape, idx, pipeline_mode=pl.Buffered(1))
            return pl.BlockSpec(shape, idx)

        in_specs = [
            # tile body + 2-image-row halos (same array, three streams; halo
            # block indices are clamped -- fake rows are always masked).
            pl.BlockSpec((1, Lb, CT), lambda n, r: (n, r, 0)),
            pl.BlockSpec((1, 2 * W, CT),
                         lambda n, r: (n, jnp.maximum(r * (rt // 2) - 1, 0), 0)),
            pl.BlockSpec((1, 2 * W, CT),
                         lambda n, r: (n, jnp.minimum((r + 1) * (rt // 2),
                                                      Hp // 2 - 1), 0)),
            pl.BlockSpec((1, 1, CT), lambda n, r: (n, 0, 0)),   # channel gate
            const_spec((L2, 2)),                                # column masks
            const_spec((CT, 9 * T)), const_spec((1, T)),        # pixel-gate conv
            const_spec((CT, 9 * C)), const_spec((1, C)),        # output conv
        ]
        return pl.pallas_call(
            functools.partial(_gating_kernel, Hp, W, rt),
            out_shape=jax.ShapeDtypeStruct((N, Hp * W, C), jnp.float32),
            grid_spec=pltpu.PrefetchScalarGridSpec(
                num_scalar_prefetch=0,
                grid=(N, n_tiles),
                in_specs=in_specs,
                out_specs=pl.BlockSpec((1, Lb, C), lambda n, r: (n, r, 0)),
            ),
            compiler_params=pltpu.CompilerParams(
                dimension_semantics=("parallel", "parallel"),
                vmem_limit_bytes=_vmem_limit_bytes(),
            ),
        )(xf, xf, xf, cw, cmask, wpx, p["bpx"], wcv, p["bcv"])

    try:
        out = _run(True)
    except Exception:
        # pl.Buffered(1) single-buffering unsupported on this jax build.
        out = _run(False)

    return out[:, :H * W, :].reshape(N, H, W, C)


def pixel_gating_seperate_forward(x, params_list, gating_seq_len,
                                  row_tile_target=512):
    """x[seq][scale] -> list of per-scale gated outputs (NHWC)."""
    outs = []
    for s in range(len(params_list)):
        feats = [x[t][s] for t in range(gating_seq_len)]
        feat_cat = jnp.concatenate(feats, axis=-1)          # (N, H, W, C*T)
        outs.append(pixel_gating_scale(feat_cat, params_list[s],
                                       row_tile_target=row_tile_target))
    return outs


# ----------------------------------------------------------------------------
# Pure-JAX reference (standard conv formulation).  Matmul operands are cast to
# bf16 with f32 accumulation and the activations are quantized to bf16 once,
# mirroring the kernel's bf16 activation transport.
# ----------------------------------------------------------------------------
def _gating_ref(feat_cat, p):
    N, H, W, CT = feat_cat.shape
    T = p["wpx"].shape[3]
    chunk = CT // T

    avg = feat_cat.mean(axis=(1, 2))
    mx = feat_cat.max(axis=(1, 2))
    cg = (jnp.dot(avg.astype(BF16), p["wavg"].astype(BF16),
                  preferred_element_type=jnp.float32)
          + jnp.dot(mx.astype(BF16), p["wmax"].astype(BF16),
                    preferred_element_type=jnp.float32)
          + p["bavg"][0] + p["bmax"][0])
    cw = jax.nn.sigmoid(cg)

    feat_q = feat_cat.astype(BF16).astype(jnp.float32)
    feat_ch = feat_q * cw[:, None, None, :]

    def conv3x3(xx, w, b):
        cout = w.shape[-1]
        pad = jnp.pad(xx.astype(BF16), ((0, 0), (1, 1), (1, 1), (0, 0)))
        acc = jnp.zeros((N, H, W, cout), jnp.float32)
        for ky in range(3):
            for kx in range(3):
                acc = acc + jnp.einsum(
                    "nhwc,co->nhwo", pad[:, ky:ky + H, kx:kx + W, :],
                    w[ky, kx].astype(BF16),
                    preferred_element_type=jnp.float32)
        return acc + b[0]

    pw = jax.nn.sigmoid(conv3x3(feat_ch, p["wpx"], p["bpx"]))
    parts = [feat_ch[..., t * chunk:(t + 1) * chunk] * pw[..., t:t + 1]
             for t in range(T)]
    gated = jnp.concatenate(parts, axis=-1)
    return jax.nn.relu(conv3x3(gated, p["wcv"], p["bcv"]))


# ----------------------------------------------------------------------------
# Deterministic parameter init (synthetic, xavier-ish scale).
# ----------------------------------------------------------------------------
def make_params(key, in_channels, gating_seq_len):
    params_list = []
    for i, c in enumerate(in_channels):
        ct = c * gating_seq_len
        ks = jax.random.split(jax.random.fold_in(key, i), 8)
        sc1 = (6.0 / (2 * ct)) ** 0.5
        sc3p = (6.0 / (9 * (ct + gating_seq_len))) ** 0.5
        sc3c = (6.0 / (9 * (ct + c))) ** 0.5
        params_list.append(dict(
            wavg=jax.random.uniform(ks[0], (ct, ct), jnp.float32, -sc1, sc1),
            bavg=jax.random.uniform(ks[4], (1, ct), jnp.float32, -0.1, 0.1),
            wmax=jax.random.uniform(ks[1], (ct, ct), jnp.float32, -sc1, sc1),
            bmax=jax.random.uniform(ks[5], (1, ct), jnp.float32, -0.1, 0.1),
            wpx=jax.random.uniform(ks[2], (3, 3, ct, gating_seq_len),
                                   jnp.float32, -sc3p, sc3p),
            bpx=jax.random.uniform(ks[6], (1, gating_seq_len), jnp.float32,
                                   -0.1, 0.1),
            wcv=jax.random.uniform(ks[3], (3, 3, ct, c), jnp.float32, -sc3c, sc3c),
            bcv=jax.random.uniform(ks[7], (1, c), jnp.float32, -0.1, 0.1),
        ))
    return params_list


if __name__ == "__main__":
    # Small synthetic config consistent with the module: 3 scales, seq len 4.
    # row_tile_target=128 keeps the tiles small enough that scale 0 exercises
    # multi-tile halos and scale 2 exercises H padding (production would use
    # the default ~512-row tiles).
    in_channels = (16, 8, 8)
    feat_size = (32, 8, 12)
    gating_seq_len = 4
    batch = 2

    key = jax.random.PRNGKey(0)
    params_list = make_params(key, in_channels, gating_seq_len)

    # x[seq][scale] : NHWC features
    x = []
    for t in range(gating_seq_len):
        per_scale = []
        for s, (c, hw) in enumerate(zip(in_channels, feat_size)):
            k = jax.random.fold_in(jax.random.fold_in(key, 100 + t), s)
            per_scale.append(jax.random.normal(k, (batch, hw, hw, c), jnp.float32))
        x.append(per_scale)

    outs = pixel_gating_seperate_forward(x, params_list, gating_seq_len,
                                         row_tile_target=128)
    outs = [jax.block_until_ready(o) for o in outs]

    ok = True
    for s in range(len(in_channels)):
        feat_cat = jnp.concatenate([x[t][s] for t in range(gating_seq_len)],
                                   axis=-1)
        ref = _gating_ref(feat_cat, params_list[s])
        if not jnp.allclose(outs[s], ref, rtol=2e-2, atol=2e-2):
            ok = False
            print(f"scale {s}: max abs err = "
                  f"{float(jnp.max(jnp.abs(outs[s] - ref)))}")

    if ok:
        print("KERNEL_OK")
</pallas_src>

<mosaic_0001>
module attributes {stable_mosaic.version = 11 : i64} {
  func.func @_gating_kernel(%arg0: i32, %arg1: i32, %arg2: memref<1x128x64xbf16, #tpu.memory_space<vmem>>, %arg3: memref<1x64x64xbf16, #tpu.memory_space<vmem>>, %arg4: memref<1x64x64xbf16, #tpu.memory_space<vmem>>, %arg5: memref<1x1x64xf32, #tpu.memory_space<vmem>>, %arg6: memref<256x2xf32, #tpu.memory_space<vmem>>, %arg7: memref<64x36xbf16, #tpu.memory_space<vmem>>, %arg8: memref<1x4xf32, #tpu.memory_space<vmem>>, %arg9: memref<64x144xbf16, #tpu.memory_space<vmem>>, %arg10: memref<1x16xf32, #tpu.memory_space<vmem>>, %arg11: memref<1x128x16xf32, #tpu.memory_space<vmem>>) attributes {dimension_semantics = [#tpu.dimension_semantics<parallel>, #tpu.dimension_semantics<parallel>], iteration_bounds = array<i64: 2, 8>, scalar_prefetch = 0 : i64, scratch_operands = 0 : i64, tpu.core_type = #tpu.core_type<tc>, window_params = [{transform_indices = @transform_0, window_bounds = array<i64: 1, 128, 64>}, {transform_indices = @transform_1, window_bounds = array<i64: 1, 64, 64>}, {transform_indices = @transform_2, window_bounds = array<i64: 1, 64, 64>}, {transform_indices = @transform_3, window_bounds = array<i64: 1, 1, 64>}, {pipeline_mode = #tpu.pipeline_mode<synchronous>, transform_indices = @transform_4, window_bounds = array<i64: 256, 2>}, {pipeline_mode = #tpu.pipeline_mode<synchronous>, transform_indices = @transform_5, window_bounds = array<i64: 64, 36>}, {pipeline_mode = #tpu.pipeline_mode<synchronous>, transform_indices = @transform_6, window_bounds = array<i64: 1, 4>}, {pipeline_mode = #tpu.pipeline_mode<synchronous>, transform_indices = @transform_7, window_bounds = array<i64: 64, 144>}, {pipeline_mode = #tpu.pipeline_mode<synchronous>, transform_indices = @transform_8, window_bounds = array<i64: 1, 16>}, {transform_indices = @transform_9, window_bounds = array<i64: 1, 128, 16>}]} {
    %c4_i32 = arith.constant 4 : i32
    %0 = arith.muli %arg1, %c4_i32 : i32
    %c0 = arith.constant 0 : index
    %c0_0 = arith.constant 0 : index
    %c0_1 = arith.constant 0 : index
    %1 = vector.load %arg5[%c0, %c0_0, %c0_1] : memref<1x1x64xf32, #tpu.memory_space<vmem>>, vector<1x1x64xf32>
    %2 = vector.shape_cast %1 : vector<1x1x64xf32> to vector<1x64xf32>
    %c0_2 = arith.constant 0 : index
    %c0_3 = arith.constant 0 : index
    %c0_4 = arith.constant 0 : index
    %3 = vector.load %arg3[%c0_2, %c0_3, %c0_4] : memref<1x64x64xbf16, #tpu.memory_space<vmem>>, vector<1x64x64xbf16>
    %4 = vector.shape_cast %3 : vector<1x64x64xbf16> to vector<64x64xbf16>
    %c0_5 = arith.constant 0 : index
    %c0_6 = arith.constant 0 : index
    %c0_7 = arith.constant 0 : index
    %5 = vector.load %arg2[%c0_5, %c0_6, %c0_7] : memref<1x128x64xbf16, #tpu.memory_space<vmem>>, vector<1x128x64xbf16>
    %6 = vector.shape_cast %5 : vector<1x128x64xbf16> to vector<128x64xbf16>
    %c0_8 = arith.constant 0 : index
    %c0_9 = arith.constant 0 : index
    %c0_10 = arith.constant 0 : index
    %7 = vector.load %arg4[%c0_8, %c0_9, %c0_10] : memref<1x64x64xbf16, #tpu.memory_space<vmem>>, vector<1x64x64xbf16>
    %8 = vector.shape_cast %7 : vector<1x64x64xbf16> to vector<64x64xbf16>
    %9 = tpu.concatenate %4, %6, %8 in 0 : vector<64x64xbf16>, vector<128x64xbf16>, vector<64x64xbf16> -> vector<256x64xbf16>
    %10 = arith.extf %9 : vector<256x64xbf16> to vector<256x64xf32>
    %11 = vector.broadcast %2 : vector<1x64xf32> to vector<256x64xf32>
    %12 = arith.mulf %10, %11 : vector<256x64xf32>
    %13 = arith.truncf %12 : vector<256x64xf32> to vector<256x64xbf16>
    %c0_11 = arith.constant 0 : index
    %c0_12 = arith.constant 0 : index
    %14 = vector.load %arg6[%c0_11, %c0_12] : memref<256x2xf32, #tpu.memory_space<vmem>>, vector<256x1xf32>
    %cst = arith.constant 0.000000e+00 : f32
    %15 = vector.broadcast %cst : f32 to vector<256x1xf32>
    %16 = arith.cmpf ogt, %14, %15 : vector<256x1xf32>
    %c0_13 = arith.constant 0 : index
    %c1 = arith.constant 1 : index
    %17 = vector.load %arg6[%c0_13, %c1] : memref<256x2xf32, #tpu.memory_space<vmem>>, vector<256x1xf32>
    %cst_14 = arith.constant 0.000000e+00 : f32
    %18 = vector.broadcast %cst_14 : f32 to vector<256x1xf32>
    %19 = arith.cmpf ogt, %17, %18 : vector<256x1xf32>
    %20 = vector.extract_strided_slice %16 {offsets = [0, 0], sizes = [192, 1], strides = [1, 1]} : vector<256x1xi1> to vector<192x1xi1>
    %21 = vector.extract_strided_slice %19 {offsets = [0, 0], sizes = [192, 1], strides = [1, 1]} : vector<256x1xi1> to vector<192x1xi1>
    %22 = tpu.iota {dimensions = array<i32: 0>} : vector<192x1xi32>
    %23 = tpu.iota {dimensions = array<i32: 0>} : vector<128x1xi32>
    %c2_i32 = arith.constant 2 : i32
    %24 = arith.subi %c2_i32, %0 : i32
    %c32_i32 = arith.constant 32 : i32
    %25 = arith.muli %24, %c32_i32 : i32
    %26 = vector.broadcast %25 : i32 to vector<192x1xi32>
    %27 = arith.cmpi sge, %22, %26 : vector<192x1xi32>
    %c32_i32_15 = arith.constant 32 : i32
    %28 = arith.subi %c32_i32_15, %0 : i32
    %c32_i32_16 = arith.constant 32 : i32
    %29 = arith.muli %28, %c32_i32_16 : i32
    %30 = vector.broadcast %29 : i32 to vector<192x1xi32>
    %31 = arith.cmpi slt, %22, %30 : vector<192x1xi32>
    %c1_i32 = arith.constant 1 : i32
    %32 = arith.subi %c1_i32, %0 : i32
    %c32_i32_17 = arith.constant 32 : i32
    %33 = arith.muli %32, %c32_i32_17 : i32
    %34 = vector.broadcast %33 : i32 to vector<128x1xi32>
    %35 = arith.cmpi sge, %23, %34 : vector<128x1xi32>
    %c31_i32 = arith.constant 31 : i32
    %36 = arith.subi %c31_i32, %0 : i32
    %c32_i32_18 = arith.constant 32 : i32
    %37 = arith.muli %36, %c32_i32_18 : i32
    %38 = vector.broadcast %37 : i32 to vector<128x1xi32>
    %39 = arith.cmpi slt, %23, %38 : vector<128x1xi32>
    %c0_19 = arith.constant 0 : index
    %c0_20 = arith.constant 0 : index
    %40 = vector.load %arg7[%c0_19, %c0_20] : memref<64x36xbf16, #tpu.memory_space<vmem>>, vector<64x36xbf16>
    %cst_21 = arith.constant dense<0.000000e+00> : vector<256x36xf32>
    %41 = tpu.matmul %13, %40, %cst_21 {dimension_numbers = #tpu.dot_dimension_numbers<[1], [0], [0], [1], [0, 0, 1, 1], [], []>} : vector<256x64xbf16>, vector<64x36xbf16>, vector<256x36xf32> -> vector<256x36xf32>
    %42 = vector.extract_strided_slice %41 {offsets = [0, 0], sizes = [256, 12], strides = [1, 1]} : vector<256x36xf32> to vector<256x12xf32>
    %c1_i32_22 = arith.constant 1 : i32
    %43 = tpu.dynamic_rotate %42 by %c1_i32_22 dim 0 : vector<256x12xf32>, i32 -> vector<256x12xf32>
    %cst_23 = arith.constant 0.000000e+00 : f32
    %44 = vector.shape_cast %16 : vector<256x1xi1> to vector<256x1xi1>
    %45 = vector.broadcast %44 : vector<256x1xi1> to vector<256x12xi1>
    %46 = vector.broadcast %cst_23 : f32 to vector<256x12xf32>
    %47 = arith.select %45, %43, %46 : vector<256x12xi1>, vector<256x12xf32>
    %48 = vector.extract_strided_slice %41 {offsets = [0, 24], sizes = [256, 12], strides = [1, 1]} : vector<256x36xf32> to vector<256x12xf32>
    %c255_i32 = arith.constant 255 : i32
    %49 = tpu.dynamic_rotate %48 by %c255_i32 dim 0 : vector<256x12xf32>, i32 -> vector<256x12xf32>
    %cst_24 = arith.constant 0.000000e+00 : f32
    %50 = vector.shape_cast %19 : vector<256x1xi1> to vector<256x1xi1>
    %51 = vector.broadcast %50 : vector<256x1xi1> to vector<256x12xi1>
    %52 = vector.broadcast %cst_24 : f32 to vector<256x12xf32>
    %53 = arith.select %51, %49, %52 : vector<256x12xi1>, vector<256x12xf32>
    %54 = vector.extract_strided_slice %41 {offsets = [0, 12], sizes = [256, 12], strides = [1, 1]} : vector<256x36xf32> to vector<256x12xf32>
    %55 = arith.addf %47, %54 : vector<256x12xf32>
    %56 = arith.addf %55, %53 : vector<256x12xf32>
    %57 = vector.extract_strided_slice %56 {offsets = [0, 0], sizes = [192, 4], strides = [1, 1]} : vector<256x12xf32> to vector<192x4xf32>
    %cst_25 = arith.constant 0.000000e+00 : f32
    %58 = vector.shape_cast %27 : vector<192x1xi1> to vector<192x1xi1>
    %59 = vector.broadcast %58 : vector<192x1xi1> to vector<192x4xi1>
    %60 = vector.broadcast %cst_25 : f32 to vector<192x4xf32>
    %61 = arith.select %59, %57, %60 : vector<192x4xi1>, vector<192x4xf32>
    %62 = vector.extract_strided_slice %56 {offsets = [32, 4], sizes = [192, 4], strides = [1, 1]} : vector<256x12xf32> to vector<192x4xf32>
    %63 = vector.extract_strided_slice %56 {offsets = [64, 8], sizes = [192, 4], strides = [1, 1]} : vector<256x12xf32> to vector<192x4xf32>
    %cst_26 = arith.constant 0.000000e+00 : f32
    %64 = vector.shape_cast %31 : vector<192x1xi1> to vector<192x1xi1>
    %65 = vector.broadcast %64 : vector<192x1xi1> to vector<192x4xi1>
    %66 = vector.broadcast %cst_26 : f32 to vector<192x4xf32>
    %67 = arith.select %65, %63, %66 : vector<192x4xi1>, vector<192x4xf32>
    %68 = arith.addf %61, %62 : vector<192x4xf32>
    %69 = arith.addf %68, %67 : vector<192x4xf32>
    %c0_27 = arith.constant 0 : index
    %c0_28 = arith.constant 0 : index
    %70 = vector.load %arg8[%c0_27, %c0_28] : memref<1x4xf32, #tpu.memory_space<vmem>>, vector<1x4xf32>
    %71 = vector.broadcast %70 : vector<1x4xf32> to vector<192x4xf32>
    %72 = arith.addf %69, %71 : vector<192x4xf32>
    %73 = arith.negf %72 : vector<192x4xf32>
    %74 = math.exp %73 : vector<192x4xf32>
    %cst_29 = arith.constant 1.000000e+00 : f32
    %75 = vector.broadcast %cst_29 : f32 to vector<192x4xf32>
    %76 = arith.addf %75, %74 : vector<192x4xf32>
    %77 = arith.divf %75, %76 : vector<192x4xf32>
    %78 = vector.extract_strided_slice %13 {offsets = [32, 0], sizes = [192, 64], strides = [1, 1]} : vector<256x64xbf16> to vector<192x64xbf16>
    %cst_30 = arith.constant 0.000000e+00 : f32
    %79 = vector.broadcast %cst_30 : f32 to vector<192x144xf32>
    %80 = vector.extract_strided_slice %78 {offsets = [0, 0], sizes = [192, 16], strides = [1, 1]} : vector<192x64xbf16> to vector<192x16xbf16>
    %81 = vector.extract_strided_slice %77 {offsets = [0, 0], sizes = [192, 1], strides = [1, 1]} : vector<192x4xf32> to vector<192x1xf32>
    %82 = arith.extf %80 : vector<192x16xbf16> to vector<192x16xf32>
    %83 = vector.broadcast %81 : vector<192x1xf32> to vector<192x16xf32>
    %84 = arith.mulf %82, %83 : vector<192x16xf32>
    %85 = arith.truncf %84 : vector<192x16xf32> to vector<192x16xbf16>
    %c0_31 = arith.constant 0 : index
    %c0_32 = arith.constant 0 : index
    %86 = vector.load %arg9[%c0_31, %c0_32] : memref<64x144xbf16, #tpu.memory_space<vmem>>, vector<16x144xbf16>
    %cst_33 = arith.constant dense<0.000000e+00> : vector<192x144xf32>
    %87 = tpu.matmul %85, %86, %cst_33 {dimension_numbers = #tpu.dot_dimension_numbers<[1], [0], [0], [1], [0, 0, 1, 1], [], []>} : vector<192x16xbf16>, vector<16x144xbf16>, vector<192x144xf32> -> vector<192x144xf32>
    %88 = arith.addf %79, %87 : vector<192x144xf32>
    %89 = vector.extract_strided_slice %78 {offsets = [0, 16], sizes = [192, 16], strides = [1, 1]} : vector<192x64xbf16> to vector<192x16xbf16>
    %90 = vector.extract_strided_slice %77 {offsets = [0, 1], sizes = [192, 1], strides = [1, 1]} : vector<192x4xf32> to vector<192x1xf32>
    %91 = arith.extf %89 : vector<192x16xbf16> to vector<192x16xf32>
    %92 = vector.broadcast %90 : vector<192x1xf32> to vector<192x16xf32>
    %93 = arith.mulf %91, %92 : vector<192x16xf32>
    %94 = arith.truncf %93 : vector<192x16xf32> to vector<192x16xbf16>
    %c16 = arith.constant 16 : index
    %c0_34 = arith.constant 0 : index
    %95 = vector.load %arg9[%c16, %c0_34] : memref<64x144xbf16, #tpu.memory_space<vmem>>, vector<16x144xbf16>
    %cst_35 = arith.constant dense<0.000000e+00> : vector<192x144xf32>
    %96 = tpu.matmul %94, %95, %cst_35 {dimension_numbers = #tpu.dot_dimension_numbers<[1], [0], [0], [1], [0, 0, 1, 1], [], []>} : vector<192x16xbf16>, vector<16x144xbf16>, vector<192x144xf32> -> vector<192x144xf32>
    %97 = arith.addf %88, %96 : vector<192x144xf32>
    %98 = vector.extract_strided_slice %78 {offsets = [0, 32], sizes = [192, 16], strides = [1, 1]} : vector<192x64xbf16> to vector<192x16xbf16>
    %99 = vector.extract_strided_slice %77 {offsets = [0, 2], sizes = [192, 1], strides = [1, 1]} : vector<192x4xf32> to vector<192x1xf32>
    %100 = arith.extf %98 : vector<192x16xbf16> to vector<192x16xf32>
    %101 = vector.broadcast %99 : vector<192x1xf32> to vector<192x16xf32>
    %102 = arith.mulf %100, %101 : vector<192x16xf32>
    %103 = arith.truncf %102 : vector<192x16xf32> to vector<192x16xbf16>
    %c32 = arith.constant 32 : index
    %c0_36 = arith.constant 0 : index
    %104 = vector.load %arg9[%c32, %c0_36] : memref<64x144xbf16, #tpu.memory_space<vmem>>, vector<16x144xbf16>
    %cst_37 = arith.constant dense<0.000000e+00> : vector<192x144xf32>
    %105 = tpu.matmul %103, %104, %cst_37 {dimension_numbers = #tpu.dot_dimension_numbers<[1], [0], [0], [1], [0, 0, 1, 1], [], []>} : vector<192x16xbf16>, vector<16x144xbf16>, vector<192x144xf32> -> vector<192x144xf32>
    %106 = arith.addf %97, %105 : vector<192x144xf32>
    %107 = vector.extract_strided_slice %78 {offsets = [0, 48], sizes = [192, 16], strides = [1, 1]} : vector<192x64xbf16> to vector<192x16xbf16>
    %108 = vector.extract_strided_slice %77 {offsets = [0, 3], sizes = [192, 1], strides = [1, 1]} : vector<192x4xf32> to vector<192x1xf32>
    %109 = arith.extf %107 : vector<192x16xbf16> to vector<192x16xf32>
    %110 = vector.broadcast %108 : vector<192x1xf32> to vector<192x16xf32>
    %111 = arith.mulf %109, %110 : vector<192x16xf32>
    %112 = arith.truncf %111 : vector<192x16xf32> to vector<192x16xbf16>
    %c48 = arith.constant 48 : index
    %c0_38 = arith.constant 0 : index
    %113 = vector.load %arg9[%c48, %c0_38] : memref<64x144xbf16, #tpu.memory_space<vmem>>, vector<16x144xbf16>
    %cst_39 = arith.constant dense<0.000000e+00> : vector<192x144xf32>
    %114 = tpu.matmul %112, %113, %cst_39 {dimension_numbers = #tpu.dot_dimension_numbers<[1], [0], [0], [1], [0, 0, 1, 1], [], []>} : vector<192x16xbf16>, vector<16x144xbf16>, vector<192x144xf32> -> vector<192x144xf32>
    %115 = arith.addf %106, %114 : vector<192x144xf32>
    %116 = vector.extract_strided_slice %115 {offsets = [0, 0], sizes = [192, 48], strides = [1, 1]} : vector<192x144xf32> to vector<192x48xf32>
    %c1_i32_40 = arith.constant 1 : i32
    %117 = tpu.dynamic_rotate %116 by %c1_i32_40 dim 0 : vector<192x48xf32>, i32 -> vector<192x48xf32>
    %cst_41 = arith.constant 0.000000e+00 : f32
    %118 = vector.shape_cast %20 : vector<192x1xi1> to vector<192x1xi1>
    %119 = vector.broadcast %118 : vector<192x1xi1> to vector<192x48xi1>
    %120 = vector.broadcast %cst_41 : f32 to vector<192x48xf32>
    %121 = arith.select %119, %117, %120 : vector<192x48xi1>, vector<192x48xf32>
    %122 = vector.extract_strided_slice %115 {offsets = [0, 96], sizes = [192, 48], strides = [1, 1]} : vector<192x144xf32> to vector<192x48xf32>
    %c191_i32 = arith.constant 191 : i32
    %123 = tpu.dynamic_rotate %122 by %c191_i32 dim 0 : vector<192x48xf32>, i32 -> vector<192x48xf32>
    %cst_42 = arith.constant 0.000000e+00 : f32
    %124 = vector.shape_cast %21 : vector<192x1xi1> to vector<192x1xi1>
    %125 = vector.broadcast %124 : vector<192x1xi1> to vector<192x48xi1>
    %126 = vector.broadcast %cst_42 : f32 to vector<192x48xf32>
    %127 = arith.select %125, %123, %126 : vector<192x48xi1>, vector<192x48xf32>
    %128 = vector.extract_strided_slice %115 {offsets = [0, 48], sizes = [192, 48], strides = [1, 1]} : vector<192x144xf32> to vector<192x48xf32>
    %129 = arith.addf %121, %128 : vector<192x48xf32>
    %130 = arith.addf %129, %127 : vector<192x48xf32>
    %131 = vector.extract_strided_slice %130 {offsets = [0, 0], sizes = [128, 16], strides = [1, 1]} : vector<192x48xf32> to vector<128x16xf32>
    %cst_43 = arith.constant 0.000000e+00 : f32
    %132 = vector.shape_cast %35 : vector<128x1xi1> to vector<128x1xi1>
    %133 = vector.broadcast %132 : vector<128x1xi1> to vector<128x16xi1>
    %134 = vector.broadcast %cst_43 : f32 to vector<128x16xf32>
    %135 = arith.select %133, %131, %134 : vector<128x16xi1>, vector<128x16xf32>
    %136 = vector.extract_strided_slice %130 {offsets = [32, 16], sizes = [128, 16], strides = [1, 1]} : vector<192x48xf32> to vector<128x16xf32>
    %137 = vector.extract_strided_slice %130 {offsets = [64, 32], sizes = [128, 16], strides = [1, 1]} : vector<192x48xf32> to vector<128x16xf32>
    %cst_44 = arith.constant 0.000000e+00 : f32
    %138 = vector.shape_cast %39 : vector<128x1xi1> to vector<128x1xi1>
    %139 = vector.broadcast %138 : vector<128x1xi1> to vector<128x16xi1>
    %140 = vector.broadcast %cst_44 : f32 to vector<128x16xf32>
    %141 = arith.select %139, %137, %140 : vector<128x16xi1>, vector<128x16xf32>
    %142 = arith.addf %135, %136 : vector<128x16xf32>
    %143 = arith.addf %142, %141 : vector<128x16xf32>
    %c0_45 = arith.constant 0 : index
    %c0_46 = arith.constant 0 : index
    %144 = vector.load %arg10[%c0_45, %c0_46] : memref<1x16xf32, #tpu.memory_space<vmem>>, vector<1x16xf32>
    %145 = vector.broadcast %144 : vector<1x16xf32> to vector<128x16xf32>
    %146 = arith.addf %143, %145 : vector<128x16xf32>
    %cst_47 = arith.constant 0.000000e+00 : f32
    %147 = vector.broadcast %cst_47 : f32 to vector<128x16xf32>
    %148 = arith.maximumf %146, %147 : vector<128x16xf32>
    %c0_48 = arith.constant 0 : index
    %c0_49 = arith.constant 0 : index
    %c0_50 = arith.constant 0 : index
    %149 = vector.load %arg11[%c0_48, %c0_49, %c0_50] : memref<1x128x16xf32, #tpu.memory_space<vmem>>, vector<1x128x16xf32>
    %150 = vector.shape_cast %149 : vector<1x128x16xf32> to vector<128x16xf32>
    %151 = vector.shape_cast %148 : vector<128x16xf32> to vector<1x128x16xf32>
    tpu.vector_store %arg11[%c0_48, %c0_49, %c0_50], %151 {strides = array<i32>} : memref<1x128x16xf32, #tpu.memory_space<vmem>>, vector<1x128x16xf32>,
    return
  }
  func.func @transform_0(%arg0: i32, %arg1: i32) -> (i32, i32, i32) {
    %c0_i32 = arith.constant 0 : i32
    %c0_i32_0 = arith.constant 0 : i32
    return %arg0, %arg1, %c0_i32 : i32, i32, i32
  }
  func.func @transform_1(%arg0: i32, %arg1: i32) -> (i32, i32, i32) {
    %c2_i32 = arith.constant 2 : i32
    %0 = arith.muli %arg1, %c2_i32 : i32
    %c1_i32 = arith.constant 1 : i32
    %1 = arith.subi %0, %c1_i32 : i32
    %c0_i32 = arith.constant 0 : i32
    %2 = arith.maxsi %1, %c0_i32 : i32
    %c0_i32_0 = arith.constant 0 : i32
    %c0_i32_1 = arith.constant 0 : i32
    return %arg0, %2, %c0_i32_0 : i32, i32, i32
  }
  func.func @transform_2(%arg0: i32, %arg1: i32) -> (i32, i32, i32) {
    %c1_i32 = arith.constant 1 : i32
    %0 = arith.addi %arg1, %c1_i32 : i32
    %c2_i32 = arith.constant 2 : i32
    %1 = arith.muli %0, %c2_i32 : i32
    %c15_i32 = arith.constant 15 : i32
    %2 = arith.minsi %1, %c15_i32 : i32
    %c0_i32 = arith.constant 0 : i32
    %c0_i32_0 = arith.constant 0 : i32
    return %arg0, %2, %c0_i32 : i32, i32, i32
  }
  func.func @transform_3(%arg0: i32, %arg1: i32) -> (i32, i32, i32) {
    %c0_i32 = arith.constant 0 : i32
    %c0_i32_0 = arith.constant 0 : i32
    %c0_i32_1 = arith.constant 0 : i32
    return %arg0, %c0_i32, %c0_i32_0 : i32, i32, i32
  }
  func.func @transform_4(%arg0: i32, %arg1: i32) -> (i32, i32) {
    %c0_i32 = arith.constant 0 : i32
    %c0_i32_0 = arith.constant 0 : i32
    %c0_i32_1 = arith.constant 0 : i32
    return %c0_i32, %c0_i32_0 : i32, i32
  }
  func.func @transform_5(%arg0: i32, %arg1: i32) -> (i32, i32) {
    %c0_i32 = arith.constant 0 : i32
    %c0_i32_0 = arith.constant 0 : i32
    %c0_i32_1 = arith.constant 0 : i32
    return %c0_i32, %c0_i32_0 : i32, i32
  }
  func.func @transform_6(%arg0: i32, %arg1: i32) -> (i32, i32) {
    %c0_i32 = arith.constant 0 : i32
    %c0_i32_0 = arith.constant 0 : i32
    %c0_i32_1 = arith.constant 0 : i32
    return %c0_i32, %c0_i32_0 : i32, i32
  }
  func.func @transform_7(%arg0: i32, %arg1: i32) -> (i32, i32) {
    %c0_i32 = arith.constant 0 : i32
    %c0_i32_0 = arith.constant 0 : i32
    %c0_i32_1 = arith.constant 0 : i32
    return %c0_i32, %c0_i32_0 : i32, i32
  }
  func.func @transform_8(%arg0: i32, %arg1: i32) -> (i32, i32) {
    %c0_i32 = arith.constant 0 : i32
    %c0_i32_0 = arith.constant 0 : i32
    %c0_i32_1 = arith.constant 0 : i32
    return %c0_i32, %c0_i32_0 : i32, i32
  }
  func.func @transform_9(%arg0: i32, %arg1: i32) -> (i32, i32, i32) {
    %c0_i32 = arith.constant 0 : i32
    %c0_i32_0 = arith.constant 0 : i32
    return %arg0, %arg1, %c0_i32 : i32, i32, i32
  }
}

module attributes {stable_mosaic.version = 11 : i64} {
  func.func @_gating_kernel(%arg0: i32, %arg1: i32, %arg2: memref<1x128x64xbf16, #tpu.memory_space<vmem>>, %arg3: memref<1x64x64xbf16, #tpu.memory_space<vmem>>, %arg4: memref<1x64x64xbf16, #tpu.memory_space<vmem>>, %arg5: memref<1x1x64xf32, #tpu.memory_space<vmem>>, %arg6: memref<256x2xf32, #tpu.memory_space<vmem>>, %arg7: memref<64x36xbf16, #tpu.memory_space<vmem>>, %arg8: memref<1x4xf32, #tpu.memory_space<vmem>>, %arg9: memref<64x144xbf16, #tpu.memory_space<vmem>>, %arg10: memref<1x16xf32, #tpu.memory_space<vmem>>, %arg11: memref<1x128x16xf32, #tpu.memory_space<vmem>>) attributes {dimension_semantics = [#tpu.dimension_semantics<parallel>, #tpu.dimension_semantics<parallel>], iteration_bounds = array<i64: 2, 8>, scalar_prefetch = 0 : i64, scratch_operands = 0 : i64, tpu.core_type = #tpu.core_type<tc>, window_params = [{transform_indices = @transform_0, window_bounds = array<i64: 1, 128, 64>}, {transform_indices = @transform_1, window_bounds = array<i64: 1, 64, 64>}, {transform_indices = @transform_2, window_bounds = array<i64: 1, 64, 64>}, {transform_indices = @transform_3, window_bounds = array<i64: 1, 1, 64>}, {pipeline_mode = #tpu.pipeline_mode<synchronous>, transform_indices = @transform_4, window_bounds = array<i64: 256, 2>}, {pipeline_mode = #tpu.pipeline_mode<synchronous>, transform_indices = @transform_5, window_bounds = array<i64: 64, 36>}, {pipeline_mode = #tpu.pipeline_mode<synchronous>, transform_indices = @transform_6, window_bounds = array<i64: 1, 4>}, {pipeline_mode = #tpu.pipeline_mode<synchronous>, transform_indices = @transform_7, window_bounds = array<i64: 64, 144>}, {pipeline_mode = #tpu.pipeline_mode<synchronous>, transform_indices = @transform_8, window_bounds = array<i64: 1, 16>}, {transform_indices = @transform_9, window_bounds = array<i64: 1, 128, 16>}]} {
    %c4_i32 = arith.constant 4 : i32
    %0 = arith.muli %arg1, %c4_i32 : i32
    %c0 = arith.constant 0 : index
    %c0_0 = arith.constant 0 : index
    %c0_1 = arith.constant 0 : index
    %1 = vector.load %arg5[%c0, %c0_0, %c0_1] : memref<1x1x64xf32, #tpu.memory_space<vmem>>, vector<1x1x64xf32>
    %2 = vector.shape_cast %1 : vector<1x1x64xf32> to vector<1x64xf32>
    %c0_2 = arith.constant 0 : index
    %c0_3 = arith.constant 0 : index
    %c0_4 = arith.constant 0 : index
    %3 = vector.load %arg3[%c0_2, %c0_3, %c0_4] : memref<1x64x64xbf16, #tpu.memory_space<vmem>>, vector<1x64x64xbf16>
    %4 = vector.shape_cast %3 : vector<1x64x64xbf16> to vector<64x64xbf16>
    %c0_5 = arith.constant 0 : index
    %c0_6 = arith.constant 0 : index
    %c0_7 = arith.constant 0 : index
    %5 = vector.load %arg2[%c0_5, %c0_6, %c0_7] : memref<1x128x64xbf16, #tpu.memory_space<vmem>>, vector<1x128x64xbf16>
    %6 = vector.shape_cast %5 : vector<1x128x64xbf16> to vector<128x64xbf16>
    %c0_8 = arith.constant 0 : index
    %c0_9 = arith.constant 0 : index
    %c0_10 = arith.constant 0 : index
    %7 = vector.load %arg4[%c0_8, %c0_9, %c0_10] : memref<1x64x64xbf16, #tpu.memory_space<vmem>>, vector<1x64x64xbf16>
    %8 = vector.shape_cast %7 : vector<1x64x64xbf16> to vector<64x64xbf16>
    %9 = tpu.concatenate %4, %6, %8 in 0 : vector<64x64xbf16>, vector<128x64xbf16>, vector<64x64xbf16> -> vector<256x64xbf16>
    %10 = arith.extf %9 : vector<256x64xbf16> to vector<256x64xf32>
    %11 = vector.broadcast %2 : vector<1x64xf32> to vector<256x64xf32>
    %12 = arith.mulf %10, %11 : vector<256x64xf32>
    %13 = arith.truncf %12 : vector<256x64xf32> to vector<256x64xbf16>
    %c0_11 = arith.constant 0 : index
    %c0_12 = arith.constant 0 : index
    %14 = vector.load %arg6[%c0_11, %c0_12] : memref<256x2xf32, #tpu.memory_space<vmem>>, vector<256x1xf32>
    %cst = arith.constant 0.000000e+00 : f32
    %15 = vector.broadcast %cst : f32 to vector<256x1xf32>
    %16 = arith.cmpf ogt, %14, %15 : vector<256x1xf32>
    %c0_13 = arith.constant 0 : index
    %c1 = arith.constant 1 : index
    %17 = vector.load %arg6[%c0_13, %c1] : memref<256x2xf32, #tpu.memory_space<vmem>>, vector<256x1xf32>
    %cst_14 = arith.constant 0.000000e+00 : f32
    %18 = vector.broadcast %cst_14 : f32 to vector<256x1xf32>
    %19 = arith.cmpf ogt, %17, %18 : vector<256x1xf32>
    %20 = vector.extract_strided_slice %16 {offsets = [0, 0], sizes = [192, 1], strides = [1, 1]} : vector<256x1xi1> to vector<192x1xi1>
    %21 = vector.extract_strided_slice %19 {offsets = [0, 0], sizes = [192, 1], strides = [1, 1]} : vector<256x1xi1> to vector<192x1xi1>
    %22 = tpu.iota {dimensions = array<i32: 0>} : vector<192x1xi32>
    %23 = tpu.iota {dimensions = array<i32: 0>} : vector<128x1xi32>
    %c2_i32 = arith.constant 2 : i32
    %24 = arith.subi %c2_i32, %0 : i32
    %c32_i32 = arith.constant 32 : i32
    %25 = arith.muli %24, %c32_i32 : i32
    %26 = vector.broadcast %25 : i32 to vector<192x1xi32>
    %27 = arith.cmpi sge, %22, %26 : vector<192x1xi32>
    %c32_i32_15 = arith.constant 32 : i32
    %28 = arith.subi %c32_i32_15, %0 : i32
    %c32_i32_16 = arith.constant 32 : i32
    %29 = arith.muli %28, %c32_i32_16 : i32
    %30 = vector.broadcast %29 : i32 to vector<192x1xi32>
    %31 = arith.cmpi slt, %22, %30 : vector<192x1xi32>
    %c1_i32 = arith.constant 1 : i32
    %32 = arith.subi %c1_i32, %0 : i32
    %c32_i32_17 = arith.constant 32 : i32
    %33 = arith.muli %32, %c32_i32_17 : i32
    %34 = vector.broadcast %33 : i32 to vector<128x1xi32>
    %35 = arith.cmpi sge, %23, %34 : vector<128x1xi32>
    %c31_i32 = arith.constant 31 : i32
    %36 = arith.subi %c31_i32, %0 : i32
    %c32_i32_18 = arith.constant 32 : i32
    %37 = arith.muli %36, %c32_i32_18 : i32
    %38 = vector.broadcast %37 : i32 to vector<128x1xi32>
    %39 = arith.cmpi slt, %23, %38 : vector<128x1xi32>
    %c0_19 = arith.constant 0 : index
    %c0_20 = arith.constant 0 : index
    %40 = vector.load %arg7[%c0_19, %c0_20] : memref<64x36xbf16, #tpu.memory_space<vmem>>, vector<64x36xbf16>
    %cst_21 = arith.constant dense<0.000000e+00> : vector<256x36xf32>
    %41 = tpu.matmul %13, %40, %cst_21 {dimension_numbers = #tpu.dot_dimension_numbers<[1], [0], [0], [1], [0, 0, 1, 1], [], []>} : vector<256x64xbf16>, vector<64x36xbf16>, vector<256x36xf32> -> vector<256x36xf32>
    %42 = vector.extract_strided_slice %41 {offsets = [0, 0], sizes = [256, 12], strides = [1, 1]} : vector<256x36xf32> to vector<256x12xf32>
    %c1_i32_22 = arith.constant 1 : i32
    %43 = tpu.dynamic_rotate %42 by %c1_i32_22 dim 0 : vector<256x12xf32>, i32 -> vector<256x12xf32>
    %cst_23 = arith.constant 0.000000e+00 : f32
    %44 = vector.shape_cast %16 : vector<256x1xi1> to vector<256x1xi1>
    %45 = vector.broadcast %44 : vector<256x1xi1> to vector<256x12xi1>
    %46 = vector.broadcast %cst_23 : f32 to vector<256x12xf32>
    %47 = arith.select %45, %43, %46 : vector<256x12xi1>, vector<256x12xf32>
    %48 = vector.extract_strided_slice %41 {offsets = [0, 24], sizes = [256, 12], strides = [1, 1]} : vector<256x36xf32> to vector<256x12xf32>
    %c255_i32 = arith.constant 255 : i32
    %49 = tpu.dynamic_rotate %48 by %c255_i32 dim 0 : vector<256x12xf32>, i32 -> vector<256x12xf32>
    %cst_24 = arith.constant 0.000000e+00 : f32
    %50 = vector.shape_cast %19 : vector<256x1xi1> to vector<256x1xi1>
    %51 = vector.broadcast %50 : vector<256x1xi1> to vector<256x12xi1>
    %52 = vector.broadcast %cst_24 : f32 to vector<256x12xf32>
    %53 = arith.select %51, %49, %52 : vector<256x12xi1>, vector<256x12xf32>
    %54 = vector.extract_strided_slice %41 {offsets = [0, 12], sizes = [256, 12], strides = [1, 1]} : vector<256x36xf32> to vector<256x12xf32>
    %55 = arith.addf %47, %54 : vector<256x12xf32>
    %56 = arith.addf %55, %53 : vector<256x12xf32>
    %57 = vector.extract_strided_slice %56 {offsets = [0, 0], sizes = [192, 4], strides = [1, 1]} : vector<256x12xf32> to vector<192x4xf32>
    %cst_25 = arith.constant 0.000000e+00 : f32
    %58 = vector.shape_cast %27 : vector<192x1xi1> to vector<192x1xi1>
    %59 = vector.broadcast %58 : vector<192x1xi1> to vector<192x4xi1>
    %60 = vector.broadcast %cst_25 : f32 to vector<192x4xf32>
    %61 = arith.select %59, %57, %60 : vector<192x4xi1>, vector<192x4xf32>
    %62 = vector.extract_strided_slice %56 {offsets = [32, 4], sizes = [192, 4], strides = [1, 1]} : vector<256x12xf32> to vector<192x4xf32>
    %63 = vector.extract_strided_slice %56 {offsets = [64, 8], sizes = [192, 4], strides = [1, 1]} : vector<256x12xf32> to vector<192x4xf32>
    %cst_26 = arith.constant 0.000000e+00 : f32
    %64 = vector.shape_cast %31 : vector<192x1xi1> to vector<192x1xi1>
    %65 = vector.broadcast %64 : vector<192x1xi1> to vector<192x4xi1>
    %66 = vector.broadcast %cst_26 : f32 to vector<192x4xf32>
    %67 = arith.select %65, %63, %66 : vector<192x4xi1>, vector<192x4xf32>
    %68 = arith.addf %61, %62 : vector<192x4xf32>
    %69 = arith.addf %68, %67 : vector<192x4xf32>
    %c0_27 = arith.constant 0 : index
    %c0_28 = arith.constant 0 : index
    %70 = vector.load %arg8[%c0_27, %c0_28] : memref<1x4xf32, #tpu.memory_space<vmem>>, vector<1x4xf32>
    %71 = vector.broadcast %70 : vector<1x4xf32> to vector<192x4xf32>
    %72 = arith.addf %69, %71 : vector<192x4xf32>
    %73 = arith.negf %72 : vector<192x4xf32>
    %74 = math.exp %73 : vector<192x4xf32>
    %cst_29 = arith.constant 1.000000e+00 : f32
    %75 = vector.broadcast %cst_29 : f32 to vector<192x4xf32>
    %76 = arith.addf %75, %74 : vector<192x4xf32>
    %77 = arith.divf %75, %76 : vector<192x4xf32>
    %78 = vector.extract_strided_slice %13 {offsets = [32, 0], sizes = [192, 64], strides = [1, 1]} : vector<256x64xbf16> to vector<192x64xbf16>
    %cst_30 = arith.constant 0.000000e+00 : f32
    %79 = vector.broadcast %cst_30 : f32 to vector<192x144xf32>
    %80 = vector.extract_strided_slice %78 {offsets = [0, 0], sizes = [192, 16], strides = [1, 1]} : vector<192x64xbf16> to vector<192x16xbf16>
    %81 = vector.extract_strided_slice %77 {offsets = [0, 0], sizes = [192, 1], strides = [1, 1]} : vector<192x4xf32> to vector<192x1xf32>
    %82 = arith.extf %80 : vector<192x16xbf16> to vector<192x16xf32>
    %83 = vector.broadcast %81 : vector<192x1xf32> to vector<192x16xf32>
    %84 = arith.mulf %82, %83 : vector<192x16xf32>
    %85 = arith.truncf %84 : vector<192x16xf32> to vector<192x16xbf16>
    %c0_31 = arith.constant 0 : index
    %c0_32 = arith.constant 0 : index
    %86 = vector.load %arg9[%c0_31, %c0_32] : memref<64x144xbf16, #tpu.memory_space<vmem>>, vector<16x144xbf16>
    %cst_33 = arith.constant dense<0.000000e+00> : vector<192x144xf32>
    %87 = tpu.matmul %85, %86, %cst_33 {dimension_numbers = #tpu.dot_dimension_numbers<[1], [0], [0], [1], [0, 0, 1, 1], [], []>} : vector<192x16xbf16>, vector<16x144xbf16>, vector<192x144xf32> -> vector<192x144xf32>
    %88 = arith.addf %79, %87 : vector<192x144xf32>
    %89 = vector.extract_strided_slice %78 {offsets = [0, 16], sizes = [192, 16], strides = [1, 1]} : vector<192x64xbf16> to vector<192x16xbf16>
    %90 = vector.extract_strided_slice %77 {offsets = [0, 1], sizes = [192, 1], strides = [1, 1]} : vector<192x4xf32> to vector<192x1xf32>
    %91 = arith.extf %89 : vector<192x16xbf16> to vector<192x16xf32>
    %92 = vector.broadcast %90 : vector<192x1xf32> to vector<192x16xf32>
    %93 = arith.mulf %91, %92 : vector<192x16xf32>
    %94 = arith.truncf %93 : vector<192x16xf32> to vector<192x16xbf16>
    %c16 = arith.constant 16 : index
    %c0_34 = arith.constant 0 : index
    %95 = vector.load %arg9[%c16, %c0_34] : memref<64x144xbf16, #tpu.memory_space<vmem>>, vector<16x144xbf16>
    %cst_35 = arith.constant dense<0.000000e+00> : vector<192x144xf32>
    %96 = tpu.matmul %94, %95, %cst_35 {dimension_numbers = #tpu.dot_dimension_numbers<[1], [0], [0], [1], [0, 0, 1, 1], [], []>} : vector<192x16xbf16>, vector<16x144xbf16>, vector<192x144xf32> -> vector<192x144xf32>
    %97 = arith.addf %88, %96 : vector<192x144xf32>
    %98 = vector.extract_strided_slice %78 {offsets = [0, 32], sizes = [192, 16], strides = [1, 1]} : vector<192x64xbf16> to vector<192x16xbf16>
    %99 = vector.extract_strided_slice %77 {offsets = [0, 2], sizes = [192, 1], strides = [1, 1]} : vector<192x4xf32> to vector<192x1xf32>
    %100 = arith.extf %98 : vector<192x16xbf16> to vector<192x16xf32>
    %101 = vector.broadcast %99 : vector<192x1xf32> to vector<192x16xf32>
    %102 = arith.mulf %100, %101 : vector<192x16xf32>
    %103 = arith.truncf %102 : vector<192x16xf32> to vector<192x16xbf16>
    %c32 = arith.constant 32 : index
    %c0_36 = arith.constant 0 : index
    %104 = vector.load %arg9[%c32, %c0_36] : memref<64x144xbf16, #tpu.memory_space<vmem>>, vector<16x144xbf16>
    %cst_37 = arith.constant dense<0.000000e+00> : vector<192x144xf32>
    %105 = tpu.matmul %103, %104, %cst_37 {dimension_numbers = #tpu.dot_dimension_numbers<[1], [0], [0], [1], [0, 0, 1, 1], [], []>} : vector<192x16xbf16>, vector<16x144xbf16>, vector<192x144xf32> -> vector<192x144xf32>
    %106 = arith.addf %97, %105 : vector<192x144xf32>
    %107 = vector.extract_strided_slice %78 {offsets = [0, 48], sizes = [192, 16], strides = [1, 1]} : vector<192x64xbf16> to vector<192x16xbf16>
    %108 = vector.extract_strided_slice %77 {offsets = [0, 3], sizes = [192, 1], strides = [1, 1]} : vector<192x4xf32> to vector<192x1xf32>
    %109 = arith.extf %107 : vector<192x16xbf16> to vector<192x16xf32>
    %110 = vector.broadcast %108 : vector<192x1xf32> to vector<192x16xf32>
    %111 = arith.mulf %109, %110 : vector<192x16xf32>
    %112 = arith.truncf %111 : vector<192x16xf32> to vector<192x16xbf16>
    %c48 = arith.constant 48 : index
    %c0_38 = arith.constant 0 : index
    %113 = vector.load %arg9[%c48, %c0_38] : memref<64x144xbf16, #tpu.memory_space<vmem>>, vector<16x144xbf16>
    %cst_39 = arith.constant dense<0.000000e+00> : vector<192x144xf32>
    %114 = tpu.matmul %112, %113, %cst_39 {dimension_numbers = #tpu.dot_dimension_numbers<[1], [0], [0], [1], [0, 0, 1, 1], [], []>} : vector<192x16xbf16>, vector<16x144xbf16>, vector<192x144xf32> -> vector<192x144xf32>
    %115 = arith.addf %106, %114 : vector<192x144xf32>
    %116 = vector.extract_strided_slice %115 {offsets = [0, 0], sizes = [192, 48], strides = [1, 1]} : vector<192x144xf32> to vector<192x48xf32>
    %c1_i32_40 = arith.constant 1 : i32
    %117 = tpu.dynamic_rotate %116 by %c1_i32_40 dim 0 : vector<192x48xf32>, i32 -> vector<192x48xf32>
    %cst_41 = arith.constant 0.000000e+00 : f32
    %118 = vector.shape_cast %20 : vector<192x1xi1> to vector<192x1xi1>
    %119 = vector.broadcast %118 : vector<192x1xi1> to vector<192x48xi1>
    %120 = vector.broadcast %cst_41 : f32 to vector<192x48xf32>
    %121 = arith.select %119, %117, %120 : vector<192x48xi1>, vector<192x48xf32>
    %122 = vector.extract_strided_slice %115 {offsets = [0, 96], sizes = [192, 48], strides = [1, 1]} : vector<192x144xf32> to vector<192x48xf32>
    %c191_i32 = arith.constant 191 : i32
    %123 = tpu.dynamic_rotate %122 by %c191_i32 dim 0 : vector<192x48xf32>, i32 -> vector<192x48xf32>
    %cst_42 = arith.constant 0.000000e+00 : f32
    %124 = vector.shape_cast %21 : vector<192x1xi1> to vector<192x1xi1>
    %125 = vector.broadcast %124 : vector<192x1xi1> to vector<192x48xi1>
    %126 = vector.broadcast %cst_42 : f32 to vector<192x48xf32>
    %127 = arith.select %125, %123, %126 : vector<192x48xi1>, vector<192x48xf32>
    %128 = vector.extract_strided_slice %115 {offsets = [0, 48], sizes = [192, 48], strides = [1, 1]} : vector<192x144xf32> to vector<192x48xf32>
    %129 = arith.addf %121, %128 : vector<192x48xf32>
    %130 = arith.addf %129, %127 : vector<192x48xf32>
    %131 = vector.extract_strided_slice %130 {offsets = [0, 0], sizes = [128, 16], strides = [1, 1]} : vector<192x48xf32> to vector<128x16xf32>
    %cst_43 = arith.constant 0.000000e+00 : f32
    %132 = vector.shape_cast %35 : vector<128x1xi1> to vector<128x1xi1>
    %133 = vector.broadcast %132 : vector<128x1xi1> to vector<128x16xi1>
    %134 = vector.broadcast %cst_43 : f32 to vector<128x16xf32>
    %135 = arith.select %133, %131, %134 : vector<128x16xi1>, vector<128x16xf32>
    %136 = vector.extract_strided_slice %130 {offsets = [32, 16], sizes = [128, 16], strides = [1, 1]} : vector<192x48xf32> to vector<128x16xf32>
    %137 = vector.extract_strided_slice %130 {offsets = [64, 32], sizes = [128, 16], strides = [1, 1]} : vector<192x48xf32> to vector<128x16xf32>
    %cst_44 = arith.constant 0.000000e+00 : f32
    %138 = vector.shape_cast %39 : vector<128x1xi1> to vector<128x1xi1>
    %139 = vector.broadcast %138 : vector<128x1xi1> to vector<128x16xi1>
    %140 = vector.broadcast %cst_44 : f32 to vector<128x16xf32>
    %141 = arith.select %139, %137, %140 : vector<128x16xi1>, vector<128x16xf32>
    %142 = arith.addf %135, %136 : vector<128x16xf32>
    %143 = arith.addf %142, %141 : vector<128x16xf32>
    %c0_45 = arith.constant 0 : index
    %c0_46 = arith.constant 0 : index
    %144 = vector.load %arg10[%c0_45, %c0_46] : memref<1x16xf32, #tpu.memory_space<vmem>>, vector<1x16xf32>
    %145 = vector.broadcast %144 : vector<1x16xf32> to vector<128x16xf32>
    %146 = arith.addf %143, %145 : vector<128x16xf32>
    %cst_47 = arith.constant 0.000000e+00 : f32
    %147 = vector.broadcast %cst_47 : f32 to vector<128x16xf32>
    %148 = arith.maximumf %146, %147 : vector<128x16xf32>
    %c0_48 = arith.constant 0 : index
    %c0_49 = arith.constant 0 : index
    %c0_50 = arith.constant 0 : index
    %149 = vector.load %arg11[%c0_48, %c0_49, %c0_50] : memref<1x128x16xf32, #tpu.memory_space<vmem>>, vector<1x128x16xf32>
    %150 = vector.shape_cast %149 : vector<1x128x16xf32> to vector<128x16xf32>
    %151 = vector.shape_cast %148 : vector<128x16xf32> to vector<1x128x16xf32>
    tpu.vector_store %arg11[%c0_48, %c0_49, %c0_50], %151 {strides = array<i32>} : memref<1x128x16xf32, #tpu.memory_space<vmem>>, vector<1x128x16xf32>,
    return
  }
  func.func @transform_0(%arg0: i32, %arg1: i32) -> (i32, i32, i32) {
    %c0_i32 = arith.constant 0 : i32
    %c0_i32_0 = arith.constant 0 : i32
    return %arg0, %arg1, %c0_i32 : i32, i32, i32
  }
  func.func @transform_1(%arg0: i32, %arg1: i32) -> (i32, i32, i32) {
    %c2_i32 = arith.constant 2 : i32
    %0 = arith.muli %arg1, %c2_i32 : i32
    %c1_i32 = arith.constant 1 : i32
    %1 = arith.subi %0, %c1_i32 : i32
    %c0_i32 = arith.constant 0 : i32
    %2 = arith.maxsi %1, %c0_i32 : i32
    %c0_i32_0 = arith.constant 0 : i32
    %c0_i32_1 = arith.constant 0 : i32
    return %arg0, %2, %c0_i32_0 : i32, i32, i32
  }
  func.func @transform_2(%arg0: i32, %arg1: i32) -> (i32, i32, i32) {
    %c1_i32 = arith.constant 1 : i32
    %0 = arith.addi %arg1, %c1_i32 : i32
    %c2_i32 = arith.constant 2 : i32
    %1 = arith.muli %0, %c2_i32 : i32
    %c15_i32 = arith.constant 15 : i32
    %2 = arith.minsi %1, %c15_i32 : i32
    %c0_i32 = arith.constant 0 : i32
    %c0_i32_0 = arith.constant 0 : i32
    return %arg0, %2, %c0_i32 : i32, i32, i32
  }
  func.func @transform_3(%arg0: i32, %arg1: i32) -> (i32, i32, i32) {
    %c0_i32 = arith.constant 0 : i32
    %c0_i32_0 = arith.constant 0 : i32
    %c0_i32_1 = arith.constant 0 : i32
    return %arg0, %c0_i32, %c0_i32_0 : i32, i32, i32
  }
  func.func @transform_4(%arg0: i32, %arg1: i32) -> (i32, i32) {
    %c0_i32 = arith.constant 0 : i32
    %c0_i32_0 = arith.constant 0 : i32
    %c0_i32_1 = arith.constant 0 : i32
    return %c0_i32, %c0_i32_0 : i32, i32
  }
  func.func @transform_5(%arg0: i32, %arg1: i32) -> (i32, i32) {
    %c0_i32 = arith.constant 0 : i32
    %c0_i32_0 = arith.constant 0 : i32
    %c0_i32_1 = arith.constant 0 : i32
    return %c0_i32, %c0_i32_0 : i32, i32
  }
  func.func @transform_6(%arg0: i32, %arg1: i32) -> (i32, i32) {
    %c0_i32 = arith.constant 0 : i32
    %c0_i32_0 = arith.constant 0 : i32
    %c0_i32_1 = arith.constant 0 : i32
    return %c0_i32, %c0_i32_0 : i32, i32
  }
  func.func @transform_7(%arg0: i32, %arg1: i32) -> (i32, i32) {
    %c0_i32 = arith.constant 0 : i32
    %c0_i32_0 = arith.constant 0 : i32
    %c0_i32_1 = arith.constant 0 : i32
    return %c0_i32, %c0_i32_0 : i32, i32
  }
  func.func @transform_8(%arg0: i32, %arg1: i32) -> (i32, i32) {
    %c0_i32 = arith.constant 0 : i32
    %c0_i32_0 = arith.constant 0 : i32
    %c0_i32_1 = arith.constant 0 : i32
    return %c0_i32, %c0_i32_0 : i32, i32
  }
  func.func @transform_9(%arg0: i32, %arg1: i32) -> (i32, i32, i32) {
    %c0_i32 = arith.constant 0 : i32
    %c0_i32_0 = arith.constant 0 : i32
    return %arg0, %arg1, %c0_i32 : i32, i32, i32
  }
}

</mosaic_0001>

<llo_original>
// kernel: tpu_custom_call.1
$region0: #{tpu_custom_call.1}
  #allocation0 [shape = 'u32[]', space=smem, size = 0x4, offset = 0x4, fixed_abs, tag = 'smem constant byte address 0x4 - core index']
  #allocation1 [shape = 'u32[72,128]{1,0:T(1,128)}', space=vmem, size = 0x9000, scoped, tag = 'internal scratch']
  %s0 = inlined_call_operand.vmem [shape: bf16[2,1024,64], index: 0, kind: input, shape index: {}]
  %s1 = inlined_call_operand.vmem [shape: bf16[2,1024,64], index: 1, kind: input, shape index: {}]
  %s2 = inlined_call_operand.vmem [shape: bf16[2,1024,64], index: 2, kind: input, shape index: {}]
  %s3 = inlined_call_operand.vmem [shape: f32[2,1,64], index: 3, kind: input, shape index: {}]
  %s4 = inlined_call_operand.vmem [shape: f32[256,2], index: 4, kind: input, shape index: {}]
  %s5 = inlined_call_operand.vmem [shape: bf16[64,36], index: 5, kind: input, shape index: {}]
  %s6 = inlined_call_operand.vmem [shape: f32[1,4], index: 6, kind: input, shape index: {}]
  %s7 = inlined_call_operand.vmem [shape: bf16[64,144], index: 7, kind: input, shape index: {}]
  %s8 = inlined_call_operand.vmem [shape: f32[1,16], index: 8, kind: input, shape index: {}]
  %s9 = inlined_call_operand.vmem [shape: f32[2,1024,16], index: 9, kind: output, shape index: {}]
  %s10 = sld [smem:[#allocation0]]
  $region69: #{tpu_custom_call.1} parent=0
    _
  %s12 = ssub.s32 1, %s10
  %s13 = scalar_select 0, %s12, %s10
  loop: start=0, step=1, limit=18
  $region2: #{tpu_custom_call.1} parent=0 // loop_pre_header
    _
  $region3: #{tpu_custom_call.1} parent=0 // loop_header
    %s15 = sphi 0, %s19
    %p16 = scmp.ge.s32.totalorder %s15, 18
    %s22 = sphi 0, %s34
    %s23 = sphi 0, %s30
    %s24 = sphi 0, %s22
    %s25 = sphi 0, %s23
    %s26 = sphi 0, %s24
    %s27 = sphi 0, %s25
    %s39 = sphi 0, %s41
    %s42 = sphi 0, %s39
    %s43 = sphi 0, %s42
    %s59 = sphi 0, %s43
    %s75 = sphi 0, %s77
    %s78 = sphi 0, %s75
    %s79 = sphi 0, %s78
    %s95 = sphi 0, %s79
    %s111 = sphi 0, %s113
    %s114 = sphi 0, %s111
    %s115 = sphi 0, %s114
    %s131 = sphi 0, %s115
    %s137 = sphi 0, %s139
    %s140 = sphi 0, %s137
    %s141 = sphi 0, %s140
    %s157 = sphi 0, %s141
    %s161 = sphi 0, %s161
    %s163 = sphi 0, %s161
    %s164 = sphi 0, %s163
    %s178 = sphi 0, %s164
    %s182 = sphi 0, %s182
    %s184 = sphi 0, %s182
    %s185 = sphi 0, %s184
    %s199 = sphi 0, %s185
    %s203 = sphi 0, %s203
    %s205 = sphi 0, %s203
    %s206 = sphi 0, %s205
    %s220 = sphi 0, %s206
    %s224 = sphi 0, %s224
    %s226 = sphi 0, %s224
    %s227 = sphi 0, %s226
    %s241 = sphi 0, %s227
    %s245 = sphi 0, %s245
    %s247 = sphi 0, %s245
    %s248 = sphi 0, %s247
    %s262 = sphi 0, %s248
    %s270 = sphi 0, %s272
    %s273 = sphi 0, %s270
    %s274 = sphi 0, %s273
    %s290 = sphi 0, %s274
  $region4: #{tpu_custom_call.1} parent=0 // loop_header_branch
    %18 = sbr.rel (%p16) target = $region8
  $region5: #{tpu_custom_call.1} parent=0 // loop_body
    %s20 = ssub.s32 %s15, 1
    %s21 = ssub.s32 %s15, 2
    %s28 = sadd.s32 1, %s23
    %p29 = scmp.ge.s32.totalorder %s28, 8
    %s30 = scalar_select %p29, 0, %s28
    %s31 = sadd.s32 1, %s22
    %s32 = scalar_select %p29, %s31, %s22
    %p33 = scmp.ge.s32.totalorder %s32, 2
    %s34 = scalar_select %p33, 0, %s32
    %s35 = ssub.s32 %s22, %s34
    %s36 = ssub.s32 %s23, %s30
    %s37 = sor.u32 %s35, %s36
    %p38 = scmp.eq.s32.totalorder %s37, 0
    %s40 = sadd.s32 %s39, 1
    %s41 = scalar_select %p38, %s39, %s40
    %p44 = pneg %p38
    %p45 = scmp.eq.s32.totalorder %s15, 15
    %p46 = por %p44, %p45
    %p47 = scmp.ne.s32.totalorder %s39, %s42
    %p48 = scmp.eq.s32.totalorder %s15, 0
    %p49 = por %p47, %p48
    %p50 = scmp.ne.s32.totalorder %s39, %s42
    %p51 = scmp.eq.s32.totalorder %s20, 15
    %p52 = por %p50, %p51
    %p53 = scmp.ne.s32.totalorder %s42, %s43
    %p54 = scmp.eq.s32.totalorder %s20, 0
    %p55 = por %p53, %p54
    %p56 = scmp.ne.s32.totalorder %s42, %s43
    %p57 = scmp.eq.s32.totalorder %s21, 15
    %p58 = por %p56, %p57
    %p60 = scmp.ne.s32.totalorder %s43, %s59
    %p61 = scmp.eq.s32.totalorder %s21, 0
    %p62 = por %p60, %p61
    %s63 = smul.u32 %s23, 2
    %s64 = ssub.s32 %s63, 1
    %p65 = scmp.gt.s32.totalorder %s64, 0
    %s66 = scalar_select %p65, %s64, 0
    %s67 = smul.u32 %s30, 2
    %s68 = ssub.s32 %s67, 1
    %p69 = scmp.gt.s32.totalorder %s68, 0
    %s70 = scalar_select %p69, %s68, 0
    %s71 = ssub.s32 %s22, %s34
    %s72 = ssub.s32 %s66, %s70
    %s73 = sor.u32 %s71, %s72
    %p74 = scmp.eq.s32.totalorder %s73, 0
    %s76 = sadd.s32 %s75, 1
    %s77 = scalar_select %p74, %s75, %s76
    %p80 = pneg %p74
    %p81 = scmp.eq.s32.totalorder %s15, 15
    %p82 = por %p80, %p81
    %p83 = scmp.ne.s32.totalorder %s75, %s78
    %p84 = scmp.eq.s32.totalorder %s15, 0
    %p85 = por %p83, %p84
    %p86 = scmp.ne.s32.totalorder %s75, %s78
    %p87 = scmp.eq.s32.totalorder %s20, 15
    %p88 = por %p86, %p87
    %p89 = scmp.ne.s32.totalorder %s78, %s79
    %p90 = scmp.eq.s32.totalorder %s20, 0
    %p91 = por %p89, %p90
    %p92 = scmp.ne.s32.totalorder %s78, %s79
    %p93 = scmp.eq.s32.totalorder %s21, 15
    %p94 = por %p92, %p93
    %p96 = scmp.ne.s32.totalorder %s79, %s95
    %p97 = scmp.eq.s32.totalorder %s21, 0
    %p98 = por %p96, %p97
    %s99 = sadd.s32 %s23, 1
    %s100 = smul.u32 %s99, 2
    %p101 = scmp.lt.s32.totalorder %s100, 15
    %s102 = scalar_select %p101, %s100, 15
    %s103 = sadd.s32 %s30, 1
    %s104 = smul.u32 %s103, 2
    %p105 = scmp.lt.s32.totalorder %s104, 15
    %s106 = scalar_select %p105, %s104, 15
    %s107 = ssub.s32 %s22, %s34
    %s108 = ssub.s32 %s102, %s106
    %s109 = sor.u32 %s107, %s108
    %p110 = scmp.eq.s32.totalorder %s109, 0
    %s112 = sadd.s32 %s111, 1
    %s113 = scalar_select %p110, %s111, %s112
    %p116 = pneg %p110
    %p117 = scmp.eq.s32.totalorder %s15, 15
    %p118 = por %p116, %p117
    %p119 = scmp.ne.s32.totalorder %s111, %s114
    %p120 = scmp.eq.s32.totalorder %s15, 0
    %p121 = por %p119, %p120
    %p122 = scmp.ne.s32.totalorder %s111, %s114
    %p123 = scmp.eq.s32.totalorder %s20, 15
    %p124 = por %p122, %p123
    %p125 = scmp.ne.s32.totalorder %s114, %s115
    %p126 = scmp.eq.s32.totalorder %s20, 0
    %p127 = por %p125, %p126
    %p128 = scmp.ne.s32.totalorder %s114, %s115
    %p129 = scmp.eq.s32.totalorder %s21, 15
    %p130 = por %p128, %p129
    %p132 = scmp.ne.s32.totalorder %s115, %s131
    %p133 = scmp.eq.s32.totalorder %s21, 0
    %p134 = por %p132, %p133
    %s135 = ssub.s32 %s22, %s34
    %p136 = scmp.eq.s32.totalorder %s135, 0
    %s138 = sadd.s32 %s137, 1
    %s139 = scalar_select %p136, %s137, %s138
    %p142 = pneg %p136
    %p143 = scmp.eq.s32.totalorder %s15, 15
    %p144 = por %p142, %p143
    %p145 = scmp.ne.s32.totalorder %s137, %s140
    %p146 = scmp.eq.s32.totalorder %s15, 0
    %p147 = por %p145, %p146
    %p148 = scmp.ne.s32.totalorder %s137, %s140
    %p149 = scmp.eq.s32.totalorder %s20, 15
    %p150 = por %p148, %p149
    %p151 = scmp.ne.s32.totalorder %s140, %s141
    %p152 = scmp.eq.s32.totalorder %s20, 0
    %p153 = por %p151, %p152
    %p154 = scmp.ne.s32.totalorder %s140, %s141
    %p155 = scmp.eq.s32.totalorder %s21, 15
    %p156 = por %p154, %p155
    %p158 = scmp.ne.s32.totalorder %s141, %s157
    %p159 = scmp.eq.s32.totalorder %s21, 0
    %p160 = por %p158, %p159
    %s162 = sadd.s32 %s161, 1
    %p165 = scmp.eq.s32.totalorder %s15, 15
    %p166 = scmp.ne.s32.totalorder %s161, %s163
    %p167 = scmp.eq.s32.totalorder %s15, 0
    %p168 = por %p166, %p167
    %p169 = scmp.ne.s32.totalorder %s161, %s163
    %p170 = scmp.eq.s32.totalorder %s20, 15
    %p171 = por %p169, %p170
    %p172 = scmp.ne.s32.totalorder %s163, %s164
    %p173 = scmp.eq.s32.totalorder %s20, 0
    %p174 = por %p172, %p173
    %p175 = scmp.ne.s32.totalorder %s163, %s164
    %p176 = scmp.eq.s32.totalorder %s21, 15
    %p177 = por %p175, %p176
    %p179 = scmp.ne.s32.totalorder %s164, %s178
    %p180 = scmp.eq.s32.totalorder %s21, 0
    %p181 = por %p179, %p180
    %s183 = sadd.s32 %s182, 1
    %p186 = scmp.eq.s32.totalorder %s15, 15
    %p187 = scmp.ne.s32.totalorder %s182, %s184
    %p188 = scmp.eq.s32.totalorder %s15, 0
    %p189 = por %p187, %p188
    %p190 = scmp.ne.s32.totalorder %s182, %s184
    %p191 = scmp.eq.s32.totalorder %s20, 15
    %p192 = por %p190, %p191
    %p193 = scmp.ne.s32.totalorder %s184, %s185
    %p194 = scmp.eq.s32.totalorder %s20, 0
    %p195 = por %p193, %p194
    %p196 = scmp.ne.s32.totalorder %s184, %s185
    %p197 = scmp.eq.s32.totalorder %s21, 15
    %p198 = por %p196, %p197
    %p200 = scmp.ne.s32.totalorder %s185, %s199
    %p201 = scmp.eq.s32.totalorder %s21, 0
    %p202 = por %p200, %p201
    %s204 = sadd.s32 %s203, 1
    %p207 = scmp.eq.s32.totalorder %s15, 15
    %p208 = scmp.ne.s32.totalorder %s203, %s205
    %p209 = scmp.eq.s32.totalorder %s15, 0
    %p210 = por %p208, %p209
    %p211 = scmp.ne.s32.totalorder %s203, %s205
    %p212 = scmp.eq.s32.totalorder %s20, 15
    %p213 = por %p211, %p212
    %p214 = scmp.ne.s32.totalorder %s205, %s206
    %p215 = scmp.eq.s32.totalorder %s20, 0
    %p216 = por %p214, %p215
    %p217 = scmp.ne.s32.totalorder %s205, %s206
    %p218 = scmp.eq.s32.totalorder %s21, 15
    %p219 = por %p217, %p218
    %p221 = scmp.ne.s32.totalorder %s206, %s220
    %p222 = scmp.eq.s32.totalorder %s21, 0
    %p223 = por %p221, %p222
    %s225 = sadd.s32 %s224, 1
    %p228 = scmp.eq.s32.totalorder %s15, 15
    %p229 = scmp.ne.s32.totalorder %s224, %s226
    %p230 = scmp.eq.s32.totalorder %s15, 0
    %p231 = por %p229, %p230
    %p232 = scmp.ne.s32.totalorder %s224, %s226
    %p233 = scmp.eq.s32.totalorder %s20, 15
    %p234 = por %p232, %p233
    %p235 = scmp.ne.s32.totalorder %s226, %s227
    %p236 = scmp.eq.s32.totalorder %s20, 0
    %p237 = por %p235, %p236
    %p238 = scmp.ne.s32.totalorder %s226, %s227
    %p239 = scmp.eq.s32.totalorder %s21, 15
    %p240 = por %p238, %p239
    %p242 = scmp.ne.s32.totalorder %s227, %s241
    %p243 = scmp.eq.s32.totalorder %s21, 0
    %p244 = por %p242, %p243
    %s246 = sadd.s32 %s245, 1
    %p249 = scmp.eq.s32.totalorder %s15, 15
    %p250 = scmp.ne.s32.totalorder %s245, %s247
    %p251 = scmp.eq.s32.totalorder %s15, 0
    %p252 = por %p250, %p251
    %p253 = scmp.ne.s32.totalorder %s245, %s247
    %p254 = scmp.eq.s32.totalorder %s20, 15
    %p255 = por %p253, %p254
    %p256 = scmp.ne.s32.totalorder %s247, %s248
    %p257 = scmp.eq.s32.totalorder %s20, 0
    %p258 = por %p256, %p257
    %p259 = scmp.ne.s32.totalorder %s247, %s248
    %p260 = scmp.eq.s32.totalorder %s21, 15
    %p261 = por %p259, %p260
    %p263 = scmp.ne.s32.totalorder %s248, %s262
    %p264 = scmp.eq.s32.totalorder %s21, 0
    %p265 = por %p263, %p264
    %s266 = ssub.s32 %s22, %s34
    %s267 = ssub.s32 %s23, %s30
    %s268 = sor.u32 %s266, %s267
    %p269 = scmp.eq.s32.totalorder %s268, 0
    %s271 = sadd.s32 %s270, 1
    %s272 = scalar_select %p269, %s270, %s271
    %p275 = pneg %p269
    %p276 = scmp.eq.s32.totalorder %s15, 15
    %p277 = por %p275, %p276
    %p278 = scmp.ne.s32.totalorder %s270, %s273
    %p279 = scmp.eq.s32.totalorder %s15, 0
    %p280 = por %p278, %p279
    %p281 = scmp.ne.s32.totalorder %s270, %s273
    %p282 = scmp.eq.s32.totalorder %s20, 15
    %p283 = por %p281, %p282
    %p284 = scmp.ne.s32.totalorder %s273, %s274
    %p285 = scmp.eq.s32.totalorder %s20, 0
    %p286 = por %p284, %p285
    %p287 = scmp.ne.s32.totalorder %s273, %s274
    %p288 = scmp.eq.s32.totalorder %s21, 15
    %p289 = por %p287, %p288
    %p291 = scmp.ne.s32.totalorder %s274, %s290
    %p292 = scmp.eq.s32.totalorder %s21, 0
    %p293 = por %p291, %p292
    %p294 = scmp.le.s32.totalorder 1, %s15
    %p295 = scmp.lt.s32.totalorder %s15, 17
    %p296 = pnand %p294, %p295
    %p297 = pneg %p296
    // Predicated region
    $region9: #{tpu_custom_call.1} parent=5 // pred_check
      _
    $region10: #{tpu_custom_call.1} parent=5 // pred_check_branch
      %299 = sbr.rel (%p296) target = $region12
    $region11: #{tpu_custom_call.1} parent=5 // pred_region
      %s300 = ssub.s32 %s15, 1
      // Predicated region
      $region13: #{tpu_custom_call.1} parent=11 // pred_check
        %p301 = pneg %p174
      $region14: #{tpu_custom_call.1} parent=11 // pred_check_branch
        %303 = sbr.rel (%p301) target = $region16
      $region15: #{tpu_custom_call.1} parent=11 // pred_region
        _
      $region16: #{tpu_custom_call.1} parent=11 // pred_fallthru
        _
      // Predicated region
      $region17: #{tpu_custom_call.1} parent=11 // pred_check
        %p304 = pneg %p195
      $region18: #{tpu_custom_call.1} parent=11 // pred_check_branch
        %306 = sbr.rel (%p304) target = $region20
      $region19: #{tpu_custom_call.1} parent=11 // pred_region
        _
      $region20: #{tpu_custom_call.1} parent=11 // pred_fallthru
        _
      // Predicated region
      $region21: #{tpu_custom_call.1} parent=11 // pred_check
        %p307 = pneg %p216
      $region22: #{tpu_custom_call.1} parent=11 // pred_check_branch
        %309 = sbr.rel (%p307) target = $region24
      $region23: #{tpu_custom_call.1} parent=11 // pred_region
        _
      $region24: #{tpu_custom_call.1} parent=11 // pred_fallthru
        _
      // Predicated region
      $region25: #{tpu_custom_call.1} parent=11 // pred_check
        %p310 = pneg %p237
      $region26: #{tpu_custom_call.1} parent=11 // pred_check_branch
        %312 = sbr.rel (%p310) target = $region28
      $region27: #{tpu_custom_call.1} parent=11 // pred_region
        _
      $region28: #{tpu_custom_call.1} parent=11 // pred_fallthru
        _
      // Predicated region
      $region29: #{tpu_custom_call.1} parent=11 // pred_check
        %p313 = pneg %p258
      $region30: #{tpu_custom_call.1} parent=11 // pred_check_branch
        %315 = sbr.rel (%p313) target = $region32
      $region31: #{tpu_custom_call.1} parent=11 // pred_region
        _
      $region32: #{tpu_custom_call.1} parent=11 // pred_fallthru
        _
    $region12: #{tpu_custom_call.1} parent=5 // pred_fallthru
      _
    %p316 = scmp.lt.s32.totalorder %s15, 16
    // Predicated region
    $region33: #{tpu_custom_call.1} parent=5 // pred_check
      %p317 = pneg %p316
    $region34: #{tpu_custom_call.1} parent=5 // pred_check_branch
      %319 = sbr.rel (%p317) target = $region36
    $region35: #{tpu_custom_call.1} parent=5 // pred_region
      // Predicated region
      $region37: #{tpu_custom_call.1} parent=35 // pred_check
        %p320 = pneg %p49
      $region38: #{tpu_custom_call.1} parent=35 // pred_check_branch
        %322 = sbr.rel (%p320) target = $region40
      $region39: #{tpu_custom_call.1} parent=35 // pred_region
        %s323 = smul.u32 16, %s23
        %p324 = scmp.lt.s32.totalorder %s22, 1
        %s325 = scalar_select %p324, %s22, 1
        %p326 = scmp.lt.s32.totalorder %s323, 127
        %s327 = scalar_select %p326, %s323, 127
        %s328 = smul.addr %s325, 128
        %s329 = sadd.s32 %s327, %s328
        %s330 = smul.addr %s329, 4
        %s331 = scalar_lea.vmem %s0, %s330
        %s332 = smul.u32 16, %s23
      $region40: #{tpu_custom_call.1} parent=35 // pred_fallthru
        _
      // Predicated region
      $region41: #{tpu_custom_call.1} parent=35 // pred_check
        %p333 = pneg %p85
      $region42: #{tpu_custom_call.1} parent=35 // pred_check_branch
        %335 = sbr.rel (%p333) target = $region44
      $region43: #{tpu_custom_call.1} parent=35 // pred_region
        %s336 = smul.u32 %s23, 2
        %s337 = ssub.s32 %s336, 1
        %p338 = scmp.gt.s32.totalorder %s337, 0
        %s339 = scalar_select %p338, %s337, 0
        %s340 = smul.u32 8, %s339
        %p341 = scmp.lt.s32.totalorder %s22, 1
        %s342 = scalar_select %p341, %s22, 1
        %p343 = scmp.lt.s32.totalorder %s340, 127
        %s344 = scalar_select %p343, %s340, 127
        %s345 = smul.addr %s342, 128
        %s346 = sadd.s32 %s344, %s345
        %s347 = smul.addr %s346, 4
        %s348 = scalar_lea.vmem %s1, %s347
        %s349 = smul.u32 %s23, 2
        %s350 = ssub.s32 %s349, 1
        %p351 = scmp.gt.s32.totalorder %s350, 0
        %s352 = scalar_select %p351, %s350, 0
        %s353 = smul.u32 8, %s352
      $region44: #{tpu_custom_call.1} parent=35 // pred_fallthru
        _
      // Predicated region
      $region45: #{tpu_custom_call.1} parent=35 // pred_check
        %p354 = pneg %p121
      $region46: #{tpu_custom_call.1} parent=35 // pred_check_branch
        %356 = sbr.rel (%p354) target = $region48
      $region47: #{tpu_custom_call.1} parent=35 // pred_region
        %s357 = sadd.s32 %s23, 1
        %s358 = smul.u32 %s357, 2
        %p359 = scmp.lt.s32.totalorder %s358, 15
        %s360 = scalar_select %p359, %s358, 15
        %s361 = smul.u32 8, %s360
        %p362 = scmp.lt.s32.totalorder %s22, 1
        %s363 = scalar_select %p362, %s22, 1
        %p364 = scmp.lt.s32.totalorder %s361, 127
        %s365 = scalar_select %p364, %s361, 127
        %s366 = smul.addr %s363, 128
        %s367 = sadd.s32 %s365, %s366
        %s368 = smul.addr %s367, 4
        %s369 = scalar_lea.vmem %s2, %s368
        %s370 = sadd.s32 %s23, 1
        %s371 = smul.u32 %s370, 2
        %p372 = scmp.lt.s32.totalorder %s371, 15
        %s373 = scalar_select %p372, %s371, 15
        %s374 = smul.u32 8, %s373
      $region48: #{tpu_custom_call.1} parent=35 // pred_fallthru
        _
      // Predicated region
      $region49: #{tpu_custom_call.1} parent=35 // pred_check
        %p375 = pneg %p147
      $region50: #{tpu_custom_call.1} parent=35 // pred_check_branch
        %377 = sbr.rel (%p375) target = $region52
      $region51: #{tpu_custom_call.1} parent=35 // pred_region
        %p378 = scmp.lt.s32.totalorder %s22, 1
        %s379 = scalar_select %p378, %s22, 1
        %s380 = scalar_lea.vmem %s3, %s379
      $region52: #{tpu_custom_call.1} parent=35 // pred_fallthru
        _
    $region36: #{tpu_custom_call.1} parent=5 // pred_fallthru
      _
    %p381 = scmp.le.s32.totalorder 1, %s15
    %p382 = scmp.lt.s32.totalorder %s15, 17
    %p383 = pnand %p381, %p382
    %p384 = pneg %p383
    // Predicated region
    $region53: #{tpu_custom_call.1} parent=5 // pred_check
      _
    $region54: #{tpu_custom_call.1} parent=5 // pred_check_branch
      %386 = sbr.rel (%p383) target = $region56
    $region55: #{tpu_custom_call.1} parent=5 // pred_region
      %s387 = ssub.s32 %s15, 1
      %s388 = smul.u32 16, %s25
      %p389 = scmp.lt.s32.totalorder %s24, 1
      %s390 = scalar_select %p389, %s24, 1
      %p391 = scmp.lt.s32.totalorder %s388, 127
      %s392 = scalar_select %p391, %s388, 127
      %s393 = smul.addr %s390, 128
      %s394 = sadd.s32 %s392, %s393
      %s395 = smul.addr %s394, 4
      %s396 = scalar_lea.vmem %s0, %s395
      %p397 = pneg %p55
      %p398 = pneg %p52
      %s399 = smul.u32 %s25, 2
      %s400 = ssub.s32 %s399, 1
      %p401 = scmp.gt.s32.totalorder %s400, 0
      %s402 = scalar_select %p401, %s400, 0
      %s403 = smul.u32 8, %s402
      %p404 = scmp.lt.s32.totalorder %s24, 1
      %s405 = scalar_select %p404, %s24, 1
      %p406 = scmp.lt.s32.totalorder %s403, 127
      %s407 = scalar_select %p406, %s403, 127
      %s408 = smul.addr %s405, 128
      %s409 = sadd.s32 %s407, %s408
      %s410 = smul.addr %s409, 4
      %s411 = scalar_lea.vmem %s1, %s410
      %p412 = pneg %p91
      %p413 = pneg %p88
      %s414 = sadd.s32 %s25, 1
      %s415 = smul.u32 %s414, 2
      %p416 = scmp.lt.s32.totalorder %s415, 15
      %s417 = scalar_select %p416, %s415, 15
      %s418 = smul.u32 8, %s417
      %p419 = scmp.lt.s32.totalorder %s24, 1
      %s420 = scalar_select %p419, %s24, 1
      %p421 = scmp.lt.s32.totalorder %s418, 127
      %s422 = scalar_select %p421, %s418, 127
      %s423 = smul.addr %s420, 128
      %s424 = sadd.s32 %s422, %s423
      %s425 = smul.addr %s424, 4
      %s426 = scalar_lea.vmem %s2, %s425
      %p427 = pneg %p127
      %p428 = pneg %p124
      %p429 = scmp.lt.s32.totalorder %s24, 1
      %s430 = scalar_select %p429, %s24, 1
      %s431 = scalar_lea.vmem %s3, %s430
      %p432 = pneg %p153
      %p433 = pneg %p150
      %p434 = pneg %p174
      %p435 = pneg %p171
      %p436 = pneg %p195
      %p437 = pneg %p192
      %p438 = pneg %p216
      %p439 = pneg %p213
      %p440 = pneg %p237
      %p441 = pneg %p234
      %p442 = pneg %p258
      %p443 = pneg %p255
      %p444 = pneg %p286
      %p445 = pneg %p283
      %s446 = smul.u32 16, %s25
      %p447 = scmp.lt.s32.totalorder %s24, 1
      %s448 = scalar_select %p447, %s24, 1
      %p449 = scmp.lt.s32.totalorder %s446, 127
      %s450 = scalar_select %p449, %s446, 127
      %s451 = smul.addr %s448, 128
      %s452 = sadd.s32 %s450, %s451
      %s453 = smul.addr %s452, 8
      %s454 = scalar_lea.vmem %s9, %s453
      %s455 = smul.u32 16, %s25
      %p456 = scmp.lt.s32.totalorder %s24, 1
      %s457 = scalar_select %p456, %s24, 1
      %p458 = scmp.lt.s32.totalorder %s455, 127
      %s459 = scalar_select %p458, %s455, 127
      %s460 = smul.addr %s457, 128
      %s461 = sadd.s32 %s459, %s460
      %s462 = smul.addr %s461, 4
      %s463 = scalar_lea.vmem %s0, %s462
      %s464 = smul.u32 16, %s25
      %s465 = smul.u32 %s25, 2
      %s466 = ssub.s32 %s465, 1
      %p467 = scmp.gt.s32.totalorder %s466, 0
      %s468 = scalar_select %p467, %s466, 0
      %s469 = smul.u32 8, %s468
      %p470 = scmp.lt.s32.totalorder %s24, 1
      %s471 = scalar_select %p470, %s24, 1
      %p472 = scmp.lt.s32.totalorder %s469, 127
      %s473 = scalar_select %p472, %s469, 127
      %s474 = smul.addr %s471, 128
      %s475 = sadd.s32 %s473, %s474
      %s476 = smul.addr %s475, 4
      %s477 = scalar_lea.vmem %s1, %s476
      %s478 = smul.u32 %s25, 2
      %s479 = ssub.s32 %s478, 1
      %p480 = scmp.gt.s32.totalorder %s479, 0
      %s481 = scalar_select %p480, %s479, 0
      %s482 = smul.u32 8, %s481
      %s483 = sadd.s32 %s25, 1
      %s484 = smul.u32 %s483, 2
      %p485 = scmp.lt.s32.totalorder %s484, 15
      %s486 = scalar_select %p485, %s484, 15
      %s487 = smul.u32 8, %s486
      %p488 = scmp.lt.s32.totalorder %s24, 1
      %s489 = scalar_select %p488, %s24, 1
      %p490 = scmp.lt.s32.totalorder %s487, 127
      %s491 = scalar_select %p490, %s487, 127
      %s492 = smul.addr %s489, 128
      %s493 = sadd.s32 %s491, %s492
      %s494 = smul.addr %s493, 4
      %s495 = scalar_lea.vmem %s2, %s494
      %s496 = sadd.s32 %s25, 1
      %s497 = smul.u32 %s496, 2
      %p498 = scmp.lt.s32.totalorder %s497, 15
      %s499 = scalar_select %p498, %s497, 15
      %s500 = smul.u32 8, %s499
      %p501 = scmp.lt.s32.totalorder %s24, 1
      %s502 = scalar_select %p501, %s24, 1
      %s503 = scalar_lea.vmem %s3, %s502
      %s504 = smul.u32 16, %s25
      %p505 = scmp.lt.s32.totalorder %s24, 1
      %s506 = scalar_select %p505, %s24, 1
      %p507 = scmp.lt.s32.totalorder %s504, 127
      %s508 = scalar_select %p507, %s504, 127
      %s509 = smul.addr %s506, 128
      %s510 = sadd.s32 %s508, %s509
      %s511 = smul.addr %s510, 8
      %s512 = scalar_lea.vmem %s9, %s511
      %s513 = smul.u32 16, %s25
      %s515 = smul.u32 %s25, 4
      %v516 = vld [vmem:[%s503] sm:$0x1]
      %v517 = vld [vmem:[%s477] sm:$0xf]
      %v518 = vld [vmem:[%s477 + $0x4] sm:$0xf]
      %v519 = vld [vmem:[%s477 + $0x8] sm:$0xf]
      %v520 = vld [vmem:[%s477 + $0xc] sm:$0xf]
      %v521 = vld [vmem:[%s477 + $0x10] sm:$0xf]
      %v522 = vld [vmem:[%s477 + $0x14] sm:$0xf]
      %v523 = vld [vmem:[%s477 + $0x18] sm:$0xf]
      %v524 = vld [vmem:[%s477 + $0x1c] sm:$0xf]
      %v525 = vld [vmem:[%s463] sm:$0xf]
      %v526 = vld [vmem:[%s463 + $0x4] sm:$0xf]
      %v527 = vld [vmem:[%s463 + $0x8] sm:$0xf]
      %v528 = vld [vmem:[%s463 + $0xc] sm:$0xf]
      %v529 = vld [vmem:[%s463 + $0x10] sm:$0xf]
      %v530 = vld [vmem:[%s463 + $0x14] sm:$0xf]
      %v531 = vld [vmem:[%s463 + $0x18] sm:$0xf]
      %v532 = vld [vmem:[%s463 + $0x1c] sm:$0xf]
      %v533 = vld [vmem:[%s463 + $0x20] sm:$0xf]
      %v534 = vld [vmem:[%s463 + $0x24] sm:$0xf]
      %v535 = vld [vmem:[%s463 + $0x28] sm:$0xf]
      %v536 = vld [vmem:[%s463 + $0x2c] sm:$0xf]
      %v537 = vld [vmem:[%s463 + $0x30] sm:$0xf]
      %v538 = vld [vmem:[%s463 + $0x34] sm:$0xf]
      %v539 = vld [vmem:[%s463 + $0x38] sm:$0xf]
      %v540 = vld [vmem:[%s463 + $0x3c] sm:$0xf]
      %v541 = vld [vmem:[%s495] sm:$0xf]
      %v542 = vld [vmem:[%s495 + $0x4] sm:$0xf]
      %v543 = vld [vmem:[%s495 + $0x8] sm:$0xf]
      %v544 = vld [vmem:[%s495 + $0xc] sm:$0xf]
      %v545 = vld [vmem:[%s495 + $0x10] sm:$0xf]
      %v546 = vld [vmem:[%s495 + $0x14] sm:$0xf]
      %v547 = vld [vmem:[%s495 + $0x18] sm:$0xf]
      %v548 = vld [vmem:[%s495 + $0x1c] sm:$0xf]
      %v557 = vunpack.c.l.b16 %v517
      %v558 = vunpack.c.l.b16 %v518
      %v559 = vunpack.c.l.b16 %v519
      %v560 = vunpack.c.l.b16 %v520
      %v561 = vunpack.c.l.b16 %v521
      %v562 = vunpack.c.l.b16 %v522
      %v563 = vunpack.c.l.b16 %v523
      %v564 = vunpack.c.l.b16 %v524
      %v565 = vpack.c.b16 %v558, %v557
      %v566 = vpack.c.b16 %v560, %v559
      %v567 = vpack.c.b16 %v562, %v561
      %v568 = vpack.c.b16 %v564, %v563
      %v589 = vunpack.c.l.b16 %v525
      %v590 = vunpack.c.l.b16 %v526
      %v591 = vunpack.c.l.b16 %v527
      %v592 = vunpack.c.l.b16 %v528
      %v593 = vunpack.c.l.b16 %v529
      %v594 = vunpack.c.l.b16 %v530
      %v595 = vunpack.c.l.b16 %v531
      %v596 = vunpack.c.l.b16 %v532
      %v597 = vunpack.c.l.b16 %v533
      %v598 = vunpack.c.l.b16 %v534
      %v599 = vunpack.c.l.b16 %v535
      %v600 = vunpack.c.l.b16 %v536
      %v601 = vunpack.c.l.b16 %v537
      %v602 = vunpack.c.l.b16 %v538
      %v603 = vunpack.c.l.b16 %v539
      %v604 = vunpack.c.l.b16 %v540
      %v605 = vpack.c.b16 %v590, %v589
      %v606 = vpack.c.b16 %v592, %v591
      %v607 = vpack.c.b16 %v594, %v593
      %v608 = vpack.c.b16 %v596, %v595
      %v609 = vpack.c.b16 %v598, %v597
      %v610 = vpack.c.b16 %v600, %v599
      %v611 = vpack.c.b16 %v602, %v601
      %v612 = vpack.c.b16 %v604, %v603
      %v629 = vunpack.c.l.b16 %v541
      %v630 = vunpack.c.l.b16 %v542
      %v631 = vunpack.c.l.b16 %v543
      %v632 = vunpack.c.l.b16 %v544
      %v633 = vunpack.c.l.b16 %v545
      %v634 = vunpack.c.l.b16 %v546
      %v635 = vunpack.c.l.b16 %v547
      %v636 = vunpack.c.l.b16 %v548
      %v637 = vpack.c.b16 %v630, %v629
      %v638 = vpack.c.b16 %v632, %v631
      %v639 = vpack.c.b16 %v634, %v633
      %v640 = vpack.c.b16 %v636, %v635
      %v645 = vunpack.c.l.bf16 %v565
      %v646 = vunpack.c.h.bf16 %v565
      %v647 = vunpack.c.l.bf16 %v566
      %v648 = vunpack.c.h.bf16 %v566
      %v649 = vunpack.c.l.bf16 %v567
      %v650 = vunpack.c.h.bf16 %v567
      %v651 = vunpack.c.l.bf16 %v568
      %v652 = vunpack.c.h.bf16 %v568
      %v653 = vunpack.c.l.bf16 %v605
      %v654 = vunpack.c.h.bf16 %v605
      %v655 = vunpack.c.l.bf16 %v606
      %v656 = vunpack.c.h.bf16 %v606
      %v657 = vunpack.c.l.bf16 %v607
      %v658 = vunpack.c.h.bf16 %v607
      %v659 = vunpack.c.l.bf16 %v608
      %v660 = vunpack.c.h.bf16 %v608
      %v661 = vunpack.c.l.bf16 %v609
      %v662 = vunpack.c.h.bf16 %v609
      %v663 = vunpack.c.l.bf16 %v610
      %v664 = vunpack.c.h.bf16 %v610
      %v665 = vunpack.c.l.bf16 %v611
      %v666 = vunpack.c.h.bf16 %v611
      %v667 = vunpack.c.l.bf16 %v612
      %v668 = vunpack.c.h.bf16 %v612
      %v669 = vunpack.c.l.bf16 %v637
      %v670 = vunpack.c.h.bf16 %v637
      %v671 = vunpack.c.l.bf16 %v638
      %v672 = vunpack.c.h.bf16 %v638
      %v673 = vunpack.c.l.bf16 %v639
      %v674 = vunpack.c.h.bf16 %v639
      %v675 = vunpack.c.l.bf16 %v640
      %v676 = vunpack.c.h.bf16 %v640
      %v678 = vperm.slane %v516, 0
      %v680 = vmul.f32 %v645, %v678
      %v681 = vmul.f32 %v646, %v678
      %v682 = vmul.f32 %v647, %v678
      %v683 = vmul.f32 %v648, %v678
      %v684 = vmul.f32 %v649, %v678
      %v685 = vmul.f32 %v650, %v678
      %v686 = vmul.f32 %v651, %v678
      %v687 = vmul.f32 %v652, %v678
      %v688 = vmul.f32 %v653, %v678
      %v689 = vmul.f32 %v654, %v678
      %v690 = vmul.f32 %v655, %v678
      %v691 = vmul.f32 %v656, %v678
      %v692 = vmul.f32 %v657, %v678
      %v693 = vmul.f32 %v658, %v678
      %v694 = vmul.f32 %v659, %v678
      %v695 = vmul.f32 %v660, %v678
      %v696 = vmul.f32 %v661, %v678
      %v697 = vmul.f32 %v662, %v678
      %v698 = vmul.f32 %v663, %v678
      %v699 = vmul.f32 %v664, %v678
      %v700 = vmul.f32 %v665, %v678
      %v701 = vmul.f32 %v666, %v678
      %v702 = vmul.f32 %v667, %v678
      %v703 = vmul.f32 %v668, %v678
      %v704 = vmul.f32 %v669, %v678
      %v705 = vmul.f32 %v670, %v678
      %v706 = vmul.f32 %v671, %v678
      %v707 = vmul.f32 %v672, %v678
      %v708 = vmul.f32 %v673, %v678
      %v709 = vmul.f32 %v674, %v678
      %v710 = vmul.f32 %v675, %v678
      %v711 = vmul.f32 %v676, %v678
      %v712 = vpack.c.bf16 %v680, %v680
      %v713 = vpack.c.bf16 %v681, %v681
      %v714 = vpack.c.bf16 %v682, %v682
      %v715 = vpack.c.bf16 %v683, %v683
      %v716 = vpack.c.bf16 %v684, %v684
      %v717 = vpack.c.bf16 %v685, %v685
      %v718 = vpack.c.bf16 %v686, %v686
      %v719 = vpack.c.bf16 %v687, %v687
      %v720 = vpack.c.bf16 %v688, %v688
      %v721 = vpack.c.bf16 %v689, %v689
      %v722 = vpack.c.bf16 %v690, %v690
      %v723 = vpack.c.bf16 %v691, %v691
      %v724 = vpack.c.bf16 %v692, %v692
      %v725 = vpack.c.bf16 %v693, %v693
      %v726 = vpack.c.bf16 %v694, %v694
      %v727 = vpack.c.bf16 %v695, %v695
      %v728 = vpack.c.bf16 %v696, %v696
      %v729 = vpack.c.bf16 %v697, %v697
      %v730 = vpack.c.bf16 %v698, %v698
      %v731 = vpack.c.bf16 %v699, %v699
      %v732 = vpack.c.bf16 %v700, %v700
      %v733 = vpack.c.bf16 %v701, %v701
      %v734 = vpack.c.bf16 %v702, %v702
      %v735 = vpack.c.bf16 %v703, %v703
      %v736 = vpack.c.bf16 %v704, %v704
      %v737 = vpack.c.bf16 %v705, %v705
      %v738 = vpack.c.bf16 %v706, %v706
      %v739 = vpack.c.bf16 %v707, %v707
      %v740 = vpack.c.bf16 %v708, %v708
      %v741 = vpack.c.bf16 %v709, %v709
      %v742 = vpack.c.bf16 %v710, %v710
      %v743 = vpack.c.bf16 %v711, %v711
      %v744 = vld [vmem:[%s4] sm:$0xff]
      %v745 = vld [vmem:[%s4 + $0x8] sm:$0xff]
      %v746 = vld [vmem:[%s4 + $0x10] sm:$0xff]
      %v747 = vld [vmem:[%s4 + $0x18] sm:$0xff]
      %v748 = vld [vmem:[%s4 + $0x20] sm:$0xff]
      %v749 = vld [vmem:[%s4 + $0x28] sm:$0xff]
      %v750 = vld [vmem:[%s4 + $0x30] sm:$0xff]
      %v751 = vld [vmem:[%s4 + $0x38] sm:$0xff]
      %v752 = vld [vmem:[%s4 + $0x40] sm:$0xff]
      %v753 = vld [vmem:[%s4 + $0x48] sm:$0xff]
      %v754 = vld [vmem:[%s4 + $0x50] sm:$0xff]
      %v755 = vld [vmem:[%s4 + $0x58] sm:$0xff]
      %v756 = vld [vmem:[%s4 + $0x60] sm:$0xff]
      %v757 = vld [vmem:[%s4 + $0x68] sm:$0xff]
      %v758 = vld [vmem:[%s4 + $0x70] sm:$0xff]
      %v759 = vld [vmem:[%s4 + $0x78] sm:$0xff]
      %v760 = vld [vmem:[%s4 + $0x80] sm:$0xff]
      %v761 = vld [vmem:[%s4 + $0x88] sm:$0xff]
      %v762 = vld [vmem:[%s4 + $0x90] sm:$0xff]
      %v763 = vld [vmem:[%s4 + $0x98] sm:$0xff]
      %v764 = vld [vmem:[%s4 + $0xa0] sm:$0xff]
      %v765 = vld [vmem:[%s4 + $0xa8] sm:$0xff]
      %v766 = vld [vmem:[%s4 + $0xb0] sm:$0xff]
      %v767 = vld [vmem:[%s4 + $0xb8] sm:$0xff]
      %v768 = vld [vmem:[%s4 + $0xc0] sm:$0xff]
      %v769 = vld [vmem:[%s4 + $0xc8] sm:$0xff]
      %v770 = vld [vmem:[%s4 + $0xd0] sm:$0xff]
      %v771 = vld [vmem:[%s4 + $0xd8] sm:$0xff]
      %v772 = vld [vmem:[%s4 + $0xe0] sm:$0xff]
      %v773 = vld [vmem:[%s4 + $0xe8] sm:$0xff]
      %v774 = vld [vmem:[%s4 + $0xf0] sm:$0xff]
      %v775 = vld [vmem:[%s4 + $0xf8] sm:$0xff]
      %vm776 = vcmp.gt.f32.partialorder %v744, 0.0
      %vm777 = vcmp.gt.f32.partialorder %v745, 0.0
      %vm778 = vcmp.gt.f32.partialorder %v746, 0.0
      %vm779 = vcmp.gt.f32.partialorder %v747, 0.0
      %vm780 = vcmp.gt.f32.partialorder %v748, 0.0
      %vm781 = vcmp.gt.f32.partialorder %v749, 0.0
      %vm782 = vcmp.gt.f32.partialorder %v750, 0.0
      %vm783 = vcmp.gt.f32.partialorder %v751, 0.0
      %vm784 = vcmp.gt.f32.partialorder %v752, 0.0
      %vm785 = vcmp.gt.f32.partialorder %v753, 0.0
      %vm786 = vcmp.gt.f32.partialorder %v754, 0.0
      %vm787 = vcmp.gt.f32.partialorder %v755, 0.0
      %vm788 = vcmp.gt.f32.partialorder %v756, 0.0
      %vm789 = vcmp.gt.f32.partialorder %v757, 0.0
      %vm790 = vcmp.gt.f32.partialorder %v758, 0.0
      %vm791 = vcmp.gt.f32.partialorder %v759, 0.0
      %vm792 = vcmp.gt.f32.partialorder %v760, 0.0
      %vm793 = vcmp.gt.f32.partialorder %v761, 0.0
      %vm794 = vcmp.gt.f32.partialorder %v762, 0.0
      %vm795 = vcmp.gt.f32.partialorder %v763, 0.0
      %vm796 = vcmp.gt.f32.partialorder %v764, 0.0
      %vm797 = vcmp.gt.f32.partialorder %v765, 0.0
      %vm798 = vcmp.gt.f32.partialorder %v766, 0.0
      %vm799 = vcmp.gt.f32.partialorder %v767, 0.0
      %vm800 = vcmp.gt.f32.partialorder %v768, 0.0
      %vm801 = vcmp.gt.f32.partialorder %v769, 0.0
      %vm802 = vcmp.gt.f32.partialorder %v770, 0.0
      %vm803 = vcmp.gt.f32.partialorder %v771, 0.0
      %vm804 = vcmp.gt.f32.partialorder %v772, 0.0
      %vm805 = vcmp.gt.f32.partialorder %v773, 0.0
      %vm806 = vcmp.gt.f32.partialorder %v774, 0.0
      %vm807 = vcmp.gt.f32.partialorder %v775, 0.0
      %v808 = vlaneseq
      %v809 = vshrl.u32 %v808, 7
      %v810 = vadd.s32 %v809, 8
      %v811 = vadd.s32 %v809, 16
      %v812 = vadd.s32 %v809, 24
      %v813 = vadd.s32 %v809, 32
      %v814 = vadd.s32 %v809, 40
      %v815 = vadd.s32 %v809, 48
      %v816 = vadd.s32 %v809, 56
      %v817 = vadd.s32 %v809, 64
      %v818 = vadd.s32 %v809, 72
      %v819 = vadd.s32 %v809, 80
      %v820 = vadd.s32 %v809, 88
      %v821 = vadd.s32 %v809, 96
      %v822 = vadd.s32 %v809, 104
      %v823 = vadd.s32 %v809, 112
      %v824 = vadd.s32 %v809, 120
      %v825 = vadd.s32 %v809, 128
      %v826 = vadd.s32 %v809, 136
      %v827 = vadd.s32 %v809, 144
      %v828 = vadd.s32 %v809, 152
      %v829 = vadd.s32 %v809, 160
      %v830 = vadd.s32 %v809, 168
      %v831 = vadd.s32 %v809, 176
      %v832 = vadd.s32 %v809, 184
      %s833 = ssub.s32 2, %s515
      %s834 = smul.u32 %s833, 32
      %v835 = vstv %s834
      %vm836 = vcmp.ge.s32.totalorder %v809, %v835
      %vm837 = vcmp.ge.s32.totalorder %v810, %v835
      %vm838 = vcmp.ge.s32.totalorder %v811, %v835
      %vm839 = vcmp.ge.s32.totalorder %v812, %v835
      %vm840 = vcmp.ge.s32.totalorder %v813, %v835
      %vm841 = vcmp.ge.s32.totalorder %v814, %v835
      %vm842 = vcmp.ge.s32.totalorder %v815, %v835
      %vm843 = vcmp.ge.s32.totalorder %v816, %v835
      %vm844 = vcmp.ge.s32.totalorder %v817, %v835
      %vm845 = vcmp.ge.s32.totalorder %v818, %v835
      %vm846 = vcmp.ge.s32.totalorder %v819, %v835
      %vm847 = vcmp.ge.s32.totalorder %v820, %v835
      %vm848 = vcmp.ge.s32.totalorder %v821, %v835
      %vm849 = vcmp.ge.s32.totalorder %v822, %v835
      %vm850 = vcmp.ge.s32.totalorder %v823, %v835
      %vm851 = vcmp.ge.s32.totalorder %v824, %v835
      %vm852 = vcmp.ge.s32.totalorder %v825, %v835
      %vm853 = vcmp.ge.s32.totalorder %v826, %v835
      %vm854 = vcmp.ge.s32.totalorder %v827, %v835
      %vm855 = vcmp.ge.s32.totalorder %v828, %v835
      %vm856 = vcmp.ge.s32.totalorder %v829, %v835
      %vm857 = vcmp.ge.s32.totalorder %v830, %v835
      %vm858 = vcmp.ge.s32.totalorder %v831, %v835
      %vm859 = vcmp.ge.s32.totalorder %v832, %v835
      %s860 = ssub.s32 32, %s515
      %s861 = smul.u32 %s860, 32
      %v862 = vstv %s861
      %vm863 = vcmp.lt.s32.totalorder %v809, %v862
      %vm864 = vcmp.lt.s32.totalorder %v810, %v862
      %vm865 = vcmp.lt.s32.totalorder %v811, %v862
      %vm866 = vcmp.lt.s32.totalorder %v812, %v862
      %vm867 = vcmp.lt.s32.totalorder %v813, %v862
      %vm868 = vcmp.lt.s32.totalorder %v814, %v862
      %vm869 = vcmp.lt.s32.totalorder %v815, %v862
      %vm870 = vcmp.lt.s32.totalorder %v816, %v862
      %vm871 = vcmp.lt.s32.totalorder %v817, %v862
      %vm872 = vcmp.lt.s32.totalorder %v818, %v862
      %vm873 = vcmp.lt.s32.totalorder %v819, %v862
      %vm874 = vcmp.lt.s32.totalorder %v820, %v862
      %vm875 = vcmp.lt.s32.totalorder %v821, %v862
      %vm876 = vcmp.lt.s32.totalorder %v822, %v862
      %vm877 = vcmp.lt.s32.totalorder %v823, %v862
      %vm878 = vcmp.lt.s32.totalorder %v824, %v862
      %vm879 = vcmp.lt.s32.totalorder %v825, %v862
      %vm880 = vcmp.lt.s32.totalorder %v826, %v862
      %vm881 = vcmp.lt.s32.totalorder %v827, %v862
      %vm882 = vcmp.lt.s32.totalorder %v828, %v862
      %vm883 = vcmp.lt.s32.totalorder %v829, %v862
      %vm884 = vcmp.lt.s32.totalorder %v830, %v862
      %vm885 = vcmp.lt.s32.totalorder %v831, %v862
      %vm886 = vcmp.lt.s32.totalorder %v832, %v862
      %s887 = ssub.s32 1, %s515
      %s888 = smul.u32 %s887, 32
      %v889 = vstv %s888
      %vm890 = vcmp.ge.s32.totalorder %v809, %v889
      %vm891 = vcmp.ge.s32.totalorder %v810, %v889
      %vm892 = vcmp.ge.s32.totalorder %v811, %v889
      %vm893 = vcmp.ge.s32.totalorder %v812, %v889
      %vm894 = vcmp.ge.s32.totalorder %v813, %v889
      %vm895 = vcmp.ge.s32.totalorder %v814, %v889
      %vm896 = vcmp.ge.s32.totalorder %v815, %v889
      %vm897 = vcmp.ge.s32.totalorder %v816, %v889
      %vm898 = vcmp.ge.s32.totalorder %v817, %v889
      %vm899 = vcmp.ge.s32.totalorder %v818, %v889
      %vm900 = vcmp.ge.s32.totalorder %v819, %v889
      %vm901 = vcmp.ge.s32.totalorder %v820, %v889
      %vm902 = vcmp.ge.s32.totalorder %v821, %v889
      %vm903 = vcmp.ge.s32.totalorder %v822, %v889
      %vm904 = vcmp.ge.s32.totalorder %v823, %v889
      %vm905 = vcmp.ge.s32.totalorder %v824, %v889
      %s906 = ssub.s32 31, %s515
      %s907 = smul.u32 %s906, 32
      %v908 = vstv %s907
      %vm909 = vcmp.lt.s32.totalorder %v809, %v908
      %vm910 = vcmp.lt.s32.totalorder %v810, %v908
      %vm911 = vcmp.lt.s32.totalorder %v811, %v908
      %vm912 = vcmp.lt.s32.totalorder %v812, %v908
      %vm913 = vcmp.lt.s32.totalorder %v813, %v908
      %vm914 = vcmp.lt.s32.totalorder %v814, %v908
      %vm915 = vcmp.lt.s32.totalorder %v815, %v908
      %vm916 = vcmp.lt.s32.totalorder %v816, %v908
      %vm917 = vcmp.lt.s32.totalorder %v817, %v908
      %vm918 = vcmp.lt.s32.totalorder %v818, %v908
      %vm919 = vcmp.lt.s32.totalorder %v819, %v908
      %vm920 = vcmp.lt.s32.totalorder %v820, %v908
      %vm921 = vcmp.lt.s32.totalorder %v821, %v908
      %vm922 = vcmp.lt.s32.totalorder %v822, %v908
      %vm923 = vcmp.lt.s32.totalorder %v823, %v908
      %vm924 = vcmp.lt.s32.totalorder %v824, %v908
      %v925 = vld [vmem:[%s5] sm:$0xf]
      %v926 = vld [vmem:[%s5 + $0x4] sm:$0xf]
      %v927 = vld [vmem:[%s5 + $0x8] sm:$0xf]
      %v928 = vld [vmem:[%s5 + $0xc] sm:$0xf]
      %v929 = vld [vmem:[%s5 + $0x10] sm:$0xf]
      %v930 = vld [vmem:[%s5 + $0x14] sm:$0xf]
      %v931 = vld [vmem:[%s5 + $0x18] sm:$0xf]
      %v932 = vld [vmem:[%s5 + $0x1c] sm:$0xf]
      %v965 = vunpack.c.l.b16 %v712
      %v966 = vunpack.c.l.b16 %v713
      %v967 = vunpack.c.l.b16 %v714
      %v968 = vunpack.c.l.b16 %v715
      %v969 = vunpack.c.l.b16 %v716
      %v970 = vunpack.c.l.b16 %v717
      %v971 = vunpack.c.l.b16 %v718
      %v972 = vunpack.c.l.b16 %v719
      %v973 = vunpack.c.l.b16 %v720
      %v974 = vunpack.c.l.b16 %v721
      %v975 = vunpack.c.l.b16 %v722
      %v976 = vunpack.c.l.b16 %v723
      %v977 = vunpack.c.l.b16 %v724
      %v978 = vunpack.c.l.b16 %v725
      %v979 = vunpack.c.l.b16 %v726
      %v980 = vunpack.c.l.b16 %v727
      %v981 = vunpack.c.l.b16 %v728
      %v982 = vunpack.c.l.b16 %v729
      %v983 = vunpack.c.l.b16 %v730
      %v984 = vunpack.c.l.b16 %v731
      %v985 = vunpack.c.l.b16 %v732
      %v986 = vunpack.c.l.b16 %v733
      %v987 = vunpack.c.l.b16 %v734
      %v988 = vunpack.c.l.b16 %v735
      %v989 = vunpack.c.l.b16 %v736
      %v990 = vunpack.c.l.b16 %v737
      %v991 = vunpack.c.l.b16 %v738
      %v992 = vunpack.c.l.b16 %v739
      %v993 = vunpack.c.l.b16 %v740
      %v994 = vunpack.c.l.b16 %v741
      %v995 = vunpack.c.l.b16 %v742
      %v996 = vunpack.c.l.b16 %v743
      %v997 = vpack.c.b16 %v966, %v965
      %v998 = vpack.c.b16 %v968, %v967
      %v999 = vpack.c.b16 %v970, %v969
      %v1000 = vpack.c.b16 %v972, %v971
      %v1001 = vpack.c.b16 %v974, %v973
      %v1002 = vpack.c.b16 %v976, %v975
      %v1003 = vpack.c.b16 %v978, %v977
      %v1004 = vpack.c.b16 %v980, %v979
      %v1005 = vpack.c.b16 %v982, %v981
      %v1006 = vpack.c.b16 %v984, %v983
      %v1007 = vpack.c.b16 %v986, %v985
      %v1008 = vpack.c.b16 %v988, %v987
      %v1009 = vpack.c.b16 %v990, %v989
      %v1010 = vpack.c.b16 %v992, %v991
      %v1011 = vpack.c.b16 %v994, %v993
      %v1012 = vpack.c.b16 %v996, %v995
      %v1021 = vunpack.c.l.b16 %v925
      %v1022 = vunpack.c.l.b16 %v926
      %v1023 = vunpack.c.l.b16 %v927
      %v1024 = vunpack.c.l.b16 %v928
      %v1025 = vunpack.c.l.b16 %v929
      %v1026 = vunpack.c.l.b16 %v930
      %v1027 = vunpack.c.l.b16 %v931
      %v1028 = vunpack.c.l.b16 %v932
      %v1029 = vpack.c.b16 %v1022, %v1021
      %v1030 = vpack.c.b16 %v1024, %v1023
      %v1031 = vpack.c.b16 %v1026, %v1025
      %v1032 = vpack.c.b16 %v1028, %v1027
      %vm1037 = vcmask 523264
      %v1039 = vsel %vm1037, %v997, 0
      %v1042 = vsel %vm1037, %v998, 0
      %v1045 = vsel %vm1037, %v999, 0
      %v1048 = vsel %vm1037, %v1000, 0
      %v1051 = vsel %vm1037, %v1001, 0
      %v1054 = vsel %vm1037, %v1002, 0
      %v1057 = vsel %vm1037, %v1003, 0
      %v1060 = vsel %vm1037, %v1004, 0
      %v1063 = vsel %vm1037, %v1005, 0
      %v1066 = vsel %vm1037, %v1006, 0
      %v1069 = vsel %vm1037, %v1007, 0
      %v1072 = vsel %vm1037, %v1008, 0
      %v1075 = vsel %vm1037, %v1009, 0
      %v1078 = vsel %vm1037, %v1010, 0
      %v1081 = vsel %vm1037, %v1011, 0
      %v1084 = vsel %vm1037, %v1012, 0
      %1086 = vmatpush.bf16.msra.mxu0 0
      %1087 = vmatpush.bf16.msra.mxu0 0
      %1088 = vmatpush.bf16.msra.mxu0 0
      %1089 = vmatpush.bf16.msra.mxu0 0
      %1090 = vmatpush.bf16.msra.mxu0 %v1032
      %1091 = vmatpush.bf16.msra.mxu0 %v1031
      %1092 = vmatpush.bf16.msra.mxu0 %v1030
      %1093 = vmatpush.bf16.msra.mxu0 %v1029
      %1094 = vmatmul.bf16.gmra.mxu0 %v1039
      %v1095 = vpop.f32.mrf.mxu0
      %v1096 = vadd.f32 0.0, %v1095
      %v1097 = vpop.f32.mrf.mxu0
      %v1098 = vadd.f32 0.0, %v1097
      %1099 = vmatmul.bf16.gmra.mxu0 %v1042
      %v1100 = vpop.f32.mrf.mxu0
      %v1101 = vadd.f32 0.0, %v1100
      %v1102 = vpop.f32.mrf.mxu0
      %v1103 = vadd.f32 0.0, %v1102
      %1104 = vmatmul.bf16.gmra.mxu0 %v1045
      %v1105 = vpop.f32.mrf.mxu0
      %v1106 = vadd.f32 0.0, %v1105
      %v1107 = vpop.f32.mrf.mxu0
      %v1108 = vadd.f32 0.0, %v1107
      %1109 = vmatmul.bf16.gmra.mxu0 %v1048
      %v1110 = vpop.f32.mrf.mxu0
      %v1111 = vadd.f32 0.0, %v1110
      %v1112 = vpop.f32.mrf.mxu0
      %v1113 = vadd.f32 0.0, %v1112
      %1114 = vmatmul.bf16.gmra.mxu0 %v1051
      %v1115 = vpop.f32.mrf.mxu0
      %v1116 = vadd.f32 0.0, %v1115
      %v1117 = vpop.f32.mrf.mxu0
      %v1118 = vadd.f32 0.0, %v1117
      %1119 = vmatmul.bf16.gmra.mxu0 %v1054
      %v1120 = vpop.f32.mrf.mxu0
      %v1121 = vadd.f32 0.0, %v1120
      %v1122 = vpop.f32.mrf.mxu0
      %v1123 = vadd.f32 0.0, %v1122
      %1124 = vmatmul.bf16.gmra.mxu0 %v1057
      %v1125 = vpop.f32.mrf.mxu0
      %v1126 = vadd.f32 0.0, %v1125
      %v1127 = vpop.f32.mrf.mxu0
      %v1128 = vadd.f32 0.0, %v1127
      %1129 = vmatmul.bf16.gmra.mxu0 %v1060
      %v1130 = vpop.f32.mrf.mxu0
      %v1131 = vadd.f32 0.0, %v1130
      %v1132 = vpop.f32.mrf.mxu0
      %v1133 = vadd.f32 0.0, %v1132
      %1134 = vmatmul.bf16.gmra.mxu0 %v1063
      %v1135 = vpop.f32.mrf.mxu0
      %v1136 = vadd.f32 0.0, %v1135
      %v1137 = vpop.f32.mrf.mxu0
      %v1138 = vadd.f32 0.0, %v1137
      %1139 = vmatmul.bf16.gmra.mxu0 %v1066
      %v1140 = vpop.f32.mrf.mxu0
      %v1141 = vadd.f32 0.0, %v1140
      %v1142 = vpop.f32.mrf.mxu0
      %v1143 = vadd.f32 0.0, %v1142
      %1144 = vmatmul.bf16.gmra.mxu0 %v1069
      %v1145 = vpop.f32.mrf.mxu0
      %v1146 = vadd.f32 0.0, %v1145
      %v1147 = vpop.f32.mrf.mxu0
      %v1148 = vadd.f32 0.0, %v1147
      %1149 = vmatmul.bf16.gmra.mxu0 %v1072
      %v1150 = vpop.f32.mrf.mxu0
      %v1151 = vadd.f32 0.0, %v1150
      %v1152 = vpop.f32.mrf.mxu0
      %v1153 = vadd.f32 0.0, %v1152
      %1154 = vmatmul.bf16.gmra.mxu0 %v1075
      %v1155 = vpop.f32.mrf.mxu0
      %v1156 = vadd.f32 0.0, %v1155
      %v1157 = vpop.f32.mrf.mxu0
      %v1158 = vadd.f32 0.0, %v1157
      %1159 = vmatmul.bf16.gmra.mxu0 %v1078
      %v1160 = vpop.f32.mrf.mxu0
      %v1161 = vadd.f32 0.0, %v1160
      %v1162 = vpop.f32.mrf.mxu0
      %v1163 = vadd.f32 0.0, %v1162
      %1164 = vmatmul.bf16.gmra.mxu0 %v1081
      %v1165 = vpop.f32.mrf.mxu0
      %v1166 = vadd.f32 0.0, %v1165
      %v1167 = vpop.f32.mrf.mxu0
      %v1168 = vadd.f32 0.0, %v1167
      %1169 = vmatmul.bf16.gmra.mxu0 %v1084
      %v1170 = vpop.f32.mrf.mxu0
      %v1171 = vadd.f32 0.0, %v1170
      %v1172 = vpop.f32.mrf.mxu0
      %v1173 = vadd.f32 0.0, %v1172
      %1174 = vdwg.mxu0
      %v1175 = vrot.slane %v1096, 7
      %v1176 = vrot.slane %v1098, 7
      %v1177 = vrot.slane %v1101, 7
      %v1178 = vrot.slane %v1103, 7
      %v1179 = vrot.slane %v1106, 7
      %v1180 = vrot.slane %v1108, 7
      %v1181 = vrot.slane %v1111, 7
      %v1182 = vrot.slane %v1113, 7
      %v1183 = vrot.slane %v1116, 7
      %v1184 = vrot.slane %v1118, 7
      %v1185 = vrot.slane %v1121, 7
      %v1186 = vrot.slane %v1123, 7
      %v1187 = vrot.slane %v1126, 7
      %v1188 = vrot.slane %v1128, 7
      %v1189 = vrot.slane %v1131, 7
      %v1190 = vrot.slane %v1133, 7
      %v1191 = vrot.slane %v1136, 7
      %v1192 = vrot.slane %v1138, 7
      %v1193 = vrot.slane %v1141, 7
      %v1194 = vrot.slane %v1143, 7
      %v1195 = vrot.slane %v1146, 7
      %v1196 = vrot.slane %v1148, 7
      %v1197 = vrot.slane %v1151, 7
      %v1198 = vrot.slane %v1153, 7
      %v1199 = vrot.slane %v1156, 7
      %v1200 = vrot.slane %v1158, 7
      %v1201 = vrot.slane %v1161, 7
      %v1202 = vrot.slane %v1163, 7
      %v1203 = vrot.slane %v1166, 7
      %v1204 = vrot.slane %v1168, 7
      %v1205 = vrot.slane %v1171, 7
      %v1206 = vrot.slane %v1173, 7
      %vm1207 = vcmp.lt.s32.totalorder %v809, 1
      %v1208 = vsel %vm1207, %v1205, %v1206
      %v1209 = vsel %vm1207, %v1204, %v1205
      %v1210 = vsel %vm1207, %v1203, %v1204
      %v1211 = vsel %vm1207, %v1202, %v1203
      %v1212 = vsel %vm1207, %v1201, %v1202
      %v1213 = vsel %vm1207, %v1200, %v1201
      %v1214 = vsel %vm1207, %v1199, %v1200
      %v1215 = vsel %vm1207, %v1198, %v1199
      %v1216 = vsel %vm1207, %v1197, %v1198
      %v1217 = vsel %vm1207, %v1196, %v1197
      %v1218 = vsel %vm1207, %v1195, %v1196
      %v1219 = vsel %vm1207, %v1194, %v1195
      %v1220 = vsel %vm1207, %v1193, %v1194
      %v1221 = vsel %vm1207, %v1192, %v1193
      %v1222 = vsel %vm1207, %v1191, %v1192
      %v1223 = vsel %vm1207, %v1190, %v1191
      %v1224 = vsel %vm1207, %v1189, %v1190
      %v1225 = vsel %vm1207, %v1188, %v1189
      %v1226 = vsel %vm1207, %v1187, %v1188
      %v1227 = vsel %vm1207, %v1186, %v1187
      %v1228 = vsel %vm1207, %v1185, %v1186
      %v1229 = vsel %vm1207, %v1184, %v1185
      %v1230 = vsel %vm1207, %v1183, %v1184
      %v1231 = vsel %vm1207, %v1182, %v1183
      %v1232 = vsel %vm1207, %v1181, %v1182
      %v1233 = vsel %vm1207, %v1180, %v1181
      %v1234 = vsel %vm1207, %v1179, %v1180
      %v1235 = vsel %vm1207, %v1178, %v1179
      %v1236 = vsel %vm1207, %v1177, %v1178
      %v1237 = vsel %vm1207, %v1176, %v1177
      %v1238 = vsel %vm1207, %v1175, %v1176
      %v1239 = vsel %vm1207, %v1206, %v1175
      %v1240 = vsel %vm776, 1, 0
      %v1241 = vsel %vm777, 1, 0
      %v1242 = vsel %vm778, 1, 0
      %v1243 = vsel %vm779, 1, 0
      %v1244 = vsel %vm780, 1, 0
      %v1245 = vsel %vm781, 1, 0
      %v1246 = vsel %vm782, 1, 0
      %v1247 = vsel %vm783, 1, 0
      %v1248 = vsel %vm784, 1, 0
      %v1249 = vsel %vm785, 1, 0
      %v1250 = vsel %vm786, 1, 0
      %v1251 = vsel %vm787, 1, 0
      %v1252 = vsel %vm788, 1, 0
      %v1253 = vsel %vm789, 1, 0
      %v1254 = vsel %vm790, 1, 0
      %v1255 = vsel %vm791, 1, 0
      %v1256 = vsel %vm792, 1, 0
      %v1257 = vsel %vm793, 1, 0
      %v1258 = vsel %vm794, 1, 0
      %v1259 = vsel %vm795, 1, 0
      %v1260 = vsel %vm796, 1, 0
      %v1261 = vsel %vm797, 1, 0
      %v1262 = vsel %vm798, 1, 0
      %v1263 = vsel %vm799, 1, 0
      %v1264 = vsel %vm800, 1, 0
      %v1265 = vsel %vm801, 1, 0
      %v1266 = vsel %vm802, 1, 0
      %v1267 = vsel %vm803, 1, 0
      %v1268 = vsel %vm804, 1, 0
      %v1269 = vsel %vm805, 1, 0
      %v1270 = vsel %vm806, 1, 0
      %v1271 = vsel %vm807, 1, 0
      %1272 = vset.pattern.permute.xlu0 0
      %1273 = vperm.xlu0 %1272, %v1240
      %v1274 = vpop.permute.xlu0 %1273
      %1275 = vset.pattern.permute.xlu0 0
      %1276 = vperm.xlu0 %1275, %v1241
      %v1277 = vpop.permute.xlu0 %1276
      %1278 = vset.pattern.permute.xlu0 0
      %1279 = vperm.xlu0 %1278, %v1242
      %v1280 = vpop.permute.xlu0 %1279
      %1281 = vset.pattern.permute.xlu0 0
      %1282 = vperm.xlu0 %1281, %v1243
      %v1283 = vpop.permute.xlu0 %1282
      %1284 = vset.pattern.permute.xlu0 0
      %1285 = vperm.xlu0 %1284, %v1244
      %v1286 = vpop.permute.xlu0 %1285
      %1287 = vset.pattern.permute.xlu0 0
      %1288 = vperm.xlu0 %1287, %v1245
      %v1289 = vpop.permute.xlu0 %1288
      %1290 = vset.pattern.permute.xlu0 0
      %1291 = vperm.xlu0 %1290, %v1246
      %v1292 = vpop.permute.xlu0 %1291
      %1293 = vset.pattern.permute.xlu0 0
      %1294 = vperm.xlu0 %1293, %v1247
      %v1295 = vpop.permute.xlu0 %1294
      %1296 = vset.pattern.permute.xlu0 0
      %1297 = vperm.xlu0 %1296, %v1248
      %v1298 = vpop.permute.xlu0 %1297
      %1299 = vset.pattern.permute.xlu0 0
      %1300 = vperm.xlu0 %1299, %v1249
      %v1301 = vpop.permute.xlu0 %1300
      %1302 = vset.pattern.permute.xlu0 0
      %1303 = vperm.xlu0 %1302, %v1250
      %v1304 = vpop.permute.xlu0 %1303
      %1305 = vset.pattern.permute.xlu0 0
      %1306 = vperm.xlu0 %1305, %v1251
      %v1307 = vpop.permute.xlu0 %1306
      %1308 = vset.pattern.permute.xlu0 0
      %1309 = vperm.xlu0 %1308, %v1252
      %v1310 = vpop.permute.xlu0 %1309
      %1311 = vset.pattern.permute.xlu0 0
      %1312 = vperm.xlu0 %1311, %v1253
      %v1313 = vpop.permute.xlu0 %1312
      %1314 = vset.pattern.permute.xlu0 0
      %1315 = vperm.xlu0 %1314, %v1254
      %v1316 = vpop.permute.xlu0 %1315
      %1317 = vset.pattern.permute.xlu0 0
      %1318 = vperm.xlu0 %1317, %v1255
      %v1319 = vpop.permute.xlu0 %1318
      %1320 = vset.pattern.permute.xlu0 0
      %1321 = vperm.xlu0 %1320, %v1256
      %v1322 = vpop.permute.xlu0 %1321
      %1323 = vset.pattern.permute.xlu0 0
      %1324 = vperm.xlu0 %1323, %v1257
      %v1325 = vpop.permute.xlu0 %1324
      %1326 = vset.pattern.permute.xlu0 0
      %1327 = vperm.xlu0 %1326, %v1258
      %v1328 = vpop.permute.xlu0 %1327
      %1329 = vset.pattern.permute.xlu0 0
      %1330 = vperm.xlu0 %1329, %v1259
      %v1331 = vpop.permute.xlu0 %1330
      %1332 = vset.pattern.permute.xlu0 0
      %1333 = vperm.xlu0 %1332, %v1260
      %v1334 = vpop.permute.xlu0 %1333
      %1335 = vset.pattern.permute.xlu0 0
      %1336 = vperm.xlu0 %1335, %v1261
      %v1337 = vpop.permute.xlu0 %1336
      %1338 = vset.pattern.permute.xlu0 0
      %1339 = vperm.xlu0 %1338, %v1262
      %v1340 = vpop.permute.xlu0 %1339
      %1341 = vset.pattern.permute.xlu0 0
      %1342 = vperm.xlu0 %1341, %v1263
      %v1343 = vpop.permute.xlu0 %1342
      %1344 = vset.pattern.permute.xlu0 0
      %1345 = vperm.xlu0 %1344, %v1264
      %v1346 = vpop.permute.xlu0 %1345
      %1347 = vset.pattern.permute.xlu0 0
      %1348 = vperm.xlu0 %1347, %v1265
      %v1349 = vpop.permute.xlu0 %1348
      %1350 = vset.pattern.permute.xlu0 0
      %1351 = vperm.xlu0 %1350, %v1266
      %v1352 = vpop.permute.xlu0 %1351
      %1353 = vset.pattern.permute.xlu0 0
      %1354 = vperm.xlu0 %1353, %v1267
      %v1355 = vpop.permute.xlu0 %1354
      %1356 = vset.pattern.permute.xlu0 0
      %1357 = vperm.xlu0 %1356, %v1268
      %v1358 = vpop.permute.xlu0 %1357
      %1359 = vset.pattern.permute.xlu0 0
      %1360 = vperm.xlu0 %1359, %v1269
      %v1361 = vpop.permute.xlu0 %1360
      %1362 = vset.pattern.permute.xlu0 0
      %1363 = vperm.xlu0 %1362, %v1270
      %v1364 = vpop.permute.xlu0 %1363
      %1365 = vset.pattern.permute.xlu0 0
      %1366 = vperm.xlu0 %1365, %v1271
      %v1367 = vpop.permute.xlu0 %1366
      %vm1368 = vcmp.eq.s32.totalorder %v1274, 1
      %vm1369 = vcmp.eq.s32.totalorder %v1277, 1
      %vm1370 = vcmp.eq.s32.totalorder %v1280, 1
      %vm1371 = vcmp.eq.s32.totalorder %v1283, 1
      %vm1372 = vcmp.eq.s32.totalorder %v1286, 1
      %vm1373 = vcmp.eq.s32.totalorder %v1289, 1
      %vm1374 = vcmp.eq.s32.totalorder %v1292, 1
      %vm1375 = vcmp.eq.s32.totalorder %v1295, 1
      %vm1376 = vcmp.eq.s32.totalorder %v1298, 1
      %vm1377 = vcmp.eq.s32.totalorder %v1301, 1
      %vm1378 = vcmp.eq.s32.totalorder %v1304, 1
      %vm1379 = vcmp.eq.s32.totalorder %v1307, 1
      %vm1380 = vcmp.eq.s32.totalorder %v1310, 1
      %vm1381 = vcmp.eq.s32.totalorder %v1313, 1
      %vm1382 = vcmp.eq.s32.totalorder %v1316, 1
      %vm1383 = vcmp.eq.s32.totalorder %v1319, 1
      %vm1384 = vcmp.eq.s32.totalorder %v1322, 1
      %vm1385 = vcmp.eq.s32.totalorder %v1325, 1
      %vm1386 = vcmp.eq.s32.totalorder %v1328, 1
      %vm1387 = vcmp.eq.s32.totalorder %v1331, 1
      %vm1388 = vcmp.eq.s32.totalorder %v1334, 1
      %vm1389 = vcmp.eq.s32.totalorder %v1337, 1
      %vm1390 = vcmp.eq.s32.totalorder %v1340, 1
      %vm1391 = vcmp.eq.s32.totalorder %v1343, 1
      %vm1392 = vcmp.eq.s32.totalorder %v1346, 1
      %vm1393 = vcmp.eq.s32.totalorder %v1349, 1
      %vm1394 = vcmp.eq.s32.totalorder %v1352, 1
      %vm1395 = vcmp.eq.s32.totalorder %v1355, 1
      %vm1396 = vcmp.eq.s32.totalorder %v1358, 1
      %vm1397 = vcmp.eq.s32.totalorder %v1361, 1
      %vm1398 = vcmp.eq.s32.totalorder %v1364, 1
      %vm1399 = vcmp.eq.s32.totalorder %v1367, 1
      %v1400 = vsel %vm1368, %v1239, 0.0
      %v1401 = vsel %vm1369, %v1238, 0.0
      %v1402 = vsel %vm1370, %v1237, 0.0
      %v1403 = vsel %vm1371, %v1236, 0.0
      %v1404 = vsel %vm1372, %v1235, 0.0
      %v1405 = vsel %vm1373, %v1234, 0.0
      %v1406 = vsel %vm1374, %v1233, 0.0
      %v1407 = vsel %vm1375, %v1232, 0.0
      %v1408 = vsel %vm1376, %v1231, 0.0
      %v1409 = vsel %vm1377, %v1230, 0.0
      %v1410 = vsel %vm1378, %v1229, 0.0
      %v1411 = vsel %vm1379, %v1228, 0.0
      %v1412 = vsel %vm1380, %v1227, 0.0
      %v1413 = vsel %vm1381, %v1226, 0.0
      %v1414 = vsel %vm1382, %v1225, 0.0
      %v1415 = vsel %vm1383, %v1224, 0.0
      %v1416 = vsel %vm1384, %v1223, 0.0
      %v1417 = vsel %vm1385, %v1222, 0.0
      %v1418 = vsel %vm1386, %v1221, 0.0
      %v1419 = vsel %vm1387, %v1220, 0.0
      %v1420 = vsel %vm1388, %v1219, 0.0
      %v1421 = vsel %vm1389, %v1218, 0.0
      %v1422 = vsel %vm1390, %v1217, 0.0
      %v1423 = vsel %vm1391, %v1216, 0.0
      %v1424 = vsel %vm1392, %v1215, 0.0
      %v1425 = vsel %vm1393, %v1214, 0.0
      %v1426 = vsel %vm1394, %v1213, 0.0
      %v1427 = vsel %vm1395, %v1212, 0.0
      %v1428 = vsel %vm1396, %v1211, 0.0
      %v1429 = vsel %vm1397, %v1210, 0.0
      %v1430 = vsel %vm1398, %v1209, 0.0
      %v1431 = vsel %vm1399, %v1208, 0.0
      %1464 = vrot.lane.b32.xlu0 %v1096, 104
      %v1465 = vpop.permute.xlu0 %1464
      %1466 = vrot.lane.b32.xlu0 %v1098, 104
      %v1467 = vpop.permute.xlu0 %1466
      %1468 = vrot.lane.b32.xlu0 %v1101, 104
      %v1469 = vpop.permute.xlu0 %1468
      %1470 = vrot.lane.b32.xlu0 %v1103, 104
      %v1471 = vpop.permute.xlu0 %1470
      %1472 = vrot.lane.b32.xlu0 %v1106, 104
      %v1473 = vpop.permute.xlu0 %1472
      %1474 = vrot.lane.b32.xlu0 %v1108, 104
      %v1475 = vpop.permute.xlu0 %1474
      %1476 = vrot.lane.b32.xlu0 %v1111, 104
      %v1477 = vpop.permute.xlu0 %1476
      %1478 = vrot.lane.b32.xlu0 %v1113, 104
      %v1479 = vpop.permute.xlu0 %1478
      %1480 = vrot.lane.b32.xlu0 %v1116, 104
      %v1481 = vpop.permute.xlu0 %1480
      %1482 = vrot.lane.b32.xlu0 %v1118, 104
      %v1483 = vpop.permute.xlu0 %1482
      %1484 = vrot.lane.b32.xlu0 %v1121, 104
      %v1485 = vpop.permute.xlu0 %1484
      %1486 = vrot.lane.b32.xlu0 %v1123, 104
      %v1487 = vpop.permute.xlu0 %1486
      %1488 = vrot.lane.b32.xlu0 %v1126, 104
      %v1489 = vpop.permute.xlu0 %1488
      %1490 = vrot.lane.b32.xlu0 %v1128, 104
      %v1491 = vpop.permute.xlu0 %1490
      %1492 = vrot.lane.b32.xlu0 %v1131, 104
      %v1493 = vpop.permute.xlu0 %1492
      %1494 = vrot.lane.b32.xlu0 %v1133, 104
      %v1495 = vpop.permute.xlu0 %1494
      %1496 = vrot.lane.b32.xlu0 %v1136, 104
      %v1497 = vpop.permute.xlu0 %1496
      %1498 = vrot.lane.b32.xlu0 %v1138, 104
      %v1499 = vpop.permute.xlu0 %1498
      %1500 = vrot.lane.b32.xlu0 %v1141, 104
      %v1501 = vpop.permute.xlu0 %1500
      %1502 = vrot.lane.b32.xlu0 %v1143, 104
      %v1503 = vpop.permute.xlu0 %1502
      %1504 = vrot.lane.b32.xlu0 %v1146, 104
      %v1505 = vpop.permute.xlu0 %1504
      %1506 = vrot.lane.b32.xlu0 %v1148, 104
      %v1507 = vpop.permute.xlu0 %1506
      %1508 = vrot.lane.b32.xlu0 %v1151, 104
      %v1509 = vpop.permute.xlu0 %1508
      %1510 = vrot.lane.b32.xlu0 %v1153, 104
      %v1511 = vpop.permute.xlu0 %1510
      %1512 = vrot.lane.b32.xlu0 %v1156, 104
      %v1513 = vpop.permute.xlu0 %1512
      %1514 = vrot.lane.b32.xlu0 %v1158, 104
      %v1515 = vpop.permute.xlu0 %1514
      %1516 = vrot.lane.b32.xlu0 %v1161, 104
      %v1517 = vpop.permute.xlu0 %1516
      %1518 = vrot.lane.b32.xlu0 %v1163, 104
      %v1519 = vpop.permute.xlu0 %1518
      %1520 = vrot.lane.b32.xlu0 %v1166, 104
      %v1521 = vpop.permute.xlu0 %1520
      %1522 = vrot.lane.b32.xlu0 %v1168, 104
      %v1523 = vpop.permute.xlu0 %1522
      %1524 = vrot.lane.b32.xlu0 %v1171, 104
      %v1525 = vpop.permute.xlu0 %1524
      %1526 = vrot.lane.b32.xlu0 %v1173, 104
      %v1527 = vpop.permute.xlu0 %1526
      %v1560 = vrot.slane %v1465, 1
      %v1561 = vrot.slane %v1467, 1
      %v1562 = vrot.slane %v1469, 1
      %v1563 = vrot.slane %v1471, 1
      %v1564 = vrot.slane %v1473, 1
      %v1565 = vrot.slane %v1475, 1
      %v1566 = vrot.slane %v1477, 1
      %v1567 = vrot.slane %v1479, 1
      %v1568 = vrot.slane %v1481, 1
      %v1569 = vrot.slane %v1483, 1
      %v1570 = vrot.slane %v1485, 1
      %v1571 = vrot.slane %v1487, 1
      %v1572 = vrot.slane %v1489, 1
      %v1573 = vrot.slane %v1491, 1
      %v1574 = vrot.slane %v1493, 1
      %v1575 = vrot.slane %v1495, 1
      %v1576 = vrot.slane %v1497, 1
      %v1577 = vrot.slane %v1499, 1
      %v1578 = vrot.slane %v1501, 1
      %v1579 = vrot.slane %v1503, 1
      %v1580 = vrot.slane %v1505, 1
      %v1581 = vrot.slane %v1507, 1
      %v1582 = vrot.slane %v1509, 1
      %v1583 = vrot.slane %v1511, 1
      %v1584 = vrot.slane %v1513, 1
      %v1585 = vrot.slane %v1515, 1
      %v1586 = vrot.slane %v1517, 1
      %v1587 = vrot.slane %v1519, 1
      %v1588 = vrot.slane %v1521, 1
      %v1589 = vrot.slane %v1523, 1
      %v1590 = vrot.slane %v1525, 1
      %v1591 = vrot.slane %v1527, 1
      %vm1592 = vcmp.lt.s32.totalorder %v809, 7
      %v1593 = vsel %vm1592, %v1590, %v1591
      %v1594 = vsel %vm1592, %v1589, %v1590
      %v1595 = vsel %vm1592, %v1588, %v1589
      %v1596 = vsel %vm1592, %v1587, %v1588
      %v1597 = vsel %vm1592, %v1586, %v1587
      %v1598 = vsel %vm1592, %v1585, %v1586
      %v1599 = vsel %vm1592, %v1584, %v1585
      %v1600 = vsel %vm1592, %v1583, %v1584
      %v1601 = vsel %vm1592, %v1582, %v1583
      %v1602 = vsel %vm1592, %v1581, %v1582
      %v1603 = vsel %vm1592, %v1580, %v1581
      %v1604 = vsel %vm1592, %v1579, %v1580
      %v1605 = vsel %vm1592, %v1578, %v1579
      %v1606 = vsel %vm1592, %v1577, %v1578
      %v1607 = vsel %vm1592, %v1576, %v1577
      %v1608 = vsel %vm1592, %v1575, %v1576
      %v1609 = vsel %vm1592, %v1574, %v1575
      %v1610 = vsel %vm1592, %v1573, %v1574
      %v1611 = vsel %vm1592, %v1572, %v1573
      %v1612 = vsel %vm1592, %v1571, %v1572
      %v1613 = vsel %vm1592, %v1570, %v1571
      %v1614 = vsel %vm1592, %v1569, %v1570
      %v1615 = vsel %vm1592, %v1568, %v1569
      %v1616 = vsel %vm1592, %v1567, %v1568
      %v1617 = vsel %vm1592, %v1566, %v1567
      %v1618 = vsel %vm1592, %v1565, %v1566
      %v1619 = vsel %vm1592, %v1564, %v1565
      %v1620 = vsel %vm1592, %v1563, %v1564
      %v1621 = vsel %vm1592, %v1562, %v1563
      %v1622 = vsel %vm1592, %v1561, %v1562
      %v1623 = vsel %vm1592, %v1560, %v1561
      %v1624 = vsel %vm1592, %v1591, %v1560
      %1625 = vset.pattern.permute.xlu0 1
      %1626 = vperm.xlu0 %1625, %v1240
      %v1627 = vpop.permute.xlu0 %1626
      %1628 = vset.pattern.permute.xlu0 1
      %1629 = vperm.xlu0 %1628, %v1241
      %v1630 = vpop.permute.xlu0 %1629
      %1631 = vset.pattern.permute.xlu0 1
      %1632 = vperm.xlu0 %1631, %v1242
      %v1633 = vpop.permute.xlu0 %1632
      %1634 = vset.pattern.permute.xlu0 1
      %1635 = vperm.xlu0 %1634, %v1243
      %v1636 = vpop.permute.xlu0 %1635
      %1637 = vset.pattern.permute.xlu0 1
      %1638 = vperm.xlu0 %1637, %v1244
      %v1639 = vpop.permute.xlu0 %1638
      %1640 = vset.pattern.permute.xlu0 1
      %1641 = vperm.xlu0 %1640, %v1245
      %v1642 = vpop.permute.xlu0 %1641
      %1643 = vset.pattern.permute.xlu0 1
      %1644 = vperm.xlu0 %1643, %v1246
      %v1645 = vpop.permute.xlu0 %1644
      %1646 = vset.pattern.permute.xlu0 1
      %1647 = vperm.xlu0 %1646, %v1247
      %v1648 = vpop.permute.xlu0 %1647
      %1649 = vset.pattern.permute.xlu0 1
      %1650 = vperm.xlu0 %1649, %v1248
      %v1651 = vpop.permute.xlu0 %1650
      %1652 = vset.pattern.permute.xlu0 1
      %1653 = vperm.xlu0 %1652, %v1249
      %v1654 = vpop.permute.xlu0 %1653
      %1655 = vset.pattern.permute.xlu0 1
      %1656 = vperm.xlu0 %1655, %v1250
      %v1657 = vpop.permute.xlu0 %1656
      %1658 = vset.pattern.permute.xlu0 1
      %1659 = vperm.xlu0 %1658, %v1251
      %v1660 = vpop.permute.xlu0 %1659
      %1661 = vset.pattern.permute.xlu0 1
      %1662 = vperm.xlu0 %1661, %v1252
      %v1663 = vpop.permute.xlu0 %1662
      %1664 = vset.pattern.permute.xlu0 1
      %1665 = vperm.xlu0 %1664, %v1253
      %v1666 = vpop.permute.xlu0 %1665
      %1667 = vset.pattern.permute.xlu0 1
      %1668 = vperm.xlu0 %1667, %v1254
      %v1669 = vpop.permute.xlu0 %1668
      %1670 = vset.pattern.permute.xlu0 1
      %1671 = vperm.xlu0 %1670, %v1255
      %v1672 = vpop.permute.xlu0 %1671
      %1673 = vset.pattern.permute.xlu0 1
      %1674 = vperm.xlu0 %1673, %v1256
      %v1675 = vpop.permute.xlu0 %1674
      %1676 = vset.pattern.permute.xlu0 1
      %1677 = vperm.xlu0 %1676, %v1257
      %v1678 = vpop.permute.xlu0 %1677
      %1679 = vset.pattern.permute.xlu0 1
      %1680 = vperm.xlu0 %1679, %v1258
      %v1681 = vpop.permute.xlu0 %1680
      %1682 = vset.pattern.permute.xlu0 1
      %1683 = vperm.xlu0 %1682, %v1259
      %v1684 = vpop.permute.xlu0 %1683
      %1685 = vset.pattern.permute.xlu0 1
      %1686 = vperm.xlu0 %1685, %v1260
      %v1687 = vpop.permute.xlu0 %1686
      %1688 = vset.pattern.permute.xlu0 1
      %1689 = vperm.xlu0 %1688, %v1261
      %v1690 = vpop.permute.xlu0 %1689
      %1691 = vset.pattern.permute.xlu0 1
      %1692 = vperm.xlu0 %1691, %v1262
      %v1693 = vpop.permute.xlu0 %1692
      %1694 = vset.pattern.permute.xlu0 1
      %1695 = vperm.xlu0 %1694, %v1263
      %v1696 = vpop.permute.xlu0 %1695
      %1697 = vset.pattern.permute.xlu0 1
      %1698 = vperm.xlu0 %1697, %v1264
      %v1699 = vpop.permute.xlu0 %1698
      %1700 = vset.pattern.permute.xlu0 1
      %1701 = vperm.xlu0 %1700, %v1265
      %v1702 = vpop.permute.xlu0 %1701
      %1703 = vset.pattern.permute.xlu0 1
      %1704 = vperm.xlu0 %1703, %v1266
      %v1705 = vpop.permute.xlu0 %1704
      %1706 = vset.pattern.permute.xlu0 1
      %1707 = vperm.xlu0 %1706, %v1267
      %v1708 = vpop.permute.xlu0 %1707
      %1709 = vset.pattern.permute.xlu0 1
      %1710 = vperm.xlu0 %1709, %v1268
      %v1711 = vpop.permute.xlu0 %1710
      %1712 = vset.pattern.permute.xlu0 1
      %1713 = vperm.xlu0 %1712, %v1269
      %v1714 = vpop.permute.xlu0 %1713
      %1715 = vset.pattern.permute.xlu0 1
      %1716 = vperm.xlu0 %1715, %v1270
      %v1717 = vpop.permute.xlu0 %1716
      %1718 = vset.pattern.permute.xlu0 1
      %1719 = vperm.xlu0 %1718, %v1271
      %v1720 = vpop.permute.xlu0 %1719
      %vm1721 = vcmp.eq.s32.totalorder %v1627, 1
      %vm1722 = vcmp.eq.s32.totalorder %v1630, 1
      %vm1723 = vcmp.eq.s32.totalorder %v1633, 1
      %vm1724 = vcmp.eq.s32.totalorder %v1636, 1
      %vm1725 = vcmp.eq.s32.totalorder %v1639, 1
      %vm1726 = vcmp.eq.s32.totalorder %v1642, 1
      %vm1727 = vcmp.eq.s32.totalorder %v1645, 1
      %vm1728 = vcmp.eq.s32.totalorder %v1648, 1
      %vm1729 = vcmp.eq.s32.totalorder %v1651, 1
      %vm1730 = vcmp.eq.s32.totalorder %v1654, 1
      %vm1731 = vcmp.eq.s32.totalorder %v1657, 1
      %vm1732 = vcmp.eq.s32.totalorder %v1660, 1
      %vm1733 = vcmp.eq.s32.totalorder %v1663, 1
      %vm1734 = vcmp.eq.s32.totalorder %v1666, 1
      %vm1735 = vcmp.eq.s32.totalorder %v1669, 1
      %vm1736 = vcmp.eq.s32.totalorder %v1672, 1
      %vm1737 = vcmp.eq.s32.totalorder %v1675, 1
      %vm1738 = vcmp.eq.s32.totalorder %v1678, 1
      %vm1739 = vcmp.eq.s32.totalorder %v1681, 1
      %vm1740 = vcmp.eq.s32.totalorder %v1684, 1
      %vm1741 = vcmp.eq.s32.totalorder %v1687, 1
      %vm1742 = vcmp.eq.s32.totalorder %v1690, 1
      %vm1743 = vcmp.eq.s32.totalorder %v1693, 1
      %vm1744 = vcmp.eq.s32.totalorder %v1696, 1
      %vm1745 = vcmp.eq.s32.totalorder %v1699, 1
      %vm1746 = vcmp.eq.s32.totalorder %v1702, 1
      %vm1747 = vcmp.eq.s32.totalorder %v1705, 1
      %vm1748 = vcmp.eq.s32.totalorder %v1708, 1
      %vm1749 = vcmp.eq.s32.totalorder %v1711, 1
      %vm1750 = vcmp.eq.s32.totalorder %v1714, 1
      %vm1751 = vcmp.eq.s32.totalorder %v1717, 1
      %vm1752 = vcmp.eq.s32.totalorder %v1720, 1
      %v1753 = vsel %vm1721, %v1623, 0.0
      %v1754 = vsel %vm1722, %v1622, 0.0
      %v1755 = vsel %vm1723, %v1621, 0.0
      %v1756 = vsel %vm1724, %v1620, 0.0
      %v1757 = vsel %vm1725, %v1619, 0.0
      %v1758 = vsel %vm1726, %v1618, 0.0
      %v1759 = vsel %vm1727, %v1617, 0.0
      %v1760 = vsel %vm1728, %v1616, 0.0
      %v1761 = vsel %vm1729, %v1615, 0.0
      %v1762 = vsel %vm1730, %v1614, 0.0
      %v1763 = vsel %vm1731, %v1613, 0.0
      %v1764 = vsel %vm1732, %v1612, 0.0
      %v1765 = vsel %vm1733, %v1611, 0.0
      %v1766 = vsel %vm1734, %v1610, 0.0
      %v1767 = vsel %vm1735, %v1609, 0.0
      %v1768 = vsel %vm1736, %v1608, 0.0
      %v1769 = vsel %vm1737, %v1607, 0.0
      %v1770 = vsel %vm1738, %v1606, 0.0
      %v1771 = vsel %vm1739, %v1605, 0.0
      %v1772 = vsel %vm1740, %v1604, 0.0
      %v1773 = vsel %vm1741, %v1603, 0.0
      %v1774 = vsel %vm1742, %v1602, 0.0
      %v1775 = vsel %vm1743, %v1601, 0.0
      %v1776 = vsel %vm1744, %v1600, 0.0
      %v1777 = vsel %vm1745, %v1599, 0.0
      %v1778 = vsel %vm1746, %v1598, 0.0
      %v1779 = vsel %vm1747, %v1597, 0.0
      %v1780 = vsel %vm1748, %v1596, 0.0
      %v1781 = vsel %vm1749, %v1595, 0.0
      %v1782 = vsel %vm1750, %v1594, 0.0
      %v1783 = vsel %vm1751, %v1593, 0.0
      %v1784 = vsel %vm1752, %v1624, 0.0
      %1785 = vrot.lane.b32.xlu0 %v1096, 116
      %v1786 = vpop.permute.xlu0 %1785
      %1787 = vrot.lane.b32.xlu0 %v1098, 116
      %v1788 = vpop.permute.xlu0 %1787
      %1789 = vrot.lane.b32.xlu0 %v1101, 116
      %v1790 = vpop.permute.xlu0 %1789
      %1791 = vrot.lane.b32.xlu0 %v1103, 116
      %v1792 = vpop.permute.xlu0 %1791
      %1793 = vrot.lane.b32.xlu0 %v1106, 116
      %v1794 = vpop.permute.xlu0 %1793
      %1795 = vrot.lane.b32.xlu0 %v1108, 116
      %v1796 = vpop.permute.xlu0 %1795
      %1797 = vrot.lane.b32.xlu0 %v1111, 116
      %v1798 = vpop.permute.xlu0 %1797
      %1799 = vrot.lane.b32.xlu0 %v1113, 116
      %v1800 = vpop.permute.xlu0 %1799
      %1801 = vrot.lane.b32.xlu0 %v1116, 116
      %v1802 = vpop.permute.xlu0 %1801
      %1803 = vrot.lane.b32.xlu0 %v1118, 116
      %v1804 = vpop.permute.xlu0 %1803
      %1805 = vrot.lane.b32.xlu0 %v1121, 116
      %v1806 = vpop.permute.xlu0 %1805
      %1807 = vrot.lane.b32.xlu0 %v1123, 116
      %v1808 = vpop.permute.xlu0 %1807
      %1809 = vrot.lane.b32.xlu0 %v1126, 116
      %v1810 = vpop.permute.xlu0 %1809
      %1811 = vrot.lane.b32.xlu0 %v1128, 116
      %v1812 = vpop.permute.xlu0 %1811
      %1813 = vrot.lane.b32.xlu0 %v1131, 116
      %v1814 = vpop.permute.xlu0 %1813
      %1815 = vrot.lane.b32.xlu0 %v1133, 116
      %v1816 = vpop.permute.xlu0 %1815
      %1817 = vrot.lane.b32.xlu0 %v1136, 116
      %v1818 = vpop.permute.xlu0 %1817
      %1819 = vrot.lane.b32.xlu0 %v1138, 116
      %v1820 = vpop.permute.xlu0 %1819
      %1821 = vrot.lane.b32.xlu0 %v1141, 116
      %v1822 = vpop.permute.xlu0 %1821
      %1823 = vrot.lane.b32.xlu0 %v1143, 116
      %v1824 = vpop.permute.xlu0 %1823
      %1825 = vrot.lane.b32.xlu0 %v1146, 116
      %v1826 = vpop.permute.xlu0 %1825
      %1827 = vrot.lane.b32.xlu0 %v1148, 116
      %v1828 = vpop.permute.xlu0 %1827
      %1829 = vrot.lane.b32.xlu0 %v1151, 116
      %v1830 = vpop.permute.xlu0 %1829
      %1831 = vrot.lane.b32.xlu0 %v1153, 116
      %v1832 = vpop.permute.xlu0 %1831
      %1833 = vrot.lane.b32.xlu0 %v1156, 116
      %v1834 = vpop.permute.xlu0 %1833
      %1835 = vrot.lane.b32.xlu0 %v1158, 116
      %v1836 = vpop.permute.xlu0 %1835
      %1837 = vrot.lane.b32.xlu0 %v1161, 116
      %v1838 = vpop.permute.xlu0 %1837
      %1839 = vrot.lane.b32.xlu0 %v1163, 116
      %v1840 = vpop.permute.xlu0 %1839
      %1841 = vrot.lane.b32.xlu0 %v1166, 116
      %v1842 = vpop.permute.xlu0 %1841
      %1843 = vrot.lane.b32.xlu0 %v1168, 116
      %v1844 = vpop.permute.xlu0 %1843
      %1845 = vrot.lane.b32.xlu0 %v1171, 116
      %v1846 = vpop.permute.xlu0 %1845
      %1847 = vrot.lane.b32.xlu0 %v1173, 116
      %v1848 = vpop.permute.xlu0 %1847
      %v1881 = vadd.f32 %v1400, %v1786
      %v1882 = vadd.f32 %v1401, %v1788
      %v1883 = vadd.f32 %v1402, %v1790
      %v1884 = vadd.f32 %v1403, %v1792
      %v1885 = vadd.f32 %v1404, %v1794
      %v1886 = vadd.f32 %v1405, %v1796
      %v1887 = vadd.f32 %v1406, %v1798
      %v1888 = vadd.f32 %v1407, %v1800
      %v1889 = vadd.f32 %v1408, %v1802
      %v1890 = vadd.f32 %v1409, %v1804
      %v1891 = vadd.f32 %v1410, %v1806
      %v1892 = vadd.f32 %v1411, %v1808
      %v1893 = vadd.f32 %v1412, %v1810
      %v1894 = vadd.f32 %v1413, %v1812
      %v1895 = vadd.f32 %v1414, %v1814
      %v1896 = vadd.f32 %v1415, %v1816
      %v1897 = vadd.f32 %v1416, %v1818
      %v1898 = vadd.f32 %v1417, %v1820
      %v1899 = vadd.f32 %v1418, %v1822
      %v1900 = vadd.f32 %v1419, %v1824
      %v1901 = vadd.f32 %v1420, %v1826
      %v1902 = vadd.f32 %v1421, %v1828
      %v1903 = vadd.f32 %v1422, %v1830
      %v1904 = vadd.f32 %v1423, %v1832
      %v1905 = vadd.f32 %v1424, %v1834
      %v1906 = vadd.f32 %v1425, %v1836
      %v1907 = vadd.f32 %v1426, %v1838
      %v1908 = vadd.f32 %v1427, %v1840
      %v1909 = vadd.f32 %v1428, %v1842
      %v1910 = vadd.f32 %v1429, %v1844
      %v1911 = vadd.f32 %v1430, %v1846
      %v1912 = vadd.f32 %v1431, %v1848
      %v1913 = vadd.f32 %v1881, %v1753
      %v1914 = vadd.f32 %v1882, %v1754
      %v1915 = vadd.f32 %v1883, %v1755
      %v1916 = vadd.f32 %v1884, %v1756
      %v1917 = vadd.f32 %v1885, %v1757
      %v1918 = vadd.f32 %v1886, %v1758
      %v1919 = vadd.f32 %v1887, %v1759
      %v1920 = vadd.f32 %v1888, %v1760
      %v1921 = vadd.f32 %v1889, %v1761
      %v1922 = vadd.f32 %v1890, %v1762
      %v1923 = vadd.f32 %v1891, %v1763
      %v1924 = vadd.f32 %v1892, %v1764
      %v1925 = vadd.f32 %v1893, %v1765
      %v1926 = vadd.f32 %v1894, %v1766
      %v1927 = vadd.f32 %v1895, %v1767
      %v1928 = vadd.f32 %v1896, %v1768
      %v1929 = vadd.f32 %v1897, %v1769
      %v1930 = vadd.f32 %v1898, %v1770
      %v1931 = vadd.f32 %v1899, %v1771
      %v1932 = vadd.f32 %v1900, %v1772
      %v1933 = vadd.f32 %v1901, %v1773
      %v1934 = vadd.f32 %v1902, %v1774
      %v1935 = vadd.f32 %v1903, %v1775
      %v1936 = vadd.f32 %v1904, %v1776
      %v1937 = vadd.f32 %v1905, %v1777
      %v1938 = vadd.f32 %v1906, %v1778
      %v1939 = vadd.f32 %v1907, %v1779
      %v1940 = vadd.f32 %v1908, %v1780
      %v1941 = vadd.f32 %v1909, %v1781
      %v1942 = vadd.f32 %v1910, %v1782
      %v1943 = vadd.f32 %v1911, %v1783
      %v1944 = vadd.f32 %v1912, %v1784
      %v1945 = vsel %vm836, 1, 0
      %v1946 = vsel %vm837, 1, 0
      %v1947 = vsel %vm838, 1, 0
      %v1948 = vsel %vm839, 1, 0
      %v1949 = vsel %vm840, 1, 0
      %v1950 = vsel %vm841, 1, 0
      %v1951 = vsel %vm842, 1, 0
      %v1952 = vsel %vm843, 1, 0
      %v1953 = vsel %vm844, 1, 0
      %v1954 = vsel %vm845, 1, 0
      %v1955 = vsel %vm846, 1, 0
      %v1956 = vsel %vm847, 1, 0
      %v1957 = vsel %vm848, 1, 0
      %v1958 = vsel %vm849, 1, 0
      %v1959 = vsel %vm850, 1, 0
      %v1960 = vsel %vm851, 1, 0
      %v1961 = vsel %vm852, 1, 0
      %v1962 = vsel %vm853, 1, 0
      %v1963 = vsel %vm854, 1, 0
      %v1964 = vsel %vm855, 1, 0
      %v1965 = vsel %vm856, 1, 0
      %v1966 = vsel %vm857, 1, 0
      %v1967 = vsel %vm858, 1, 0
      %v1968 = vsel %vm859, 1, 0
      %vm1969 = vcmp.eq.s32.totalorder %v1945, 1
      %vm1970 = vcmp.eq.s32.totalorder %v1946, 1
      %vm1971 = vcmp.eq.s32.totalorder %v1947, 1
      %vm1972 = vcmp.eq.s32.totalorder %v1948, 1
      %vm1973 = vcmp.eq.s32.totalorder %v1949, 1
      %vm1974 = vcmp.eq.s32.totalorder %v1950, 1
      %vm1975 = vcmp.eq.s32.totalorder %v1951, 1
      %vm1976 = vcmp.eq.s32.totalorder %v1952, 1
      %vm1977 = vcmp.eq.s32.totalorder %v1953, 1
      %vm1978 = vcmp.eq.s32.totalorder %v1954, 1
      %vm1979 = vcmp.eq.s32.totalorder %v1955, 1
      %vm1980 = vcmp.eq.s32.totalorder %v1956, 1
      %vm1981 = vcmp.eq.s32.totalorder %v1957, 1
      %vm1982 = vcmp.eq.s32.totalorder %v1958, 1
      %vm1983 = vcmp.eq.s32.totalorder %v1959, 1
      %vm1984 = vcmp.eq.s32.totalorder %v1960, 1
      %vm1985 = vcmp.eq.s32.totalorder %v1961, 1
      %vm1986 = vcmp.eq.s32.totalorder %v1962, 1
      %vm1987 = vcmp.eq.s32.totalorder %v1963, 1
      %vm1988 = vcmp.eq.s32.totalorder %v1964, 1
      %vm1989 = vcmp.eq.s32.totalorder %v1965, 1
      %vm1990 = vcmp.eq.s32.totalorder %v1966, 1
      %vm1991 = vcmp.eq.s32.totalorder %v1967, 1
      %vm1992 = vcmp.eq.s32.totalorder %v1968, 1
      %v1993 = vsel %vm1969, %v1913, 0.0
      %v1994 = vsel %vm1970, %v1914, 0.0
      %v1995 = vsel %vm1971, %v1915, 0.0
      %v1996 = vsel %vm1972, %v1916, 0.0
      %v1997 = vsel %vm1973, %v1917, 0.0
      %v1998 = vsel %vm1974, %v1918, 0.0
      %v1999 = vsel %vm1975, %v1919, 0.0
      %v2000 = vsel %vm1976, %v1920, 0.0
      %v2001 = vsel %vm1977, %v1921, 0.0
      %v2002 = vsel %vm1978, %v1922, 0.0
      %v2003 = vsel %vm1979, %v1923, 0.0
      %v2004 = vsel %vm1980, %v1924, 0.0
      %v2005 = vsel %vm1981, %v1925, 0.0
      %v2006 = vsel %vm1982, %v1926, 0.0
      %v2007 = vsel %vm1983, %v1927, 0.0
      %v2008 = vsel %vm1984, %v1928, 0.0
      %v2009 = vsel %vm1985, %v1929, 0.0
      %v2010 = vsel %vm1986, %v1930, 0.0
      %v2011 = vsel %vm1987, %v1931, 0.0
      %v2012 = vsel %vm1988, %v1932, 0.0
      %v2013 = vsel %vm1989, %v1933, 0.0
      %v2014 = vsel %vm1990, %v1934, 0.0
      %v2015 = vsel %vm1991, %v1935, 0.0
      %v2016 = vsel %vm1992, %v1936, 0.0
      %v2017 = vsel %vm863, 1, 0
      %v2018 = vsel %vm864, 1, 0
      %v2019 = vsel %vm865, 1, 0
      %v2020 = vsel %vm866, 1, 0
      %v2021 = vsel %vm867, 1, 0
      %v2022 = vsel %vm868, 1, 0
      %v2023 = vsel %vm869, 1, 0
      %v2024 = vsel %vm870, 1, 0
      %v2025 = vsel %vm871, 1, 0
      %v2026 = vsel %vm872, 1, 0
      %v2027 = vsel %vm873, 1, 0
      %v2028 = vsel %vm874, 1, 0
      %v2029 = vsel %vm875, 1, 0
      %v2030 = vsel %vm876, 1, 0
      %v2031 = vsel %vm877, 1, 0
      %v2032 = vsel %vm878, 1, 0
      %v2033 = vsel %vm879, 1, 0
      %v2034 = vsel %vm880, 1, 0
      %v2035 = vsel %vm881, 1, 0
      %v2036 = vsel %vm882, 1, 0
      %v2037 = vsel %vm883, 1, 0
      %v2038 = vsel %vm884, 1, 0
      %v2039 = vsel %vm885, 1, 0
      %v2040 = vsel %vm886, 1, 0
      %vm2041 = vcmp.eq.s32.totalorder %v2017, 1
      %vm2042 = vcmp.eq.s32.totalorder %v2018, 1
      %vm2043 = vcmp.eq.s32.totalorder %v2019, 1
      %vm2044 = vcmp.eq.s32.totalorder %v2020, 1
      %vm2045 = vcmp.eq.s32.totalorder %v2021, 1
      %vm2046 = vcmp.eq.s32.totalorder %v2022, 1
      %vm2047 = vcmp.eq.s32.totalorder %v2023, 1
      %vm2048 = vcmp.eq.s32.totalorder %v2024, 1
      %vm2049 = vcmp.eq.s32.totalorder %v2025, 1
      %vm2050 = vcmp.eq.s32.totalorder %v2026, 1
      %vm2051 = vcmp.eq.s32.totalorder %v2027, 1
      %vm2052 = vcmp.eq.s32.totalorder %v2028, 1
      %vm2053 = vcmp.eq.s32.totalorder %v2029, 1
      %vm2054 = vcmp.eq.s32.totalorder %v2030, 1
      %vm2055 = vcmp.eq.s32.totalorder %v2031, 1
      %vm2056 = vcmp.eq.s32.totalorder %v2032, 1
      %vm2057 = vcmp.eq.s32.totalorder %v2033, 1
      %vm2058 = vcmp.eq.s32.totalorder %v2034, 1
      %vm2059 = vcmp.eq.s32.totalorder %v2035, 1
      %vm2060 = vcmp.eq.s32.totalorder %v2036, 1
      %vm2061 = vcmp.eq.s32.totalorder %v2037, 1
      %vm2062 = vcmp.eq.s32.totalorder %v2038, 1
      %vm2063 = vcmp.eq.s32.totalorder %v2039, 1
      %vm2064 = vcmp.eq.s32.totalorder %v2040, 1
      %v2065 = vsel %vm2041, %v1921, 0.0
      %v2066 = vsel %vm2042, %v1922, 0.0
      %v2067 = vsel %vm2043, %v1923, 0.0
      %v2068 = vsel %vm2044, %v1924, 0.0
      %v2069 = vsel %vm2045, %v1925, 0.0
      %v2070 = vsel %vm2046, %v1926, 0.0
      %v2071 = vsel %vm2047, %v1927, 0.0
      %v2072 = vsel %vm2048, %v1928, 0.0
      %v2073 = vsel %vm2049, %v1929, 0.0
      %v2074 = vsel %vm2050, %v1930, 0.0
      %v2075 = vsel %vm2051, %v1931, 0.0
      %v2076 = vsel %vm2052, %v1932, 0.0
      %v2077 = vsel %vm2053, %v1933, 0.0
      %v2078 = vsel %vm2054, %v1934, 0.0
      %v2079 = vsel %vm2055, %v1935, 0.0
      %v2080 = vsel %vm2056, %v1936, 0.0
      %v2081 = vsel %vm2057, %v1937, 0.0
      %v2082 = vsel %vm2058, %v1938, 0.0
      %v2083 = vsel %vm2059, %v1939, 0.0
      %v2084 = vsel %vm2060, %v1940, 0.0
      %v2085 = vsel %vm2061, %v1941, 0.0
      %v2086 = vsel %vm2062, %v1942, 0.0
      %v2087 = vsel %vm2063, %v1943, 0.0
      %v2088 = vsel %vm2064, %v1944, 0.0
      %2113 = vrot.lane.b32.xlu0 %v1917, 124
      %v2114 = vpop.permute.xlu0 %2113
      %2115 = vrot.lane.b32.xlu0 %v1918, 124
      %v2116 = vpop.permute.xlu0 %2115
      %2117 = vrot.lane.b32.xlu0 %v1919, 124
      %v2118 = vpop.permute.xlu0 %2117
      %2119 = vrot.lane.b32.xlu0 %v1920, 124
      %v2120 = vpop.permute.xlu0 %2119
      %2121 = vrot.lane.b32.xlu0 %v1921, 124
      %v2122 = vpop.permute.xlu0 %2121
      %2123 = vrot.lane.b32.xlu0 %v1922, 124
      %v2124 = vpop.permute.xlu0 %2123
      %2125 = vrot.lane.b32.xlu0 %v1923, 124
      %v2126 = vpop.permute.xlu0 %2125
      %2127 = vrot.lane.b32.xlu0 %v1924, 124
      %v2128 = vpop.permute.xlu0 %2127
      %2129 = vrot.lane.b32.xlu0 %v1925, 124
      %v2130 = vpop.permute.xlu0 %2129
      %2131 = vrot.lane.b32.xlu0 %v1926, 124
      %v2132 = vpop.permute.xlu0 %2131
      %2133 = vrot.lane.b32.xlu0 %v1927, 124
      %v2134 = vpop.permute.xlu0 %2133
      %2135 = vrot.lane.b32.xlu0 %v1928, 124
      %v2136 = vpop.permute.xlu0 %2135
      %2137 = vrot.lane.b32.xlu0 %v1929, 124
      %v2138 = vpop.permute.xlu0 %2137
      %2139 = vrot.lane.b32.xlu0 %v1930, 124
      %v2140 = vpop.permute.xlu0 %2139
      %2141 = vrot.lane.b32.xlu0 %v1931, 124
      %v2142 = vpop.permute.xlu0 %2141
      %2143 = vrot.lane.b32.xlu0 %v1932, 124
      %v2144 = vpop.permute.xlu0 %2143
      %2145 = vrot.lane.b32.xlu0 %v1933, 124
      %v2146 = vpop.permute.xlu0 %2145
      %2147 = vrot.lane.b32.xlu0 %v1934, 124
      %v2148 = vpop.permute.xlu0 %2147
      %2149 = vrot.lane.b32.xlu0 %v1935, 124
      %v2150 = vpop.permute.xlu0 %2149
      %2151 = vrot.lane.b32.xlu0 %v1936, 124
      %v2152 = vpop.permute.xlu0 %2151
      %2153 = vrot.lane.b32.xlu0 %v1937, 124
      %v2154 = vpop.permute.xlu0 %2153
      %2155 = vrot.lane.b32.xlu0 %v1938, 124
      %v2156 = vpop.permute.xlu0 %2155
      %2157 = vrot.lane.b32.xlu0 %v1939, 124
      %v2158 = vpop.permute.xlu0 %2157
      %2159 = vrot.lane.b32.xlu0 %v1940, 124
      %v2160 = vpop.permute.xlu0 %2159
      %v2185 = vadd.f32 %v1993, %v2114
      %v2186 = vadd.f32 %v1994, %v2116
      %v2187 = vadd.f32 %v1995, %v2118
      %v2188 = vadd.f32 %v1996, %v2120
      %v2189 = vadd.f32 %v1997, %v2122
      %v2190 = vadd.f32 %v1998, %v2124
      %v2191 = vadd.f32 %v1999, %v2126
      %v2192 = vadd.f32 %v2000, %v2128
      %v2193 = vadd.f32 %v2001, %v2130
      %v2194 = vadd.f32 %v2002, %v2132
      %v2195 = vadd.f32 %v2003, %v2134
      %v2196 = vadd.f32 %v2004, %v2136
      %v2197 = vadd.f32 %v2005, %v2138
      %v2198 = vadd.f32 %v2006, %v2140
      %v2199 = vadd.f32 %v2007, %v2142
      %v2200 = vadd.f32 %v2008, %v2144
      %v2201 = vadd.f32 %v2009, %v2146
      %v2202 = vadd.f32 %v2010, %v2148
      %v2203 = vadd.f32 %v2011, %v2150
      %v2204 = vadd.f32 %v2012, %v2152
      %v2205 = vadd.f32 %v2013, %v2154
      %v2206 = vadd.f32 %v2014, %v2156
      %v2207 = vadd.f32 %v2015, %v2158
      %v2208 = vadd.f32 %v2016, %v2160
      %2233 = vrot.lane.b32.xlu0 %v2065, 120
      %v2234 = vpop.permute.xlu0 %2233
      %2235 = vrot.lane.b32.xlu0 %v2066, 120
      %v2236 = vpop.permute.xlu0 %2235
      %2237 = vrot.lane.b32.xlu0 %v2067, 120
      %v2238 = vpop.permute.xlu0 %2237
      %2239 = vrot.lane.b32.xlu0 %v2068, 120
      %v2240 = vpop.permute.xlu0 %2239
      %2241 = vrot.lane.b32.xlu0 %v2069, 120
      %v2242 = vpop.permute.xlu0 %2241
      %2243 = vrot.lane.b32.xlu0 %v2070, 120
      %v2244 = vpop.permute.xlu0 %2243
      %2245 = vrot.lane.b32.xlu0 %v2071, 120
      %v2246 = vpop.permute.xlu0 %2245
      %2247 = vrot.lane.b32.xlu0 %v2072, 120
      %v2248 = vpop.permute.xlu0 %2247
      %2249 = vrot.lane.b32.xlu0 %v2073, 120
      %v2250 = vpop.permute.xlu0 %2249
      %2251 = vrot.lane.b32.xlu0 %v2074, 120
      %v2252 = vpop.permute.xlu0 %2251
      %2253 = vrot.lane.b32.xlu0 %v2075, 120
      %v2254 = vpop.permute.xlu0 %2253
      %2255 = vrot.lane.b32.xlu0 %v2076, 120
      %v2256 = vpop.permute.xlu0 %2255
      %2257 = vrot.lane.b32.xlu0 %v2077, 120
      %v2258 = vpop.permute.xlu0 %2257
      %2259 = vrot.lane.b32.xlu0 %v2078, 120
      %v2260 = vpop.permute.xlu0 %2259
      %2261 = vrot.lane.b32.xlu0 %v2079, 120
      %v2262 = vpop.permute.xlu0 %2261
      %2263 = vrot.lane.b32.xlu0 %v2080, 120
      %v2264 = vpop.permute.xlu0 %2263
      %2265 = vrot.lane.b32.xlu0 %v2081, 120
      %v2266 = vpop.permute.xlu0 %2265
      %2267 = vrot.lane.b32.xlu0 %v2082, 120
      %v2268 = vpop.permute.xlu0 %2267
      %2269 = vrot.lane.b32.xlu0 %v2083, 120
      %v2270 = vpop.permute.xlu0 %2269
      %2271 = vrot.lane.b32.xlu0 %v2084, 120
      %v2272 = vpop.permute.xlu0 %2271
      %2273 = vrot.lane.b32.xlu0 %v2085, 120
      %v2274 = vpop.permute.xlu0 %2273
      %2275 = vrot.lane.b32.xlu0 %v2086, 120
      %v2276 = vpop.permute.xlu0 %2275
      %2277 = vrot.lane.b32.xlu0 %v2087, 120
      %v2278 = vpop.permute.xlu0 %2277
      %2279 = vrot.lane.b32.xlu0 %v2088, 120
      %v2280 = vpop.permute.xlu0 %2279
      %v2305 = vadd.f32 %v2185, %v2234
      %v2306 = vadd.f32 %v2186, %v2236
      %v2307 = vadd.f32 %v2187, %v2238
      %v2308 = vadd.f32 %v2188, %v2240
      %v2309 = vadd.f32 %v2189, %v2242
      %v2310 = vadd.f32 %v2190, %v2244
      %v2311 = vadd.f32 %v2191, %v2246
      %v2312 = vadd.f32 %v2192, %v2248
      %v2313 = vadd.f32 %v2193, %v2250
      %v2314 = vadd.f32 %v2194, %v2252
      %v2315 = vadd.f32 %v2195, %v2254
      %v2316 = vadd.f32 %v2196, %v2256
      %v2317 = vadd.f32 %v2197, %v2258
      %v2318 = vadd.f32 %v2198, %v2260
      %v2319 = vadd.f32 %v2199, %v2262
      %v2320 = vadd.f32 %v2200, %v2264
      %v2321 = vadd.f32 %v2201, %v2266
      %v2322 = vadd.f32 %v2202, %v2268
      %v2323 = vadd.f32 %v2203, %v2270
      %v2324 = vadd.f32 %v2204, %v2272
      %v2325 = vadd.f32 %v2205, %v2274
      %v2326 = vadd.f32 %v2206, %v2276
      %v2327 = vadd.f32 %v2207, %v2278
      %v2328 = vadd.f32 %v2208, %v2280
      %v2329 = vld [vmem:[%s6] sm:$0x1]
      %v2331 = vperm.slane %v2329, 0
      %v2333 = vadd.f32 %v2305, %v2331
      %v2334 = vadd.f32 %v2306, %v2331
      %v2335 = vadd.f32 %v2307, %v2331
      %v2336 = vadd.f32 %v2308, %v2331
      %v2337 = vadd.f32 %v2309, %v2331
      %v2338 = vadd.f32 %v2310, %v2331
      %v2339 = vadd.f32 %v2311, %v2331
      %v2340 = vadd.f32 %v2312, %v2331
      %v2341 = vadd.f32 %v2313, %v2331
      %v2342 = vadd.f32 %v2314, %v2331
      %v2343 = vadd.f32 %v2315, %v2331
      %v2344 = vadd.f32 %v2316, %v2331
      %v2345 = vadd.f32 %v2317, %v2331
      %v2346 = vadd.f32 %v2318, %v2331
      %v2347 = vadd.f32 %v2319, %v2331
      %v2348 = vadd.f32 %v2320, %v2331
      %v2349 = vadd.f32 %v2321, %v2331
      %v2350 = vadd.f32 %v2322, %v2331
      %v2351 = vadd.f32 %v2323, %v2331
      %v2352 = vadd.f32 %v2324, %v2331
      %v2353 = vadd.f32 %v2325, %v2331
      %v2354 = vadd.f32 %v2326, %v2331
      %v2355 = vadd.f32 %v2327, %v2331
      %v2356 = vadd.f32 %v2328, %v2331
      %v2357 = vxor.u32 %v2333, 2147483648
      %v2358 = vxor.u32 %v2334, 2147483648
      %v2359 = vxor.u32 %v2335, 2147483648
      %v2360 = vxor.u32 %v2336, 2147483648
      %v2361 = vxor.u32 %v2337, 2147483648
      %v2362 = vxor.u32 %v2338, 2147483648
      %v2363 = vxor.u32 %v2339, 2147483648
      %v2364 = vxor.u32 %v2340, 2147483648
      %v2365 = vxor.u32 %v2341, 2147483648
      %v2366 = vxor.u32 %v2342, 2147483648
      %v2367 = vxor.u32 %v2343, 2147483648
      %v2368 = vxor.u32 %v2344, 2147483648
      %v2369 = vxor.u32 %v2345, 2147483648
      %v2370 = vxor.u32 %v2346, 2147483648
      %v2371 = vxor.u32 %v2347, 2147483648
      %v2372 = vxor.u32 %v2348, 2147483648
      %v2373 = vxor.u32 %v2349, 2147483648
      %v2374 = vxor.u32 %v2350, 2147483648
      %v2375 = vxor.u32 %v2351, 2147483648
      %v2376 = vxor.u32 %v2352, 2147483648
      %v2377 = vxor.u32 %v2353, 2147483648
      %v2378 = vxor.u32 %v2354, 2147483648
      %v2379 = vxor.u32 %v2355, 2147483648
      %v2380 = vxor.u32 %v2356, 2147483648
      %v2381 = vmul.f32 %v2357, 1.442695
      %v2382 = vpow.pop %v2381
      %v2383 = vmul.f32 %v2358, 1.442695
      %v2384 = vpow.pop %v2383
      %v2385 = vmul.f32 %v2359, 1.442695
      %v2386 = vpow.pop %v2385
      %v2387 = vmul.f32 %v2360, 1.442695
      %v2388 = vpow.pop %v2387
      %v2389 = vmul.f32 %v2361, 1.442695
      %v2390 = vpow.pop %v2389
      %v2391 = vmul.f32 %v2362, 1.442695
      %v2392 = vpow.pop %v2391
      %v2393 = vmul.f32 %v2363, 1.442695
      %v2394 = vpow.pop %v2393
      %v2395 = vmul.f32 %v2364, 1.442695
      %v2396 = vpow.pop %v2395
      %v2397 = vmul.f32 %v2365, 1.442695
      %v2398 = vpow.pop %v2397
      %v2399 = vmul.f32 %v2366, 1.442695
      %v2400 = vpow.pop %v2399
      %v2401 = vmul.f32 %v2367, 1.442695
      %v2402 = vpow.pop %v2401
      %v2403 = vmul.f32 %v2368, 1.442695
      %v2404 = vpow.pop %v2403
      %v2405 = vmul.f32 %v2369, 1.442695
      %v2406 = vpow.pop %v2405
      %v2407 = vmul.f32 %v2370, 1.442695
      %v2408 = vpow.pop %v2407
      %v2409 = vmul.f32 %v2371, 1.442695
      %v2410 = vpow.pop %v2409
      %v2411 = vmul.f32 %v2372, 1.442695
      %v2412 = vpow.pop %v2411
      %v2413 = vmul.f32 %v2373, 1.442695
      %v2414 = vpow.pop %v2413
      %v2415 = vmul.f32 %v2374, 1.442695
      %v2416 = vpow.pop %v2415
      %v2417 = vmul.f32 %v2375, 1.442695
      %v2418 = vpow.pop %v2417
      %v2419 = vmul.f32 %v2376, 1.442695
      %v2420 = vpow.pop %v2419
      %v2421 = vmul.f32 %v2377, 1.442695
      %v2422 = vpow.pop %v2421
      %v2423 = vmul.f32 %v2378, 1.442695
      %v2424 = vpow.pop %v2423
      %v2425 = vmul.f32 %v2379, 1.442695
      %v2426 = vpow.pop %v2425
      %v2427 = vmul.f32 %v2380, 1.442695
      %v2428 = vpow.pop %v2427
      %v2429 = vadd.f32 %v2382, 1.0
      %v2430 = vadd.f32 %v2384, 1.0
      %v2431 = vadd.f32 %v2386, 1.0
      %v2432 = vadd.f32 %v2388, 1.0
      %v2433 = vadd.f32 %v2390, 1.0
      %v2434 = vadd.f32 %v2392, 1.0
      %v2435 = vadd.f32 %v2394, 1.0
      %v2436 = vadd.f32 %v2396, 1.0
      %v2437 = vadd.f32 %v2398, 1.0
      %v2438 = vadd.f32 %v2400, 1.0
      %v2439 = vadd.f32 %v2402, 1.0
      %v2440 = vadd.f32 %v2404, 1.0
      %v2441 = vadd.f32 %v2406, 1.0
      %v2442 = vadd.f32 %v2408, 1.0
      %v2443 = vadd.f32 %v2410, 1.0
      %v2444 = vadd.f32 %v2412, 1.0
      %v2445 = vadd.f32 %v2414, 1.0
      %v2446 = vadd.f32 %v2416, 1.0
      %v2447 = vadd.f32 %v2418, 1.0
      %v2448 = vadd.f32 %v2420, 1.0
      %v2449 = vadd.f32 %v2422, 1.0
      %v2450 = vadd.f32 %v2424, 1.0
      %v2451 = vadd.f32 %v2426, 1.0
      %v2452 = vadd.f32 %v2428, 1.0
      %v2453 = vrcp.pop %v2429
      %v2454 = vmul.f32 %v2429, %v2453
      %v2455 = vsub.f32 1.0, %v2454
      %v2456 = vmul.f32 %v2453, %v2455
      %v2457 = vadd.f32 %v2453, %v2456
      %vm2458 = vweird.f32 %v2429
      %vm2459 = vweird.f32 %v2453
      %vm2460 = vmor %vm2458, %vm2459
      %v2461 = vsel %vm2460, %v2453, %v2457
      %v2462 = vand.u32 2147483647, %v2429
      %vm2463 = vcmp.eq.f32.partialorder %v2462, 8.507059e+37
      %v2464 = vand.u32 %v2429, 2147483648
      %v2465 = vor.u32 1.1754944e-38, %v2464
      %v2466 = vsel %vm2463, %v2465, %v2461
      %v2467 = vmul.f32 1.0, %v2466
      %v2468 = vrcp.pop %v2430
      %v2469 = vmul.f32 %v2430, %v2468
      %v2470 = vsub.f32 1.0, %v2469
      %v2471 = vmul.f32 %v2468, %v2470
      %v2472 = vadd.f32 %v2468, %v2471
      %vm2473 = vweird.f32 %v2430
      %vm2474 = vweird.f32 %v2468
      %vm2475 = vmor %vm2473, %vm2474
      %v2476 = vsel %vm2475, %v2468, %v2472
      %v2477 = vand.u32 2147483647, %v2430
      %vm2478 = vcmp.eq.f32.partialorder %v2477, 8.507059e+37
      %v2479 = vand.u32 %v2430, 2147483648
      %v2480 = vor.u32 1.1754944e-38, %v2479
      %v2481 = vsel %vm2478, %v2480, %v2476
      %v2482 = vmul.f32 1.0, %v2481
      %v2483 = vrcp.pop %v2431
      %v2484 = vmul.f32 %v2431, %v2483
      %v2485 = vsub.f32 1.0, %v2484
      %v2486 = vmul.f32 %v2483, %v2485
      %v2487 = vadd.f32 %v2483, %v2486
      %vm2488 = vweird.f32 %v2431
      %vm2489 = vweird.f32 %v2483
      %vm2490 = vmor %vm2488, %vm2489
      %v2491 = vsel %vm2490, %v2483, %v2487
      %v2492 = vand.u32 2147483647, %v2431
      %vm2493 = vcmp.eq.f32.partialorder %v2492, 8.507059e+37
      %v2494 = vand.u32 %v2431, 2147483648
      %v2495 = vor.u32 1.1754944e-38, %v2494
      %v2496 = vsel %vm2493, %v2495, %v2491
      %v2497 = vmul.f32 1.0, %v2496
      %v2498 = vrcp.pop %v2432
      %v2499 = vmul.f32 %v2432, %v2498
      %v2500 = vsub.f32 1.0, %v2499
      %v2501 = vmul.f32 %v2498, %v2500
      %v2502 = vadd.f32 %v2498, %v2501
      %vm2503 = vweird.f32 %v2432
      %vm2504 = vweird.f32 %v2498
      %vm2505 = vmor %vm2503, %vm2504
      %v2506 = vsel %vm2505, %v2498, %v2502
      %v2507 = vand.u32 2147483647, %v2432
      %vm2508 = vcmp.eq.f32.partialorder %v2507, 8.507059e+37
      %v2509 = vand.u32 %v2432, 2147483648
      %v2510 = vor.u32 1.1754944e-38, %v2509
      %v2511 = vsel %vm2508, %v2510, %v2506
      %v2512 = vmul.f32 1.0, %v2511
      %v2513 = vrcp.pop %v2433
      %v2514 = vmul.f32 %v2433, %v2513
      %v2515 = vsub.f32 1.0, %v2514
      %v2516 = vmul.f32 %v2513, %v2515
      %v2517 = vadd.f32 %v2513, %v2516
      %vm2518 = vweird.f32 %v2433
      %vm2519 = vweird.f32 %v2513
      %vm2520 = vmor %vm2518, %vm2519
      %v2521 = vsel %vm2520, %v2513, %v2517
      %v2522 = vand.u32 2147483647, %v2433
      %vm2523 = vcmp.eq.f32.partialorder %v2522, 8.507059e+37
      %v2524 = vand.u32 %v2433, 2147483648
      %v2525 = vor.u32 1.1754944e-38, %v2524
      %v2526 = vsel %vm2523, %v2525, %v2521
      %v2527 = vmul.f32 1.0, %v2526
      %v2528 = vrcp.pop %v2434
      %v2529 = vmul.f32 %v2434, %v2528
      %v2530 = vsub.f32 1.0, %v2529
      %v2531 = vmul.f32 %v2528, %v2530
      %v2532 = vadd.f32 %v2528, %v2531
      %vm2533 = vweird.f32 %v2434
      %vm2534 = vweird.f32 %v2528
      %vm2535 = vmor %vm2533, %vm2534
      %v2536 = vsel %vm2535, %v2528, %v2532
      %v2537 = vand.u32 2147483647, %v2434
      %vm2538 = vcmp.eq.f32.partialorder %v2537, 8.507059e+37
      %v2539 = vand.u32 %v2434, 2147483648
      %v2540 = vor.u32 1.1754944e-38, %v2539
      %v2541 = vsel %vm2538, %v2540, %v2536
      %v2542 = vmul.f32 1.0, %v2541
      %v2543 = vrcp.pop %v2435
      %v2544 = vmul.f32 %v2435, %v2543
      %v2545 = vsub.f32 1.0, %v2544
      %v2546 = vmul.f32 %v2543, %v2545
      %v2547 = vadd.f32 %v2543, %v2546
      %vm2548 = vweird.f32 %v2435
      %vm2549 = vweird.f32 %v2543
      %vm2550 = vmor %vm2548, %vm2549
      %v2551 = vsel %vm2550, %v2543, %v2547
      %v2552 = vand.u32 2147483647, %v2435
      %vm2553 = vcmp.eq.f32.partialorder %v2552, 8.507059e+37
      %v2554 = vand.u32 %v2435, 2147483648
      %v2555 = vor.u32 1.1754944e-38, %v2554
      %v2556 = vsel %vm2553, %v2555, %v2551
      %v2557 = vmul.f32 1.0, %v2556
      %v2558 = vrcp.pop %v2436
      %v2559 = vmul.f32 %v2436, %v2558
      %v2560 = vsub.f32 1.0, %v2559
      %v2561 = vmul.f32 %v2558, %v2560
      %v2562 = vadd.f32 %v2558, %v2561
      %vm2563 = vweird.f32 %v2436
      %vm2564 = vweird.f32 %v2558
      %vm2565 = vmor %vm2563, %vm2564
      %v2566 = vsel %vm2565, %v2558, %v2562
      %v2567 = vand.u32 2147483647, %v2436
      %vm2568 = vcmp.eq.f32.partialorder %v2567, 8.507059e+37
      %v2569 = vand.u32 %v2436, 2147483648
      %v2570 = vor.u32 1.1754944e-38, %v2569
      %v2571 = vsel %vm2568, %v2570, %v2566
      %v2572 = vmul.f32 1.0, %v2571
      %v2573 = vrcp.pop %v2437
      %v2574 = vmul.f32 %v2437, %v2573
      %v2575 = vsub.f32 1.0, %v2574
      %v2576 = vmul.f32 %v2573, %v2575
      %v2577 = vadd.f32 %v2573, %v2576
      %vm2578 = vweird.f32 %v2437
      %vm2579 = vweird.f32 %v2573
      %vm2580 = vmor %vm2578, %vm2579
      %v2581 = vsel %vm2580, %v2573, %v2577
      %v2582 = vand.u32 2147483647, %v2437
      %vm2583 = vcmp.eq.f32.partialorder %v2582, 8.507059e+37
      %v2584 = vand.u32 %v2437, 2147483648
      %v2585 = vor.u32 1.1754944e-38, %v2584
      %v2586 = vsel %vm2583, %v2585, %v2581
      %v2587 = vmul.f32 1.0, %v2586
      %v2588 = vrcp.pop %v2438
      %v2589 = vmul.f32 %v2438, %v2588
      %v2590 = vsub.f32 1.0, %v2589
      %v2591 = vmul.f32 %v2588, %v2590
      %v2592 = vadd.f32 %v2588, %v2591
      %vm2593 = vweird.f32 %v2438
      %vm2594 = vweird.f32 %v2588
      %vm2595 = vmor %vm2593, %vm2594
      %v2596 = vsel %vm2595, %v2588, %v2592
      %v2597 = vand.u32 2147483647, %v2438
      %vm2598 = vcmp.eq.f32.partialorder %v2597, 8.507059e+37
      %v2599 = vand.u32 %v2438, 2147483648
      %v2600 = vor.u32 1.1754944e-38, %v2599
      %v2601 = vsel %vm2598, %v2600, %v2596
      %v2602 = vmul.f32 1.0, %v2601
      %v2603 = vrcp.pop %v2439
      %v2604 = vmul.f32 %v2439, %v2603
      %v2605 = vsub.f32 1.0, %v2604
      %v2606 = vmul.f32 %v2603, %v2605
      %v2607 = vadd.f32 %v2603, %v2606
      %vm2608 = vweird.f32 %v2439
      %vm2609 = vweird.f32 %v2603
      %vm2610 = vmor %vm2608, %vm2609
      %v2611 = vsel %vm2610, %v2603, %v2607
      %v2612 = vand.u32 2147483647, %v2439
      %vm2613 = vcmp.eq.f32.partialorder %v2612, 8.507059e+37
      %v2614 = vand.u32 %v2439, 2147483648
      %v2615 = vor.u32 1.1754944e-38, %v2614
      %v2616 = vsel %vm2613, %v2615, %v2611
      %v2617 = vmul.f32 1.0, %v2616
      %v2618 = vrcp.pop %v2440
      %v2619 = vmul.f32 %v2440, %v2618
      %v2620 = vsub.f32 1.0, %v2619
      %v2621 = vmul.f32 %v2618, %v2620
      %v2622 = vadd.f32 %v2618, %v2621
      %vm2623 = vweird.f32 %v2440
      %vm2624 = vweird.f32 %v2618
      %vm2625 = vmor %vm2623, %vm2624
      %v2626 = vsel %vm2625, %v2618, %v2622
      %v2627 = vand.u32 2147483647, %v2440
      %vm2628 = vcmp.eq.f32.partialorder %v2627, 8.507059e+37
      %v2629 = vand.u32 %v2440, 2147483648
      %v2630 = vor.u32 1.1754944e-38, %v2629
      %v2631 = vsel %vm2628, %v2630, %v2626
      %v2632 = vmul.f32 1.0, %v2631
      %v2633 = vrcp.pop %v2441
      %v2634 = vmul.f32 %v2441, %v2633
      %v2635 = vsub.f32 1.0, %v2634
      %v2636 = vmul.f32 %v2633, %v2635
      %v2637 = vadd.f32 %v2633, %v2636
      %vm2638 = vweird.f32 %v2441
      %vm2639 = vweird.f32 %v2633
      %vm2640 = vmor %vm2638, %vm2639
      %v2641 = vsel %vm2640, %v2633, %v2637
      %v2642 = vand.u32 2147483647, %v2441
      %vm2643 = vcmp.eq.f32.partialorder %v2642, 8.507059e+37
      %v2644 = vand.u32 %v2441, 2147483648
      %v2645 = vor.u32 1.1754944e-38, %v2644
      %v2646 = vsel %vm2643, %v2645, %v2641
      %v2647 = vmul.f32 1.0, %v2646
      %v2648 = vrcp.pop %v2442
      %v2649 = vmul.f32 %v2442, %v2648
      %v2650 = vsub.f32 1.0, %v2649
      %v2651 = vmul.f32 %v2648, %v2650
      %v2652 = vadd.f32 %v2648, %v2651
      %vm2653 = vweird.f32 %v2442
      %vm2654 = vweird.f32 %v2648
      %vm2655 = vmor %vm2653, %vm2654
      %v2656 = vsel %vm2655, %v2648, %v2652
      %v2657 = vand.u32 2147483647, %v2442
      %vm2658 = vcmp.eq.f32.partialorder %v2657, 8.507059e+37
      %v2659 = vand.u32 %v2442, 2147483648
      %v2660 = vor.u32 1.1754944e-38, %v2659
      %v2661 = vsel %vm2658, %v2660, %v2656
      %v2662 = vmul.f32 1.0, %v2661
      %v2663 = vrcp.pop %v2443
      %v2664 = vmul.f32 %v2443, %v2663
      %v2665 = vsub.f32 1.0, %v2664
      %v2666 = vmul.f32 %v2663, %v2665
      %v2667 = vadd.f32 %v2663, %v2666
      %vm2668 = vweird.f32 %v2443
      %vm2669 = vweird.f32 %v2663
      %vm2670 = vmor %vm2668, %vm2669
      %v2671 = vsel %vm2670, %v2663, %v2667
      %v2672 = vand.u32 2147483647, %v2443
      %vm2673 = vcmp.eq.f32.partialorder %v2672, 8.507059e+37
      %v2674 = vand.u32 %v2443, 2147483648
      %v2675 = vor.u32 1.1754944e-38, %v2674
      %v2676 = vsel %vm2673, %v2675, %v2671
      %v2677 = vmul.f32 1.0, %v2676
      %v2678 = vrcp.pop %v2444
      %v2679 = vmul.f32 %v2444, %v2678
      %v2680 = vsub.f32 1.0, %v2679
      %v2681 = vmul.f32 %v2678, %v2680
      %v2682 = vadd.f32 %v2678, %v2681
      %vm2683 = vweird.f32 %v2444
      %vm2684 = vweird.f32 %v2678
      %vm2685 = vmor %vm2683, %vm2684
      %v2686 = vsel %vm2685, %v2678, %v2682
      %v2687 = vand.u32 2147483647, %v2444
      %vm2688 = vcmp.eq.f32.partialorder %v2687, 8.507059e+37
      %v2689 = vand.u32 %v2444, 2147483648
      %v2690 = vor.u32 1.1754944e-38, %v2689
      %v2691 = vsel %vm2688, %v2690, %v2686
      %v2692 = vmul.f32 1.0, %v2691
      %v2693 = vrcp.pop %v2445
      %v2694 = vmul.f32 %v2445, %v2693
      %v2695 = vsub.f32 1.0, %v2694
      %v2696 = vmul.f32 %v2693, %v2695
      %v2697 = vadd.f32 %v2693, %v2696
      %vm2698 = vweird.f32 %v2445
      %vm2699 = vweird.f32 %v2693
      %vm2700 = vmor %vm2698, %vm2699
      %v2701 = vsel %vm2700, %v2693, %v2697
      %v2702 = vand.u32 2147483647, %v2445
      %vm2703 = vcmp.eq.f32.partialorder %v2702, 8.507059e+37
      %v2704 = vand.u32 %v2445, 2147483648
      %v2705 = vor.u32 1.1754944e-38, %v2704
      %v2706 = vsel %vm2703, %v2705, %v2701
      %v2707 = vmul.f32 1.0, %v2706
      %v2708 = vrcp.pop %v2446
      %v2709 = vmul.f32 %v2446, %v2708
      %v2710 = vsub.f32 1.0, %v2709
      %v2711 = vmul.f32 %v2708, %v2710
      %v2712 = vadd.f32 %v2708, %v2711
      %vm2713 = vweird.f32 %v2446
      %vm2714 = vweird.f32 %v2708
      %vm2715 = vmor %vm2713, %vm2714
      %v2716 = vsel %vm2715, %v2708, %v2712
      %v2717 = vand.u32 2147483647, %v2446
      %vm2718 = vcmp.eq.f32.partialorder %v2717, 8.507059e+37
      %v2719 = vand.u32 %v2446, 2147483648
      %v2720 = vor.u32 1.1754944e-38, %v2719
      %v2721 = vsel %vm2718, %v2720, %v2716
      %v2722 = vmul.f32 1.0, %v2721
      %v2723 = vrcp.pop %v2447
      %v2724 = vmul.f32 %v2447, %v2723
      %v2725 = vsub.f32 1.0, %v2724
      %v2726 = vmul.f32 %v2723, %v2725
      %v2727 = vadd.f32 %v2723, %v2726
      %vm2728 = vweird.f32 %v2447
      %vm2729 = vweird.f32 %v2723
      %vm2730 = vmor %vm2728, %vm2729
      %v2731 = vsel %vm2730, %v2723, %v2727
      %v2732 = vand.u32 2147483647, %v2447
      %vm2733 = vcmp.eq.f32.partialorder %v2732, 8.507059e+37
      %v2734 = vand.u32 %v2447, 2147483648
      %v2735 = vor.u32 1.1754944e-38, %v2734
      %v2736 = vsel %vm2733, %v2735, %v2731
      %v2737 = vmul.f32 1.0, %v2736
      %v2738 = vrcp.pop %v2448
      %v2739 = vmul.f32 %v2448, %v2738
      %v2740 = vsub.f32 1.0, %v2739
      %v2741 = vmul.f32 %v2738, %v2740
      %v2742 = vadd.f32 %v2738, %v2741
      %vm2743 = vweird.f32 %v2448
      %vm2744 = vweird.f32 %v2738
      %vm2745 = vmor %vm2743, %vm2744
      %v2746 = vsel %vm2745, %v2738, %v2742
      %v2747 = vand.u32 2147483647, %v2448
      %vm2748 = vcmp.eq.f32.partialorder %v2747, 8.507059e+37
      %v2749 = vand.u32 %v2448, 2147483648
      %v2750 = vor.u32 1.1754944e-38, %v2749
      %v2751 = vsel %vm2748, %v2750, %v2746
      %v2752 = vmul.f32 1.0, %v2751
      %v2753 = vrcp.pop %v2449
      %v2754 = vmul.f32 %v2449, %v2753
      %v2755 = vsub.f32 1.0, %v2754
      %v2756 = vmul.f32 %v2753, %v2755
      %v2757 = vadd.f32 %v2753, %v2756
      %vm2758 = vweird.f32 %v2449
      %vm2759 = vweird.f32 %v2753
      %vm2760 = vmor %vm2758, %vm2759
      %v2761 = vsel %vm2760, %v2753, %v2757
      %v2762 = vand.u32 2147483647, %v2449
      %vm2763 = vcmp.eq.f32.partialorder %v2762, 8.507059e+37
      %v2764 = vand.u32 %v2449, 2147483648
      %v2765 = vor.u32 1.1754944e-38, %v2764
      %v2766 = vsel %vm2763, %v2765, %v2761
      %v2767 = vmul.f32 1.0, %v2766
      %v2768 = vrcp.pop %v2450
      %v2769 = vmul.f32 %v2450, %v2768
      %v2770 = vsub.f32 1.0, %v2769
      %v2771 = vmul.f32 %v2768, %v2770
      %v2772 = vadd.f32 %v2768, %v2771
      %vm2773 = vweird.f32 %v2450
      %vm2774 = vweird.f32 %v2768
      %vm2775 = vmor %vm2773, %vm2774
      %v2776 = vsel %vm2775, %v2768, %v2772
      %v2777 = vand.u32 2147483647, %v2450
      %vm2778 = vcmp.eq.f32.partialorder %v2777, 8.507059e+37
      %v2779 = vand.u32 %v2450, 2147483648
      %v2780 = vor.u32 1.1754944e-38, %v2779
      %v2781 = vsel %vm2778, %v2780, %v2776
      %v2782 = vmul.f32 1.0, %v2781
      %v2783 = vrcp.pop %v2451
      %v2784 = vmul.f32 %v2451, %v2783
      %v2785 = vsub.f32 1.0, %v2784
      %v2786 = vmul.f32 %v2783, %v2785
      %v2787 = vadd.f32 %v2783, %v2786
      %vm2788 = vweird.f32 %v2451
      %vm2789 = vweird.f32 %v2783
      %vm2790 = vmor %vm2788, %vm2789
      %v2791 = vsel %vm2790, %v2783, %v2787
      %v2792 = vand.u32 2147483647, %v2451
      %vm2793 = vcmp.eq.f32.partialorder %v2792, 8.507059e+37
      %v2794 = vand.u32 %v2451, 2147483648
      %v2795 = vor.u32 1.1754944e-38, %v2794
      %v2796 = vsel %vm2793, %v2795, %v2791
      %v2797 = vmul.f32 1.0, %v2796
      %v2798 = vrcp.pop %v2452
      %v2799 = vmul.f32 %v2452, %v2798
      %v2800 = vsub.f32 1.0, %v2799
      %v2801 = vmul.f32 %v2798, %v2800
      %v2802 = vadd.f32 %v2798, %v2801
      %vm2803 = vweird.f32 %v2452
      %vm2804 = vweird.f32 %v2798
      %vm2805 = vmor %vm2803, %vm2804
      %v2806 = vsel %vm2805, %v2798, %v2802
      %v2807 = vand.u32 2147483647, %v2452
      %vm2808 = vcmp.eq.f32.partialorder %v2807, 8.507059e+37
      %v2809 = vand.u32 %v2452, 2147483648
      %v2810 = vor.u32 1.1754944e-38, %v2809
      %v2811 = vsel %vm2808, %v2810, %v2806
      %v2812 = vmul.f32 1.0, %v2811
      %v2813 = vunpack.c.l.bf16 %v716
      %v2814 = vunpack.c.l.bf16 %v717
      %v2815 = vunpack.c.l.bf16 %v718
      %v2816 = vunpack.c.l.bf16 %v719
      %v2817 = vunpack.c.l.bf16 %v720
      %v2818 = vunpack.c.l.bf16 %v721
      %v2819 = vunpack.c.l.bf16 %v722
      %v2820 = vunpack.c.l.bf16 %v723
      %v2821 = vunpack.c.l.bf16 %v724
      %v2822 = vunpack.c.l.bf16 %v725
      %v2823 = vunpack.c.l.bf16 %v726
      %v2824 = vunpack.c.l.bf16 %v727
      %v2825 = vunpack.c.l.bf16 %v728
      %v2826 = vunpack.c.l.bf16 %v729
      %v2827 = vunpack.c.l.bf16 %v730
      %v2828 = vunpack.c.l.bf16 %v731
      %v2829 = vunpack.c.l.bf16 %v732
      %v2830 = vunpack.c.l.bf16 %v733
      %v2831 = vunpack.c.l.bf16 %v734
      %v2832 = vunpack.c.l.bf16 %v735
      %v2833 = vunpack.c.l.bf16 %v736
      %v2834 = vunpack.c.l.bf16 %v737
      %v2835 = vunpack.c.l.bf16 %v738
      %v2836 = vunpack.c.l.bf16 %v739
      %2838 = vset.pattern.permute.xlu0 0
      %2839 = vperm.xlu0 %2838, %v2467
      %v2840 = vpop.permute.xlu0 %2839
      %2843 = vset.pattern.permute.xlu0 0
      %2844 = vperm.xlu0 %2843, %v2482
      %v2845 = vpop.permute.xlu0 %2844
      %2848 = vset.pattern.permute.xlu0 0
      %2849 = vperm.xlu0 %2848, %v2497
      %v2850 = vpop.permute.xlu0 %2849
      %2853 = vset.pattern.permute.xlu0 0
      %2854 = vperm.xlu0 %2853, %v2512
      %v2855 = vpop.permute.xlu0 %2854
      %2858 = vset.pattern.permute.xlu0 0
      %2859 = vperm.xlu0 %2858, %v2527
      %v2860 = vpop.permute.xlu0 %2859
      %2863 = vset.pattern.permute.xlu0 0
      %2864 = vperm.xlu0 %2863, %v2542
      %v2865 = vpop.permute.xlu0 %2864
      %2868 = vset.pattern.permute.xlu0 0
      %2869 = vperm.xlu0 %2868, %v2557
      %v2870 = vpop.permute.xlu0 %2869
      %2873 = vset.pattern.permute.xlu0 0
      %2874 = vperm.xlu0 %2873, %v2572
      %v2875 = vpop.permute.xlu0 %2874
      %2878 = vset.pattern.permute.xlu0 0
      %2879 = vperm.xlu0 %2878, %v2587
      %v2880 = vpop.permute.xlu0 %2879
      %2883 = vset.pattern.permute.xlu0 0
      %2884 = vperm.xlu0 %2883, %v2602
      %v2885 = vpop.permute.xlu0 %2884
      %2888 = vset.pattern.permute.xlu0 0
      %2889 = vperm.xlu0 %2888, %v2617
      %v2890 = vpop.permute.xlu0 %2889
      %2893 = vset.pattern.permute.xlu0 0
      %2894 = vperm.xlu0 %2893, %v2632
      %v2895 = vpop.permute.xlu0 %2894
      %2898 = vset.pattern.permute.xlu0 0
      %2899 = vperm.xlu0 %2898, %v2647
      %v2900 = vpop.permute.xlu0 %2899
      %2903 = vset.pattern.permute.xlu0 0
      %2904 = vperm.xlu0 %2903, %v2662
      %v2905 = vpop.permute.xlu0 %2904
      %2908 = vset.pattern.permute.xlu0 0
      %2909 = vperm.xlu0 %2908, %v2677
      %v2910 = vpop.permute.xlu0 %2909
      %2913 = vset.pattern.permute.xlu0 0
      %2914 = vperm.xlu0 %2913, %v2692
      %v2915 = vpop.permute.xlu0 %2914
      %2918 = vset.pattern.permute.xlu0 0
      %2919 = vperm.xlu0 %2918, %v2707
      %v2920 = vpop.permute.xlu0 %2919
      %2923 = vset.pattern.permute.xlu0 0
      %2924 = vperm.xlu0 %2923, %v2722
      %v2925 = vpop.permute.xlu0 %2924
      %2928 = vset.pattern.permute.xlu0 0
      %2929 = vperm.xlu0 %2928, %v2737
      %v2930 = vpop.permute.xlu0 %2929
      %2933 = vset.pattern.permute.xlu0 0
      %2934 = vperm.xlu0 %2933, %v2752
      %v2935 = vpop.permute.xlu0 %2934
      %2938 = vset.pattern.permute.xlu0 0
      %2939 = vperm.xlu0 %2938, %v2767
      %v2940 = vpop.permute.xlu0 %2939
      %2943 = vset.pattern.permute.xlu0 0
      %2944 = vperm.xlu0 %2943, %v2782
      %v2945 = vpop.permute.xlu0 %2944
      %2948 = vset.pattern.permute.xlu0 0
      %2949 = vperm.xlu0 %2948, %v2797
      %v2950 = vpop.permute.xlu0 %2949
      %2953 = vset.pattern.permute.xlu0 0
      %2954 = vperm.xlu0 %2953, %v2812
      %v2955 = vpop.permute.xlu0 %2954
      %v2957 = vmul.f32 %v2813, %v2840
      %v2958 = vmul.f32 %v2814, %v2845
      %v2959 = vmul.f32 %v2815, %v2850
      %v2960 = vmul.f32 %v2816, %v2855
      %v2961 = vmul.f32 %v2817, %v2860
      %v2962 = vmul.f32 %v2818, %v2865
      %v2963 = vmul.f32 %v2819, %v2870
      %v2964 = vmul.f32 %v2820, %v2875
      %v2965 = vmul.f32 %v2821, %v2880
      %v2966 = vmul.f32 %v2822, %v2885
      %v2967 = vmul.f32 %v2823, %v2890
      %v2968 = vmul.f32 %v2824, %v2895
      %v2969 = vmul.f32 %v2825, %v2900
      %v2970 = vmul.f32 %v2826, %v2905
      %v2971 = vmul.f32 %v2827, %v2910
      %v2972 = vmul.f32 %v2828, %v2915
      %v2973 = vmul.f32 %v2829, %v2920
      %v2974 = vmul.f32 %v2830, %v2925
      %v2975 = vmul.f32 %v2831, %v2930
      %v2976 = vmul.f32 %v2832, %v2935
      %v2977 = vmul.f32 %v2833, %v2940
      %v2978 = vmul.f32 %v2834, %v2945
      %v2979 = vmul.f32 %v2835, %v2950
      %v2980 = vmul.f32 %v2836, %v2955
      %v2981 = vpack.c.bf16 %v2958, %v2957
      %v2982 = vpack.c.bf16 %v2960, %v2959
      %v2983 = vpack.c.bf16 %v2962, %v2961
      %v2984 = vpack.c.bf16 %v2964, %v2963
      %v2985 = vpack.c.bf16 %v2966, %v2965
      %v2986 = vpack.c.bf16 %v2968, %v2967
      %v2987 = vpack.c.bf16 %v2970, %v2969
      %v2988 = vpack.c.bf16 %v2972, %v2971
      %v2989 = vpack.c.bf16 %v2974, %v2973
      %v2990 = vpack.c.bf16 %v2976, %v2975
      %v2991 = vpack.c.bf16 %v2978, %v2977
      %v2992 = vpack.c.bf16 %v2980, %v2979
      %v2993 = vld [vmem:[%s7] sm:$0xff]
      %v2994 = vld [vmem:[%s7 + $0x8] sm:$0xff]
      %2995 = vset.pattern.permute.xlu0 1
      %2996 = vperm.xlu0 %2995, %v2467
      %v2997 = vpop.permute.xlu0 %2996
      %2999 = vset.pattern.permute.xlu0 1
      %3000 = vperm.xlu0 %2999, %v2482
      %v3001 = vpop.permute.xlu0 %3000
      %3003 = vset.pattern.permute.xlu0 1
      %3004 = vperm.xlu0 %3003, %v2497
      %v3005 = vpop.permute.xlu0 %3004
      %3007 = vset.pattern.permute.xlu0 1
      %3008 = vperm.xlu0 %3007, %v2512
      %v3009 = vpop.permute.xlu0 %3008
      %3011 = vset.pattern.permute.xlu0 1
      %3012 = vperm.xlu0 %3011, %v2527
      %v3013 = vpop.permute.xlu0 %3012
      %3015 = vset.pattern.permute.xlu0 1
      %3016 = vperm.xlu0 %3015, %v2542
      %v3017 = vpop.permute.xlu0 %3016
      %3019 = vset.pattern.permute.xlu0 1
      %3020 = vperm.xlu0 %3019, %v2557
      %v3021 = vpop.permute.xlu0 %3020
      %3023 = vset.pattern.permute.xlu0 1
      %3024 = vperm.xlu0 %3023, %v2572
      %v3025 = vpop.permute.xlu0 %3024
      %3027 = vset.pattern.permute.xlu0 1
      %3028 = vperm.xlu0 %3027, %v2587
      %v3029 = vpop.permute.xlu0 %3028
      %3031 = vset.pattern.permute.xlu0 1
      %3032 = vperm.xlu0 %3031, %v2602
      %v3033 = vpop.permute.xlu0 %3032
      %3035 = vset.pattern.permute.xlu0 1
      %3036 = vperm.xlu0 %3035, %v2617
      %v3037 = vpop.permute.xlu0 %3036
      %3039 = vset.pattern.permute.xlu0 1
      %3040 = vperm.xlu0 %3039, %v2632
      %v3041 = vpop.permute.xlu0 %3040
      %3043 = vset.pattern.permute.xlu0 1
      %3044 = vperm.xlu0 %3043, %v2647
      %v3045 = vpop.permute.xlu0 %3044
      %3047 = vset.pattern.permute.xlu0 1
      %3048 = vperm.xlu0 %3047, %v2662
      %v3049 = vpop.permute.xlu0 %3048
      %3051 = vset.pattern.permute.xlu0 1
      %3052 = vperm.xlu0 %3051, %v2677
      %v3053 = vpop.permute.xlu0 %3052
      %3055 = vset.pattern.permute.xlu0 1
      %3056 = vperm.xlu0 %3055, %v2692
      %v3057 = vpop.permute.xlu0 %3056
      %3059 = vset.pattern.permute.xlu0 1
      %3060 = vperm.xlu0 %3059, %v2707
      %v3061 = vpop.permute.xlu0 %3060
      %3063 = vset.pattern.permute.xlu0 1
      %3064 = vperm.xlu0 %3063, %v2722
      %v3065 = vpop.permute.xlu0 %3064
      %3067 = vset.pattern.permute.xlu0 1
      %3068 = vperm.xlu0 %3067, %v2737
      %v3069 = vpop.permute.xlu0 %3068
      %3071 = vset.pattern.permute.xlu0 1
      %3072 = vperm.xlu0 %3071, %v2752
      %v3073 = vpop.permute.xlu0 %3072
      %3075 = vset.pattern.permute.xlu0 1
      %3076 = vperm.xlu0 %3075, %v2767
      %v3077 = vpop.permute.xlu0 %3076
      %3079 = vset.pattern.permute.xlu0 1
      %3080 = vperm.xlu0 %3079, %v2782
      %v3081 = vpop.permute.xlu0 %3080
      %3083 = vset.pattern.permute.xlu0 1
      %3084 = vperm.xlu0 %3083, %v2797
      %v3085 = vpop.permute.xlu0 %3084
      %3087 = vset.pattern.permute.xlu0 1
      %3088 = vperm.xlu0 %3087, %v2812
      %v3089 = vpop.permute.xlu0 %3088
      %v3091 = vmul.f32 %v2813, %v2997
      %v3092 = vmul.f32 %v2814, %v3001
      %v3093 = vmul.f32 %v2815, %v3005
      %v3094 = vmul.f32 %v2816, %v3009
      %v3095 = vmul.f32 %v2817, %v3013
      %v3096 = vmul.f32 %v2818, %v3017
      %v3097 = vmul.f32 %v2819, %v3021
      %v3098 = vmul.f32 %v2820, %v3025
      %v3099 = vmul.f32 %v2821, %v3029
      %v3100 = vmul.f32 %v2822, %v3033
      %v3101 = vmul.f32 %v2823, %v3037
      %v3102 = vmul.f32 %v2824, %v3041
      %v3103 = vmul.f32 %v2825, %v3045
      %v3104 = vmul.f32 %v2826, %v3049
      %v3105 = vmul.f32 %v2827, %v3053
      %v3106 = vmul.f32 %v2828, %v3057
      %v3107 = vmul.f32 %v2829, %v3061
      %v3108 = vmul.f32 %v2830, %v3065
      %v3109 = vmul.f32 %v2831, %v3069
      %v3110 = vmul.f32 %v2832, %v3073
      %v3111 = vmul.f32 %v2833, %v3077
      %v3112 = vmul.f32 %v2834, %v3081
      %v3113 = vmul.f32 %v2835, %v3085
      %v3114 = vmul.f32 %v2836, %v3089
      %v3115 = vpack.c.bf16 %v3092, %v3091
      %v3116 = vpack.c.bf16 %v3094, %v3093
      %v3117 = vpack.c.bf16 %v3096, %v3095
      %v3118 = vpack.c.bf16 %v3098, %v3097
      %v3119 = vpack.c.bf16 %v3100, %v3099
      %v3120 = vpack.c.bf16 %v3102, %v3101
      %v3121 = vpack.c.bf16 %v3104, %v3103
      %v3122 = vpack.c.bf16 %v3106, %v3105
      %v3123 = vpack.c.bf16 %v3108, %v3107
      %v3124 = vpack.c.bf16 %v3110, %v3109
      %v3125 = vpack.c.bf16 %v3112, %v3111
      %v3126 = vpack.c.bf16 %v3114, %v3113
      %v3127 = vld [vmem:[%s7 + $0x10] sm:$0xff]
      %v3128 = vld [vmem:[%s7 + $0x18] sm:$0xff]
      %3141 = vrot.lane.b32.xlu0 %v3115, 112
      %v3142 = vpop.permute.xlu0 %3141
      %3143 = vrot.lane.b32.xlu0 %v3116, 112
      %v3144 = vpop.permute.xlu0 %3143
      %3145 = vrot.lane.b32.xlu0 %v3117, 112
      %v3146 = vpop.permute.xlu0 %3145
      %3147 = vrot.lane.b32.xlu0 %v3118, 112
      %v3148 = vpop.permute.xlu0 %3147
      %3149 = vrot.lane.b32.xlu0 %v3119, 112
      %v3150 = vpop.permute.xlu0 %3149
      %3151 = vrot.lane.b32.xlu0 %v3120, 112
      %v3152 = vpop.permute.xlu0 %3151
      %3153 = vrot.lane.b32.xlu0 %v3121, 112
      %v3154 = vpop.permute.xlu0 %3153
      %3155 = vrot.lane.b32.xlu0 %v3122, 112
      %v3156 = vpop.permute.xlu0 %3155
      %3157 = vrot.lane.b32.xlu0 %v3123, 112
      %v3158 = vpop.permute.xlu0 %3157
      %3159 = vrot.lane.b32.xlu0 %v3124, 112
      %v3160 = vpop.permute.xlu0 %3159
      %3161 = vrot.lane.b32.xlu0 %v3125, 112
      %v3162 = vpop.permute.xlu0 %3161
      %3163 = vrot.lane.b32.xlu0 %v3126, 112
      %v3164 = vpop.permute.xlu0 %3163
      %v3167 = vunpack.c.l.b16 %v3127
      %v3168 = vunpack.c.h.b16 %v3127
      %v3169 = vunpack.c.l.b16 %v3128
      %v3170 = vunpack.c.h.b16 %v3128
      %v3171 = vpack.c.b16 %v3169, %v3167
      %v3172 = vpack.c.b16 %v3170, %v3168
      %vm3175 = vcmask 130048
      %v3177 = vsel %vm3175, %v3142, 0
      %v3180 = vsel %vm3175, %v3144, 0
      %v3183 = vsel %vm3175, %v3146, 0
      %v3186 = vsel %vm3175, %v3148, 0
      %v3189 = vsel %vm3175, %v3150, 0
      %v3192 = vsel %vm3175, %v3152, 0
      %v3195 = vsel %vm3175, %v3154, 0
      %v3198 = vsel %vm3175, %v3156, 0
      %v3201 = vsel %vm3175, %v3158, 0
      %v3204 = vsel %vm3175, %v3160, 0
      %v3207 = vsel %vm3175, %v3162, 0
      %v3210 = vsel %vm3175, %v3164, 0
      %3212 = vmatpush.bf16.msra.mxu0 0
      %3213 = vmatpush.bf16.msra.mxu0 0
      %3214 = vmatpush.bf16.msra.mxu0 0
      %3215 = vmatpush.bf16.msra.mxu0 0
      %3216 = vmatpush.bf16.msra.mxu0 0
      %3217 = vmatpush.bf16.msra.mxu0 0
      %3218 = vmatpush.bf16.msra.mxu0 0
      %3219 = vmatpush.bf16.msra.mxu0 %v3171
      %3220 = vmatmul.bf16.gmra.mxu0 %v3177
      %v3221 = vpop.f32.mrf.mxu0
      %v3222 = vadd.f32 0.0, %v3221
      %v3223 = vpop.f32.mrf.mxu0
      %v3224 = vadd.f32 0.0, %v3223
      %3225 = vmatmul.bf16.gmra.mxu0 %v3180
      %v3226 = vpop.f32.mrf.mxu0
      %v3227 = vadd.f32 0.0, %v3226
      %v3228 = vpop.f32.mrf.mxu0
      %v3229 = vadd.f32 0.0, %v3228
      %3230 = vmatmul.bf16.gmra.mxu0 %v3183
      %v3231 = vpop.f32.mrf.mxu0
      %v3232 = vadd.f32 0.0, %v3231
      %v3233 = vpop.f32.mrf.mxu0
      %v3234 = vadd.f32 0.0, %v3233
      %3235 = vmatmul.bf16.gmra.mxu0 %v3186
      %v3236 = vpop.f32.mrf.mxu0
      %v3237 = vadd.f32 0.0, %v3236
      %v3238 = vpop.f32.mrf.mxu0
      %v3239 = vadd.f32 0.0, %v3238
      %3240 = vmatmul.bf16.gmra.mxu0 %v3189
      %v3241 = vpop.f32.mrf.mxu0
      %v3242 = vadd.f32 0.0, %v3241
      %v3243 = vpop.f32.mrf.mxu0
      %v3244 = vadd.f32 0.0, %v3243
      %3245 = vmatmul.bf16.gmra.mxu0 %v3192
      %v3246 = vpop.f32.mrf.mxu0
      %v3247 = vadd.f32 0.0, %v3246
      %v3248 = vpop.f32.mrf.mxu0
      %v3249 = vadd.f32 0.0, %v3248
      %3250 = vmatmul.bf16.gmra.mxu0 %v3195
      %v3251 = vpop.f32.mrf.mxu0
      %v3252 = vadd.f32 0.0, %v3251
      %v3253 = vpop.f32.mrf.mxu0
      %v3254 = vadd.f32 0.0, %v3253
      %3255 = vmatmul.bf16.gmra.mxu0 %v3198
      %v3256 = vpop.f32.mrf.mxu0
      %v3257 = vadd.f32 0.0, %v3256
      %v3258 = vpop.f32.mrf.mxu0
      %v3259 = vadd.f32 0.0, %v3258
      %3260 = vmatmul.bf16.gmra.mxu0 %v3201
      %v3261 = vpop.f32.mrf.mxu0
      %v3262 = vadd.f32 0.0, %v3261
      %v3263 = vpop.f32.mrf.mxu0
      %v3264 = vadd.f32 0.0, %v3263
      %3265 = vmatmul.bf16.gmra.mxu0 %v3204
      %v3266 = vpop.f32.mrf.mxu0
      %v3267 = vadd.f32 0.0, %v3266
      %v3268 = vpop.f32.mrf.mxu0
      %v3269 = vadd.f32 0.0, %v3268
      %3270 = vmatmul.bf16.gmra.mxu0 %v3207
      %v3271 = vpop.f32.mrf.mxu0
      %v3272 = vadd.f32 0.0, %v3271
      %v3273 = vpop.f32.mrf.mxu0
      %v3274 = vadd.f32 0.0, %v3273
      %3275 = vmatmul.bf16.gmra.mxu0 %v3210
      %v3276 = vpop.f32.mrf.mxu0
      %v3277 = vadd.f32 0.0, %v3276
      %v3278 = vpop.f32.mrf.mxu0
      %v3279 = vadd.f32 0.0, %v3278
      %3280 = vdwg.mxu0
      %3281 = vmatpush.bf16.msra.mxu0 0
      %3282 = vmatpush.bf16.msra.mxu0 0
      %3283 = vmatpush.bf16.msra.mxu0 0
      %3284 = vmatpush.bf16.msra.mxu0 0
      %3285 = vmatpush.bf16.msra.mxu0 0
      %3286 = vmatpush.bf16.msra.mxu0 0
      %3287 = vmatpush.bf16.msra.mxu0 0
      %3288 = vmatpush.bf16.msra.mxu0 %v3172
      %3289 = vmatmul.bf16.gmra.mxu0 %v3177
      %v3290 = vpop.f32.mrf.mxu0
      %v3291 = vadd.f32 0.0, %v3290
      %v3292 = vpop.f32.mrf.mxu0
      %v3293 = vadd.f32 0.0, %v3292
      %3294 = vmatmul.bf16.gmra.mxu0 %v3180
      %v3295 = vpop.f32.mrf.mxu0
      %v3296 = vadd.f32 0.0, %v3295
      %v3297 = vpop.f32.mrf.mxu0
      %v3298 = vadd.f32 0.0, %v3297
      %3299 = vmatmul.bf16.gmra.mxu0 %v3183
      %v3300 = vpop.f32.mrf.mxu0
      %v3301 = vadd.f32 0.0, %v3300
      %v3302 = vpop.f32.mrf.mxu0
      %v3303 = vadd.f32 0.0, %v3302
      %3304 = vmatmul.bf16.gmra.mxu0 %v3186
      %v3305 = vpop.f32.mrf.mxu0
      %v3306 = vadd.f32 0.0, %v3305
      %v3307 = vpop.f32.mrf.mxu0
      %v3308 = vadd.f32 0.0, %v3307
      %3309 = vmatmul.bf16.gmra.mxu0 %v3189
      %v3310 = vpop.f32.mrf.mxu0
      %v3311 = vadd.f32 0.0, %v3310
      %v3312 = vpop.f32.mrf.mxu0
      %v3313 = vadd.f32 0.0, %v3312
      %3314 = vmatmul.bf16.gmra.mxu0 %v3192
      %v3315 = vpop.f32.mrf.mxu0
      %v3316 = vadd.f32 0.0, %v3315
      %v3317 = vpop.f32.mrf.mxu0
      %v3318 = vadd.f32 0.0, %v3317
      %3319 = vmatmul.bf16.gmra.mxu0 %v3195
      %v3320 = vpop.f32.mrf.mxu0
      %v3321 = vadd.f32 0.0, %v3320
      %v3322 = vpop.f32.mrf.mxu0
      %v3323 = vadd.f32 0.0, %v3322
      %3324 = vmatmul.bf16.gmra.mxu0 %v3198
      %v3325 = vpop.f32.mrf.mxu0
      %v3326 = vadd.f32 0.0, %v3325
      %v3327 = vpop.f32.mrf.mxu0
      %v3328 = vadd.f32 0.0, %v3327
      %3329 = vmatmul.bf16.gmra.mxu0 %v3201
      %v3330 = vpop.f32.mrf.mxu0
      %v3331 = vadd.f32 0.0, %v3330
      %v3332 = vpop.f32.mrf.mxu0
      %v3333 = vadd.f32 0.0, %v3332
      %3334 = vmatmul.bf16.gmra.mxu0 %v3204
      %v3335 = vpop.f32.mrf.mxu0
      %v3336 = vadd.f32 0.0, %v3335
      %v3337 = vpop.f32.mrf.mxu0
      %v3338 = vadd.f32 0.0, %v3337
      %3339 = vmatmul.bf16.gmra.mxu0 %v3207
      %v3340 = vpop.f32.mrf.mxu0
      %v3341 = vadd.f32 0.0, %v3340
      %v3342 = vpop.f32.mrf.mxu0
      %v3343 = vadd.f32 0.0, %v3342
      %3344 = vmatmul.bf16.gmra.mxu0 %v3210
      %v3345 = vpop.f32.mrf.mxu0
      %v3346 = vadd.f32 0.0, %v3345
      %v3347 = vpop.f32.mrf.mxu0
      %v3348 = vadd.f32 0.0, %v3347
      %3349 = vdwg.mxu0
      %v3352 = vunpack.c.l.b16 %v2993
      %v3353 = vunpack.c.h.b16 %v2993
      %v3354 = vunpack.c.l.b16 %v2994
      %v3355 = vunpack.c.h.b16 %v2994
      %v3356 = vpack.c.b16 %v3354, %v3352
      %v3357 = vpack.c.b16 %v3355, %v3353
      %v3361 = vsel %vm3175, %v2981, 0
      %v3364 = vsel %vm3175, %v2982, 0
      %v3367 = vsel %vm3175, %v2983, 0
      %v3370 = vsel %vm3175, %v2984, 0
      %v3373 = vsel %vm3175, %v2985, 0
      %v3376 = vsel %vm3175, %v2986, 0
      %v3379 = vsel %vm3175, %v2987, 0
      %v3382 = vsel %vm3175, %v2988, 0
      %v3385 = vsel %vm3175, %v2989, 0
      %v3388 = vsel %vm3175, %v2990, 0
      %v3391 = vsel %vm3175, %v2991, 0
      %v3394 = vsel %vm3175, %v2992, 0
      %3396 = vmatpush.bf16.msra.mxu0 0
      %3397 = vmatpush.bf16.msra.mxu0 0
      %3398 = vmatpush.bf16.msra.mxu0 0
      %3399 = vmatpush.bf16.msra.mxu0 0
      %3400 = vmatpush.bf16.msra.mxu0 0
      %3401 = vmatpush.bf16.msra.mxu0 0
      %3402 = vmatpush.bf16.msra.mxu0 0
      %3403 = vmatpush.bf16.msra.mxu0 %v3356
      %3404 = vmatmul.bf16.gmra.mxu0 %v3361
      %v3405 = vpop.f32.mrf.mxu0
      %v3406 = vadd.f32 %v3222, %v3405
      %v3407 = vpop.f32.mrf.mxu0
      %v3408 = vadd.f32 %v3224, %v3407
      %3409 = vmatmul.bf16.gmra.mxu0 %v3364
      %v3410 = vpop.f32.mrf.mxu0
      %v3411 = vadd.f32 %v3227, %v3410
      %v3412 = vpop.f32.mrf.mxu0
      %v3413 = vadd.f32 %v3229, %v3412
      %3414 = vmatmul.bf16.gmra.mxu0 %v3367
      %v3415 = vpop.f32.mrf.mxu0
      %v3416 = vadd.f32 %v3232, %v3415
      %v3417 = vpop.f32.mrf.mxu0
      %v3418 = vadd.f32 %v3234, %v3417
      %3419 = vmatmul.bf16.gmra.mxu0 %v3370
      %v3420 = vpop.f32.mrf.mxu0
      %v3421 = vadd.f32 %v3237, %v3420
      %v3422 = vpop.f32.mrf.mxu0
      %v3423 = vadd.f32 %v3239, %v3422
      %3424 = vmatmul.bf16.gmra.mxu0 %v3373
      %v3425 = vpop.f32.mrf.mxu0
      %v3426 = vadd.f32 %v3242, %v3425
      %v3427 = vpop.f32.mrf.mxu0
      %v3428 = vadd.f32 %v3244, %v3427
      %3429 = vmatmul.bf16.gmra.mxu0 %v3376
      %v3430 = vpop.f32.mrf.mxu0
      %v3431 = vadd.f32 %v3247, %v3430
      %v3432 = vpop.f32.mrf.mxu0
      %v3433 = vadd.f32 %v3249, %v3432
      %3434 = vmatmul.bf16.gmra.mxu0 %v3379
      %v3435 = vpop.f32.mrf.mxu0
      %v3436 = vadd.f32 %v3252, %v3435
      %v3437 = vpop.f32.mrf.mxu0
      %v3438 = vadd.f32 %v3254, %v3437
      %3439 = vmatmul.bf16.gmra.mxu0 %v3382
      %v3440 = vpop.f32.mrf.mxu0
      %v3441 = vadd.f32 %v3257, %v3440
      %v3442 = vpop.f32.mrf.mxu0
      %v3443 = vadd.f32 %v3259, %v3442
      %3444 = vmatmul.bf16.gmra.mxu0 %v3385
      %v3445 = vpop.f32.mrf.mxu0
      %v3446 = vadd.f32 %v3262, %v3445
      %v3447 = vpop.f32.mrf.mxu0
      %v3448 = vadd.f32 %v3264, %v3447
      %3449 = vmatmul.bf16.gmra.mxu0 %v3388
      %v3450 = vpop.f32.mrf.mxu0
      %v3451 = vadd.f32 %v3267, %v3450
      %v3452 = vpop.f32.mrf.mxu0
      %v3453 = vadd.f32 %v3269, %v3452
      %3454 = vmatmul.bf16.gmra.mxu0 %v3391
      %v3455 = vpop.f32.mrf.mxu0
      %v3456 = vadd.f32 %v3272, %v3455
      %v3457 = vpop.f32.mrf.mxu0
      %v3458 = vadd.f32 %v3274, %v3457
      %3459 = vmatmul.bf16.gmra.mxu0 %v3394
      %v3460 = vpop.f32.mrf.mxu0
      %v3461 = vadd.f32 %v3277, %v3460
      %v3462 = vpop.f32.mrf.mxu0
      %v3463 = vadd.f32 %v3279, %v3462
      %3464 = vdwg.mxu0
      %3465 = vmatpush.bf16.msra.mxu0 0
      %3466 = vmatpush.bf16.msra.mxu0 0
      %3467 = vmatpush.bf16.msra.mxu0 0
      %3468 = vmatpush.bf16.msra.mxu0 0
      %3469 = vmatpush.bf16.msra.mxu0 0
      %3470 = vmatpush.bf16.msra.mxu0 0
      %3471 = vmatpush.bf16.msra.mxu0 0
      %3472 = vmatpush.bf16.msra.mxu0 %v3357
      %3473 = vmatmul.bf16.gmra.mxu0 %v3361
      %v3474 = vpop.f32.mrf.mxu0
      %v3475 = vadd.f32 %v3291, %v3474
      %v3476 = vpop.f32.mrf.mxu0
      %v3477 = vadd.f32 %v3293, %v3476
      %3478 = vmatmul.bf16.gmra.mxu0 %v3364
      %v3479 = vpop.f32.mrf.mxu0
      %v3480 = vadd.f32 %v3296, %v3479
      %v3481 = vpop.f32.mrf.mxu0
      %v3482 = vadd.f32 %v3298, %v3481
      %3483 = vmatmul.bf16.gmra.mxu0 %v3367
      %v3484 = vpop.f32.mrf.mxu0
      %v3485 = vadd.f32 %v3301, %v3484
      %v3486 = vpop.f32.mrf.mxu0
      %v3487 = vadd.f32 %v3303, %v3486
      %3488 = vmatmul.bf16.gmra.mxu0 %v3370
      %v3489 = vpop.f32.mrf.mxu0
      %v3490 = vadd.f32 %v3306, %v3489
      %v3491 = vpop.f32.mrf.mxu0
      %v3492 = vadd.f32 %v3308, %v3491
      %3493 = vmatmul.bf16.gmra.mxu0 %v3373
      %v3494 = vpop.f32.mrf.mxu0
      %v3495 = vadd.f32 %v3311, %v3494
      %v3496 = vpop.f32.mrf.mxu0
      %v3497 = vadd.f32 %v3313, %v3496
      %3498 = vmatmul.bf16.gmra.mxu0 %v3376
      %v3499 = vpop.f32.mrf.mxu0
      %v3500 = vadd.f32 %v3316, %v3499
      %v3501 = vpop.f32.mrf.mxu0
      %v3502 = vadd.f32 %v3318, %v3501
      %3503 = vmatmul.bf16.gmra.mxu0 %v3379
      %v3504 = vpop.f32.mrf.mxu0
      %v3505 = vadd.f32 %v3321, %v3504
      %v3506 = vpop.f32.mrf.mxu0
      %v3507 = vadd.f32 %v3323, %v3506
      %3508 = vmatmul.bf16.gmra.mxu0 %v3382
      %v3509 = vpop.f32.mrf.mxu0
      %v3510 = vadd.f32 %v3326, %v3509
      %v3511 = vpop.f32.mrf.mxu0
      %v3512 = vadd.f32 %v3328, %v3511
      %3513 = vmatmul.bf16.gmra.mxu0 %v3385
      %v3514 = vpop.f32.mrf.mxu0
      %v3515 = vadd.f32 %v3331, %v3514
      %v3516 = vpop.f32.mrf.mxu0
      %v3517 = vadd.f32 %v3333, %v3516
      %3518 = vmatmul.bf16.gmra.mxu0 %v3388
      %v3519 = vpop.f32.mrf.mxu0
      %v3520 = vadd.f32 %v3336, %v3519
      %v3521 = vpop.f32.mrf.mxu0
      %v3522 = vadd.f32 %v3338, %v3521
      %3523 = vmatmul.bf16.gmra.mxu0 %v3391
      %v3524 = vpop.f32.mrf.mxu0
      %v3525 = vadd.f32 %v3341, %v3524
      %v3526 = vpop.f32.mrf.mxu0
      %v3527 = vadd.f32 %v3343, %v3526
      %3528 = vmatmul.bf16.gmra.mxu0 %v3394
      %v3529 = vpop.f32.mrf.mxu0
      %v3530 = vadd.f32 %v3346, %v3529
      %v3531 = vpop.f32.mrf.mxu0
      %v3532 = vadd.f32 %v3348, %v3531
      %3533 = vdwg.mxu0
      %3534 = vset.pattern.permute.xlu0 2
      %3535 = vperm.xlu0 %3534, %v2467
      %v3536 = vpop.permute.xlu0 %3535
      %3538 = vset.pattern.permute.xlu0 2
      %3539 = vperm.xlu0 %3538, %v2482
      %v3540 = vpop.permute.xlu0 %3539
      %3542 = vset.pattern.permute.xlu0 2
      %3543 = vperm.xlu0 %3542, %v2497
      %v3544 = vpop.permute.xlu0 %3543
      %3546 = vset.pattern.permute.xlu0 2
      %3547 = vperm.xlu0 %3546, %v2512
      %v3548 = vpop.permute.xlu0 %3547
      %3550 = vset.pattern.permute.xlu0 2
      %3551 = vperm.xlu0 %3550, %v2527
      %v3552 = vpop.permute.xlu0 %3551
      %3554 = vset.pattern.permute.xlu0 2
      %3555 = vperm.xlu0 %3554, %v2542
      %v3556 = vpop.permute.xlu0 %3555
      %3558 = vset.pattern.permute.xlu0 2
      %3559 = vperm.xlu0 %3558, %v2557
      %v3560 = vpop.permute.xlu0 %3559
      %3562 = vset.pattern.permute.xlu0 2
      %3563 = vperm.xlu0 %3562, %v2572
      %v3564 = vpop.permute.xlu0 %3563
      %3566 = vset.pattern.permute.xlu0 2
      %3567 = vperm.xlu0 %3566, %v2587
      %v3568 = vpop.permute.xlu0 %3567
      %3570 = vset.pattern.permute.xlu0 2
      %3571 = vperm.xlu0 %3570, %v2602
      %v3572 = vpop.permute.xlu0 %3571
      %3574 = vset.pattern.permute.xlu0 2
      %3575 = vperm.xlu0 %3574, %v2617
      %v3576 = vpop.permute.xlu0 %3575
      %3578 = vset.pattern.permute.xlu0 2
      %3579 = vperm.xlu0 %3578, %v2632
      %v3580 = vpop.permute.xlu0 %3579
      %3582 = vset.pattern.permute.xlu0 2
      %3583 = vperm.xlu0 %3582, %v2647
      %v3584 = vpop.permute.xlu0 %3583
      %3586 = vset.pattern.permute.xlu0 2
      %3587 = vperm.xlu0 %3586, %v2662
      %v3588 = vpop.permute.xlu0 %3587
      %3590 = vset.pattern.permute.xlu0 2
      %3591 = vperm.xlu0 %3590, %v2677
      %v3592 = vpop.permute.xlu0 %3591
      %3594 = vset.pattern.permute.xlu0 2
      %3595 = vperm.xlu0 %3594, %v2692
      %v3596 = vpop.permute.xlu0 %3595
      %3598 = vset.pattern.permute.xlu0 2
      %3599 = vperm.xlu0 %3598, %v2707
      %v3600 = vpop.permute.xlu0 %3599
      %3602 = vset.pattern.permute.xlu0 2
      %3603 = vperm.xlu0 %3602, %v2722
      %v3604 = vpop.permute.xlu0 %3603
      %3606 = vset.pattern.permute.xlu0 2
      %3607 = vperm.xlu0 %3606, %v2737
      %v3608 = vpop.permute.xlu0 %3607
      %3610 = vset.pattern.permute.xlu0 2
      %3611 = vperm.xlu0 %3610, %v2752
      %v3612 = vpop.permute.xlu0 %3611
      %3614 = vset.pattern.permute.xlu0 2
      %3615 = vperm.xlu0 %3614, %v2767
      %v3616 = vpop.permute.xlu0 %3615
      %3618 = vset.pattern.permute.xlu0 2
      %3619 = vperm.xlu0 %3618, %v2782
      %v3620 = vpop.permute.xlu0 %3619
      %3622 = vset.pattern.permute.xlu0 2
      %3623 = vperm.xlu0 %3622, %v2797
      %v3624 = vpop.permute.xlu0 %3623
      %3626 = vset.pattern.permute.xlu0 2
      %3627 = vperm.xlu0 %3626, %v2812
      %v3628 = vpop.permute.xlu0 %3627
      %v3630 = vmul.f32 %v2813, %v3536
      %v3631 = vmul.f32 %v2814, %v3540
      %v3632 = vmul.f32 %v2815, %v3544
      %v3633 = vmul.f32 %v2816, %v3548
      %v3634 = vmul.f32 %v2817, %v3552
      %v3635 = vmul.f32 %v2818, %v3556
      %v3636 = vmul.f32 %v2819, %v3560
      %v3637 = vmul.f32 %v2820, %v3564
      %v3638 = vmul.f32 %v2821, %v3568
      %v3639 = vmul.f32 %v2822, %v3572
      %v3640 = vmul.f32 %v2823, %v3576
      %v3641 = vmul.f32 %v2824, %v3580
      %v3642 = vmul.f32 %v2825, %v3584
      %v3643 = vmul.f32 %v2826, %v3588
      %v3644 = vmul.f32 %v2827, %v3592
      %v3645 = vmul.f32 %v2828, %v3596
      %v3646 = vmul.f32 %v2829, %v3600
      %v3647 = vmul.f32 %v2830, %v3604
      %v3648 = vmul.f32 %v2831, %v3608
      %v3649 = vmul.f32 %v2832, %v3612
      %v3650 = vmul.f32 %v2833, %v3616
      %v3651 = vmul.f32 %v2834, %v3620
      %v3652 = vmul.f32 %v2835, %v3624
      %v3653 = vmul.f32 %v2836, %v3628
      %v3654 = vpack.c.bf16 %v3631, %v3630
      %v3655 = vpack.c.bf16 %v3633, %v3632
      %v3656 = vpack.c.bf16 %v3635, %v3634
      %v3657 = vpack.c.bf16 %v3637, %v3636
      %v3658 = vpack.c.bf16 %v3639, %v3638
      %v3659 = vpack.c.bf16 %v3641, %v3640
      %v3660 = vpack.c.bf16 %v3643, %v3642
      %v3661 = vpack.c.bf16 %v3645, %v3644
      %v3662 = vpack.c.bf16 %v3647, %v3646
      %v3663 = vpack.c.bf16 %v3649, %v3648
      %v3664 = vpack.c.bf16 %v3651, %v3650
      %v3665 = vpack.c.bf16 %v3653, %v3652
      %v3666 = vld [vmem:[%s7 + $0x20] sm:$0xff]
      %v3667 = vld [vmem:[%s7 + $0x28] sm:$0xff]
      %3680 = vrot.lane.b32.xlu0 %v3654, 96
      %v3681 = vpop.permute.xlu0 %3680
      %3682 = vrot.lane.b32.xlu0 %v3655, 96
      %v3683 = vpop.permute.xlu0 %3682
      %3684 = vrot.lane.b32.xlu0 %v3656, 96
      %v3685 = vpop.permute.xlu0 %3684
      %3686 = vrot.lane.b32.xlu0 %v3657, 96
      %v3687 = vpop.permute.xlu0 %3686
      %3688 = vrot.lane.b32.xlu0 %v3658, 96
      %v3689 = vpop.permute.xlu0 %3688
      %3690 = vrot.lane.b32.xlu0 %v3659, 96
      %v3691 = vpop.permute.xlu0 %3690
      %3692 = vrot.lane.b32.xlu0 %v3660, 96
      %v3693 = vpop.permute.xlu0 %3692
      %3694 = vrot.lane.b32.xlu0 %v3661, 96
      %v3695 = vpop.permute.xlu0 %3694
      %3696 = vrot.lane.b32.xlu0 %v3662, 96
      %v3697 = vpop.permute.xlu0 %3696
      %3698 = vrot.lane.b32.xlu0 %v3663, 96
      %v3699 = vpop.permute.xlu0 %3698
      %3700 = vrot.lane.b32.xlu0 %v3664, 96
      %v3701 = vpop.permute.xlu0 %3700
      %3702 = vrot.lane.b32.xlu0 %v3665, 96
      %v3703 = vpop.permute.xlu0 %3702
      %v3706 = vunpack.c.l.b16 %v3666
      %v3707 = vunpack.c.h.b16 %v3666
      %v3708 = vunpack.c.l.b16 %v3667
      %v3709 = vunpack.c.h.b16 %v3667
      %v3710 = vpack.c.b16 %v3708, %v3706
      %v3711 = vpack.c.b16 %v3709, %v3707
      %v3715 = vsel %vm3175, %v3681, 0
      %v3718 = vsel %vm3175, %v3683, 0
      %v3721 = vsel %vm3175, %v3685, 0
      %v3724 = vsel %vm3175, %v3687, 0
      %v3727 = vsel %vm3175, %v3689, 0
      %v3730 = vsel %vm3175, %v3691, 0
      %v3733 = vsel %vm3175, %v3693, 0
      %v3736 = vsel %vm3175, %v3695, 0
      %v3739 = vsel %vm3175, %v3697, 0
      %v3742 = vsel %vm3175, %v3699, 0
      %v3745 = vsel %vm3175, %v3701, 0
      %v3748 = vsel %vm3175, %v3703, 0
      %3750 = vmatpush.bf16.msra.mxu0 0
      %3751 = vmatpush.bf16.msra.mxu0 0
      %3752 = vmatpush.bf16.msra.mxu0 0
      %3753 = vmatpush.bf16.msra.mxu0 0
      %3754 = vmatpush.bf16.msra.mxu0 0
      %3755 = vmatpush.bf16.msra.mxu0 0
      %3756 = vmatpush.bf16.msra.mxu0 0
      %3757 = vmatpush.bf16.msra.mxu0 %v3710
      %3758 = vmatmul.bf16.gmra.mxu0 %v3715
      %v3759 = vpop.f32.mrf.mxu0
      %v3760 = vadd.f32 0.0, %v3759
      %v3761 = vpop.f32.mrf.mxu0
      %v3762 = vadd.f32 0.0, %v3761
      %3763 = vmatmul.bf16.gmra.mxu0 %v3718
      %v3764 = vpop.f32.mrf.mxu0
      %v3765 = vadd.f32 0.0, %v3764
      %v3766 = vpop.f32.mrf.mxu0
      %v3767 = vadd.f32 0.0, %v3766
      %3768 = vmatmul.bf16.gmra.mxu0 %v3721
      %v3769 = vpop.f32.mrf.mxu0
      %v3770 = vadd.f32 0.0, %v3769
      %v3771 = vpop.f32.mrf.mxu0
      %v3772 = vadd.f32 0.0, %v3771
      %3773 = vmatmul.bf16.gmra.mxu0 %v3724
      %v3774 = vpop.f32.mrf.mxu0
      %v3775 = vadd.f32 0.0, %v3774
      %v3776 = vpop.f32.mrf.mxu0
      %v3777 = vadd.f32 0.0, %v3776
      %3778 = vmatmul.bf16.gmra.mxu0 %v3727
      %v3779 = vpop.f32.mrf.mxu0
      %v3780 = vadd.f32 0.0, %v3779
      %v3781 = vpop.f32.mrf.mxu0
      %v3782 = vadd.f32 0.0, %v3781
      %3783 = vmatmul.bf16.gmra.mxu0 %v3730
      %v3784 = vpop.f32.mrf.mxu0
      %v3785 = vadd.f32 0.0, %v3784
      %v3786 = vpop.f32.mrf.mxu0
      %v3787 = vadd.f32 0.0, %v3786
      %3788 = vmatmul.bf16.gmra.mxu0 %v3733
      %v3789 = vpop.f32.mrf.mxu0
      %v3790 = vadd.f32 0.0, %v3789
      %v3791 = vpop.f32.mrf.mxu0
      %v3792 = vadd.f32 0.0, %v3791
      %3793 = vmatmul.bf16.gmra.mxu0 %v3736
      %v3794 = vpop.f32.mrf.mxu0
      %v3795 = vadd.f32 0.0, %v3794
      %v3796 = vpop.f32.mrf.mxu0
      %v3797 = vadd.f32 0.0, %v3796
      %3798 = vmatmul.bf16.gmra.mxu0 %v3739
      %v3799 = vpop.f32.mrf.mxu0
      %v3800 = vadd.f32 0.0, %v3799
      %v3801 = vpop.f32.mrf.mxu0
      %v3802 = vadd.f32 0.0, %v3801
      %3803 = vmatmul.bf16.gmra.mxu0 %v3742
      %v3804 = vpop.f32.mrf.mxu0
      %v3805 = vadd.f32 0.0, %v3804
      %v3806 = vpop.f32.mrf.mxu0
      %v3807 = vadd.f32 0.0, %v3806
      %3808 = vmatmul.bf16.gmra.mxu0 %v3745
      %v3809 = vpop.f32.mrf.mxu0
      %v3810 = vadd.f32 0.0, %v3809
      %v3811 = vpop.f32.mrf.mxu0
      %v3812 = vadd.f32 0.0, %v3811
      %3813 = vmatmul.bf16.gmra.mxu0 %v3748
      %v3814 = vpop.f32.mrf.mxu0
      %v3815 = vadd.f32 0.0, %v3814
      %v3816 = vpop.f32.mrf.mxu0
      %v3817 = vadd.f32 0.0, %v3816
      %3818 = vdwg.mxu0
      %3819 = vmatpush.bf16.msra.mxu0 0
      %3820 = vmatpush.bf16.msra.mxu0 0
      %3821 = vmatpush.bf16.msra.mxu0 0
      %3822 = vmatpush.bf16.msra.mxu0 0
      %3823 = vmatpush.bf16.msra.mxu0 0
      %3824 = vmatpush.bf16.msra.mxu0 0
      %3825 = vmatpush.bf16.msra.mxu0 0
      %3826 = vmatpush.bf16.msra.mxu0 %v3711
      %3827 = vmatmul.bf16.gmra.mxu0 %v3715
      %v3828 = vpop.f32.mrf.mxu0
      %v3829 = vadd.f32 0.0, %v3828
      %v3830 = vpop.f32.mrf.mxu0
      %v3831 = vadd.f32 0.0, %v3830
      %3832 = vmatmul.bf16.gmra.mxu0 %v3718
      %v3833 = vpop.f32.mrf.mxu0
      %v3834 = vadd.f32 0.0, %v3833
      %v3835 = vpop.f32.mrf.mxu0
      %v3836 = vadd.f32 0.0, %v3835
      %3837 = vmatmul.bf16.gmra.mxu0 %v3721
      %v3838 = vpop.f32.mrf.mxu0
      %v3839 = vadd.f32 0.0, %v3838
      %v3840 = vpop.f32.mrf.mxu0
      %v3841 = vadd.f32 0.0, %v3840
      %3842 = vmatmul.bf16.gmra.mxu0 %v3724
      %v3843 = vpop.f32.mrf.mxu0
      %v3844 = vadd.f32 0.0, %v3843
      %v3845 = vpop.f32.mrf.mxu0
      %v3846 = vadd.f32 0.0, %v3845
      %3847 = vmatmul.bf16.gmra.mxu0 %v3727
      %v3848 = vpop.f32.mrf.mxu0
      %v3849 = vadd.f32 0.0, %v3848
      %v3850 = vpop.f32.mrf.mxu0
      %v3851 = vadd.f32 0.0, %v3850
      %3852 = vmatmul.bf16.gmra.mxu0 %v3730
      %v3853 = vpop.f32.mrf.mxu0
      %v3854 = vadd.f32 0.0, %v3853
      %v3855 = vpop.f32.mrf.mxu0
      %v3856 = vadd.f32 0.0, %v3855
      %3857 = vmatmul.bf16.gmra.mxu0 %v3733
      %v3858 = vpop.f32.mrf.mxu0
      %v3859 = vadd.f32 0.0, %v3858
      %v3860 = vpop.f32.mrf.mxu0
      %v3861 = vadd.f32 0.0, %v3860
      %3862 = vmatmul.bf16.gmra.mxu0 %v3736
      %v3863 = vpop.f32.mrf.mxu0
      %v3864 = vadd.f32 0.0, %v3863
      %v3865 = vpop.f32.mrf.mxu0
      %v3866 = vadd.f32 0.0, %v3865
      %3867 = vmatmul.bf16.gmra.mxu0 %v3739
      %v3868 = vpop.f32.mrf.mxu0
      %v3869 = vadd.f32 0.0, %v3868
      %v3870 = vpop.f32.mrf.mxu0
      %v3871 = vadd.f32 0.0, %v3870
      %3872 = vmatmul.bf16.gmra.mxu0 %v3742
      %v3873 = vpop.f32.mrf.mxu0
      %v3874 = vadd.f32 0.0, %v3873
      %v3875 = vpop.f32.mrf.mxu0
      %v3876 = vadd.f32 0.0, %v3875
      %3877 = vmatmul.bf16.gmra.mxu0 %v3745
      %v3878 = vpop.f32.mrf.mxu0
      %v3879 = vadd.f32 0.0, %v3878
      %v3880 = vpop.f32.mrf.mxu0
      %v3881 = vadd.f32 0.0, %v3880
      %3882 = vmatmul.bf16.gmra.mxu0 %v3748
      %v3883 = vpop.f32.mrf.mxu0
      %v3884 = vadd.f32 0.0, %v3883
      %v3885 = vpop.f32.mrf.mxu0
      %v3886 = vadd.f32 0.0, %v3885
      %3887 = vdwg.mxu0
      %v3888 = vadd.f32 %v3406, %v3760
      %v3889 = vadd.f32 %v3475, %v3829
      %v3890 = vadd.f32 %v3408, %v3762
      %v3891 = vadd.f32 %v3477, %v3831
      %v3892 = vadd.f32 %v3411, %v3765
      %v3893 = vadd.f32 %v3480, %v3834
      %v3894 = vadd.f32 %v3413, %v3767
      %v3895 = vadd.f32 %v3482, %v3836
      %v3896 = vadd.f32 %v3416, %v3770
      %v3897 = vadd.f32 %v3485, %v3839
      %v3898 = vadd.f32 %v3418, %v3772
      %v3899 = vadd.f32 %v3487, %v3841
      %v3900 = vadd.f32 %v3421, %v3775
      %v3901 = vadd.f32 %v3490, %v3844
      %v3902 = vadd.f32 %v3423, %v3777
      %v3903 = vadd.f32 %v3492, %v3846
      %v3904 = vadd.f32 %v3426, %v3780
      %v3905 = vadd.f32 %v3495, %v3849
      %v3906 = vadd.f32 %v3428, %v3782
      %v3907 = vadd.f32 %v3497, %v3851
      %v3908 = vadd.f32 %v3431, %v3785
      %v3909 = vadd.f32 %v3500, %v3854
      %v3910 = vadd.f32 %v3433, %v3787
      %v3911 = vadd.f32 %v3502, %v3856
      %v3912 = vadd.f32 %v3436, %v3790
      %v3913 = vadd.f32 %v3505, %v3859
      %v3914 = vadd.f32 %v3438, %v3792
      %v3915 = vadd.f32 %v3507, %v3861
      %v3916 = vadd.f32 %v3441, %v3795
      %v3917 = vadd.f32 %v3510, %v3864
      %v3918 = vadd.f32 %v3443, %v3797
      %v3919 = vadd.f32 %v3512, %v3866
      %v3920 = vadd.f32 %v3446, %v3800
      %v3921 = vadd.f32 %v3515, %v3869
      %v3922 = vadd.f32 %v3448, %v3802
      %v3923 = vadd.f32 %v3517, %v3871
      %v3924 = vadd.f32 %v3451, %v3805
      %v3925 = vadd.f32 %v3520, %v3874
      %v3926 = vadd.f32 %v3453, %v3807
      %v3927 = vadd.f32 %v3522, %v3876
      %v3928 = vadd.f32 %v3456, %v3810
      %v3929 = vadd.f32 %v3525, %v3879
      %v3930 = vadd.f32 %v3458, %v3812
      %v3931 = vadd.f32 %v3527, %v3881
      %v3932 = vadd.f32 %v3461, %v3815
      %v3933 = vadd.f32 %v3530, %v3884
      %v3934 = vadd.f32 %v3463, %v3817
      %v3935 = vadd.f32 %v3532, %v3886
      %3936 = vset.pattern.permute.xlu0 3
      %3937 = vperm.xlu0 %3936, %v2467
      %v3938 = vpop.permute.xlu0 %3937
      %3940 = vset.pattern.permute.xlu0 3
      %3941 = vperm.xlu0 %3940, %v2482
      %v3942 = vpop.permute.xlu0 %3941
      %3944 = vset.pattern.permute.xlu0 3
      %3945 = vperm.xlu0 %3944, %v2497
      %v3946 = vpop.permute.xlu0 %3945
      %3948 = vset.pattern.permute.xlu0 3
      %3949 = vperm.xlu0 %3948, %v2512
      %v3950 = vpop.permute.xlu0 %3949
      %3952 = vset.pattern.permute.xlu0 3
      %3953 = vperm.xlu0 %3952, %v2527
      %v3954 = vpop.permute.xlu0 %3953
      %3956 = vset.pattern.permute.xlu0 3
      %3957 = vperm.xlu0 %3956, %v2542
      %v3958 = vpop.permute.xlu0 %3957
      %3960 = vset.pattern.permute.xlu0 3
      %3961 = vperm.xlu0 %3960, %v2557
      %v3962 = vpop.permute.xlu0 %3961
      %3964 = vset.pattern.permute.xlu0 3
      %3965 = vperm.xlu0 %3964, %v2572
      %v3966 = vpop.permute.xlu0 %3965
      %3968 = vset.pattern.permute.xlu0 3
      %3969 = vperm.xlu0 %3968, %v2587
      %v3970 = vpop.permute.xlu0 %3969
      %3972 = vset.pattern.permute.xlu0 3
      %3973 = vperm.xlu0 %3972, %v2602
      %v3974 = vpop.permute.xlu0 %3973
      %3976 = vset.pattern.permute.xlu0 3
      %3977 = vperm.xlu0 %3976, %v2617
      %v3978 = vpop.permute.xlu0 %3977
      %3980 = vset.pattern.permute.xlu0 3
      %3981 = vperm.xlu0 %3980, %v2632
      %v3982 = vpop.permute.xlu0 %3981
      %3984 = vset.pattern.permute.xlu0 3
      %3985 = vperm.xlu0 %3984, %v2647
      %v3986 = vpop.permute.xlu0 %3985
      %3988 = vset.pattern.permute.xlu0 3
      %3989 = vperm.xlu0 %3988, %v2662
      %v3990 = vpop.permute.xlu0 %3989
      %3992 = vset.pattern.permute.xlu0 3
      %3993 = vperm.xlu0 %3992, %v2677
      %v3994 = vpop.permute.xlu0 %3993
      %3996 = vset.pattern.permute.xlu0 3
      %3997 = vperm.xlu0 %3996, %v2692
      %v3998 = vpop.permute.xlu0 %3997
      %4000 = vset.pattern.permute.xlu0 3
      %4001 = vperm.xlu0 %4000, %v2707
      %v4002 = vpop.permute.xlu0 %4001
      %4004 = vset.pattern.permute.xlu0 3
      %4005 = vperm.xlu0 %4004, %v2722
      %v4006 = vpop.permute.xlu0 %4005
      %4008 = vset.pattern.permute.xlu0 3
      %4009 = vperm.xlu0 %4008, %v2737
      %v4010 = vpop.permute.xlu0 %4009
      %4012 = vset.pattern.permute.xlu0 3
      %4013 = vperm.xlu0 %4012, %v2752
      %v4014 = vpop.permute.xlu0 %4013
      %4016 = vset.pattern.permute.xlu0 3
      %4017 = vperm.xlu0 %4016, %v2767
      %v4018 = vpop.permute.xlu0 %4017
      %4020 = vset.pattern.permute.xlu0 3
      %4021 = vperm.xlu0 %4020, %v2782
      %v4022 = vpop.permute.xlu0 %4021
      %4024 = vset.pattern.permute.xlu0 3
      %4025 = vperm.xlu0 %4024, %v2797
      %v4026 = vpop.permute.xlu0 %4025
      %4028 = vset.pattern.permute.xlu0 3
      %4029 = vperm.xlu0 %4028, %v2812
      %v4030 = vpop.permute.xlu0 %4029
      %v4032 = vmul.f32 %v2813, %v3938
      %v4033 = vmul.f32 %v2814, %v3942
      %v4034 = vmul.f32 %v2815, %v3946
      %v4035 = vmul.f32 %v2816, %v3950
      %v4036 = vmul.f32 %v2817, %v3954
      %v4037 = vmul.f32 %v2818, %v3958
      %v4038 = vmul.f32 %v2819, %v3962
      %v4039 = vmul.f32 %v2820, %v3966
      %v4040 = vmul.f32 %v2821, %v3970
      %v4041 = vmul.f32 %v2822, %v3974
      %v4042 = vmul.f32 %v2823, %v3978
      %v4043 = vmul.f32 %v2824, %v3982
      %v4044 = vmul.f32 %v2825, %v3986
      %v4045 = vmul.f32 %v2826, %v3990
      %v4046 = vmul.f32 %v2827, %v3994
      %v4047 = vmul.f32 %v2828, %v3998
      %v4048 = vmul.f32 %v2829, %v4002
      %v4049 = vmul.f32 %v2830, %v4006
      %v4050 = vmul.f32 %v2831, %v4010
      %v4051 = vmul.f32 %v2832, %v4014
      %v4052 = vmul.f32 %v2833, %v4018
      %v4053 = vmul.f32 %v2834, %v4022
      %v4054 = vmul.f32 %v2835, %v4026
      %v4055 = vmul.f32 %v2836, %v4030
      %v4056 = vpack.c.bf16 %v4033, %v4032
      %v4057 = vpack.c.bf16 %v4035, %v4034
      %v4058 = vpack.c.bf16 %v4037, %v4036
      %v4059 = vpack.c.bf16 %v4039, %v4038
      %v4060 = vpack.c.bf16 %v4041, %v4040
      %v4061 = vpack.c.bf16 %v4043, %v4042
      %v4062 = vpack.c.bf16 %v4045, %v4044
      %v4063 = vpack.c.bf16 %v4047, %v4046
      %v4064 = vpack.c.bf16 %v4049, %v4048
      %v4065 = vpack.c.bf16 %v4051, %v4050
      %v4066 = vpack.c.bf16 %v4053, %v4052
      %v4067 = vpack.c.bf16 %v4055, %v4054
      %v4068 = vld [vmem:[%s7 + $0x30] sm:$0xff]
      %v4069 = vld [vmem:[%s7 + $0x38] sm:$0xff]
      %4082 = vrot.lane.b32.xlu0 %v4056, 80
      %v4083 = vpop.permute.xlu0 %4082
      %4084 = vrot.lane.b32.xlu0 %v4057, 80
      %v4085 = vpop.permute.xlu0 %4084
      %4086 = vrot.lane.b32.xlu0 %v4058, 80
      %v4087 = vpop.permute.xlu0 %4086
      %4088 = vrot.lane.b32.xlu0 %v4059, 80
      %v4089 = vpop.permute.xlu0 %4088
      %4090 = vrot.lane.b32.xlu0 %v4060, 80
      %v4091 = vpop.permute.xlu0 %4090
      %4092 = vrot.lane.b32.xlu0 %v4061, 80
      %v4093 = vpop.permute.xlu0 %4092
      %4094 = vrot.lane.b32.xlu0 %v4062, 80
      %v4095 = vpop.permute.xlu0 %4094
      %4096 = vrot.lane.b32.xlu0 %v4063, 80
      %v4097 = vpop.permute.xlu0 %4096
      %4098 = vrot.lane.b32.xlu0 %v4064, 80
      %v4099 = vpop.permute.xlu0 %4098
      %4100 = vrot.lane.b32.xlu0 %v4065, 80
      %v4101 = vpop.permute.xlu0 %4100
      %4102 = vrot.lane.b32.xlu0 %v4066, 80
      %v4103 = vpop.permute.xlu0 %4102
      %4104 = vrot.lane.b32.xlu0 %v4067, 80
      %v4105 = vpop.permute.xlu0 %4104
      %v4108 = vunpack.c.l.b16 %v4068
      %v4109 = vunpack.c.h.b16 %v4068
      %v4110 = vunpack.c.l.b16 %v4069
      %v4111 = vunpack.c.h.b16 %v4069
      %v4112 = vpack.c.b16 %v4110, %v4108
      %v4113 = vpack.c.b16 %v4111, %v4109
      %v4117 = vsel %vm3175, %v4083, 0
      %v4120 = vsel %vm3175, %v4085, 0
      %v4123 = vsel %vm3175, %v4087, 0
      %v4126 = vsel %vm3175, %v4089, 0
      %v4129 = vsel %vm3175, %v4091, 0
      %v4132 = vsel %vm3175, %v4093, 0
      %v4135 = vsel %vm3175, %v4095, 0
      %v4138 = vsel %vm3175, %v4097, 0
      %v4141 = vsel %vm3175, %v4099, 0
      %v4144 = vsel %vm3175, %v4101, 0
      %v4147 = vsel %vm3175, %v4103, 0
      %v4150 = vsel %vm3175, %v4105, 0
      %4152 = vmatpush.bf16.msra.mxu0 0
      %4153 = vmatpush.bf16.msra.mxu0 0
      %4154 = vmatpush.bf16.msra.mxu0 0
      %4155 = vmatpush.bf16.msra.mxu0 0
      %4156 = vmatpush.bf16.msra.mxu0 0
      %4157 = vmatpush.bf16.msra.mxu0 0
      %4158 = vmatpush.bf16.msra.mxu0 0
      %4159 = vmatpush.bf16.msra.mxu0 %v4112
      %4160 = vmatmul.bf16.gmra.mxu0 %v4117
      %v4161 = vpop.f32.mrf.mxu0
      %v4162 = vadd.f32 0.0, %v4161
      %v4163 = vpop.f32.mrf.mxu0
      %v4164 = vadd.f32 0.0, %v4163
      %4165 = vmatmul.bf16.gmra.mxu0 %v4120
      %v4166 = vpop.f32.mrf.mxu0
      %v4167 = vadd.f32 0.0, %v4166
      %v4168 = vpop.f32.mrf.mxu0
      %v4169 = vadd.f32 0.0, %v4168
      %4170 = vmatmul.bf16.gmra.mxu0 %v4123
      %v4171 = vpop.f32.mrf.mxu0
      %v4172 = vadd.f32 0.0, %v4171
      %v4173 = vpop.f32.mrf.mxu0
      %v4174 = vadd.f32 0.0, %v4173
      %4175 = vmatmul.bf16.gmra.mxu0 %v4126
      %v4176 = vpop.f32.mrf.mxu0
      %v4177 = vadd.f32 0.0, %v4176
      %v4178 = vpop.f32.mrf.mxu0
      %v4179 = vadd.f32 0.0, %v4178
      %4180 = vmatmul.bf16.gmra.mxu0 %v4129
      %v4181 = vpop.f32.mrf.mxu0
      %v4182 = vadd.f32 0.0, %v4181
      %v4183 = vpop.f32.mrf.mxu0
      %v4184 = vadd.f32 0.0, %v4183
      %4185 = vmatmul.bf16.gmra.mxu0 %v4132
      %v4186 = vpop.f32.mrf.mxu0
      %v4187 = vadd.f32 0.0, %v4186
      %v4188 = vpop.f32.mrf.mxu0
      %v4189 = vadd.f32 0.0, %v4188
      %4190 = vmatmul.bf16.gmra.mxu0 %v4135
      %v4191 = vpop.f32.mrf.mxu0
      %v4192 = vadd.f32 0.0, %v4191
      %v4193 = vpop.f32.mrf.mxu0
      %v4194 = vadd.f32 0.0, %v4193
      %4195 = vmatmul.bf16.gmra.mxu0 %v4138
      %v4196 = vpop.f32.mrf.mxu0
      %v4197 = vadd.f32 0.0, %v4196
      %v4198 = vpop.f32.mrf.mxu0
      %v4199 = vadd.f32 0.0, %v4198
      %4200 = vmatmul.bf16.gmra.mxu0 %v4141
      %v4201 = vpop.f32.mrf.mxu0
      %v4202 = vadd.f32 0.0, %v4201
      %v4203 = vpop.f32.mrf.mxu0
      %v4204 = vadd.f32 0.0, %v4203
      %4205 = vmatmul.bf16.gmra.mxu0 %v4144
      %v4206 = vpop.f32.mrf.mxu0
      %v4207 = vadd.f32 0.0, %v4206
      %v4208 = vpop.f32.mrf.mxu0
      %v4209 = vadd.f32 0.0, %v4208
      %4210 = vmatmul.bf16.gmra.mxu0 %v4147
      %v4211 = vpop.f32.mrf.mxu0
      %v4212 = vadd.f32 0.0, %v4211
      %v4213 = vpop.f32.mrf.mxu0
      %v4214 = vadd.f32 0.0, %v4213
      %4215 = vmatmul.bf16.gmra.mxu0 %v4150
      %v4216 = vpop.f32.mrf.mxu0
      %v4217 = vadd.f32 0.0, %v4216
      %v4218 = vpop.f32.mrf.mxu0
      %v4219 = vadd.f32 0.0, %v4218
      %4220 = vdwg.mxu0
      %4221 = vmatpush.bf16.msra.mxu0 0
      %4222 = vmatpush.bf16.msra.mxu0 0
      %4223 = vmatpush.bf16.msra.mxu0 0
      %4224 = vmatpush.bf16.msra.mxu0 0
      %4225 = vmatpush.bf16.msra.mxu0 0
      %4226 = vmatpush.bf16.msra.mxu0 0
      %4227 = vmatpush.bf16.msra.mxu0 0
      %4228 = vmatpush.bf16.msra.mxu0 %v4113
      %4229 = vmatmul.bf16.gmra.mxu0 %v4117
      %v4230 = vpop.f32.mrf.mxu0
      %v4231 = vadd.f32 0.0, %v4230
      %v4232 = vpop.f32.mrf.mxu0
      %v4233 = vadd.f32 0.0, %v4232
      %4234 = vmatmul.bf16.gmra.mxu0 %v4120
      %v4235 = vpop.f32.mrf.mxu0
      %v4236 = vadd.f32 0.0, %v4235
      %v4237 = vpop.f32.mrf.mxu0
      %v4238 = vadd.f32 0.0, %v4237
      %4239 = vmatmul.bf16.gmra.mxu0 %v4123
      %v4240 = vpop.f32.mrf.mxu0
      %v4241 = vadd.f32 0.0, %v4240
      %v4242 = vpop.f32.mrf.mxu0
      %v4243 = vadd.f32 0.0, %v4242
      %4244 = vmatmul.bf16.gmra.mxu0 %v4126
      %v4245 = vpop.f32.mrf.mxu0
      %v4246 = vadd.f32 0.0, %v4245
      %v4247 = vpop.f32.mrf.mxu0
      %v4248 = vadd.f32 0.0, %v4247
      %4249 = vmatmul.bf16.gmra.mxu0 %v4129
      %v4250 = vpop.f32.mrf.mxu0
      %v4251 = vadd.f32 0.0, %v4250
      %v4252 = vpop.f32.mrf.mxu0
      %v4253 = vadd.f32 0.0, %v4252
      %4254 = vmatmul.bf16.gmra.mxu0 %v4132
      %v4255 = vpop.f32.mrf.mxu0
      %v4256 = vadd.f32 0.0, %v4255
      %v4257 = vpop.f32.mrf.mxu0
      %v4258 = vadd.f32 0.0, %v4257
      %4259 = vmatmul.bf16.gmra.mxu0 %v4135
      %v4260 = vpop.f32.mrf.mxu0
      %v4261 = vadd.f32 0.0, %v4260
      %v4262 = vpop.f32.mrf.mxu0
      %v4263 = vadd.f32 0.0, %v4262
      %4264 = vmatmul.bf16.gmra.mxu0 %v4138
      %v4265 = vpop.f32.mrf.mxu0
      %v4266 = vadd.f32 0.0, %v4265
      %v4267 = vpop.f32.mrf.mxu0
      %v4268 = vadd.f32 0.0, %v4267
      %4269 = vmatmul.bf16.gmra.mxu0 %v4141
      %v4270 = vpop.f32.mrf.mxu0
      %v4271 = vadd.f32 0.0, %v4270
      %v4272 = vpop.f32.mrf.mxu0
      %v4273 = vadd.f32 0.0, %v4272
      %4274 = vmatmul.bf16.gmra.mxu0 %v4144
      %v4275 = vpop.f32.mrf.mxu0
      %v4276 = vadd.f32 0.0, %v4275
      %v4277 = vpop.f32.mrf.mxu0
      %v4278 = vadd.f32 0.0, %v4277
      %4279 = vmatmul.bf16.gmra.mxu0 %v4147
      %v4280 = vpop.f32.mrf.mxu0
      %v4281 = vadd.f32 0.0, %v4280
      %v4282 = vpop.f32.mrf.mxu0
      %v4283 = vadd.f32 0.0, %v4282
      %4284 = vmatmul.bf16.gmra.mxu0 %v4150
      %v4285 = vpop.f32.mrf.mxu0
      %v4286 = vadd.f32 0.0, %v4285
      %v4287 = vpop.f32.mrf.mxu0
      %v4288 = vadd.f32 0.0, %v4287
      %4289 = vdwg.mxu0
      %v4290 = vadd.f32 %v3888, %v4162
      %v4291 = vadd.f32 %v3889, %v4231
      %v4292 = vadd.f32 %v3890, %v4164
      %v4293 = vadd.f32 %v3891, %v4233
      %v4294 = vadd.f32 %v3892, %v4167
      %v4295 = vadd.f32 %v3893, %v4236
      %v4296 = vadd.f32 %v3894, %v4169
      %v4297 = vadd.f32 %v3895, %v4238
      %v4298 = vadd.f32 %v3896, %v4172
      %v4299 = vadd.f32 %v3897, %v4241
      %v4300 = vadd.f32 %v3898, %v4174
      %v4301 = vadd.f32 %v3899, %v4243
      %v4302 = vadd.f32 %v3900, %v4177
      %v4303 = vadd.f32 %v3901, %v4246
      %v4304 = vadd.f32 %v3902, %v4179
      %v4305 = vadd.f32 %v3903, %v4248
      %v4306 = vadd.f32 %v3904, %v4182
      %v4307 = vadd.f32 %v3905, %v4251
      %v4308 = vadd.f32 %v3906, %v4184
      %v4309 = vadd.f32 %v3907, %v4253
      %v4310 = vadd.f32 %v3908, %v4187
      %v4311 = vadd.f32 %v3909, %v4256
      %v4312 = vadd.f32 %v3910, %v4189
      %v4313 = vadd.f32 %v3911, %v4258
      %v4314 = vadd.f32 %v3912, %v4192
      %v4315 = vadd.f32 %v3913, %v4261
      %v4316 = vadd.f32 %v3914, %v4194
      %v4317 = vadd.f32 %v3915, %v4263
      %v4318 = vadd.f32 %v3916, %v4197
      %v4319 = vadd.f32 %v3917, %v4266
      %v4320 = vadd.f32 %v3918, %v4199
      %v4321 = vadd.f32 %v3919, %v4268
      %v4322 = vadd.f32 %v3920, %v4202
      %v4323 = vadd.f32 %v3921, %v4271
      %v4324 = vadd.f32 %v3922, %v4204
      %v4325 = vadd.f32 %v3923, %v4273
      %v4326 = vadd.f32 %v3924, %v4207
      %v4327 = vadd.f32 %v3925, %v4276
      %v4328 = vadd.f32 %v3926, %v4209
      %v4329 = vadd.f32 %v3927, %v4278
      %v4330 = vadd.f32 %v3928, %v4212
      %v4331 = vadd.f32 %v3929, %v4281
      %v4332 = vadd.f32 %v3930, %v4214
      %v4333 = vadd.f32 %v3931, %v4283
      %v4334 = vadd.f32 %v3932, %v4217
      %v4335 = vadd.f32 %v3933, %v4286
      %v4336 = vadd.f32 %v3934, %v4219
      %v4337 = vadd.f32 %v3935, %v4288
      %v4338 = vrot.slane %v4290, 7
      %v4339 = vrot.slane %v4292, 7
      %v4340 = vrot.slane %v4294, 7
      %v4341 = vrot.slane %v4296, 7
      %v4342 = vrot.slane %v4298, 7
      %v4343 = vrot.slane %v4300, 7
      %v4344 = vrot.slane %v4302, 7
      %v4345 = vrot.slane %v4304, 7
      %v4346 = vrot.slane %v4306, 7
      %v4347 = vrot.slane %v4308, 7
      %v4348 = vrot.slane %v4310, 7
      %v4349 = vrot.slane %v4312, 7
      %v4350 = vrot.slane %v4314, 7
      %v4351 = vrot.slane %v4316, 7
      %v4352 = vrot.slane %v4318, 7
      %v4353 = vrot.slane %v4320, 7
      %v4354 = vrot.slane %v4322, 7
      %v4355 = vrot.slane %v4324, 7
      %v4356 = vrot.slane %v4326, 7
      %v4357 = vrot.slane %v4328, 7
      %v4358 = vrot.slane %v4330, 7
      %v4359 = vrot.slane %v4332, 7
      %v4360 = vrot.slane %v4334, 7
      %v4361 = vrot.slane %v4336, 7
      %v4362 = vsel %vm1207, %v4360, %v4361
      %v4363 = vsel %vm1207, %v4359, %v4360
      %v4364 = vsel %vm1207, %v4358, %v4359
      %v4365 = vsel %vm1207, %v4357, %v4358
      %v4366 = vsel %vm1207, %v4356, %v4357
      %v4367 = vsel %vm1207, %v4355, %v4356
      %v4368 = vsel %vm1207, %v4354, %v4355
      %v4369 = vsel %vm1207, %v4353, %v4354
      %v4370 = vsel %vm1207, %v4352, %v4353
      %v4371 = vsel %vm1207, %v4351, %v4352
      %v4372 = vsel %vm1207, %v4350, %v4351
      %v4373 = vsel %vm1207, %v4349, %v4350
      %v4374 = vsel %vm1207, %v4348, %v4349
      %v4375 = vsel %vm1207, %v4347, %v4348
      %v4376 = vsel %vm1207, %v4346, %v4347
      %v4377 = vsel %vm1207, %v4345, %v4346
      %v4378 = vsel %vm1207, %v4344, %v4345
      %v4379 = vsel %vm1207, %v4343, %v4344
      %v4380 = vsel %vm1207, %v4342, %v4343
      %v4381 = vsel %vm1207, %v4341, %v4342
      %v4382 = vsel %vm1207, %v4340, %v4341
      %v4383 = vsel %vm1207, %v4339, %v4340
      %v4384 = vsel %vm1207, %v4338, %v4339
      %v4385 = vsel %vm1207, %v4361, %v4338
      %v4386 = vsel %vm1368, %v4385, 0.0
      %v4387 = vsel %vm1369, %v4384, 0.0
      %v4388 = vsel %vm1370, %v4383, 0.0
      %v4389 = vsel %vm1371, %v4382, 0.0
      %v4390 = vsel %vm1372, %v4381, 0.0
      %v4391 = vsel %vm1373, %v4380, 0.0
      %v4392 = vsel %vm1374, %v4379, 0.0
      %v4393 = vsel %vm1375, %v4378, 0.0
      %v4394 = vsel %vm1376, %v4377, 0.0
      %v4395 = vsel %vm1377, %v4376, 0.0
      %v4396 = vsel %vm1378, %v4375, 0.0
      %v4397 = vsel %vm1379, %v4374, 0.0
      %v4398 = vsel %vm1380, %v4373, 0.0
      %v4399 = vsel %vm1381, %v4372, 0.0
      %v4400 = vsel %vm1382, %v4371, 0.0
      %v4401 = vsel %vm1383, %v4370, 0.0
      %v4402 = vsel %vm1384, %v4369, 0.0
      %v4403 = vsel %vm1385, %v4368, 0.0
      %v4404 = vsel %vm1386, %v4367, 0.0
      %v4405 = vsel %vm1387, %v4366, 0.0
      %v4406 = vsel %vm1388, %v4365, 0.0
      %v4407 = vsel %vm1389, %v4364, 0.0
      %v4408 = vsel %vm1390, %v4363, 0.0
      %v4409 = vsel %vm1391, %v4362, 0.0
      %4458 = vrot.lane.b32.xlu0 %v4290, 32
      %v4459 = vpop.permute.xlu0 %4458
      %4460 = vrot.lane.b32.xlu0 %v4291, 32
      %v4461 = vpop.permute.xlu0 %4460
      %4462 = vrot.lane.b32.xlu0 %v4292, 32
      %v4463 = vpop.permute.xlu0 %4462
      %4464 = vrot.lane.b32.xlu0 %v4293, 32
      %v4465 = vpop.permute.xlu0 %4464
      %4466 = vrot.lane.b32.xlu0 %v4294, 32
      %v4467 = vpop.permute.xlu0 %4466
      %4468 = vrot.lane.b32.xlu0 %v4295, 32
      %v4469 = vpop.permute.xlu0 %4468
      %4470 = vrot.lane.b32.xlu0 %v4296, 32
      %v4471 = vpop.permute.xlu0 %4470
      %4472 = vrot.lane.b32.xlu0 %v4297, 32
      %v4473 = vpop.permute.xlu0 %4472
      %4474 = vrot.lane.b32.xlu0 %v4298, 32
      %v4475 = vpop.permute.xlu0 %4474
      %4476 = vrot.lane.b32.xlu0 %v4299, 32
      %v4477 = vpop.permute.xlu0 %4476
      %4478 = vrot.lane.b32.xlu0 %v4300, 32
      %v4479 = vpop.permute.xlu0 %4478
      %4480 = vrot.lane.b32.xlu0 %v4301, 32
      %v4481 = vpop.permute.xlu0 %4480
      %4482 = vrot.lane.b32.xlu0 %v4302, 32
      %v4483 = vpop.permute.xlu0 %4482
      %4484 = vrot.lane.b32.xlu0 %v4303, 32
      %v4485 = vpop.permute.xlu0 %4484
      %4486 = vrot.lane.b32.xlu0 %v4304, 32
      %v4487 = vpop.permute.xlu0 %4486
      %4488 = vrot.lane.b32.xlu0 %v4305, 32
      %v4489 = vpop.permute.xlu0 %4488
      %4490 = vrot.lane.b32.xlu0 %v4306, 32
      %v4491 = vpop.permute.xlu0 %4490
      %4492 = vrot.lane.b32.xlu0 %v4307, 32
      %v4493 = vpop.permute.xlu0 %4492
      %4494 = vrot.lane.b32.xlu0 %v4308, 32
      %v4495 = vpop.permute.xlu0 %4494
      %4496 = vrot.lane.b32.xlu0 %v4309, 32
      %v4497 = vpop.permute.xlu0 %4496
      %4498 = vrot.lane.b32.xlu0 %v4310, 32
      %v4499 = vpop.permute.xlu0 %4498
      %4500 = vrot.lane.b32.xlu0 %v4311, 32
      %v4501 = vpop.permute.xlu0 %4500
      %4502 = vrot.lane.b32.xlu0 %v4312, 32
      %v4503 = vpop.permute.xlu0 %4502
      %4504 = vrot.lane.b32.xlu0 %v4313, 32
      %v4505 = vpop.permute.xlu0 %4504
      %4506 = vrot.lane.b32.xlu0 %v4314, 32
      %v4507 = vpop.permute.xlu0 %4506
      %4508 = vrot.lane.b32.xlu0 %v4315, 32
      %v4509 = vpop.permute.xlu0 %4508
      %4510 = vrot.lane.b32.xlu0 %v4316, 32
      %v4511 = vpop.permute.xlu0 %4510
      %4512 = vrot.lane.b32.xlu0 %v4317, 32
      %v4513 = vpop.permute.xlu0 %4512
      %4514 = vrot.lane.b32.xlu0 %v4318, 32
      %v4515 = vpop.permute.xlu0 %4514
      %4516 = vrot.lane.b32.xlu0 %v4319, 32
      %v4517 = vpop.permute.xlu0 %4516
      %4518 = vrot.lane.b32.xlu0 %v4320, 32
      %v4519 = vpop.permute.xlu0 %4518
      %4520 = vrot.lane.b32.xlu0 %v4321, 32
      %v4521 = vpop.permute.xlu0 %4520
      %4522 = vrot.lane.b32.xlu0 %v4322, 32
      %v4523 = vpop.permute.xlu0 %4522
      %4524 = vrot.lane.b32.xlu0 %v4323, 32
      %v4525 = vpop.permute.xlu0 %4524
      %4526 = vrot.lane.b32.xlu0 %v4324, 32
      %v4527 = vpop.permute.xlu0 %4526
      %4528 = vrot.lane.b32.xlu0 %v4325, 32
      %v4529 = vpop.permute.xlu0 %4528
      %4530 = vrot.lane.b32.xlu0 %v4326, 32
      %v4531 = vpop.permute.xlu0 %4530
      %4532 = vrot.lane.b32.xlu0 %v4327, 32
      %v4533 = vpop.permute.xlu0 %4532
      %4534 = vrot.lane.b32.xlu0 %v4328, 32
      %v4535 = vpop.permute.xlu0 %4534
      %4536 = vrot.lane.b32.xlu0 %v4329, 32
      %v4537 = vpop.permute.xlu0 %4536
      %4538 = vrot.lane.b32.xlu0 %v4330, 32
      %v4539 = vpop.permute.xlu0 %4538
      %4540 = vrot.lane.b32.xlu0 %v4331, 32
      %v4541 = vpop.permute.xlu0 %4540
      %4542 = vrot.lane.b32.xlu0 %v4332, 32
      %v4543 = vpop.permute.xlu0 %4542
      %4544 = vrot.lane.b32.xlu0 %v4333, 32
      %v4545 = vpop.permute.xlu0 %4544
      %4546 = vrot.lane.b32.xlu0 %v4334, 32
      %v4547 = vpop.permute.xlu0 %4546
      %4548 = vrot.lane.b32.xlu0 %v4335, 32
      %v4549 = vpop.permute.xlu0 %4548
      %4550 = vrot.lane.b32.xlu0 %v4336, 32
      %v4551 = vpop.permute.xlu0 %4550
      %4552 = vrot.lane.b32.xlu0 %v4337, 32
      %v4553 = vpop.permute.xlu0 %4552
      %vm4554 = vcmask 261120
      %v4555 = vsel %vm4554, %v4459, %v4461
      %v4556 = vsel %vm4554, %v4463, %v4465
      %v4557 = vsel %vm4554, %v4467, %v4469
      %v4558 = vsel %vm4554, %v4471, %v4473
      %v4559 = vsel %vm4554, %v4475, %v4477
      %v4560 = vsel %vm4554, %v4479, %v4481
      %v4561 = vsel %vm4554, %v4483, %v4485
      %v4562 = vsel %vm4554, %v4487, %v4489
      %v4563 = vsel %vm4554, %v4491, %v4493
      %v4564 = vsel %vm4554, %v4495, %v4497
      %v4565 = vsel %vm4554, %v4499, %v4501
      %v4566 = vsel %vm4554, %v4503, %v4505
      %v4567 = vsel %vm4554, %v4507, %v4509
      %v4568 = vsel %vm4554, %v4511, %v4513
      %v4569 = vsel %vm4554, %v4515, %v4517
      %v4570 = vsel %vm4554, %v4519, %v4521
      %v4571 = vsel %vm4554, %v4523, %v4525
      %v4572 = vsel %vm4554, %v4527, %v4529
      %v4573 = vsel %vm4554, %v4531, %v4533
      %v4574 = vsel %vm4554, %v4535, %v4537
      %v4575 = vsel %vm4554, %v4539, %v4541
      %v4576 = vsel %vm4554, %v4543, %v4545
      %v4577 = vsel %vm4554, %v4547, %v4549
      %v4578 = vsel %vm4554, %v4551, %v4553
      %v4603 = vrot.slane %v4555, 1
      %v4604 = vrot.slane %v4556, 1
      %v4605 = vrot.slane %v4557, 1
      %v4606 = vrot.slane %v4558, 1
      %v4607 = vrot.slane %v4559, 1
      %v4608 = vrot.slane %v4560, 1
      %v4609 = vrot.slane %v4561, 1
      %v4610 = vrot.slane %v4562, 1
      %v4611 = vrot.slane %v4563, 1
      %v4612 = vrot.slane %v4564, 1
      %v4613 = vrot.slane %v4565, 1
      %v4614 = vrot.slane %v4566, 1
      %v4615 = vrot.slane %v4567, 1
      %v4616 = vrot.slane %v4568, 1
      %v4617 = vrot.slane %v4569, 1
      %v4618 = vrot.slane %v4570, 1
      %v4619 = vrot.slane %v4571, 1
      %v4620 = vrot.slane %v4572, 1
      %v4621 = vrot.slane %v4573, 1
      %v4622 = vrot.slane %v4574, 1
      %v4623 = vrot.slane %v4575, 1
      %v4624 = vrot.slane %v4576, 1
      %v4625 = vrot.slane %v4577, 1
      %v4626 = vrot.slane %v4578, 1
      %v4627 = vsel %vm1592, %v4625, %v4626
      %v4628 = vsel %vm1592, %v4624, %v4625
      %v4629 = vsel %vm1592, %v4623, %v4624
      %v4630 = vsel %vm1592, %v4622, %v4623
      %v4631 = vsel %vm1592, %v4621, %v4622
      %v4632 = vsel %vm1592, %v4620, %v4621
      %v4633 = vsel %vm1592, %v4619, %v4620
      %v4634 = vsel %vm1592, %v4618, %v4619
      %v4635 = vsel %vm1592, %v4617, %v4618
      %v4636 = vsel %vm1592, %v4616, %v4617
      %v4637 = vsel %vm1592, %v4615, %v4616
      %v4638 = vsel %vm1592, %v4614, %v4615
      %v4639 = vsel %vm1592, %v4613, %v4614
      %v4640 = vsel %vm1592, %v4612, %v4613
      %v4641 = vsel %vm1592, %v4611, %v4612
      %v4642 = vsel %vm1592, %v4610, %v4611
      %v4643 = vsel %vm1592, %v4609, %v4610
      %v4644 = vsel %vm1592, %v4608, %v4609
      %v4645 = vsel %vm1592, %v4607, %v4608
      %v4646 = vsel %vm1592, %v4606, %v4607
      %v4647 = vsel %vm1592, %v4605, %v4606
      %v4648 = vsel %vm1592, %v4604, %v4605
      %v4649 = vsel %vm1592, %v4603, %v4604
      %v4650 = vsel %vm1592, %v4626, %v4603
      %v4651 = vsel %vm1721, %v4649, 0.0
      %v4652 = vsel %vm1722, %v4648, 0.0
      %v4653 = vsel %vm1723, %v4647, 0.0
      %v4654 = vsel %vm1724, %v4646, 0.0
      %v4655 = vsel %vm1725, %v4645, 0.0
      %v4656 = vsel %vm1726, %v4644, 0.0
      %v4657 = vsel %vm1727, %v4643, 0.0
      %v4658 = vsel %vm1728, %v4642, 0.0
      %v4659 = vsel %vm1729, %v4641, 0.0
      %v4660 = vsel %vm1730, %v4640, 0.0
      %v4661 = vsel %vm1731, %v4639, 0.0
      %v4662 = vsel %vm1732, %v4638, 0.0
      %v4663 = vsel %vm1733, %v4637, 0.0
      %v4664 = vsel %vm1734, %v4636, 0.0
      %v4665 = vsel %vm1735, %v4635, 0.0
      %v4666 = vsel %vm1736, %v4634, 0.0
      %v4667 = vsel %vm1737, %v4633, 0.0
      %v4668 = vsel %vm1738, %v4632, 0.0
      %v4669 = vsel %vm1739, %v4631, 0.0
      %v4670 = vsel %vm1740, %v4630, 0.0
      %v4671 = vsel %vm1741, %v4629, 0.0
      %v4672 = vsel %vm1742, %v4628, 0.0
      %v4673 = vsel %vm1743, %v4627, 0.0
      %v4674 = vsel %vm1744, %v4650, 0.0
      %4675 = vrot.lane.b32.xlu0 %v4290, 80
      %v4676 = vpop.permute.xlu0 %4675
      %4677 = vrot.lane.b32.xlu0 %v4292, 80
      %v4678 = vpop.permute.xlu0 %4677
      %4679 = vrot.lane.b32.xlu0 %v4294, 80
      %v4680 = vpop.permute.xlu0 %4679
      %4681 = vrot.lane.b32.xlu0 %v4296, 80
      %v4682 = vpop.permute.xlu0 %4681
      %4683 = vrot.lane.b32.xlu0 %v4298, 80
      %v4684 = vpop.permute.xlu0 %4683
      %4685 = vrot.lane.b32.xlu0 %v4300, 80
      %v4686 = vpop.permute.xlu0 %4685
      %4687 = vrot.lane.b32.xlu0 %v4302, 80
      %v4688 = vpop.permute.xlu0 %4687
      %4689 = vrot.lane.b32.xlu0 %v4304, 80
      %v4690 = vpop.permute.xlu0 %4689
      %4691 = vrot.lane.b32.xlu0 %v4306, 80
      %v4692 = vpop.permute.xlu0 %4691
      %4693 = vrot.lane.b32.xlu0 %v4308, 80
      %v4694 = vpop.permute.xlu0 %4693
      %4695 = vrot.lane.b32.xlu0 %v4310, 80
      %v4696 = vpop.permute.xlu0 %4695
      %4697 = vrot.lane.b32.xlu0 %v4312, 80
      %v4698 = vpop.permute.xlu0 %4697
      %4699 = vrot.lane.b32.xlu0 %v4314, 80
      %v4700 = vpop.permute.xlu0 %4699
      %4701 = vrot.lane.b32.xlu0 %v4316, 80
      %v4702 = vpop.permute.xlu0 %4701
      %4703 = vrot.lane.b32.xlu0 %v4318, 80
      %v4704 = vpop.permute.xlu0 %4703
      %4705 = vrot.lane.b32.xlu0 %v4320, 80
      %v4706 = vpop.permute.xlu0 %4705
      %4707 = vrot.lane.b32.xlu0 %v4322, 80
      %v4708 = vpop.permute.xlu0 %4707
      %4709 = vrot.lane.b32.xlu0 %v4324, 80
      %v4710 = vpop.permute.xlu0 %4709
      %4711 = vrot.lane.b32.xlu0 %v4326, 80
      %v4712 = vpop.permute.xlu0 %4711
      %4713 = vrot.lane.b32.xlu0 %v4328, 80
      %v4714 = vpop.permute.xlu0 %4713
      %4715 = vrot.lane.b32.xlu0 %v4330, 80
      %v4716 = vpop.permute.xlu0 %4715
      %4717 = vrot.lane.b32.xlu0 %v4332, 80
      %v4718 = vpop.permute.xlu0 %4717
      %4719 = vrot.lane.b32.xlu0 %v4334, 80
      %v4720 = vpop.permute.xlu0 %4719
      %4721 = vrot.lane.b32.xlu0 %v4336, 80
      %v4722 = vpop.permute.xlu0 %4721
      %v4747 = vadd.f32 %v4386, %v4676
      %v4748 = vadd.f32 %v4387, %v4678
      %v4749 = vadd.f32 %v4388, %v4680
      %v4750 = vadd.f32 %v4389, %v4682
      %v4751 = vadd.f32 %v4390, %v4684
      %v4752 = vadd.f32 %v4391, %v4686
      %v4753 = vadd.f32 %v4392, %v4688
      %v4754 = vadd.f32 %v4393, %v4690
      %v4755 = vadd.f32 %v4394, %v4692
      %v4756 = vadd.f32 %v4395, %v4694
      %v4757 = vadd.f32 %v4396, %v4696
      %v4758 = vadd.f32 %v4397, %v4698
      %v4759 = vadd.f32 %v4398, %v4700
      %v4760 = vadd.f32 %v4399, %v4702
      %v4761 = vadd.f32 %v4400, %v4704
      %v4762 = vadd.f32 %v4401, %v4706
      %v4763 = vadd.f32 %v4402, %v4708
      %v4764 = vadd.f32 %v4403, %v4710
      %v4765 = vadd.f32 %v4404, %v4712
      %v4766 = vadd.f32 %v4405, %v4714
      %v4767 = vadd.f32 %v4406, %v4716
      %v4768 = vadd.f32 %v4407, %v4718
      %v4769 = vadd.f32 %v4408, %v4720
      %v4770 = vadd.f32 %v4409, %v4722
      %v4771 = vadd.f32 %v4747, %v4651
      %v4772 = vadd.f32 %v4748, %v4652
      %v4773 = vadd.f32 %v4749, %v4653
      %v4774 = vadd.f32 %v4750, %v4654
      %v4775 = vadd.f32 %v4751, %v4655
      %v4776 = vadd.f32 %v4752, %v4656
      %v4777 = vadd.f32 %v4753, %v4657
      %v4778 = vadd.f32 %v4754, %v4658
      %v4779 = vadd.f32 %v4755, %v4659
      %v4780 = vadd.f32 %v4756, %v4660
      %v4781 = vadd.f32 %v4757, %v4661
      %v4782 = vadd.f32 %v4758, %v4662
      %v4783 = vadd.f32 %v4759, %v4663
      %v4784 = vadd.f32 %v4760, %v4664
      %v4785 = vadd.f32 %v4761, %v4665
      %v4786 = vadd.f32 %v4762, %v4666
      %v4787 = vadd.f32 %v4763, %v4667
      %v4788 = vadd.f32 %v4764, %v4668
      %v4789 = vadd.f32 %v4765, %v4669
      %v4790 = vadd.f32 %v4766, %v4670
      %v4791 = vadd.f32 %v4767, %v4671
      %v4792 = vadd.f32 %v4768, %v4672
      %v4793 = vadd.f32 %v4769, %v4673
      %v4794 = vadd.f32 %v4770, %v4674
      %v4795 = vsel %vm890, 1, 0
      %v4796 = vsel %vm891, 1, 0
      %v4797 = vsel %vm892, 1, 0
      %v4798 = vsel %vm893, 1, 0
      %v4799 = vsel %vm894, 1, 0
      %v4800 = vsel %vm895, 1, 0
      %v4801 = vsel %vm896, 1, 0
      %v4802 = vsel %vm897, 1, 0
      %v4803 = vsel %vm898, 1, 0
      %v4804 = vsel %vm899, 1, 0
      %v4805 = vsel %vm900, 1, 0
      %v4806 = vsel %vm901, 1, 0
      %v4807 = vsel %vm902, 1, 0
      %v4808 = vsel %vm903, 1, 0
      %v4809 = vsel %vm904, 1, 0
      %v4810 = vsel %vm905, 1, 0
      %vm4811 = vcmp.eq.s32.totalorder %v4795, 1
      %vm4812 = vcmp.eq.s32.totalorder %v4796, 1
      %vm4813 = vcmp.eq.s32.totalorder %v4797, 1
      %vm4814 = vcmp.eq.s32.totalorder %v4798, 1
      %vm4815 = vcmp.eq.s32.totalorder %v4799, 1
      %vm4816 = vcmp.eq.s32.totalorder %v4800, 1
      %vm4817 = vcmp.eq.s32.totalorder %v4801, 1
      %vm4818 = vcmp.eq.s32.totalorder %v4802, 1
      %vm4819 = vcmp.eq.s32.totalorder %v4803, 1
      %vm4820 = vcmp.eq.s32.totalorder %v4804, 1
      %vm4821 = vcmp.eq.s32.totalorder %v4805, 1
      %vm4822 = vcmp.eq.s32.totalorder %v4806, 1
      %vm4823 = vcmp.eq.s32.totalorder %v4807, 1
      %vm4824 = vcmp.eq.s32.totalorder %v4808, 1
      %vm4825 = vcmp.eq.s32.totalorder %v4809, 1
      %vm4826 = vcmp.eq.s32.totalorder %v4810, 1
      %v4827 = vsel %vm4811, %v4771, 0.0
      %v4828 = vsel %vm4812, %v4772, 0.0
      %v4829 = vsel %vm4813, %v4773, 0.0
      %v4830 = vsel %vm4814, %v4774, 0.0
      %v4831 = vsel %vm4815, %v4775, 0.0
      %v4832 = vsel %vm4816, %v4776, 0.0
      %v4833 = vsel %vm4817, %v4777, 0.0
      %v4834 = vsel %vm4818, %v4778, 0.0
      %v4835 = vsel %vm4819, %v4779, 0.0
      %v4836 = vsel %vm4820, %v4780, 0.0
      %v4837 = vsel %vm4821, %v4781, 0.0
      %v4838 = vsel %vm4822, %v4782, 0.0
      %v4839 = vsel %vm4823, %v4783, 0.0
      %v4840 = vsel %vm4824, %v4784, 0.0
      %v4841 = vsel %vm4825, %v4785, 0.0
      %v4842 = vsel %vm4826, %v4786, 0.0
      %v4843 = vsel %vm909, 1, 0
      %v4844 = vsel %vm910, 1, 0
      %v4845 = vsel %vm911, 1, 0
      %v4846 = vsel %vm912, 1, 0
      %v4847 = vsel %vm913, 1, 0
      %v4848 = vsel %vm914, 1, 0
      %v4849 = vsel %vm915, 1, 0
      %v4850 = vsel %vm916, 1, 0
      %v4851 = vsel %vm917, 1, 0
      %v4852 = vsel %vm918, 1, 0
      %v4853 = vsel %vm919, 1, 0
      %v4854 = vsel %vm920, 1, 0
      %v4855 = vsel %vm921, 1, 0
      %v4856 = vsel %vm922, 1, 0
      %v4857 = vsel %vm923, 1, 0
      %v4858 = vsel %vm924, 1, 0
      %vm4859 = vcmp.eq.s32.totalorder %v4843, 1
      %vm4860 = vcmp.eq.s32.totalorder %v4844, 1
      %vm4861 = vcmp.eq.s32.totalorder %v4845, 1
      %vm4862 = vcmp.eq.s32.totalorder %v4846, 1
      %vm4863 = vcmp.eq.s32.totalorder %v4847, 1
      %vm4864 = vcmp.eq.s32.totalorder %v4848, 1
      %vm4865 = vcmp.eq.s32.totalorder %v4849, 1
      %vm4866 = vcmp.eq.s32.totalorder %v4850, 1
      %vm4867 = vcmp.eq.s32.totalorder %v4851, 1
      %vm4868 = vcmp.eq.s32.totalorder %v4852, 1
      %vm4869 = vcmp.eq.s32.totalorder %v4853, 1
      %vm4870 = vcmp.eq.s32.totalorder %v4854, 1
      %vm4871 = vcmp.eq.s32.totalorder %v4855, 1
      %vm4872 = vcmp.eq.s32.totalorder %v4856, 1
      %vm4873 = vcmp.eq.s32.totalorder %v4857, 1
      %vm4874 = vcmp.eq.s32.totalorder %v4858, 1
      %v4875 = vsel %vm4859, %v4779, 0.0
      %v4876 = vsel %vm4860, %v4780, 0.0
      %v4877 = vsel %vm4861, %v4781, 0.0
      %v4878 = vsel %vm4862, %v4782, 0.0
      %v4879 = vsel %vm4863, %v4783, 0.0
      %v4880 = vsel %vm4864, %v4784, 0.0
      %v4881 = vsel %vm4865, %v4785, 0.0
      %v4882 = vsel %vm4866, %v4786, 0.0
      %v4883 = vsel %vm4867, %v4787, 0.0
      %v4884 = vsel %vm4868, %v4788, 0.0
      %v4885 = vsel %vm4869, %v4789, 0.0
      %v4886 = vsel %vm4870, %v4790, 0.0
      %v4887 = vsel %vm4871, %v4791, 0.0
      %v4888 = vsel %vm4872, %v4792, 0.0
      %v4889 = vsel %vm4873, %v4793, 0.0
      %v4890 = vsel %vm4874, %v4794, 0.0
      %4907 = vrot.lane.b32.xlu0 %v4775, 112
      %v4908 = vpop.permute.xlu0 %4907
      %4909 = vrot.lane.b32.xlu0 %v4776, 112
      %v4910 = vpop.permute.xlu0 %4909
      %4911 = vrot.lane.b32.xlu0 %v4777, 112
      %v4912 = vpop.permute.xlu0 %4911
      %4913 = vrot.lane.b32.xlu0 %v4778, 112
      %v4914 = vpop.permute.xlu0 %4913
      %4915 = vrot.lane.b32.xlu0 %v4779, 112
      %v4916 = vpop.permute.xlu0 %4915
      %4917 = vrot.lane.b32.xlu0 %v4780, 112
      %v4918 = vpop.permute.xlu0 %4917
      %4919 = vrot.lane.b32.xlu0 %v4781, 112
      %v4920 = vpop.permute.xlu0 %4919
      %4921 = vrot.lane.b32.xlu0 %v4782, 112
      %v4922 = vpop.permute.xlu0 %4921
      %4923 = vrot.lane.b32.xlu0 %v4783, 112
      %v4924 = vpop.permute.xlu0 %4923
      %4925 = vrot.lane.b32.xlu0 %v4784, 112
      %v4926 = vpop.permute.xlu0 %4925
      %4927 = vrot.lane.b32.xlu0 %v4785, 112
      %v4928 = vpop.permute.xlu0 %4927
      %4929 = vrot.lane.b32.xlu0 %v4786, 112
      %v4930 = vpop.permute.xlu0 %4929
      %4931 = vrot.lane.b32.xlu0 %v4787, 112
      %v4932 = vpop.permute.xlu0 %4931
      %4933 = vrot.lane.b32.xlu0 %v4788, 112
      %v4934 = vpop.permute.xlu0 %4933
      %4935 = vrot.lane.b32.xlu0 %v4789, 112
      %v4936 = vpop.permute.xlu0 %4935
      %4937 = vrot.lane.b32.xlu0 %v4790, 112
      %v4938 = vpop.permute.xlu0 %4937
      %v4955 = vadd.f32 %v4827, %v4908
      %v4956 = vadd.f32 %v4828, %v4910
      %v4957 = vadd.f32 %v4829, %v4912
      %v4958 = vadd.f32 %v4830, %v4914
      %v4959 = vadd.f32 %v4831, %v4916
      %v4960 = vadd.f32 %v4832, %v4918
      %v4961 = vadd.f32 %v4833, %v4920
      %v4962 = vadd.f32 %v4834, %v4922
      %v4963 = vadd.f32 %v4835, %v4924
      %v4964 = vadd.f32 %v4836, %v4926
      %v4965 = vadd.f32 %v4837, %v4928
      %v4966 = vadd.f32 %v4838, %v4930
      %v4967 = vadd.f32 %v4839, %v4932
      %v4968 = vadd.f32 %v4840, %v4934
      %v4969 = vadd.f32 %v4841, %v4936
      %v4970 = vadd.f32 %v4842, %v4938
      %4987 = vrot.lane.b32.xlu0 %v4875, 96
      %v4988 = vpop.permute.xlu0 %4987
      %4989 = vrot.lane.b32.xlu0 %v4876, 96
      %v4990 = vpop.permute.xlu0 %4989
      %4991 = vrot.lane.b32.xlu0 %v4877, 96
      %v4992 = vpop.permute.xlu0 %4991
      %4993 = vrot.lane.b32.xlu0 %v4878, 96
      %v4994 = vpop.permute.xlu0 %4993
      %4995 = vrot.lane.b32.xlu0 %v4879, 96
      %v4996 = vpop.permute.xlu0 %4995
      %4997 = vrot.lane.b32.xlu0 %v4880, 96
      %v4998 = vpop.permute.xlu0 %4997
      %4999 = vrot.lane.b32.xlu0 %v4881, 96
      %v5000 = vpop.permute.xlu0 %4999
      %5001 = vrot.lane.b32.xlu0 %v4882, 96
      %v5002 = vpop.permute.xlu0 %5001
      %5003 = vrot.lane.b32.xlu0 %v4883, 96
      %v5004 = vpop.permute.xlu0 %5003
      %5005 = vrot.lane.b32.xlu0 %v4884, 96
      %v5006 = vpop.permute.xlu0 %5005
      %5007 = vrot.lane.b32.xlu0 %v4885, 96
      %v5008 = vpop.permute.xlu0 %5007
      %5009 = vrot.lane.b32.xlu0 %v4886, 96
      %v5010 = vpop.permute.xlu0 %5009
      %5011 = vrot.lane.b32.xlu0 %v4887, 96
      %v5012 = vpop.permute.xlu0 %5011
      %5013 = vrot.lane.b32.xlu0 %v4888, 96
      %v5014 = vpop.permute.xlu0 %5013
      %5015 = vrot.lane.b32.xlu0 %v4889, 96
      %v5016 = vpop.permute.xlu0 %5015
      %5017 = vrot.lane.b32.xlu0 %v4890, 96
      %v5018 = vpop.permute.xlu0 %5017
      %v5035 = vadd.f32 %v4955, %v4988
      %v5036 = vadd.f32 %v4956, %v4990
      %v5037 = vadd.f32 %v4957, %v4992
      %v5038 = vadd.f32 %v4958, %v4994
      %v5039 = vadd.f32 %v4959, %v4996
      %v5040 = vadd.f32 %v4960, %v4998
      %v5041 = vadd.f32 %v4961, %v5000
      %v5042 = vadd.f32 %v4962, %v5002
      %v5043 = vadd.f32 %v4963, %v5004
      %v5044 = vadd.f32 %v4964, %v5006
      %v5045 = vadd.f32 %v4965, %v5008
      %v5046 = vadd.f32 %v4966, %v5010
      %v5047 = vadd.f32 %v4967, %v5012
      %v5048 = vadd.f32 %v4968, %v5014
      %v5049 = vadd.f32 %v4969, %v5016
      %v5050 = vadd.f32 %v4970, %v5018
      %v5051 = vld [vmem:[%s8] sm:$0x1]
      %v5053 = vperm.slane %v5051, 0
      %v5055 = vadd.f32 %v5035, %v5053
      %v5056 = vadd.f32 %v5036, %v5053
      %v5057 = vadd.f32 %v5037, %v5053
      %v5058 = vadd.f32 %v5038, %v5053
      %v5059 = vadd.f32 %v5039, %v5053
      %v5060 = vadd.f32 %v5040, %v5053
      %v5061 = vadd.f32 %v5041, %v5053
      %v5062 = vadd.f32 %v5042, %v5053
      %v5063 = vadd.f32 %v5043, %v5053
      %v5064 = vadd.f32 %v5044, %v5053
      %v5065 = vadd.f32 %v5045, %v5053
      %v5066 = vadd.f32 %v5046, %v5053
      %v5067 = vadd.f32 %v5047, %v5053
      %v5068 = vadd.f32 %v5048, %v5053
      %v5069 = vadd.f32 %v5049, %v5053
      %v5070 = vadd.f32 %v5050, %v5053
      %v5071 = vmax.f32 %v5055, 0.0
      %v5072 = vmax.f32 %v5056, 0.0
      %v5073 = vmax.f32 %v5057, 0.0
      %v5074 = vmax.f32 %v5058, 0.0
      %v5075 = vmax.f32 %v5059, 0.0
      %v5076 = vmax.f32 %v5060, 0.0
      %v5077 = vmax.f32 %v5061, 0.0
      %v5078 = vmax.f32 %v5062, 0.0
      %v5079 = vmax.f32 %v5063, 0.0
      %v5080 = vmax.f32 %v5064, 0.0
      %v5081 = vmax.f32 %v5065, 0.0
      %v5082 = vmax.f32 %v5066, 0.0
      %v5083 = vmax.f32 %v5067, 0.0
      %v5084 = vmax.f32 %v5068, 0.0
      %v5085 = vmax.f32 %v5069, 0.0
      %v5086 = vmax.f32 %v5070, 0.0
      %5087 = vst.msk [vmem:[%s512] sm:$0xff] %vm3175, %v5071
      %5088 = vst.msk [vmem:[%s512 + $0x8] sm:$0xff] %vm3175, %v5072
      %5089 = vst.msk [vmem:[%s512 + $0x10] sm:$0xff] %vm3175, %v5073
      %5090 = vst.msk [vmem:[%s512 + $0x18] sm:$0xff] %vm3175, %v5074
      %5091 = vst.msk [vmem:[%s512 + $0x20] sm:$0xff] %vm3175, %v5075
      %5092 = vst.msk [vmem:[%s512 + $0x28] sm:$0xff] %vm3175, %v5076
      %5093 = vst.msk [vmem:[%s512 + $0x30] sm:$0xff] %vm3175, %v5077
      %5094 = vst.msk [vmem:[%s512 + $0x38] sm:$0xff] %vm3175, %v5078
      %5095 = vst.msk [vmem:[%s512 + $0x40] sm:$0xff] %vm3175, %v5079
      %5096 = vst.msk [vmem:[%s512 + $0x48] sm:$0xff] %vm3175, %v5080
      %5097 = vst.msk [vmem:[%s512 + $0x50] sm:$0xff] %vm3175, %v5081
      %5098 = vst.msk [vmem:[%s512 + $0x58] sm:$0xff] %vm3175, %v5082
      %5099 = vst.msk [vmem:[%s512 + $0x60] sm:$0xff] %vm3175, %v5083
      %5100 = vst.msk [vmem:[%s512 + $0x68] sm:$0xff] %vm3175, %v5084
      %5101 = vst.msk [vmem:[%s512 + $0x70] sm:$0xff] %vm3175, %v5085
      %5102 = vst.msk [vmem:[%s512 + $0x78] sm:$0xff] %vm3175, %v5086
      %s5103 = smul.u32 16, %s25
      %p5104 = scmp.lt.s32.totalorder %s24, 1
      %s5105 = scalar_select %p5104, %s24, 1
      %p5106 = scmp.lt.s32.totalorder %s5103, 127
      %s5107 = scalar_select %p5106, %s5103, 127
      %s5108 = smul.addr %s5105, 128
      %s5109 = sadd.s32 %s5107, %s5108
      %s5110 = smul.addr %s5109, 8
      %s5111 = scalar_lea.vmem %s9, %s5110
      // Predicated region
      $region57: #{tpu_custom_call.1} parent=55 // pred_check
        %p5112 = pneg %p283
      $region58: #{tpu_custom_call.1} parent=55 // pred_check_branch
        %5114 = sbr.rel (%p5112) target = $region60
      $region59: #{tpu_custom_call.1} parent=55 // pred_region
        %s5115 = smul.u32 16, %s25
      $region60: #{tpu_custom_call.1} parent=55 // pred_fallthru
        _
    $region56: #{tpu_custom_call.1} parent=5 // pred_fallthru
      _
    %p5116 = scmp.le.s32.totalorder 2, %s15
    // Predicated region
    $region61: #{tpu_custom_call.1} parent=5 // pred_check
      %p5117 = pneg %p5116
    $region62: #{tpu_custom_call.1} parent=5 // pred_check_branch
      %5119 = sbr.rel (%p5117) target = $region64
    $region63: #{tpu_custom_call.1} parent=5 // pred_region
      %s5120 = ssub.s32 %s15, 2
      // Predicated region
      $region65: #{tpu_custom_call.1} parent=63 // pred_check
        %p5121 = pneg %p289
      $region66: #{tpu_custom_call.1} parent=63 // pred_check_branch
        %5123 = sbr.rel (%p5121) target = $region68
      $region67: #{tpu_custom_call.1} parent=63 // pred_region
        %s5124 = smul.u32 16, %s27
        %p5125 = scmp.lt.s32.totalorder %s26, 1
        %s5126 = scalar_select %p5125, %s26, 1
        %p5127 = scmp.lt.s32.totalorder %s5124, 127
        %s5128 = scalar_select %p5127, %s5124, 127
        %s5129 = smul.addr %s5126, 128
        %s5130 = sadd.s32 %s5128, %s5129
        %s5131 = smul.addr %s5130, 8
        %s5132 = scalar_lea.vmem %s9, %s5131
      $region68: #{tpu_custom_call.1} parent=63 // pred_fallthru
        _
    $region64: #{tpu_custom_call.1} parent=5 // pred_fallthru
      _
  $region6: #{tpu_custom_call.1} parent=0 // loop_footer
    %s19 = sadd.s32 1, %s15
  $region7: #{tpu_custom_call.1} parent=0 // loop_footer_branch
    %14 = sbr.rel target = $region3
  $region8: #{tpu_custom_call.1} parent=0 // loop_exit
    _

// kernel: tpu_custom_call.1
$region0: #{tpu_custom_call.1}
  #allocation0 [shape = 'u32[]', space=smem, size = 0x4, offset = 0x4, fixed_abs, tag = 'smem constant byte address 0x4 - core index']
  #allocation1 [shape = 'u32[72,128]{1,0:T(1,128)}', space=vmem, size = 0x9000, scoped, tag = 'internal scratch']
  %s0 = inlined_call_operand.vmem [shape: bf16[2,1024,64], index: 0, kind: input, shape index: {}]
  %s1 = inlined_call_operand.vmem [shape: bf16[2,1024,64], index: 1, kind: input, shape index: {}]
  %s2 = inlined_call_operand.vmem [shape: bf16[2,1024,64], index: 2, kind: input, shape index: {}]
  %s3 = inlined_call_operand.vmem [shape: f32[2,1,64], index: 3, kind: input, shape index: {}]
  %s4 = inlined_call_operand.vmem [shape: f32[256,2], index: 4, kind: input, shape index: {}]
  %s5 = inlined_call_operand.vmem [shape: bf16[64,36], index: 5, kind: input, shape index: {}]
  %s6 = inlined_call_operand.vmem [shape: f32[1,4], index: 6, kind: input, shape index: {}]
  %s7 = inlined_call_operand.vmem [shape: bf16[64,144], index: 7, kind: input, shape index: {}]
  %s8 = inlined_call_operand.vmem [shape: f32[1,16], index: 8, kind: input, shape index: {}]
  %s9 = inlined_call_operand.vmem [shape: f32[2,1024,16], index: 9, kind: output, shape index: {}]
  %s10 = sld [smem:[#allocation0]]
  $region69: #{tpu_custom_call.1} parent=0
    _
  %s12 = ssub.s32 1, %s10
  %s13 = scalar_select 0, %s12, %s10
  loop: start=0, step=1, limit=18
  $region2: #{tpu_custom_call.1} parent=0 // loop_pre_header
    _
  $region3: #{tpu_custom_call.1} parent=0 // loop_header
    %s15 = sphi 0, %s19
    %p16 = scmp.ge.s32.totalorder %s15, 18
    %s22 = sphi 0, %s34
    %s23 = sphi 0, %s30
    %s24 = sphi 0, %s22
    %s25 = sphi 0, %s23
    %s26 = sphi 0, %s24
    %s27 = sphi 0, %s25
    %s39 = sphi 0, %s41
    %s42 = sphi 0, %s39
    %s43 = sphi 0, %s42
    %s59 = sphi 0, %s43
    %s75 = sphi 0, %s77
    %s78 = sphi 0, %s75
    %s79 = sphi 0, %s78
    %s95 = sphi 0, %s79
    %s111 = sphi 0, %s113
    %s114 = sphi 0, %s111
    %s115 = sphi 0, %s114
    %s131 = sphi 0, %s115
    %s137 = sphi 0, %s139
    %s140 = sphi 0, %s137
    %s141 = sphi 0, %s140
    %s157 = sphi 0, %s141
    %s161 = sphi 0, %s161
    %s163 = sphi 0, %s161
    %s164 = sphi 0, %s163
    %s178 = sphi 0, %s164
    %s182 = sphi 0, %s182
    %s184 = sphi 0, %s182
    %s185 = sphi 0, %s184
    %s199 = sphi 0, %s185
    %s203 = sphi 0, %s203
    %s205 = sphi 0, %s203
    %s206 = sphi 0, %s205
    %s220 = sphi 0, %s206
    %s224 = sphi 0, %s224
    %s226 = sphi 0, %s224
    %s227 = sphi 0, %s226
    %s241 = sphi 0, %s227
    %s245 = sphi 0, %s245
    %s247 = sphi 0, %s245
    %s248 = sphi 0, %s247
    %s262 = sphi 0, %s248
    %s270 = sphi 0, %s272
    %s273 = sphi 0, %s270
    %s274 = sphi 0, %s273
    %s290 = sphi 0, %s274
  $region4: #{tpu_custom_call.1} parent=0 // loop_header_branch
    %18 = sbr.rel (%p16) target = $region8
  $region5: #{tpu_custom_call.1} parent=0 // loop_body
    %s20 = ssub.s32 %s15, 1
    %s21 = ssub.s32 %s15, 2
    %s28 = sadd.s32 1, %s23
    %p29 = scmp.ge.s32.totalorder %s28, 8
    %s30 = scalar_select %p29, 0, %s28
    %s31 = sadd.s32 1, %s22
    %s32 = scalar_select %p29, %s31, %s22
    %p33 = scmp.ge.s32.totalorder %s32, 2
    %s34 = scalar_select %p33, 0, %s32
    %s35 = ssub.s32 %s22, %s34
    %s36 = ssub.s32 %s23, %s30
    %s37 = sor.u32 %s35, %s36
    %p38 = scmp.eq.s32.totalorder %s37, 0
    %s40 = sadd.s32 %s39, 1
    %s41 = scalar_select %p38, %s39, %s40
    %p44 = pneg %p38
    %p45 = scmp.eq.s32.totalorder %s15, 15
    %p46 = por %p44, %p45
    %p47 = scmp.ne.s32.totalorder %s39, %s42
    %p48 = scmp.eq.s32.totalorder %s15, 0
    %p49 = por %p47, %p48
    %p50 = scmp.ne.s32.totalorder %s39, %s42
    %p51 = scmp.eq.s32.totalorder %s20, 15
    %p52 = por %p50, %p51
    %p53 = scmp.ne.s32.totalorder %s42, %s43
    %p54 = scmp.eq.s32.totalorder %s20, 0
    %p55 = por %p53, %p54
    %p56 = scmp.ne.s32.totalorder %s42, %s43
    %p57 = scmp.eq.s32.totalorder %s21, 15
    %p58 = por %p56, %p57
    %p60 = scmp.ne.s32.totalorder %s43, %s59
    %p61 = scmp.eq.s32.totalorder %s21, 0
    %p62 = por %p60, %p61
    %s63 = smul.u32 %s23, 2
    %s64 = ssub.s32 %s63, 1
    %p65 = scmp.gt.s32.totalorder %s64, 0
    %s66 = scalar_select %p65, %s64, 0
    %s67 = smul.u32 %s30, 2
    %s68 = ssub.s32 %s67, 1
    %p69 = scmp.gt.s32.totalorder %s68, 0
    %s70 = scalar_select %p69, %s68, 0
    %s71 = ssub.s32 %s22, %s34
    %s72 = ssub.s32 %s66, %s70
    %s73 = sor.u32 %s71, %s72
    %p74 = scmp.eq.s32.totalorder %s73, 0
    %s76 = sadd.s32 %s75, 1
    %s77 = scalar_select %p74, %s75, %s76
    %p80 = pneg %p74
    %p81 = scmp.eq.s32.totalorder %s15, 15
    %p82 = por %p80, %p81
    %p83 = scmp.ne.s32.totalorder %s75, %s78
    %p84 = scmp.eq.s32.totalorder %s15, 0
    %p85 = por %p83, %p84
    %p86 = scmp.ne.s32.totalorder %s75, %s78
    %p87 = scmp.eq.s32.totalorder %s20, 15
    %p88 = por %p86, %p87
    %p89 = scmp.ne.s32.totalorder %s78, %s79
    %p90 = scmp.eq.s32.totalorder %s20, 0
    %p91 = por %p89, %p90
    %p92 = scmp.ne.s32.totalorder %s78, %s79
    %p93 = scmp.eq.s32.totalorder %s21, 15
    %p94 = por %p92, %p93
    %p96 = scmp.ne.s32.totalorder %s79, %s95
    %p97 = scmp.eq.s32.totalorder %s21, 0
    %p98 = por %p96, %p97
    %s99 = sadd.s32 %s23, 1
    %s100 = smul.u32 %s99, 2
    %p101 = scmp.lt.s32.totalorder %s100, 15
    %s102 = scalar_select %p101, %s100, 15
    %s103 = sadd.s32 %s30, 1
    %s104 = smul.u32 %s103, 2
    %p105 = scmp.lt.s32.totalorder %s104, 15
    %s106 = scalar_select %p105, %s104, 15
    %s107 = ssub.s32 %s22, %s34
    %s108 = ssub.s32 %s102, %s106
    %s109 = sor.u32 %s107, %s108
    %p110 = scmp.eq.s32.totalorder %s109, 0
    %s112 = sadd.s32 %s111, 1
    %s113 = scalar_select %p110, %s111, %s112
    %p116 = pneg %p110
    %p117 = scmp.eq.s32.totalorder %s15, 15
    %p118 = por %p116, %p117
    %p119 = scmp.ne.s32.totalorder %s111, %s114
    %p120 = scmp.eq.s32.totalorder %s15, 0
    %p121 = por %p119, %p120
    %p122 = scmp.ne.s32.totalorder %s111, %s114
    %p123 = scmp.eq.s32.totalorder %s20, 15
    %p124 = por %p122, %p123
    %p125 = scmp.ne.s32.totalorder %s114, %s115
    %p126 = scmp.eq.s32.totalorder %s20, 0
    %p127 = por %p125, %p126
    %p128 = scmp.ne.s32.totalorder %s114, %s115
    %p129 = scmp.eq.s32.totalorder %s21, 15
    %p130 = por %p128, %p129
    %p132 = scmp.ne.s32.totalorder %s115, %s131
    %p133 = scmp.eq.s32.totalorder %s21, 0
    %p134 = por %p132, %p133
    %s135 = ssub.s32 %s22, %s34
    %p136 = scmp.eq.s32.totalorder %s135, 0
    %s138 = sadd.s32 %s137, 1
    %s139 = scalar_select %p136, %s137, %s138
    %p142 = pneg %p136
    %p143 = scmp.eq.s32.totalorder %s15, 15
    %p144 = por %p142, %p143
    %p145 = scmp.ne.s32.totalorder %s137, %s140
    %p146 = scmp.eq.s32.totalorder %s15, 0
    %p147 = por %p145, %p146
    %p148 = scmp.ne.s32.totalorder %s137, %s140
    %p149 = scmp.eq.s32.totalorder %s20, 15
    %p150 = por %p148, %p149
    %p151 = scmp.ne.s32.totalorder %s140, %s141
    %p152 = scmp.eq.s32.totalorder %s20, 0
    %p153 = por %p151, %p152
    %p154 = scmp.ne.s32.totalorder %s140, %s141
    %p155 = scmp.eq.s32.totalorder %s21, 15
    %p156 = por %p154, %p155
    %p158 = scmp.ne.s32.totalorder %s141, %s157
    %p159 = scmp.eq.s32.totalorder %s21, 0
    %p160 = por %p158, %p159
    %s162 = sadd.s32 %s161, 1
    %p165 = scmp.eq.s32.totalorder %s15, 15
    %p166 = scmp.ne.s32.totalorder %s161, %s163
    %p167 = scmp.eq.s32.totalorder %s15, 0
    %p168 = por %p166, %p167
    %p169 = scmp.ne.s32.totalorder %s161, %s163
    %p170 = scmp.eq.s32.totalorder %s20, 15
    %p171 = por %p169, %p170
    %p172 = scmp.ne.s32.totalorder %s163, %s164
    %p173 = scmp.eq.s32.totalorder %s20, 0
    %p174 = por %p172, %p173
    %p175 = scmp.ne.s32.totalorder %s163, %s164
    %p176 = scmp.eq.s32.totalorder %s21, 15
    %p177 = por %p175, %p176
    %p179 = scmp.ne.s32.totalorder %s164, %s178
    %p180 = scmp.eq.s32.totalorder %s21, 0
    %p181 = por %p179, %p180
    %s183 = sadd.s32 %s182, 1
    %p186 = scmp.eq.s32.totalorder %s15, 15
    %p187 = scmp.ne.s32.totalorder %s182, %s184
    %p188 = scmp.eq.s32.totalorder %s15, 0
    %p189 = por %p187, %p188
    %p190 = scmp.ne.s32.totalorder %s182, %s184
    %p191 = scmp.eq.s32.totalorder %s20, 15
    %p192 = por %p190, %p191
    %p193 = scmp.ne.s32.totalorder %s184, %s185
    %p194 = scmp.eq.s32.totalorder %s20, 0
    %p195 = por %p193, %p194
    %p196 = scmp.ne.s32.totalorder %s184, %s185
    %p197 = scmp.eq.s32.totalorder %s21, 15
    %p198 = por %p196, %p197
    %p200 = scmp.ne.s32.totalorder %s185, %s199
    %p201 = scmp.eq.s32.totalorder %s21, 0
    %p202 = por %p200, %p201
    %s204 = sadd.s32 %s203, 1
    %p207 = scmp.eq.s32.totalorder %s15, 15
    %p208 = scmp.ne.s32.totalorder %s203, %s205
    %p209 = scmp.eq.s32.totalorder %s15, 0
    %p210 = por %p208, %p209
    %p211 = scmp.ne.s32.totalorder %s203, %s205
    %p212 = scmp.eq.s32.totalorder %s20, 15
    %p213 = por %p211, %p212
    %p214 = scmp.ne.s32.totalorder %s205, %s206
    %p215 = scmp.eq.s32.totalorder %s20, 0
    %p216 = por %p214, %p215
    %p217 = scmp.ne.s32.totalorder %s205, %s206
    %p218 = scmp.eq.s32.totalorder %s21, 15
    %p219 = por %p217, %p218
    %p221 = scmp.ne.s32.totalorder %s206, %s220
    %p222 = scmp.eq.s32.totalorder %s21, 0
    %p223 = por %p221, %p222
    %s225 = sadd.s32 %s224, 1
    %p228 = scmp.eq.s32.totalorder %s15, 15
    %p229 = scmp.ne.s32.totalorder %s224, %s226
    %p230 = scmp.eq.s32.totalorder %s15, 0
    %p231 = por %p229, %p230
    %p232 = scmp.ne.s32.totalorder %s224, %s226
    %p233 = scmp.eq.s32.totalorder %s20, 15
    %p234 = por %p232, %p233
    %p235 = scmp.ne.s32.totalorder %s226, %s227
    %p236 = scmp.eq.s32.totalorder %s20, 0
    %p237 = por %p235, %p236
    %p238 = scmp.ne.s32.totalorder %s226, %s227
    %p239 = scmp.eq.s32.totalorder %s21, 15
    %p240 = por %p238, %p239
    %p242 = scmp.ne.s32.totalorder %s227, %s241
    %p243 = scmp.eq.s32.totalorder %s21, 0
    %p244 = por %p242, %p243
    %s246 = sadd.s32 %s245, 1
    %p249 = scmp.eq.s32.totalorder %s15, 15
    %p250 = scmp.ne.s32.totalorder %s245, %s247
    %p251 = scmp.eq.s32.totalorder %s15, 0
    %p252 = por %p250, %p251
    %p253 = scmp.ne.s32.totalorder %s245, %s247
    %p254 = scmp.eq.s32.totalorder %s20, 15
    %p255 = por %p253, %p254
    %p256 = scmp.ne.s32.totalorder %s247, %s248
    %p257 = scmp.eq.s32.totalorder %s20, 0
    %p258 = por %p256, %p257
    %p259 = scmp.ne.s32.totalorder %s247, %s248
    %p260 = scmp.eq.s32.totalorder %s21, 15
    %p261 = por %p259, %p260
    %p263 = scmp.ne.s32.totalorder %s248, %s262
    %p264 = scmp.eq.s32.totalorder %s21, 0
    %p265 = por %p263, %p264
    %s266 = ssub.s32 %s22, %s34
    %s267 = ssub.s32 %s23, %s30
    %s268 = sor.u32 %s266, %s267
    %p269 = scmp.eq.s32.totalorder %s268, 0
    %s271 = sadd.s32 %s270, 1
    %s272 = scalar_select %p269, %s270, %s271
    %p275 = pneg %p269
    %p276 = scmp.eq.s32.totalorder %s15, 15
    %p277 = por %p275, %p276
    %p278 = scmp.ne.s32.totalorder %s270, %s273
    %p279 = scmp.eq.s32.totalorder %s15, 0
    %p280 = por %p278, %p279
    %p281 = scmp.ne.s32.totalorder %s270, %s273
    %p282 = scmp.eq.s32.totalorder %s20, 15
    %p283 = por %p281, %p282
    %p284 = scmp.ne.s32.totalorder %s273, %s274
    %p285 = scmp.eq.s32.totalorder %s20, 0
    %p286 = por %p284, %p285
    %p287 = scmp.ne.s32.totalorder %s273, %s274
    %p288 = scmp.eq.s32.totalorder %s21, 15
    %p289 = por %p287, %p288
    %p291 = scmp.ne.s32.totalorder %s274, %s290
    %p292 = scmp.eq.s32.totalorder %s21, 0
    %p293 = por %p291, %p292
    %p294 = scmp.le.s32.totalorder 1, %s15
    %p295 = scmp.lt.s32.totalorder %s15, 17
    %p296 = pnand %p294, %p295
    %p297 = pneg %p296
    // Predicated region
    $region9: #{tpu_custom_call.1} parent=5 // pred_check
      _
    $region10: #{tpu_custom_call.1} parent=5 // pred_check_branch
      %299 = sbr.rel (%p296) target = $region12
    $region11: #{tpu_custom_call.1} parent=5 // pred_region
      %s300 = ssub.s32 %s15, 1
      // Predicated region
      $region13: #{tpu_custom_call.1} parent=11 // pred_check
        %p301 = pneg %p174
      $region14: #{tpu_custom_call.1} parent=11 // pred_check_branch
        %303 = sbr.rel (%p301) target = $region16
      $region15: #{tpu_custom_call.1} parent=11 // pred_region
        _
      $region16: #{tpu_custom_call.1} parent=11 // pred_fallthru
        _
      // Predicated region
      $region17: #{tpu_custom_call.1} parent=11 // pred_check
        %p304 = pneg %p195
      $region18: #{tpu_custom_call.1} parent=11 // pred_check_branch
        %306 = sbr.rel (%p304) target = $region20
      $region19: #{tpu_custom_call.1} parent=11 // pred_region
        _
      $region20: #{tpu_custom_call.1} parent=11 // pred_fallthru
        _
      // Predicated region
      $region21: #{tpu_custom_call.1} parent=11 // pred_check
        %p307 = pneg %p216
      $region22: #{tpu_custom_call.1} parent=11 // pred_check_branch
        %309 = sbr.rel (%p307) target = $region24
      $region23: #{tpu_custom_call.1} parent=11 // pred_region
        _
      $region24: #{tpu_custom_call.1} parent=11 // pred_fallthru
        _
      // Predicated region
      $region25: #{tpu_custom_call.1} parent=11 // pred_check
        %p310 = pneg %p237
      $region26: #{tpu_custom_call.1} parent=11 // pred_check_branch
        %312 = sbr.rel (%p310) target = $region28
      $region27: #{tpu_custom_call.1} parent=11 // pred_region
        _
      $region28: #{tpu_custom_call.1} parent=11 // pred_fallthru
        _
      // Predicated region
      $region29: #{tpu_custom_call.1} parent=11 // pred_check
        %p313 = pneg %p258
      $region30: #{tpu_custom_call.1} parent=11 // pred_check_branch
        %315 = sbr.rel (%p313) target = $region32
      $region31: #{tpu_custom_call.1} parent=11 // pred_region
        _
      $region32: #{tpu_custom_call.1} parent=11 // pred_fallthru
        _
    $region12: #{tpu_custom_call.1} parent=5 // pred_fallthru
      _
    %p316 = scmp.lt.s32.totalorder %s15, 16
    // Predicated region
    $region33: #{tpu_custom_call.1} parent=5 // pred_check
      %p317 = pneg %p316
    $region34: #{tpu_custom_call.1} parent=5 // pred_check_branch
      %319 = sbr.rel (%p317) target = $region36
    $region35: #{tpu_custom_call.1} parent=5 // pred_region
      // Predicated region
      $region37: #{tpu_custom_call.1} parent=35 // pred_check
        %p320 = pneg %p49
      $region38: #{tpu_custom_call.1} parent=35 // pred_check_branch
        %322 = sbr.rel (%p320) target = $region40
      $region39: #{tpu_custom_call.1} parent=35 // pred_region
        %s323 = smul.u32 16, %s23
        %p324 = scmp.lt.s32.totalorder %s22, 1
        %s325 = scalar_select %p324, %s22, 1
        %p326 = scmp.lt.s32.totalorder %s323, 127
        %s327 = scalar_select %p326, %s323, 127
        %s328 = smul.addr %s325, 128
        %s329 = sadd.s32 %s327, %s328
        %s330 = smul.addr %s329, 4
        %s331 = scalar_lea.vmem %s0, %s330
        %s332 = smul.u32 16, %s23
      $region40: #{tpu_custom_call.1} parent=35 // pred_fallthru
        _
      // Predicated region
      $region41: #{tpu_custom_call.1} parent=35 // pred_check
        %p333 = pneg %p85
      $region42: #{tpu_custom_call.1} parent=35 // pred_check_branch
        %335 = sbr.rel (%p333) target = $region44
      $region43: #{tpu_custom_call.1} parent=35 // pred_region
        %s336 = smul.u32 %s23, 2
        %s337 = ssub.s32 %s336, 1
        %p338 = scmp.gt.s32.totalorder %s337, 0
        %s339 = scalar_select %p338, %s337, 0
        %s340 = smul.u32 8, %s339
        %p341 = scmp.lt.s32.totalorder %s22, 1
        %s342 = scalar_select %p341, %s22, 1
        %p343 = scmp.lt.s32.totalorder %s340, 127
        %s344 = scalar_select %p343, %s340, 127
        %s345 = smul.addr %s342, 128
        %s346 = sadd.s32 %s344, %s345
        %s347 = smul.addr %s346, 4
        %s348 = scalar_lea.vmem %s1, %s347
        %s349 = smul.u32 %s23, 2
        %s350 = ssub.s32 %s349, 1
        %p351 = scmp.gt.s32.totalorder %s350, 0
        %s352 = scalar_select %p351, %s350, 0
        %s353 = smul.u32 8, %s352
      $region44: #{tpu_custom_call.1} parent=35 // pred_fallthru
        _
      // Predicated region
      $region45: #{tpu_custom_call.1} parent=35 // pred_check
        %p354 = pneg %p121
      $region46: #{tpu_custom_call.1} parent=35 // pred_check_branch
        %356 = sbr.rel (%p354) target = $region48
      $region47: #{tpu_custom_call.1} parent=35 // pred_region
        %s357 = sadd.s32 %s23, 1
        %s358 = smul.u32 %s357, 2
        %p359 = scmp.lt.s32.totalorder %s358, 15
        %s360 = scalar_select %p359, %s358, 15
        %s361 = smul.u32 8, %s360
        %p362 = scmp.lt.s32.totalorder %s22, 1
        %s363 = scalar_select %p362, %s22, 1
        %p364 = scmp.lt.s32.totalorder %s361, 127
        %s365 = scalar_select %p364, %s361, 127
        %s366 = smul.addr %s363, 128
        %s367 = sadd.s32 %s365, %s366
        %s368 = smul.addr %s367, 4
        %s369 = scalar_lea.vmem %s2, %s368
        %s370 = sadd.s32 %s23, 1
        %s371 = smul.u32 %s370, 2
        %p372 = scmp.lt.s32.totalorder %s371, 15
        %s373 = scalar_select %p372, %s371, 15
        %s374 = smul.u32 8, %s373
      $region48: #{tpu_custom_call.1} parent=35 // pred_fallthru
        _
      // Predicated region
      $region49: #{tpu_custom_call.1} parent=35 // pred_check
        %p375 = pneg %p147
      $region50: #{tpu_custom_call.1} parent=35 // pred_check_branch
        %377 = sbr.rel (%p375) target = $region52
      $region51: #{tpu_custom_call.1} parent=35 // pred_region
        %p378 = scmp.lt.s32.totalorder %s22, 1
        %s379 = scalar_select %p378, %s22, 1
        %s380 = scalar_lea.vmem %s3, %s379
      $region52: #{tpu_custom_call.1} parent=35 // pred_fallthru
        _
    $region36: #{tpu_custom_call.1} parent=5 // pred_fallthru
      _
    %p381 = scmp.le.s32.totalorder 1, %s15
    %p382 = scmp.lt.s32.totalorder %s15, 17
    %p383 = pnand %p381, %p382
    %p384 = pneg %p383
    // Predicated region
    $region53: #{tpu_custom_call.1} parent=5 // pred_check
      _
    $region54: #{tpu_custom_call.1} parent=5 // pred_check_branch
      %386 = sbr.rel (%p383) target = $region56
    $region55: #{tpu_custom_call.1} parent=5 // pred_region
      %s387 = ssub.s32 %s15, 1
      %s388 = smul.u32 16, %s25
      %p389 = scmp.lt.s32.totalorder %s24, 1
      %s390 = scalar_select %p389, %s24, 1
      %p391 = scmp.lt.s32.totalorder %s388, 127
      %s392 = scalar_select %p391, %s388, 127
      %s393 = smul.addr %s390, 128
      %s394 = sadd.s32 %s392, %s393
      %s395 = smul.addr %s394, 4
      %s396 = scalar_lea.vmem %s0, %s395
      %p397 = pneg %p55
      %p398 = pneg %p52
      %s399 = smul.u32 %s25, 2
      %s400 = ssub.s32 %s399, 1
      %p401 = scmp.gt.s32.totalorder %s400, 0
      %s402 = scalar_select %p401, %s400, 0
      %s403 = smul.u32 8, %s402
      %p404 = scmp.lt.s32.totalorder %s24, 1
      %s405 = scalar_select %p404, %s24, 1
      %p406 = scmp.lt.s32.totalorder %s403, 127
      %s407 = scalar_select %p406, %s403, 127
      %s408 = smul.addr %s405, 128
      %s409 = sadd.s32 %s407, %s408
      %s410 = smul.addr %s409, 4
      %s411 = scalar_lea.vmem %s1, %s410
      %p412 = pneg %p91
      %p413 = pneg %p88
      %s414 = sadd.s32 %s25, 1
      %s415 = smul.u32 %s414, 2
      %p416 = scmp.lt.s32.totalorder %s415, 15
      %s417 = scalar_select %p416, %s415, 15
      %s418 = smul.u32 8, %s417
      %p419 = scmp.lt.s32.totalorder %s24, 1
      %s420 = scalar_select %p419, %s24, 1
      %p421 = scmp.lt.s32.totalorder %s418, 127
      %s422 = scalar_select %p421, %s418, 127
      %s423 = smul.addr %s420, 128
      %s424 = sadd.s32 %s422, %s423
      %s425 = smul.addr %s424, 4
      %s426 = scalar_lea.vmem %s2, %s425
      %p427 = pneg %p127
      %p428 = pneg %p124
      %p429 = scmp.lt.s32.totalorder %s24, 1
      %s430 = scalar_select %p429, %s24, 1
      %s431 = scalar_lea.vmem %s3, %s430
      %p432 = pneg %p153
      %p433 = pneg %p150
      %p434 = pneg %p174
      %p435 = pneg %p171
      %p436 = pneg %p195
      %p437 = pneg %p192
      %p438 = pneg %p216
      %p439 = pneg %p213
      %p440 = pneg %p237
      %p441 = pneg %p234
      %p442 = pneg %p258
      %p443 = pneg %p255
      %p444 = pneg %p286
      %p445 = pneg %p283
      %s446 = smul.u32 16, %s25
      %p447 = scmp.lt.s32.totalorder %s24, 1
      %s448 = scalar_select %p447, %s24, 1
      %p449 = scmp.lt.s32.totalorder %s446, 127
      %s450 = scalar_select %p449, %s446, 127
      %s451 = smul.addr %s448, 128
      %s452 = sadd.s32 %s450, %s451
      %s453 = smul.addr %s452, 8
      %s454 = scalar_lea.vmem %s9, %s453
      %s455 = smul.u32 16, %s25
      %p456 = scmp.lt.s32.totalorder %s24, 1
      %s457 = scalar_select %p456, %s24, 1
      %p458 = scmp.lt.s32.totalorder %s455, 127
      %s459 = scalar_select %p458, %s455, 127
      %s460 = smul.addr %s457, 128
      %s461 = sadd.s32 %s459, %s460
      %s462 = smul.addr %s461, 4
      %s463 = scalar_lea.vmem %s0, %s462
      %s464 = smul.u32 16, %s25
      %s465 = smul.u32 %s25, 2
      %s466 = ssub.s32 %s465, 1
      %p467 = scmp.gt.s32.totalorder %s466, 0
      %s468 = scalar_select %p467, %s466, 0
      %s469 = smul.u32 8, %s468
      %p470 = scmp.lt.s32.totalorder %s24, 1
      %s471 = scalar_select %p470, %s24, 1
      %p472 = scmp.lt.s32.totalorder %s469, 127
      %s473 = scalar_select %p472, %s469, 127
      %s474 = smul.addr %s471, 128
      %s475 = sadd.s32 %s473, %s474
      %s476 = smul.addr %s475, 4
      %s477 = scalar_lea.vmem %s1, %s476
      %s478 = smul.u32 %s25, 2
      %s479 = ssub.s32 %s478, 1
      %p480 = scmp.gt.s32.totalorder %s479, 0
      %s481 = scalar_select %p480, %s479, 0
      %s482 = smul.u32 8, %s481
      %s483 = sadd.s32 %s25, 1
      %s484 = smul.u32 %s483, 2
      %p485 = scmp.lt.s32.totalorder %s484, 15
      %s486 = scalar_select %p485, %s484, 15
      %s487 = smul.u32 8, %s486
      %p488 = scmp.lt.s32.totalorder %s24, 1
      %s489 = scalar_select %p488, %s24, 1
      %p490 = scmp.lt.s32.totalorder %s487, 127
      %s491 = scalar_select %p490, %s487, 127
      %s492 = smul.addr %s489, 128
      %s493 = sadd.s32 %s491, %s492
      %s494 = smul.addr %s493, 4
      %s495 = scalar_lea.vmem %s2, %s494
      %s496 = sadd.s32 %s25, 1
      %s497 = smul.u32 %s496, 2
      %p498 = scmp.lt.s32.totalorder %s497, 15
      %s499 = scalar_select %p498, %s497, 15
      %s500 = smul.u32 8, %s499
      %p501 = scmp.lt.s32.totalorder %s24, 1
      %s502 = scalar_select %p501, %s24, 1
      %s503 = scalar_lea.vmem %s3, %s502
      %s504 = smul.u32 16, %s25
      %p505 = scmp.lt.s32.totalorder %s24, 1
      %s506 = scalar_select %p505, %s24, 1
      %p507 = scmp.lt.s32.totalorder %s504, 127
      %s508 = scalar_select %p507, %s504, 127
      %s509 = smul.addr %s506, 128
      %s510 = sadd.s32 %s508, %s509
      %s511 = smul.addr %s510, 8
      %s512 = scalar_lea.vmem %s9, %s511
      %s513 = smul.u32 16, %s25
      %s515 = smul.u32 %s25, 4
      %v516 = vld [vmem:[%s503] sm:$0x1]
      %v517 = vld [vmem:[%s477] sm:$0xf]
      %v518 = vld [vmem:[%s477 + $0x4] sm:$0xf]
      %v519 = vld [vmem:[%s477 + $0x8] sm:$0xf]
      %v520 = vld [vmem:[%s477 + $0xc] sm:$0xf]
      %v521 = vld [vmem:[%s477 + $0x10] sm:$0xf]
      %v522 = vld [vmem:[%s477 + $0x14] sm:$0xf]
      %v523 = vld [vmem:[%s477 + $0x18] sm:$0xf]
      %v524 = vld [vmem:[%s477 + $0x1c] sm:$0xf]
      %v525 = vld [vmem:[%s463] sm:$0xf]
      %v526 = vld [vmem:[%s463 + $0x4] sm:$0xf]
      %v527 = vld [vmem:[%s463 + $0x8] sm:$0xf]
      %v528 = vld [vmem:[%s463 + $0xc] sm:$0xf]
      %v529 = vld [vmem:[%s463 + $0x10] sm:$0xf]
      %v530 = vld [vmem:[%s463 + $0x14] sm:$0xf]
      %v531 = vld [vmem:[%s463 + $0x18] sm:$0xf]
      %v532 = vld [vmem:[%s463 + $0x1c] sm:$0xf]
      %v533 = vld [vmem:[%s463 + $0x20] sm:$0xf]
      %v534 = vld [vmem:[%s463 + $0x24] sm:$0xf]
      %v535 = vld [vmem:[%s463 + $0x28] sm:$0xf]
      %v536 = vld [vmem:[%s463 + $0x2c] sm:$0xf]
      %v537 = vld [vmem:[%s463 + $0x30] sm:$0xf]
      %v538 = vld [vmem:[%s463 + $0x34] sm:$0xf]
      %v539 = vld [vmem:[%s463 + $0x38] sm:$0xf]
      %v540 = vld [vmem:[%s463 + $0x3c] sm:$0xf]
      %v541 = vld [vmem:[%s495] sm:$0xf]
      %v542 = vld [vmem:[%s495 + $0x4] sm:$0xf]
      %v543 = vld [vmem:[%s495 + $0x8] sm:$0xf]
      %v544 = vld [vmem:[%s495 + $0xc] sm:$0xf]
      %v545 = vld [vmem:[%s495 + $0x10] sm:$0xf]
      %v546 = vld [vmem:[%s495 + $0x14] sm:$0xf]
      %v547 = vld [vmem:[%s495 + $0x18] sm:$0xf]
      %v548 = vld [vmem:[%s495 + $0x1c] sm:$0xf]
      %v557 = vunpack.c.l.b16 %v517
      %v558 = vunpack.c.l.b16 %v518
      %v559 = vunpack.c.l.b16 %v519
      %v560 = vunpack.c.l.b16 %v520
      %v561 = vunpack.c.l.b16 %v521
      %v562 = vunpack.c.l.b16 %v522
      %v563 = vunpack.c.l.b16 %v523
      %v564 = vunpack.c.l.b16 %v524
      %v565 = vpack.c.b16 %v558, %v557
      %v566 = vpack.c.b16 %v560, %v559
      %v567 = vpack.c.b16 %v562, %v561
      %v568 = vpack.c.b16 %v564, %v563
      %v589 = vunpack.c.l.b16 %v525
      %v590 = vunpack.c.l.b16 %v526
      %v591 = vunpack.c.l.b16 %v527
      %v592 = vunpack.c.l.b16 %v528
      %v593 = vunpack.c.l.b16 %v529
      %v594 = vunpack.c.l.b16 %v530
      %v595 = vunpack.c.l.b16 %v531
      %v596 = vunpack.c.l.b16 %v532
      %v597 = vunpack.c.l.b16 %v533
      %v598 = vunpack.c.l.b16 %v534
      %v599 = vunpack.c.l.b16 %v535
      %v600 = vunpack.c.l.b16 %v536
      %v601 = vunpack.c.l.b16 %v537
      %v602 = vunpack.c.l.b16 %v538
      %v603 = vunpack.c.l.b16 %v539
      %v604 = vunpack.c.l.b16 %v540
      %v605 = vpack.c.b16 %v590, %v589
      %v606 = vpack.c.b16 %v592, %v591
      %v607 = vpack.c.b16 %v594, %v593
      %v608 = vpack.c.b16 %v596, %v595
      %v609 = vpack.c.b16 %v598, %v597
      %v610 = vpack.c.b16 %v600, %v599
      %v611 = vpack.c.b16 %v602, %v601
      %v612 = vpack.c.b16 %v604, %v603
      %v629 = vunpack.c.l.b16 %v541
      %v630 = vunpack.c.l.b16 %v542
      %v631 = vunpack.c.l.b16 %v543
      %v632 = vunpack.c.l.b16 %v544
      %v633 = vunpack.c.l.b16 %v545
      %v634 = vunpack.c.l.b16 %v546
      %v635 = vunpack.c.l.b16 %v547
      %v636 = vunpack.c.l.b16 %v548
      %v637 = vpack.c.b16 %v630, %v629
      %v638 = vpack.c.b16 %v632, %v631
      %v639 = vpack.c.b16 %v634, %v633
      %v640 = vpack.c.b16 %v636, %v635
      %v645 = vunpack.c.l.bf16 %v565
      %v646 = vunpack.c.h.bf16 %v565
      %v647 = vunpack.c.l.bf16 %v566
      %v648 = vunpack.c.h.bf16 %v566
      %v649 = vunpack.c.l.bf16 %v567
      %v650 = vunpack.c.h.bf16 %v567
      %v651 = vunpack.c.l.bf16 %v568
      %v652 = vunpack.c.h.bf16 %v568
      %v653 = vunpack.c.l.bf16 %v605
      %v654 = vunpack.c.h.bf16 %v605
      %v655 = vunpack.c.l.bf16 %v606
      %v656 = vunpack.c.h.bf16 %v606
      %v657 = vunpack.c.l.bf16 %v607
      %v658 = vunpack.c.h.bf16 %v607
      %v659 = vunpack.c.l.bf16 %v608
      %v660 = vunpack.c.h.bf16 %v608
      %v661 = vunpack.c.l.bf16 %v609
      %v662 = vunpack.c.h.bf16 %v609
      %v663 = vunpack.c.l.bf16 %v610
      %v664 = vunpack.c.h.bf16 %v610
      %v665 = vunpack.c.l.bf16 %v611
      %v666 = vunpack.c.h.bf16 %v611
      %v667 = vunpack.c.l.bf16 %v612
      %v668 = vunpack.c.h.bf16 %v612
      %v669 = vunpack.c.l.bf16 %v637
      %v670 = vunpack.c.h.bf16 %v637
      %v671 = vunpack.c.l.bf16 %v638
      %v672 = vunpack.c.h.bf16 %v638
      %v673 = vunpack.c.l.bf16 %v639
      %v674 = vunpack.c.h.bf16 %v639
      %v675 = vunpack.c.l.bf16 %v640
      %v676 = vunpack.c.h.bf16 %v640
      %v678 = vperm.slane %v516, 0
      %v680 = vmul.f32 %v645, %v678
      %v681 = vmul.f32 %v646, %v678
      %v682 = vmul.f32 %v647, %v678
      %v683 = vmul.f32 %v648, %v678
      %v684 = vmul.f32 %v649, %v678
      %v685 = vmul.f32 %v650, %v678
      %v686 = vmul.f32 %v651, %v678
      %v687 = vmul.f32 %v652, %v678
      %v688 = vmul.f32 %v653, %v678
      %v689 = vmul.f32 %v654, %v678
      %v690 = vmul.f32 %v655, %v678
      %v691 = vmul.f32 %v656, %v678
      %v692 = vmul.f32 %v657, %v678
      %v693 = vmul.f32 %v658, %v678
      %v694 = vmul.f32 %v659, %v678
      %v695 = vmul.f32 %v660, %v678
      %v696 = vmul.f32 %v661, %v678
      %v697 = vmul.f32 %v662, %v678
      %v698 = vmul.f32 %v663, %v678
      %v699 = vmul.f32 %v664, %v678
      %v700 = vmul.f32 %v665, %v678
      %v701 = vmul.f32 %v666, %v678
      %v702 = vmul.f32 %v667, %v678
      %v703 = vmul.f32 %v668, %v678
      %v704 = vmul.f32 %v669, %v678
      %v705 = vmul.f32 %v670, %v678
      %v706 = vmul.f32 %v671, %v678
      %v707 = vmul.f32 %v672, %v678
      %v708 = vmul.f32 %v673, %v678
      %v709 = vmul.f32 %v674, %v678
      %v710 = vmul.f32 %v675, %v678
      %v711 = vmul.f32 %v676, %v678
      %v712 = vpack.c.bf16 %v680, %v680
      %v713 = vpack.c.bf16 %v681, %v681
      %v714 = vpack.c.bf16 %v682, %v682
      %v715 = vpack.c.bf16 %v683, %v683
      %v716 = vpack.c.bf16 %v684, %v684
      %v717 = vpack.c.bf16 %v685, %v685
      %v718 = vpack.c.bf16 %v686, %v686
      %v719 = vpack.c.bf16 %v687, %v687
      %v720 = vpack.c.bf16 %v688, %v688
      %v721 = vpack.c.bf16 %v689, %v689
      %v722 = vpack.c.bf16 %v690, %v690
      %v723 = vpack.c.bf16 %v691, %v691
      %v724 = vpack.c.bf16 %v692, %v692
      %v725 = vpack.c.bf16 %v693, %v693
      %v726 = vpack.c.bf16 %v694, %v694
      %v727 = vpack.c.bf16 %v695, %v695
      %v728 = vpack.c.bf16 %v696, %v696
      %v729 = vpack.c.bf16 %v697, %v697
      %v730 = vpack.c.bf16 %v698, %v698
      %v731 = vpack.c.bf16 %v699, %v699
      %v732 = vpack.c.bf16 %v700, %v700
      %v733 = vpack.c.bf16 %v701, %v701
      %v734 = vpack.c.bf16 %v702, %v702
      %v735 = vpack.c.bf16 %v703, %v703
      %v736 = vpack.c.bf16 %v704, %v704
      %v737 = vpack.c.bf16 %v705, %v705
      %v738 = vpack.c.bf16 %v706, %v706
      %v739 = vpack.c.bf16 %v707, %v707
      %v740 = vpack.c.bf16 %v708, %v708
      %v741 = vpack.c.bf16 %v709, %v709
      %v742 = vpack.c.bf16 %v710, %v710
      %v743 = vpack.c.bf16 %v711, %v711
      %v744 = vld [vmem:[%s4] sm:$0xff]
      %v745 = vld [vmem:[%s4 + $0x8] sm:$0xff]
      %v746 = vld [vmem:[%s4 + $0x10] sm:$0xff]
      %v747 = vld [vmem:[%s4 + $0x18] sm:$0xff]
      %v748 = vld [vmem:[%s4 + $0x20] sm:$0xff]
      %v749 = vld [vmem:[%s4 + $0x28] sm:$0xff]
      %v750 = vld [vmem:[%s4 + $0x30] sm:$0xff]
      %v751 = vld [vmem:[%s4 + $0x38] sm:$0xff]
      %v752 = vld [vmem:[%s4 + $0x40] sm:$0xff]
      %v753 = vld [vmem:[%s4 + $0x48] sm:$0xff]
      %v754 = vld [vmem:[%s4 + $0x50] sm:$0xff]
      %v755 = vld [vmem:[%s4 + $0x58] sm:$0xff]
      %v756 = vld [vmem:[%s4 + $0x60] sm:$0xff]
      %v757 = vld [vmem:[%s4 + $0x68] sm:$0xff]
      %v758 = vld [vmem:[%s4 + $0x70] sm:$0xff]
      %v759 = vld [vmem:[%s4 + $0x78] sm:$0xff]
      %v760 = vld [vmem:[%s4 + $0x80] sm:$0xff]
      %v761 = vld [vmem:[%s4 + $0x88] sm:$0xff]
      %v762 = vld [vmem:[%s4 + $0x90] sm:$0xff]
      %v763 = vld [vmem:[%s4 + $0x98] sm:$0xff]
      %v764 = vld [vmem:[%s4 + $0xa0] sm:$0xff]
      %v765 = vld [vmem:[%s4 + $0xa8] sm:$0xff]
      %v766 = vld [vmem:[%s4 + $0xb0] sm:$0xff]
      %v767 = vld [vmem:[%s4 + $0xb8] sm:$0xff]
      %v768 = vld [vmem:[%s4 + $0xc0] sm:$0xff]
      %v769 = vld [vmem:[%s4 + $0xc8] sm:$0xff]
      %v770 = vld [vmem:[%s4 + $0xd0] sm:$0xff]
      %v771 = vld [vmem:[%s4 + $0xd8] sm:$0xff]
      %v772 = vld [vmem:[%s4 + $0xe0] sm:$0xff]
      %v773 = vld [vmem:[%s4 + $0xe8] sm:$0xff]
      %v774 = vld [vmem:[%s4 + $0xf0] sm:$0xff]
      %v775 = vld [vmem:[%s4 + $0xf8] sm:$0xff]
      %vm776 = vcmp.gt.f32.partialorder %v744, 0.0
      %vm777 = vcmp.gt.f32.partialorder %v745, 0.0
      %vm778 = vcmp.gt.f32.partialorder %v746, 0.0
      %vm779 = vcmp.gt.f32.partialorder %v747, 0.0
      %vm780 = vcmp.gt.f32.partialorder %v748, 0.0
      %vm781 = vcmp.gt.f32.partialorder %v749, 0.0
      %vm782 = vcmp.gt.f32.partialorder %v750, 0.0
      %vm783 = vcmp.gt.f32.partialorder %v751, 0.0
      %vm784 = vcmp.gt.f32.partialorder %v752, 0.0
      %vm785 = vcmp.gt.f32.partialorder %v753, 0.0
      %vm786 = vcmp.gt.f32.partialorder %v754, 0.0
      %vm787 = vcmp.gt.f32.partialorder %v755, 0.0
      %vm788 = vcmp.gt.f32.partialorder %v756, 0.0
      %vm789 = vcmp.gt.f32.partialorder %v757, 0.0
      %vm790 = vcmp.gt.f32.partialorder %v758, 0.0
      %vm791 = vcmp.gt.f32.partialorder %v759, 0.0
      %vm792 = vcmp.gt.f32.partialorder %v760, 0.0
      %vm793 = vcmp.gt.f32.partialorder %v761, 0.0
      %vm794 = vcmp.gt.f32.partialorder %v762, 0.0
      %vm795 = vcmp.gt.f32.partialorder %v763, 0.0
      %vm796 = vcmp.gt.f32.partialorder %v764, 0.0
      %vm797 = vcmp.gt.f32.partialorder %v765, 0.0
      %vm798 = vcmp.gt.f32.partialorder %v766, 0.0
      %vm799 = vcmp.gt.f32.partialorder %v767, 0.0
      %vm800 = vcmp.gt.f32.partialorder %v768, 0.0
      %vm801 = vcmp.gt.f32.partialorder %v769, 0.0
      %vm802 = vcmp.gt.f32.partialorder %v770, 0.0
      %vm803 = vcmp.gt.f32.partialorder %v771, 0.0
      %vm804 = vcmp.gt.f32.partialorder %v772, 0.0
      %vm805 = vcmp.gt.f32.partialorder %v773, 0.0
      %vm806 = vcmp.gt.f32.partialorder %v774, 0.0
      %vm807 = vcmp.gt.f32.partialorder %v775, 0.0
      %v808 = vlaneseq
      %v809 = vshrl.u32 %v808, 7
      %v810 = vadd.s32 %v809, 8
      %v811 = vadd.s32 %v809, 16
      %v812 = vadd.s32 %v809, 24
      %v813 = vadd.s32 %v809, 32
      %v814 = vadd.s32 %v809, 40
      %v815 = vadd.s32 %v809, 48
      %v816 = vadd.s32 %v809, 56
      %v817 = vadd.s32 %v809, 64
      %v818 = vadd.s32 %v809, 72
      %v819 = vadd.s32 %v809, 80
      %v820 = vadd.s32 %v809, 88
      %v821 = vadd.s32 %v809, 96
      %v822 = vadd.s32 %v809, 104
      %v823 = vadd.s32 %v809, 112
      %v824 = vadd.s32 %v809, 120
      %v825 = vadd.s32 %v809, 128
      %v826 = vadd.s32 %v809, 136
      %v827 = vadd.s32 %v809, 144
      %v828 = vadd.s32 %v809, 152
      %v829 = vadd.s32 %v809, 160
      %v830 = vadd.s32 %v809, 168
      %v831 = vadd.s32 %v809, 176
      %v832 = vadd.s32 %v809, 184
      %s833 = ssub.s32 2, %s515
      %s834 = smul.u32 %s833, 32
      %v835 = vstv %s834
      %vm836 = vcmp.ge.s32.totalorder %v809, %v835
      %vm837 = vcmp.ge.s32.totalorder %v810, %v835
      %vm838 = vcmp.ge.s32.totalorder %v811, %v835
      %vm839 = vcmp.ge.s32.totalorder %v812, %v835
      %vm840 = vcmp.ge.s32.totalorder %v813, %v835
      %vm841 = vcmp.ge.s32.totalorder %v814, %v835
      %vm842 = vcmp.ge.s32.totalorder %v815, %v835
      %vm843 = vcmp.ge.s32.totalorder %v816, %v835
      %vm844 = vcmp.ge.s32.totalorder %v817, %v835
      %vm845 = vcmp.ge.s32.totalorder %v818, %v835
      %vm846 = vcmp.ge.s32.totalorder %v819, %v835
      %vm847 = vcmp.ge.s32.totalorder %v820, %v835
      %vm848 = vcmp.ge.s32.totalorder %v821, %v835
      %vm849 = vcmp.ge.s32.totalorder %v822, %v835
      %vm850 = vcmp.ge.s32.totalorder %v823, %v835
      %vm851 = vcmp.ge.s32.totalorder %v824, %v835
      %vm852 = vcmp.ge.s32.totalorder %v825, %v835
      %vm853 = vcmp.ge.s32.totalorder %v826, %v835
      %vm854 = vcmp.ge.s32.totalorder %v827, %v835
      %vm855 = vcmp.ge.s32.totalorder %v828, %v835
      %vm856 = vcmp.ge.s32.totalorder %v829, %v835
      %vm857 = vcmp.ge.s32.totalorder %v830, %v835
      %vm858 = vcmp.ge.s32.totalorder %v831, %v835
      %vm859 = vcmp.ge.s32.totalorder %v832, %v835
      %s860 = ssub.s32 32, %s515
      %s861 = smul.u32 %s860, 32
      %v862 = vstv %s861
      %vm863 = vcmp.lt.s32.totalorder %v809, %v862
      %vm864 = vcmp.lt.s32.totalorder %v810, %v862
      %vm865 = vcmp.lt.s32.totalorder %v811, %v862
      %vm866 = vcmp.lt.s32.totalorder %v812, %v862
      %vm867 = vcmp.lt.s32.totalorder %v813, %v862
      %vm868 = vcmp.lt.s32.totalorder %v814, %v862
      %vm869 = vcmp.lt.s32.totalorder %v815, %v862
      %vm870 = vcmp.lt.s32.totalorder %v816, %v862
      %vm871 = vcmp.lt.s32.totalorder %v817, %v862
      %vm872 = vcmp.lt.s32.totalorder %v818, %v862
      %vm873 = vcmp.lt.s32.totalorder %v819, %v862
      %vm874 = vcmp.lt.s32.totalorder %v820, %v862
      %vm875 = vcmp.lt.s32.totalorder %v821, %v862
      %vm876 = vcmp.lt.s32.totalorder %v822, %v862
      %vm877 = vcmp.lt.s32.totalorder %v823, %v862
      %vm878 = vcmp.lt.s32.totalorder %v824, %v862
      %vm879 = vcmp.lt.s32.totalorder %v825, %v862
      %vm880 = vcmp.lt.s32.totalorder %v826, %v862
      %vm881 = vcmp.lt.s32.totalorder %v827, %v862
      %vm882 = vcmp.lt.s32.totalorder %v828, %v862
      %vm883 = vcmp.lt.s32.totalorder %v829, %v862
      %vm884 = vcmp.lt.s32.totalorder %v830, %v862
      %vm885 = vcmp.lt.s32.totalorder %v831, %v862
      %vm886 = vcmp.lt.s32.totalorder %v832, %v862
      %s887 = ssub.s32 1, %s515
      %s888 = smul.u32 %s887, 32
      %v889 = vstv %s888
      %vm890 = vcmp.ge.s32.totalorder %v809, %v889
      %vm891 = vcmp.ge.s32.totalorder %v810, %v889
      %vm892 = vcmp.ge.s32.totalorder %v811, %v889
      %vm893 = vcmp.ge.s32.totalorder %v812, %v889
      %vm894 = vcmp.ge.s32.totalorder %v813, %v889
      %vm895 = vcmp.ge.s32.totalorder %v814, %v889
      %vm896 = vcmp.ge.s32.totalorder %v815, %v889
      %vm897 = vcmp.ge.s32.totalorder %v816, %v889
      %vm898 = vcmp.ge.s32.totalorder %v817, %v889
      %vm899 = vcmp.ge.s32.totalorder %v818, %v889
      %vm900 = vcmp.ge.s32.totalorder %v819, %v889
      %vm901 = vcmp.ge.s32.totalorder %v820, %v889
      %vm902 = vcmp.ge.s32.totalorder %v821, %v889
      %vm903 = vcmp.ge.s32.totalorder %v822, %v889
      %vm904 = vcmp.ge.s32.totalorder %v823, %v889
      %vm905 = vcmp.ge.s32.totalorder %v824, %v889
      %s906 = ssub.s32 31, %s515
      %s907 = smul.u32 %s906, 32
      %v908 = vstv %s907
      %vm909 = vcmp.lt.s32.totalorder %v809, %v908
      %vm910 = vcmp.lt.s32.totalorder %v810, %v908
      %vm911 = vcmp.lt.s32.totalorder %v811, %v908
      %vm912 = vcmp.lt.s32.totalorder %v812, %v908
      %vm913 = vcmp.lt.s32.totalorder %v813, %v908
      %vm914 = vcmp.lt.s32.totalorder %v814, %v908
      %vm915 = vcmp.lt.s32.totalorder %v815, %v908
      %vm916 = vcmp.lt.s32.totalorder %v816, %v908
      %vm917 = vcmp.lt.s32.totalorder %v817, %v908
      %vm918 = vcmp.lt.s32.totalorder %v818, %v908
      %vm919 = vcmp.lt.s32.totalorder %v819, %v908
      %vm920 = vcmp.lt.s32.totalorder %v820, %v908
      %vm921 = vcmp.lt.s32.totalorder %v821, %v908
      %vm922 = vcmp.lt.s32.totalorder %v822, %v908
      %vm923 = vcmp.lt.s32.totalorder %v823, %v908
      %vm924 = vcmp.lt.s32.totalorder %v824, %v908
      %v925 = vld [vmem:[%s5] sm:$0xf]
      %v926 = vld [vmem:[%s5 + $0x4] sm:$0xf]
      %v927 = vld [vmem:[%s5 + $0x8] sm:$0xf]
      %v928 = vld [vmem:[%s5 + $0xc] sm:$0xf]
      %v929 = vld [vmem:[%s5 + $0x10] sm:$0xf]
      %v930 = vld [vmem:[%s5 + $0x14] sm:$0xf]
      %v931 = vld [vmem:[%s5 + $0x18] sm:$0xf]
      %v932 = vld [vmem:[%s5 + $0x1c] sm:$0xf]
      %v965 = vunpack.c.l.b16 %v712
      %v966 = vunpack.c.l.b16 %v713
      %v967 = vunpack.c.l.b16 %v714
      %v968 = vunpack.c.l.b16 %v715
      %v969 = vunpack.c.l.b16 %v716
      %v970 = vunpack.c.l.b16 %v717
      %v971 = vunpack.c.l.b16 %v718
      %v972 = vunpack.c.l.b16 %v719
      %v973 = vunpack.c.l.b16 %v720
      %v974 = vunpack.c.l.b16 %v721
      %v975 = vunpack.c.l.b16 %v722
      %v976 = vunpack.c.l.b16 %v723
      %v977 = vunpack.c.l.b16 %v724
      %v978 = vunpack.c.l.b16 %v725
      %v979 = vunpack.c.l.b16 %v726
      %v980 = vunpack.c.l.b16 %v727
      %v981 = vunpack.c.l.b16 %v728
      %v982 = vunpack.c.l.b16 %v729
      %v983 = vunpack.c.l.b16 %v730
      %v984 = vunpack.c.l.b16 %v731
      %v985 = vunpack.c.l.b16 %v732
      %v986 = vunpack.c.l.b16 %v733
      %v987 = vunpack.c.l.b16 %v734
      %v988 = vunpack.c.l.b16 %v735
      %v989 = vunpack.c.l.b16 %v736
      %v990 = vunpack.c.l.b16 %v737
      %v991 = vunpack.c.l.b16 %v738
      %v992 = vunpack.c.l.b16 %v739
      %v993 = vunpack.c.l.b16 %v740
      %v994 = vunpack.c.l.b16 %v741
      %v995 = vunpack.c.l.b16 %v742
      %v996 = vunpack.c.l.b16 %v743
      %v997 = vpack.c.b16 %v966, %v965
      %v998 = vpack.c.b16 %v968, %v967
      %v999 = vpack.c.b16 %v970, %v969
      %v1000 = vpack.c.b16 %v972, %v971
      %v1001 = vpack.c.b16 %v974, %v973
      %v1002 = vpack.c.b16 %v976, %v975
      %v1003 = vpack.c.b16 %v978, %v977
      %v1004 = vpack.c.b16 %v980, %v979
      %v1005 = vpack.c.b16 %v982, %v981
      %v1006 = vpack.c.b16 %v984, %v983
      %v1007 = vpack.c.b16 %v986, %v985
      %v1008 = vpack.c.b16 %v988, %v987
      %v1009 = vpack.c.b16 %v990, %v989
      %v1010 = vpack.c.b16 %v992, %v991
      %v1011 = vpack.c.b16 %v994, %v993
      %v1012 = vpack.c.b16 %v996, %v995
      %v1021 = vunpack.c.l.b16 %v925
      %v1022 = vunpack.c.l.b16 %v926
      %v1023 = vunpack.c.l.b16 %v927
      %v1024 = vunpack.c.l.b16 %v928
      %v1025 = vunpack.c.l.b16 %v929
      %v1026 = vunpack.c.l.b16 %v930
      %v1027 = vunpack.c.l.b16 %v931
      %v1028 = vunpack.c.l.b16 %v932
      %v1029 = vpack.c.b16 %v1022, %v1021
      %v1030 = vpack.c.b16 %v1024, %v1023
      %v1031 = vpack.c.b16 %v1026, %v1025
      %v1032 = vpack.c.b16 %v1028, %v1027
      %vm1037 = vcmask 523264
      %v1039 = vsel %vm1037, %v997, 0
      %v1042 = vsel %vm1037, %v998, 0
      %v1045 = vsel %vm1037, %v999, 0
      %v1048 = vsel %vm1037, %v1000, 0
      %v1051 = vsel %vm1037, %v1001, 0
      %v1054 = vsel %vm1037, %v1002, 0
      %v1057 = vsel %vm1037, %v1003, 0
      %v1060 = vsel %vm1037, %v1004, 0
      %v1063 = vsel %vm1037, %v1005, 0
      %v1066 = vsel %vm1037, %v1006, 0
      %v1069 = vsel %vm1037, %v1007, 0
      %v1072 = vsel %vm1037, %v1008, 0
      %v1075 = vsel %vm1037, %v1009, 0
      %v1078 = vsel %vm1037, %v1010, 0
      %v1081 = vsel %vm1037, %v1011, 0
      %v1084 = vsel %vm1037, %v1012, 0
      %1086 = vmatpush.bf16.msra.mxu0 0
      %1087 = vmatpush.bf16.msra.mxu0 0
      %1088 = vmatpush.bf16.msra.mxu0 0
      %1089 = vmatpush.bf16.msra.mxu0 0
      %1090 = vmatpush.bf16.msra.mxu0 %v1032
      %1091 = vmatpush.bf16.msra.mxu0 %v1031
      %1092 = vmatpush.bf16.msra.mxu0 %v1030
      %1093 = vmatpush.bf16.msra.mxu0 %v1029
      %1094 = vmatmul.bf16.gmra.mxu0 %v1039
      %v1095 = vpop.f32.mrf.mxu0
      %v1096 = vadd.f32 0.0, %v1095
      %v1097 = vpop.f32.mrf.mxu0
      %v1098 = vadd.f32 0.0, %v1097
      %1099 = vmatmul.bf16.gmra.mxu0 %v1042
      %v1100 = vpop.f32.mrf.mxu0
      %v1101 = vadd.f32 0.0, %v1100
      %v1102 = vpop.f32.mrf.mxu0
      %v1103 = vadd.f32 0.0, %v1102
      %1104 = vmatmul.bf16.gmra.mxu0 %v1045
      %v1105 = vpop.f32.mrf.mxu0
      %v1106 = vadd.f32 0.0, %v1105
      %v1107 = vpop.f32.mrf.mxu0
      %v1108 = vadd.f32 0.0, %v1107
      %1109 = vmatmul.bf16.gmra.mxu0 %v1048
      %v1110 = vpop.f32.mrf.mxu0
      %v1111 = vadd.f32 0.0, %v1110
      %v1112 = vpop.f32.mrf.mxu0
      %v1113 = vadd.f32 0.0, %v1112
      %1114 = vmatmul.bf16.gmra.mxu0 %v1051
      %v1115 = vpop.f32.mrf.mxu0
      %v1116 = vadd.f32 0.0, %v1115
      %v1117 = vpop.f32.mrf.mxu0
      %v1118 = vadd.f32 0.0, %v1117
      %1119 = vmatmul.bf16.gmra.mxu0 %v1054
      %v1120 = vpop.f32.mrf.mxu0
      %v1121 = vadd.f32 0.0, %v1120
      %v1122 = vpop.f32.mrf.mxu0
      %v1123 = vadd.f32 0.0, %v1122
      %1124 = vmatmul.bf16.gmra.mxu0 %v1057
      %v1125 = vpop.f32.mrf.mxu0
      %v1126 = vadd.f32 0.0, %v1125
      %v1127 = vpop.f32.mrf.mxu0
      %v1128 = vadd.f32 0.0, %v1127
      %1129 = vmatmul.bf16.gmra.mxu0 %v1060
      %v1130 = vpop.f32.mrf.mxu0
      %v1131 = vadd.f32 0.0, %v1130
      %v1132 = vpop.f32.mrf.mxu0
      %v1133 = vadd.f32 0.0, %v1132
      %1134 = vmatmul.bf16.gmra.mxu0 %v1063
      %v1135 = vpop.f32.mrf.mxu0
      %v1136 = vadd.f32 0.0, %v1135
      %v1137 = vpop.f32.mrf.mxu0
      %v1138 = vadd.f32 0.0, %v1137
      %1139 = vmatmul.bf16.gmra.mxu0 %v1066
      %v1140 = vpop.f32.mrf.mxu0
      %v1141 = vadd.f32 0.0, %v1140
      %v1142 = vpop.f32.mrf.mxu0
      %v1143 = vadd.f32 0.0, %v1142
      %1144 = vmatmul.bf16.gmra.mxu0 %v1069
      %v1145 = vpop.f32.mrf.mxu0
      %v1146 = vadd.f32 0.0, %v1145
      %v1147 = vpop.f32.mrf.mxu0
      %v1148 = vadd.f32 0.0, %v1147
      %1149 = vmatmul.bf16.gmra.mxu0 %v1072
      %v1150 = vpop.f32.mrf.mxu0
      %v1151 = vadd.f32 0.0, %v1150
      %v1152 = vpop.f32.mrf.mxu0
      %v1153 = vadd.f32 0.0, %v1152
      %1154 = vmatmul.bf16.gmra.mxu0 %v1075
      %v1155 = vpop.f32.mrf.mxu0
      %v1156 = vadd.f32 0.0, %v1155
      %v1157 = vpop.f32.mrf.mxu0
      %v1158 = vadd.f32 0.0, %v1157
      %1159 = vmatmul.bf16.gmra.mxu0 %v1078
      %v1160 = vpop.f32.mrf.mxu0
      %v1161 = vadd.f32 0.0, %v1160
      %v1162 = vpop.f32.mrf.mxu0
      %v1163 = vadd.f32 0.0, %v1162
      %1164 = vmatmul.bf16.gmra.mxu0 %v1081
      %v1165 = vpop.f32.mrf.mxu0
      %v1166 = vadd.f32 0.0, %v1165
      %v1167 = vpop.f32.mrf.mxu0
      %v1168 = vadd.f32 0.0, %v1167
      %1169 = vmatmul.bf16.gmra.mxu0 %v1084
      %v1170 = vpop.f32.mrf.mxu0
      %v1171 = vadd.f32 0.0, %v1170
      %v1172 = vpop.f32.mrf.mxu0
      %v1173 = vadd.f32 0.0, %v1172
      %1174 = vdwg.mxu0
      %v1175 = vrot.slane %v1096, 7
      %v1176 = vrot.slane %v1098, 7
      %v1177 = vrot.slane %v1101, 7
      %v1178 = vrot.slane %v1103, 7
      %v1179 = vrot.slane %v1106, 7
      %v1180 = vrot.slane %v1108, 7
      %v1181 = vrot.slane %v1111, 7
      %v1182 = vrot.slane %v1113, 7
      %v1183 = vrot.slane %v1116, 7
      %v1184 = vrot.slane %v1118, 7
      %v1185 = vrot.slane %v1121, 7
      %v1186 = vrot.slane %v1123, 7
      %v1187 = vrot.slane %v1126, 7
      %v1188 = vrot.slane %v1128, 7
      %v1189 = vrot.slane %v1131, 7
      %v1190 = vrot.slane %v1133, 7
      %v1191 = vrot.slane %v1136, 7
      %v1192 = vrot.slane %v1138, 7
      %v1193 = vrot.slane %v1141, 7
      %v1194 = vrot.slane %v1143, 7
      %v1195 = vrot.slane %v1146, 7
      %v1196 = vrot.slane %v1148, 7
      %v1197 = vrot.slane %v1151, 7
      %v1198 = vrot.slane %v1153, 7
      %v1199 = vrot.slane %v1156, 7
      %v1200 = vrot.slane %v1158, 7
      %v1201 = vrot.slane %v1161, 7
      %v1202 = vrot.slane %v1163, 7
      %v1203 = vrot.slane %v1166, 7
      %v1204 = vrot.slane %v1168, 7
      %v1205 = vrot.slane %v1171, 7
      %v1206 = vrot.slane %v1173, 7
      %vm1207 = vcmp.lt.s32.totalorder %v809, 1
      %v1208 = vsel %vm1207, %v1205, %v1206
      %v1209 = vsel %vm1207, %v1204, %v1205
      %v1210 = vsel %vm1207, %v1203, %v1204
      %v1211 = vsel %vm1207, %v1202, %v1203
      %v1212 = vsel %vm1207, %v1201, %v1202
      %v1213 = vsel %vm1207, %v1200, %v1201
      %v1214 = vsel %vm1207, %v1199, %v1200
      %v1215 = vsel %vm1207, %v1198, %v1199
      %v1216 = vsel %vm1207, %v1197, %v1198
      %v1217 = vsel %vm1207, %v1196, %v1197
      %v1218 = vsel %vm1207, %v1195, %v1196
      %v1219 = vsel %vm1207, %v1194, %v1195
      %v1220 = vsel %vm1207, %v1193, %v1194
      %v1221 = vsel %vm1207, %v1192, %v1193
      %v1222 = vsel %vm1207, %v1191, %v1192
      %v1223 = vsel %vm1207, %v1190, %v1191
      %v1224 = vsel %vm1207, %v1189, %v1190
      %v1225 = vsel %vm1207, %v1188, %v1189
      %v1226 = vsel %vm1207, %v1187, %v1188
      %v1227 = vsel %vm1207, %v1186, %v1187
      %v1228 = vsel %vm1207, %v1185, %v1186
      %v1229 = vsel %vm1207, %v1184, %v1185
      %v1230 = vsel %vm1207, %v1183, %v1184
      %v1231 = vsel %vm1207, %v1182, %v1183
      %v1232 = vsel %vm1207, %v1181, %v1182
      %v1233 = vsel %vm1207, %v1180, %v1181
      %v1234 = vsel %vm1207, %v1179, %v1180
      %v1235 = vsel %vm1207, %v1178, %v1179
      %v1236 = vsel %vm1207, %v1177, %v1178
      %v1237 = vsel %vm1207, %v1176, %v1177
      %v1238 = vsel %vm1207, %v1175, %v1176
      %v1239 = vsel %vm1207, %v1206, %v1175
      %v1240 = vsel %vm776, 1, 0
      %v1241 = vsel %vm777, 1, 0
      %v1242 = vsel %vm778, 1, 0
      %v1243 = vsel %vm779, 1, 0
      %v1244 = vsel %vm780, 1, 0
      %v1245 = vsel %vm781, 1, 0
      %v1246 = vsel %vm782, 1, 0
      %v1247 = vsel %vm783, 1, 0
      %v1248 = vsel %vm784, 1, 0
      %v1249 = vsel %vm785, 1, 0
      %v1250 = vsel %vm786, 1, 0
      %v1251 = vsel %vm787, 1, 0
      %v1252 = vsel %vm788, 1, 0
      %v1253 = vsel %vm789, 1, 0
      %v1254 = vsel %vm790, 1, 0
      %v1255 = vsel %vm791, 1, 0
      %v1256 = vsel %vm792, 1, 0
      %v1257 = vsel %vm793, 1, 0
      %v1258 = vsel %vm794, 1, 0
      %v1259 = vsel %vm795, 1, 0
      %v1260 = vsel %vm796, 1, 0
      %v1261 = vsel %vm797, 1, 0
      %v1262 = vsel %vm798, 1, 0
      %v1263 = vsel %vm799, 1, 0
      %v1264 = vsel %vm800, 1, 0
      %v1265 = vsel %vm801, 1, 0
      %v1266 = vsel %vm802, 1, 0
      %v1267 = vsel %vm803, 1, 0
      %v1268 = vsel %vm804, 1, 0
      %v1269 = vsel %vm805, 1, 0
      %v1270 = vsel %vm806, 1, 0
      %v1271 = vsel %vm807, 1, 0
      %1272 = vset.pattern.permute.xlu0 0
      %1273 = vperm.xlu0 %1272, %v1240
      %v1274 = vpop.permute.xlu0 %1273
      %1275 = vset.pattern.permute.xlu0 0
      %1276 = vperm.xlu0 %1275, %v1241
      %v1277 = vpop.permute.xlu0 %1276
      %1278 = vset.pattern.permute.xlu0 0
      %1279 = vperm.xlu0 %1278, %v1242
      %v1280 = vpop.permute.xlu0 %1279
      %1281 = vset.pattern.permute.xlu0 0
      %1282 = vperm.xlu0 %1281, %v1243
      %v1283 = vpop.permute.xlu0 %1282
      %1284 = vset.pattern.permute.xlu0 0
      %1285 = vperm.xlu0 %1284, %v1244
      %v1286 = vpop.permute.xlu0 %1285
      %1287 = vset.pattern.permute.xlu0 0
      %1288 = vperm.xlu0 %1287, %v1245
      %v1289 = vpop.permute.xlu0 %1288
      %1290 = vset.pattern.permute.xlu0 0
      %1291 = vperm.xlu0 %1290, %v1246
      %v1292 = vpop.permute.xlu0 %1291
      %1293 = vset.pattern.permute.xlu0 0
      %1294 = vperm.xlu0 %1293, %v1247
      %v1295 = vpop.permute.xlu0 %1294
      %1296 = vset.pattern.permute.xlu0 0
      %1297 = vperm.xlu0 %1296, %v1248
      %v1298 = vpop.permute.xlu0 %1297
      %1299 = vset.pattern.permute.xlu0 0
      %1300 = vperm.xlu0 %1299, %v1249
      %v1301 = vpop.permute.xlu0 %1300
      %1302 = vset.pattern.permute.xlu0 0
      %1303 = vperm.xlu0 %1302, %v1250
      %v1304 = vpop.permute.xlu0 %1303
      %1305 = vset.pattern.permute.xlu0 0
      %1306 = vperm.xlu0 %1305, %v1251
      %v1307 = vpop.permute.xlu0 %1306
      %1308 = vset.pattern.permute.xlu0 0
      %1309 = vperm.xlu0 %1308, %v1252
      %v1310 = vpop.permute.xlu0 %1309
      %1311 = vset.pattern.permute.xlu0 0
      %1312 = vperm.xlu0 %1311, %v1253
      %v1313 = vpop.permute.xlu0 %1312
      %1314 = vset.pattern.permute.xlu0 0
      %1315 = vperm.xlu0 %1314, %v1254
      %v1316 = vpop.permute.xlu0 %1315
      %1317 = vset.pattern.permute.xlu0 0
      %1318 = vperm.xlu0 %1317, %v1255
      %v1319 = vpop.permute.xlu0 %1318
      %1320 = vset.pattern.permute.xlu0 0
      %1321 = vperm.xlu0 %1320, %v1256
      %v1322 = vpop.permute.xlu0 %1321
      %1323 = vset.pattern.permute.xlu0 0
      %1324 = vperm.xlu0 %1323, %v1257
      %v1325 = vpop.permute.xlu0 %1324
      %1326 = vset.pattern.permute.xlu0 0
      %1327 = vperm.xlu0 %1326, %v1258
      %v1328 = vpop.permute.xlu0 %1327
      %1329 = vset.pattern.permute.xlu0 0
      %1330 = vperm.xlu0 %1329, %v1259
      %v1331 = vpop.permute.xlu0 %1330
      %1332 = vset.pattern.permute.xlu0 0
      %1333 = vperm.xlu0 %1332, %v1260
      %v1334 = vpop.permute.xlu0 %1333
      %1335 = vset.pattern.permute.xlu0 0
      %1336 = vperm.xlu0 %1335, %v1261
      %v1337 = vpop.permute.xlu0 %1336
      %1338 = vset.pattern.permute.xlu0 0
      %1339 = vperm.xlu0 %1338, %v1262
      %v1340 = vpop.permute.xlu0 %1339
      %1341 = vset.pattern.permute.xlu0 0
      %1342 = vperm.xlu0 %1341, %v1263
      %v1343 = vpop.permute.xlu0 %1342
      %1344 = vset.pattern.permute.xlu0 0
      %1345 = vperm.xlu0 %1344, %v1264
      %v1346 = vpop.permute.xlu0 %1345
      %1347 = vset.pattern.permute.xlu0 0
      %1348 = vperm.xlu0 %1347, %v1265
      %v1349 = vpop.permute.xlu0 %1348
      %1350 = vset.pattern.permute.xlu0 0
      %1351 = vperm.xlu0 %1350, %v1266
      %v1352 = vpop.permute.xlu0 %1351
      %1353 = vset.pattern.permute.xlu0 0
      %1354 = vperm.xlu0 %1353, %v1267
      %v1355 = vpop.permute.xlu0 %1354
      %1356 = vset.pattern.permute.xlu0 0
      %1357 = vperm.xlu0 %1356, %v1268
      %v1358 = vpop.permute.xlu0 %1357
      %1359 = vset.pattern.permute.xlu0 0
      %1360 = vperm.xlu0 %1359, %v1269
      %v1361 = vpop.permute.xlu0 %1360
      %1362 = vset.pattern.permute.xlu0 0
      %1363 = vperm.xlu0 %1362, %v1270
      %v1364 = vpop.permute.xlu0 %1363
      %1365 = vset.pattern.permute.xlu0 0
      %1366 = vperm.xlu0 %1365, %v1271
      %v1367 = vpop.permute.xlu0 %1366
      %vm1368 = vcmp.eq.s32.totalorder %v1274, 1
      %vm1369 = vcmp.eq.s32.totalorder %v1277, 1
      %vm1370 = vcmp.eq.s32.totalorder %v1280, 1
      %vm1371 = vcmp.eq.s32.totalorder %v1283, 1
      %vm1372 = vcmp.eq.s32.totalorder %v1286, 1
      %vm1373 = vcmp.eq.s32.totalorder %v1289, 1
      %vm1374 = vcmp.eq.s32.totalorder %v1292, 1
      %vm1375 = vcmp.eq.s32.totalorder %v1295, 1
      %vm1376 = vcmp.eq.s32.totalorder %v1298, 1
      %vm1377 = vcmp.eq.s32.totalorder %v1301, 1
      %vm1378 = vcmp.eq.s32.totalorder %v1304, 1
      %vm1379 = vcmp.eq.s32.totalorder %v1307, 1
      %vm1380 = vcmp.eq.s32.totalorder %v1310, 1
      %vm1381 = vcmp.eq.s32.totalorder %v1313, 1
      %vm1382 = vcmp.eq.s32.totalorder %v1316, 1
      %vm1383 = vcmp.eq.s32.totalorder %v1319, 1
      %vm1384 = vcmp.eq.s32.totalorder %v1322, 1
      %vm1385 = vcmp.eq.s32.totalorder %v1325, 1
      %vm1386 = vcmp.eq.s32.totalorder %v1328, 1
      %vm1387 = vcmp.eq.s32.totalorder %v1331, 1
      %vm1388 = vcmp.eq.s32.totalorder %v1334, 1
      %vm1389 = vcmp.eq.s32.totalorder %v1337, 1
      %vm1390 = vcmp.eq.s32.totalorder %v1340, 1
      %vm1391 = vcmp.eq.s32.totalorder %v1343, 1
      %vm1392 = vcmp.eq.s32.totalorder %v1346, 1
      %vm1393 = vcmp.eq.s32.totalorder %v1349, 1
      %vm1394 = vcmp.eq.s32.totalorder %v1352, 1
      %vm1395 = vcmp.eq.s32.totalorder %v1355, 1
      %vm1396 = vcmp.eq.s32.totalorder %v1358, 1
      %vm1397 = vcmp.eq.s32.totalorder %v1361, 1
      %vm1398 = vcmp.eq.s32.totalorder %v1364, 1
      %vm1399 = vcmp.eq.s32.totalorder %v1367, 1
      %v1400 = vsel %vm1368, %v1239, 0.0
      %v1401 = vsel %vm1369, %v1238, 0.0
      %v1402 = vsel %vm1370, %v1237, 0.0
      %v1403 = vsel %vm1371, %v1236, 0.0
      %v1404 = vsel %vm1372, %v1235, 0.0
      %v1405 = vsel %vm1373, %v1234, 0.0
      %v1406 = vsel %vm1374, %v1233, 0.0
      %v1407 = vsel %vm1375, %v1232, 0.0
      %v1408 = vsel %vm1376, %v1231, 0.0
      %v1409 = vsel %vm1377, %v1230, 0.0
      %v1410 = vsel %vm1378, %v1229, 0.0
      %v1411 = vsel %vm1379, %v1228, 0.0
      %v1412 = vsel %vm1380, %v1227, 0.0
      %v1413 = vsel %vm1381, %v1226, 0.0
      %v1414 = vsel %vm1382, %v1225, 0.0
      %v1415 = vsel %vm1383, %v1224, 0.0
      %v1416 = vsel %vm1384, %v1223, 0.0
      %v1417 = vsel %vm1385, %v1222, 0.0
      %v1418 = vsel %vm1386, %v1221, 0.0
      %v1419 = vsel %vm1387, %v1220, 0.0
      %v1420 = vsel %vm1388, %v1219, 0.0
      %v1421 = vsel %vm1389, %v1218, 0.0
      %v1422 = vsel %vm1390, %v1217, 0.0
      %v1423 = vsel %vm1391, %v1216, 0.0
      %v1424 = vsel %vm1392, %v1215, 0.0
      %v1425 = vsel %vm1393, %v1214, 0.0
      %v1426 = vsel %vm1394, %v1213, 0.0
      %v1427 = vsel %vm1395, %v1212, 0.0
      %v1428 = vsel %vm1396, %v1211, 0.0
      %v1429 = vsel %vm1397, %v1210, 0.0
      %v1430 = vsel %vm1398, %v1209, 0.0
      %v1431 = vsel %vm1399, %v1208, 0.0
      %1464 = vrot.lane.b32.xlu0 %v1096, 104
      %v1465 = vpop.permute.xlu0 %1464
      %1466 = vrot.lane.b32.xlu0 %v1098, 104
      %v1467 = vpop.permute.xlu0 %1466
      %1468 = vrot.lane.b32.xlu0 %v1101, 104
      %v1469 = vpop.permute.xlu0 %1468
      %1470 = vrot.lane.b32.xlu0 %v1103, 104
      %v1471 = vpop.permute.xlu0 %1470
      %1472 = vrot.lane.b32.xlu0 %v1106, 104
      %v1473 = vpop.permute.xlu0 %1472
      %1474 = vrot.lane.b32.xlu0 %v1108, 104
      %v1475 = vpop.permute.xlu0 %1474
      %1476 = vrot.lane.b32.xlu0 %v1111, 104
      %v1477 = vpop.permute.xlu0 %1476
      %1478 = vrot.lane.b32.xlu0 %v1113, 104
      %v1479 = vpop.permute.xlu0 %1478
      %1480 = vrot.lane.b32.xlu0 %v1116, 104
      %v1481 = vpop.permute.xlu0 %1480
      %1482 = vrot.lane.b32.xlu0 %v1118, 104
      %v1483 = vpop.permute.xlu0 %1482
      %1484 = vrot.lane.b32.xlu0 %v1121, 104
      %v1485 = vpop.permute.xlu0 %1484
      %1486 = vrot.lane.b32.xlu0 %v1123, 104
      %v1487 = vpop.permute.xlu0 %1486
      %1488 = vrot.lane.b32.xlu0 %v1126, 104
      %v1489 = vpop.permute.xlu0 %1488
      %1490 = vrot.lane.b32.xlu0 %v1128, 104
      %v1491 = vpop.permute.xlu0 %1490
      %1492 = vrot.lane.b32.xlu0 %v1131, 104
      %v1493 = vpop.permute.xlu0 %1492
      %1494 = vrot.lane.b32.xlu0 %v1133, 104
      %v1495 = vpop.permute.xlu0 %1494
      %1496 = vrot.lane.b32.xlu0 %v1136, 104
      %v1497 = vpop.permute.xlu0 %1496
      %1498 = vrot.lane.b32.xlu0 %v1138, 104
      %v1499 = vpop.permute.xlu0 %1498
      %1500 = vrot.lane.b32.xlu0 %v1141, 104
      %v1501 = vpop.permute.xlu0 %1500
      %1502 = vrot.lane.b32.xlu0 %v1143, 104
      %v1503 = vpop.permute.xlu0 %1502
      %1504 = vrot.lane.b32.xlu0 %v1146, 104
      %v1505 = vpop.permute.xlu0 %1504
      %1506 = vrot.lane.b32.xlu0 %v1148, 104
      %v1507 = vpop.permute.xlu0 %1506
      %1508 = vrot.lane.b32.xlu0 %v1151, 104
      %v1509 = vpop.permute.xlu0 %1508
      %1510 = vrot.lane.b32.xlu0 %v1153, 104
      %v1511 = vpop.permute.xlu0 %1510
      %1512 = vrot.lane.b32.xlu0 %v1156, 104
      %v1513 = vpop.permute.xlu0 %1512
      %1514 = vrot.lane.b32.xlu0 %v1158, 104
      %v1515 = vpop.permute.xlu0 %1514
      %1516 = vrot.lane.b32.xlu0 %v1161, 104
      %v1517 = vpop.permute.xlu0 %1516
      %1518 = vrot.lane.b32.xlu0 %v1163, 104
      %v1519 = vpop.permute.xlu0 %1518
      %1520 = vrot.lane.b32.xlu0 %v1166, 104
      %v1521 = vpop.permute.xlu0 %1520
      %1522 = vrot.lane.b32.xlu0 %v1168, 104
      %v1523 = vpop.permute.xlu0 %1522
      %1524 = vrot.lane.b32.xlu0 %v1171, 104
      %v1525 = vpop.permute.xlu0 %1524
      %1526 = vrot.lane.b32.xlu0 %v1173, 104
      %v1527 = vpop.permute.xlu0 %1526
      %v1560 = vrot.slane %v1465, 1
      %v1561 = vrot.slane %v1467, 1
      %v1562 = vrot.slane %v1469, 1
      %v1563 = vrot.slane %v1471, 1
      %v1564 = vrot.slane %v1473, 1
      %v1565 = vrot.slane %v1475, 1
      %v1566 = vrot.slane %v1477, 1
      %v1567 = vrot.slane %v1479, 1
      %v1568 = vrot.slane %v1481, 1
      %v1569 = vrot.slane %v1483, 1
      %v1570 = vrot.slane %v1485, 1
      %v1571 = vrot.slane %v1487, 1
      %v1572 = vrot.slane %v1489, 1
      %v1573 = vrot.slane %v1491, 1
      %v1574 = vrot.slane %v1493, 1
      %v1575 = vrot.slane %v1495, 1
      %v1576 = vrot.slane %v1497, 1
      %v1577 = vrot.slane %v1499, 1
      %v1578 = vrot.slane %v1501, 1
      %v1579 = vrot.slane %v1503, 1
      %v1580 = vrot.slane %v1505, 1
      %v1581 = vrot.slane %v1507, 1
      %v1582 = vrot.slane %v1509, 1
      %v1583 = vrot.slane %v1511, 1
      %v1584 = vrot.slane %v1513, 1
      %v1585 = vrot.slane %v1515, 1
      %v1586 = vrot.slane %v1517, 1
      %v1587 = vrot.slane %v1519, 1
      %v1588 = vrot.slane %v1521, 1
      %v1589 = vrot.slane %v1523, 1
      %v1590 = vrot.slane %v1525, 1
      %v1591 = vrot.slane %v1527, 1
      %vm1592 = vcmp.lt.s32.totalorder %v809, 7
      %v1593 = vsel %vm1592, %v1590, %v1591
      %v1594 = vsel %vm1592, %v1589, %v1590
      %v1595 = vsel %vm1592, %v1588, %v1589
      %v1596 = vsel %vm1592, %v1587, %v1588
      %v1597 = vsel %vm1592, %v1586, %v1587
      %v1598 = vsel %vm1592, %v1585, %v1586
      %v1599 = vsel %vm1592, %v1584, %v1585
      %v1600 = vsel %vm1592, %v1583, %v1584
      %v1601 = vsel %vm1592, %v1582, %v1583
      %v1602 = vsel %vm1592, %v1581, %v1582
      %v1603 = vsel %vm1592, %v1580, %v1581
      %v1604 = vsel %vm1592, %v1579, %v1580
      %v1605 = vsel %vm1592, %v1578, %v1579
      %v1606 = vsel %vm1592, %v1577, %v1578
      %v1607 = vsel %vm1592, %v1576, %v1577
      %v1608 = vsel %vm1592, %v1575, %v1576
      %v1609 = vsel %vm1592, %v1574, %v1575
      %v1610 = vsel %vm1592, %v1573, %v1574
      %v1611 = vsel %vm1592, %v1572, %v1573
      %v1612 = vsel %vm1592, %v1571, %v1572
      %v1613 = vsel %vm1592, %v1570, %v1571
      %v1614 = vsel %vm1592, %v1569, %v1570
      %v1615 = vsel %vm1592, %v1568, %v1569
      %v1616 = vsel %vm1592, %v1567, %v1568
      %v1617 = vsel %vm1592, %v1566, %v1567
      %v1618 = vsel %vm1592, %v1565, %v1566
      %v1619 = vsel %vm1592, %v1564, %v1565
      %v1620 = vsel %vm1592, %v1563, %v1564
      %v1621 = vsel %vm1592, %v1562, %v1563
      %v1622 = vsel %vm1592, %v1561, %v1562
      %v1623 = vsel %vm1592, %v1560, %v1561
      %v1624 = vsel %vm1592, %v1591, %v1560
      %1625 = vset.pattern.permute.xlu0 1
      %1626 = vperm.xlu0 %1625, %v1240
      %v1627 = vpop.permute.xlu0 %1626
      %1628 = vset.pattern.permute.xlu0 1
      %1629 = vperm.xlu0 %1628, %v1241
      %v1630 = vpop.permute.xlu0 %1629
      %1631 = vset.pattern.permute.xlu0 1
      %1632 = vperm.xlu0 %1631, %v1242
      %v1633 = vpop.permute.xlu0 %1632
      %1634 = vset.pattern.permute.xlu0 1
      %1635 = vperm.xlu0 %1634, %v1243
      %v1636 = vpop.permute.xlu0 %1635
      %1637 = vset.pattern.permute.xlu0 1
      %1638 = vperm.xlu0 %1637, %v1244
      %v1639 = vpop.permute.xlu0 %1638
      %1640 = vset.pattern.permute.xlu0 1
      %1641 = vperm.xlu0 %1640, %v1245
      %v1642 = vpop.permute.xlu0 %1641
      %1643 = vset.pattern.permute.xlu0 1
      %1644 = vperm.xlu0 %1643, %v1246
      %v1645 = vpop.permute.xlu0 %1644
      %1646 = vset.pattern.permute.xlu0 1
      %1647 = vperm.xlu0 %1646, %v1247
      %v1648 = vpop.permute.xlu0 %1647
      %1649 = vset.pattern.permute.xlu0 1
      %1650 = vperm.xlu0 %1649, %v1248
      %v1651 = vpop.permute.xlu0 %1650
      %1652 = vset.pattern.permute.xlu0 1
      %1653 = vperm.xlu0 %1652, %v1249
      %v1654 = vpop.permute.xlu0 %1653
      %1655 = vset.pattern.permute.xlu0 1
      %1656 = vperm.xlu0 %1655, %v1250
      %v1657 = vpop.permute.xlu0 %1656
      %1658 = vset.pattern.permute.xlu0 1
      %1659 = vperm.xlu0 %1658, %v1251
      %v1660 = vpop.permute.xlu0 %1659
      %1661 = vset.pattern.permute.xlu0 1
      %1662 = vperm.xlu0 %1661, %v1252
      %v1663 = vpop.permute.xlu0 %1662
      %1664 = vset.pattern.permute.xlu0 1
      %1665 = vperm.xlu0 %1664, %v1253
      %v1666 = vpop.permute.xlu0 %1665
      %1667 = vset.pattern.permute.xlu0 1
      %1668 = vperm.xlu0 %1667, %v1254
      %v1669 = vpop.permute.xlu0 %1668
      %1670 = vset.pattern.permute.xlu0 1
      %1671 = vperm.xlu0 %1670, %v1255
      %v1672 = vpop.permute.xlu0 %1671
      %1673 = vset.pattern.permute.xlu0 1
      %1674 = vperm.xlu0 %1673, %v1256
      %v1675 = vpop.permute.xlu0 %1674
      %1676 = vset.pattern.permute.xlu0 1
      %1677 = vperm.xlu0 %1676, %v1257
      %v1678 = vpop.permute.xlu0 %1677
      %1679 = vset.pattern.permute.xlu0 1
      %1680 = vperm.xlu0 %1679, %v1258
      %v1681 = vpop.permute.xlu0 %1680
      %1682 = vset.pattern.permute.xlu0 1
      %1683 = vperm.xlu0 %1682, %v1259
      %v1684 = vpop.permute.xlu0 %1683
      %1685 = vset.pattern.permute.xlu0 1
      %1686 = vperm.xlu0 %1685, %v1260
      %v1687 = vpop.permute.xlu0 %1686
      %1688 = vset.pattern.permute.xlu0 1
      %1689 = vperm.xlu0 %1688, %v1261
      %v1690 = vpop.permute.xlu0 %1689
      %1691 = vset.pattern.permute.xlu0 1
      %1692 = vperm.xlu0 %1691, %v1262
      %v1693 = vpop.permute.xlu0 %1692
      %1694 = vset.pattern.permute.xlu0 1
      %1695 = vperm.xlu0 %1694, %v1263
      %v1696 = vpop.permute.xlu0 %1695
      %1697 = vset.pattern.permute.xlu0 1
      %1698 = vperm.xlu0 %1697, %v1264
      %v1699 = vpop.permute.xlu0 %1698
      %1700 = vset.pattern.permute.xlu0 1
      %1701 = vperm.xlu0 %1700, %v1265
      %v1702 = vpop.permute.xlu0 %1701
      %1703 = vset.pattern.permute.xlu0 1
      %1704 = vperm.xlu0 %1703, %v1266
      %v1705 = vpop.permute.xlu0 %1704
      %1706 = vset.pattern.permute.xlu0 1
      %1707 = vperm.xlu0 %1706, %v1267
      %v1708 = vpop.permute.xlu0 %1707
      %1709 = vset.pattern.permute.xlu0 1
      %1710 = vperm.xlu0 %1709, %v1268
      %v1711 = vpop.permute.xlu0 %1710
      %1712 = vset.pattern.permute.xlu0 1
      %1713 = vperm.xlu0 %1712, %v1269
      %v1714 = vpop.permute.xlu0 %1713
      %1715 = vset.pattern.permute.xlu0 1
      %1716 = vperm.xlu0 %1715, %v1270
      %v1717 = vpop.permute.xlu0 %1716
      %1718 = vset.pattern.permute.xlu0 1
      %1719 = vperm.xlu0 %1718, %v1271
      %v1720 = vpop.permute.xlu0 %1719
      %vm1721 = vcmp.eq.s32.totalorder %v1627, 1
      %vm1722 = vcmp.eq.s32.totalorder %v1630, 1
      %vm1723 = vcmp.eq.s32.totalorder %v1633, 1
      %vm1724 = vcmp.eq.s32.totalorder %v1636, 1
      %vm1725 = vcmp.eq.s32.totalorder %v1639, 1
      %vm1726 = vcmp.eq.s32.totalorder %v1642, 1
      %vm1727 = vcmp.eq.s32.totalorder %v1645, 1
      %vm1728 = vcmp.eq.s32.totalorder %v1648, 1
      %vm1729 = vcmp.eq.s32.totalorder %v1651, 1
      %vm1730 = vcmp.eq.s32.totalorder %v1654, 1
      %vm1731 = vcmp.eq.s32.totalorder %v1657, 1
      %vm1732 = vcmp.eq.s32.totalorder %v1660, 1
      %vm1733 = vcmp.eq.s32.totalorder %v1663, 1
      %vm1734 = vcmp.eq.s32.totalorder %v1666, 1
      %vm1735 = vcmp.eq.s32.totalorder %v1669, 1
      %vm1736 = vcmp.eq.s32.totalorder %v1672, 1
      %vm1737 = vcmp.eq.s32.totalorder %v1675, 1
      %vm1738 = vcmp.eq.s32.totalorder %v1678, 1
      %vm1739 = vcmp.eq.s32.totalorder %v1681, 1
      %vm1740 = vcmp.eq.s32.totalorder %v1684, 1
      %vm1741 = vcmp.eq.s32.totalorder %v1687, 1
      %vm1742 = vcmp.eq.s32.totalorder %v1690, 1
      %vm1743 = vcmp.eq.s32.totalorder %v1693, 1
      %vm1744 = vcmp.eq.s32.totalorder %v1696, 1
      %vm1745 = vcmp.eq.s32.totalorder %v1699, 1
      %vm1746 = vcmp.eq.s32.totalorder %v1702, 1
      %vm1747 = vcmp.eq.s32.totalorder %v1705, 1
      %vm1748 = vcmp.eq.s32.totalorder %v1708, 1
      %vm1749 = vcmp.eq.s32.totalorder %v1711, 1
      %vm1750 = vcmp.eq.s32.totalorder %v1714, 1
      %vm1751 = vcmp.eq.s32.totalorder %v1717, 1
      %vm1752 = vcmp.eq.s32.totalorder %v1720, 1
      %v1753 = vsel %vm1721, %v1623, 0.0
      %v1754 = vsel %vm1722, %v1622, 0.0
      %v1755 = vsel %vm1723, %v1621, 0.0
      %v1756 = vsel %vm1724, %v1620, 0.0
      %v1757 = vsel %vm1725, %v1619, 0.0
      %v1758 = vsel %vm1726, %v1618, 0.0
      %v1759 = vsel %vm1727, %v1617, 0.0
      %v1760 = vsel %vm1728, %v1616, 0.0
      %v1761 = vsel %vm1729, %v1615, 0.0
      %v1762 = vsel %vm1730, %v1614, 0.0
      %v1763 = vsel %vm1731, %v1613, 0.0
      %v1764 = vsel %vm1732, %v1612, 0.0
      %v1765 = vsel %vm1733, %v1611, 0.0
      %v1766 = vsel %vm1734, %v1610, 0.0
      %v1767 = vsel %vm1735, %v1609, 0.0
      %v1768 = vsel %vm1736, %v1608, 0.0
      %v1769 = vsel %vm1737, %v1607, 0.0
      %v1770 = vsel %vm1738, %v1606, 0.0
      %v1771 = vsel %vm1739, %v1605, 0.0
      %v1772 = vsel %vm1740, %v1604, 0.0
      %v1773 = vsel %vm1741, %v1603, 0.0
      %v1774 = vsel %vm1742, %v1602, 0.0
      %v1775 = vsel %vm1743, %v1601, 0.0
      %v1776 = vsel %vm1744, %v1600, 0.0
      %v1777 = vsel %vm1745, %v1599, 0.0
      %v1778 = vsel %vm1746, %v1598, 0.0
      %v1779 = vsel %vm1747, %v1597, 0.0
      %v1780 = vsel %vm1748, %v1596, 0.0
      %v1781 = vsel %vm1749, %v1595, 0.0
      %v1782 = vsel %vm1750, %v1594, 0.0
      %v1783 = vsel %vm1751, %v1593, 0.0
      %v1784 = vsel %vm1752, %v1624, 0.0
      %1785 = vrot.lane.b32.xlu0 %v1096, 116
      %v1786 = vpop.permute.xlu0 %1785
      %1787 = vrot.lane.b32.xlu0 %v1098, 116
      %v1788 = vpop.permute.xlu0 %1787
      %1789 = vrot.lane.b32.xlu0 %v1101, 116
      %v1790 = vpop.permute.xlu0 %1789
      %1791 = vrot.lane.b32.xlu0 %v1103, 116
      %v1792 = vpop.permute.xlu0 %1791
      %1793 = vrot.lane.b32.xlu0 %v1106, 116
      %v1794 = vpop.permute.xlu0 %1793
      %1795 = vrot.lane.b32.xlu0 %v1108, 116
      %v1796 = vpop.permute.xlu0 %1795
      %1797 = vrot.lane.b32.xlu0 %v1111, 116
      %v1798 = vpop.permute.xlu0 %1797
      %1799 = vrot.lane.b32.xlu0 %v1113, 116
      %v1800 = vpop.permute.xlu0 %1799
      %1801 = vrot.lane.b32.xlu0 %v1116, 116
      %v1802 = vpop.permute.xlu0 %1801
      %1803 = vrot.lane.b32.xlu0 %v1118, 116
      %v1804 = vpop.permute.xlu0 %1803
      %1805 = vrot.lane.b32.xlu0 %v1121, 116
      %v1806 = vpop.permute.xlu0 %1805
      %1807 = vrot.lane.b32.xlu0 %v1123, 116
      %v1808 = vpop.permute.xlu0 %1807
      %1809 = vrot.lane.b32.xlu0 %v1126, 116
      %v1810 = vpop.permute.xlu0 %1809
      %1811 = vrot.lane.b32.xlu0 %v1128, 116
      %v1812 = vpop.permute.xlu0 %1811
      %1813 = vrot.lane.b32.xlu0 %v1131, 116
      %v1814 = vpop.permute.xlu0 %1813
      %1815 = vrot.lane.b32.xlu0 %v1133, 116
      %v1816 = vpop.permute.xlu0 %1815
      %1817 = vrot.lane.b32.xlu0 %v1136, 116
      %v1818 = vpop.permute.xlu0 %1817
      %1819 = vrot.lane.b32.xlu0 %v1138, 116
      %v1820 = vpop.permute.xlu0 %1819
      %1821 = vrot.lane.b32.xlu0 %v1141, 116
      %v1822 = vpop.permute.xlu0 %1821
      %1823 = vrot.lane.b32.xlu0 %v1143, 116
      %v1824 = vpop.permute.xlu0 %1823
      %1825 = vrot.lane.b32.xlu0 %v1146, 116
      %v1826 = vpop.permute.xlu0 %1825
      %1827 = vrot.lane.b32.xlu0 %v1148, 116
      %v1828 = vpop.permute.xlu0 %1827
      %1829 = vrot.lane.b32.xlu0 %v1151, 116
      %v1830 = vpop.permute.xlu0 %1829
      %1831 = vrot.lane.b32.xlu0 %v1153, 116
      %v1832 = vpop.permute.xlu0 %1831
      %1833 = vrot.lane.b32.xlu0 %v1156, 116
      %v1834 = vpop.permute.xlu0 %1833
      %1835 = vrot.lane.b32.xlu0 %v1158, 116
      %v1836 = vpop.permute.xlu0 %1835
      %1837 = vrot.lane.b32.xlu0 %v1161, 116
      %v1838 = vpop.permute.xlu0 %1837
      %1839 = vrot.lane.b32.xlu0 %v1163, 116
      %v1840 = vpop.permute.xlu0 %1839
      %1841 = vrot.lane.b32.xlu0 %v1166, 116
      %v1842 = vpop.permute.xlu0 %1841
      %1843 = vrot.lane.b32.xlu0 %v1168, 116
      %v1844 = vpop.permute.xlu0 %1843
      %1845 = vrot.lane.b32.xlu0 %v1171, 116
      %v1846 = vpop.permute.xlu0 %1845
      %1847 = vrot.lane.b32.xlu0 %v1173, 116
      %v1848 = vpop.permute.xlu0 %1847
      %v1881 = vadd.f32 %v1400, %v1786
      %v1882 = vadd.f32 %v1401, %v1788
      %v1883 = vadd.f32 %v1402, %v1790
      %v1884 = vadd.f32 %v1403, %v1792
      %v1885 = vadd.f32 %v1404, %v1794
      %v1886 = vadd.f32 %v1405, %v1796
      %v1887 = vadd.f32 %v1406, %v1798
      %v1888 = vadd.f32 %v1407, %v1800
      %v1889 = vadd.f32 %v1408, %v1802
      %v1890 = vadd.f32 %v1409, %v1804
      %v1891 = vadd.f32 %v1410, %v1806
      %v1892 = vadd.f32 %v1411, %v1808
      %v1893 = vadd.f32 %v1412, %v1810
      %v1894 = vadd.f32 %v1413, %v1812
      %v1895 = vadd.f32 %v1414, %v1814
      %v1896 = vadd.f32 %v1415, %v1816
      %v1897 = vadd.f32 %v1416, %v1818
      %v1898 = vadd.f32 %v1417, %v1820
      %v1899 = vadd.f32 %v1418, %v1822
      %v1900 = vadd.f32 %v1419, %v1824
      %v1901 = vadd.f32 %v1420, %v1826
      %v1902 = vadd.f32 %v1421, %v1828
      %v1903 = vadd.f32 %v1422, %v1830
      %v1904 = vadd.f32 %v1423, %v1832
      %v1905 = vadd.f32 %v1424, %v1834
      %v1906 = vadd.f32 %v1425, %v1836
      %v1907 = vadd.f32 %v1426, %v1838
      %v1908 = vadd.f32 %v1427, %v1840
      %v1909 = vadd.f32 %v1428, %v1842
      %v1910 = vadd.f32 %v1429, %v1844
      %v1911 = vadd.f32 %v1430, %v1846
      %v1912 = vadd.f32 %v1431, %v1848
      %v1913 = vadd.f32 %v1881, %v1753
      %v1914 = vadd.f32 %v1882, %v1754
      %v1915 = vadd.f32 %v1883, %v1755
      %v1916 = vadd.f32 %v1884, %v1756
      %v1917 = vadd.f32 %v1885, %v1757
      %v1918 = vadd.f32 %v1886, %v1758
      %v1919 = vadd.f32 %v1887, %v1759
      %v1920 = vadd.f32 %v1888, %v1760
      %v1921 = vadd.f32 %v1889, %v1761
      %v1922 = vadd.f32 %v1890, %v1762
      %v1923 = vadd.f32 %v1891, %v1763
      %v1924 = vadd.f32 %v1892, %v1764
      %v1925 = vadd.f32 %v1893, %v1765
      %v1926 = vadd.f32 %v1894, %v1766
      %v1927 = vadd.f32 %v1895, %v1767
      %v1928 = vadd.f32 %v1896, %v1768
      %v1929 = vadd.f32 %v1897, %v1769
      %v1930 = vadd.f32 %v1898, %v1770
      %v1931 = vadd.f32 %v1899, %v1771
      %v1932 = vadd.f32 %v1900, %v1772
      %v1933 = vadd.f32 %v1901, %v1773
      %v1934 = vadd.f32 %v1902, %v1774
      %v1935 = vadd.f32 %v1903, %v1775
      %v1936 = vadd.f32 %v1904, %v1776
      %v1937 = vadd.f32 %v1905, %v1777
      %v1938 = vadd.f32 %v1906, %v1778
      %v1939 = vadd.f32 %v1907, %v1779
      %v1940 = vadd.f32 %v1908, %v1780
      %v1941 = vadd.f32 %v1909, %v1781
      %v1942 = vadd.f32 %v1910, %v1782
      %v1943 = vadd.f32 %v1911, %v1783
      %v1944 = vadd.f32 %v1912, %v1784
      %v1945 = vsel %vm836, 1, 0
      %v1946 = vsel %vm837, 1, 0
      %v1947 = vsel %vm838, 1, 0
      %v1948 = vsel %vm839, 1, 0
      %v1949 = vsel %vm840, 1, 0
      %v1950 = vsel %vm841, 1, 0
      %v1951 = vsel %vm842, 1, 0
      %v1952 = vsel %vm843, 1, 0
      %v1953 = vsel %vm844, 1, 0
      %v1954 = vsel %vm845, 1, 0
      %v1955 = vsel %vm846, 1, 0
      %v1956 = vsel %vm847, 1, 0
      %v1957 = vsel %vm848, 1, 0
      %v1958 = vsel %vm849, 1, 0
      %v1959 = vsel %vm850, 1, 0
      %v1960 = vsel %vm851, 1, 0
      %v1961 = vsel %vm852, 1, 0
      %v1962 = vsel %vm853, 1, 0
      %v1963 = vsel %vm854, 1, 0
      %v1964 = vsel %vm855, 1, 0
      %v1965 = vsel %vm856, 1, 0
      %v1966 = vsel %vm857, 1, 0
      %v1967 = vsel %vm858, 1, 0
      %v1968 = vsel %vm859, 1, 0
      %vm1969 = vcmp.eq.s32.totalorder %v1945, 1
      %vm1970 = vcmp.eq.s32.totalorder %v1946, 1
      %vm1971 = vcmp.eq.s32.totalorder %v1947, 1
      %vm1972 = vcmp.eq.s32.totalorder %v1948, 1
      %vm1973 = vcmp.eq.s32.totalorder %v1949, 1
      %vm1974 = vcmp.eq.s32.totalorder %v1950, 1
      %vm1975 = vcmp.eq.s32.totalorder %v1951, 1
      %vm1976 = vcmp.eq.s32.totalorder %v1952, 1
      %vm1977 = vcmp.eq.s32.totalorder %v1953, 1
      %vm1978 = vcmp.eq.s32.totalorder %v1954, 1
      %vm1979 = vcmp.eq.s32.totalorder %v1955, 1
      %vm1980 = vcmp.eq.s32.totalorder %v1956, 1
      %vm1981 = vcmp.eq.s32.totalorder %v1957, 1
      %vm1982 = vcmp.eq.s32.totalorder %v1958, 1
      %vm1983 = vcmp.eq.s32.totalorder %v1959, 1
      %vm1984 = vcmp.eq.s32.totalorder %v1960, 1
      %vm1985 = vcmp.eq.s32.totalorder %v1961, 1
      %vm1986 = vcmp.eq.s32.totalorder %v1962, 1
      %vm1987 = vcmp.eq.s32.totalorder %v1963, 1
      %vm1988 = vcmp.eq.s32.totalorder %v1964, 1
      %vm1989 = vcmp.eq.s32.totalorder %v1965, 1
      %vm1990 = vcmp.eq.s32.totalorder %v1966, 1
      %vm1991 = vcmp.eq.s32.totalorder %v1967, 1
      %vm1992 = vcmp.eq.s32.totalorder %v1968, 1
      %v1993 = vsel %vm1969, %v1913, 0.0
      %v1994 = vsel %vm1970, %v1914, 0.0
      %v1995 = vsel %vm1971, %v1915, 0.0
      %v1996 = vsel %vm1972, %v1916, 0.0
      %v1997 = vsel %vm1973, %v1917, 0.0
      %v1998 = vsel %vm1974, %v1918, 0.0
      %v1999 = vsel %vm1975, %v1919, 0.0
      %v2000 = vsel %vm1976, %v1920, 0.0
      %v2001 = vsel %vm1977, %v1921, 0.0
      %v2002 = vsel %vm1978, %v1922, 0.0
      %v2003 = vsel %vm1979, %v1923, 0.0
      %v2004 = vsel %vm1980, %v1924, 0.0
      %v2005 = vsel %vm1981, %v1925, 0.0
      %v2006 = vsel %vm1982, %v1926, 0.0
      %v2007 = vsel %vm1983, %v1927, 0.0
      %v2008 = vsel %vm1984, %v1928, 0.0
      %v2009 = vsel %vm1985, %v1929, 0.0
      %v2010 = vsel %vm1986, %v1930, 0.0
      %v2011 = vsel %vm1987, %v1931, 0.0
      %v2012 = vsel %vm1988, %v1932, 0.0
      %v2013 = vsel %vm1989, %v1933, 0.0
      %v2014 = vsel %vm1990, %v1934, 0.0
      %v2015 = vsel %vm1991, %v1935, 0.0
      %v2016 = vsel %vm1992, %v1936, 0.0
      %v2017 = vsel %vm863, 1, 0
      %v2018 = vsel %vm864, 1, 0
      %v2019 = vsel %vm865, 1, 0
      %v2020 = vsel %vm866, 1, 0
      %v2021 = vsel %vm867, 1, 0
      %v2022 = vsel %vm868, 1, 0
      %v2023 = vsel %vm869, 1, 0
      %v2024 = vsel %vm870, 1, 0
      %v2025 = vsel %vm871, 1, 0
      %v2026 = vsel %vm872, 1, 0
      %v2027 = vsel %vm873, 1, 0
      %v2028 = vsel %vm874, 1, 0
      %v2029 = vsel %vm875, 1, 0
      %v2030 = vsel %vm876, 1, 0
      %v2031 = vsel %vm877, 1, 0
      %v2032 = vsel %vm878, 1, 0
      %v2033 = vsel %vm879, 1, 0
      %v2034 = vsel %vm880, 1, 0
      %v2035 = vsel %vm881, 1, 0
      %v2036 = vsel %vm882, 1, 0
      %v2037 = vsel %vm883, 1, 0
      %v2038 = vsel %vm884, 1, 0
      %v2039 = vsel %vm885, 1, 0
      %v2040 = vsel %vm886, 1, 0
      %vm2041 = vcmp.eq.s32.totalorder %v2017, 1
      %vm2042 = vcmp.eq.s32.totalorder %v2018, 1
      %vm2043 = vcmp.eq.s32.totalorder %v2019, 1
      %vm2044 = vcmp.eq.s32.totalorder %v2020, 1
      %vm2045 = vcmp.eq.s32.totalorder %v2021, 1
      %vm2046 = vcmp.eq.s32.totalorder %v2022, 1
      %vm2047 = vcmp.eq.s32.totalorder %v2023, 1
      %vm2048 = vcmp.eq.s32.totalorder %v2024, 1
      %vm2049 = vcmp.eq.s32.totalorder %v2025, 1
      %vm2050 = vcmp.eq.s32.totalorder %v2026, 1
      %vm2051 = vcmp.eq.s32.totalorder %v2027, 1
      %vm2052 = vcmp.eq.s32.totalorder %v2028, 1
      %vm2053 = vcmp.eq.s32.totalorder %v2029, 1
      %vm2054 = vcmp.eq.s32.totalorder %v2030, 1
      %vm2055 = vcmp.eq.s32.totalorder %v2031, 1
      %vm2056 = vcmp.eq.s32.totalorder %v2032, 1
      %vm2057 = vcmp.eq.s32.totalorder %v2033, 1
      %vm2058 = vcmp.eq.s32.totalorder %v2034, 1
      %vm2059 = vcmp.eq.s32.totalorder %v2035, 1
      %vm2060 = vcmp.eq.s32.totalorder %v2036, 1
      %vm2061 = vcmp.eq.s32.totalorder %v2037, 1
      %vm2062 = vcmp.eq.s32.totalorder %v2038, 1
      %vm2063 = vcmp.eq.s32.totalorder %v2039, 1
      %vm2064 = vcmp.eq.s32.totalorder %v2040, 1
      %v2065 = vsel %vm2041, %v1921, 0.0
      %v2066 = vsel %vm2042, %v1922, 0.0
      %v2067 = vsel %vm2043, %v1923, 0.0
      %v2068 = vsel %vm2044, %v1924, 0.0
      %v2069 = vsel %vm2045, %v1925, 0.0
      %v2070 = vsel %vm2046, %v1926, 0.0
      %v2071 = vsel %vm2047, %v1927, 0.0
      %v2072 = vsel %vm2048, %v1928, 0.0
      %v2073 = vsel %vm2049, %v1929, 0.0
      %v2074 = vsel %vm2050, %v1930, 0.0
      %v2075 = vsel %vm2051, %v1931, 0.0
      %v2076 = vsel %vm2052, %v1932, 0.0
      %v2077 = vsel %vm2053, %v1933, 0.0
      %v2078 = vsel %vm2054, %v1934, 0.0
      %v2079 = vsel %vm2055, %v1935, 0.0
      %v2080 = vsel %vm2056, %v1936, 0.0
      %v2081 = vsel %vm2057, %v1937, 0.0
      %v2082 = vsel %vm2058, %v1938, 0.0
      %v2083 = vsel %vm2059, %v1939, 0.0
      %v2084 = vsel %vm2060, %v1940, 0.0
      %v2085 = vsel %vm2061, %v1941, 0.0
      %v2086 = vsel %vm2062, %v1942, 0.0
      %v2087 = vsel %vm2063, %v1943, 0.0
      %v2088 = vsel %vm2064, %v1944, 0.0
      %2113 = vrot.lane.b32.xlu0 %v1917, 124
      %v2114 = vpop.permute.xlu0 %2113
      %2115 = vrot.lane.b32.xlu0 %v1918, 124
      %v2116 = vpop.permute.xlu0 %2115
      %2117 = vrot.lane.b32.xlu0 %v1919, 124
      %v2118 = vpop.permute.xlu0 %2117
      %2119 = vrot.lane.b32.xlu0 %v1920, 124
      %v2120 = vpop.permute.xlu0 %2119
      %2121 = vrot.lane.b32.xlu0 %v1921, 124
      %v2122 = vpop.permute.xlu0 %2121
      %2123 = vrot.lane.b32.xlu0 %v1922, 124
      %v2124 = vpop.permute.xlu0 %2123
      %2125 = vrot.lane.b32.xlu0 %v1923, 124
      %v2126 = vpop.permute.xlu0 %2125
      %2127 = vrot.lane.b32.xlu0 %v1924, 124
      %v2128 = vpop.permute.xlu0 %2127
      %2129 = vrot.lane.b32.xlu0 %v1925, 124
      %v2130 = vpop.permute.xlu0 %2129
      %2131 = vrot.lane.b32.xlu0 %v1926, 124
      %v2132 = vpop.permute.xlu0 %2131
      %2133 = vrot.lane.b32.xlu0 %v1927, 124
      %v2134 = vpop.permute.xlu0 %2133
      %2135 = vrot.lane.b32.xlu0 %v1928, 124
      %v2136 = vpop.permute.xlu0 %2135
      %2137 = vrot.lane.b32.xlu0 %v1929, 124
      %v2138 = vpop.permute.xlu0 %2137
      %2139 = vrot.lane.b32.xlu0 %v1930, 124
      %v2140 = vpop.permute.xlu0 %2139
      %2141 = vrot.lane.b32.xlu0 %v1931, 124
      %v2142 = vpop.permute.xlu0 %2141
      %2143 = vrot.lane.b32.xlu0 %v1932, 124
      %v2144 = vpop.permute.xlu0 %2143
      %2145 = vrot.lane.b32.xlu0 %v1933, 124
      %v2146 = vpop.permute.xlu0 %2145
      %2147 = vrot.lane.b32.xlu0 %v1934, 124
      %v2148 = vpop.permute.xlu0 %2147
      %2149 = vrot.lane.b32.xlu0 %v1935, 124
      %v2150 = vpop.permute.xlu0 %2149
      %2151 = vrot.lane.b32.xlu0 %v1936, 124
      %v2152 = vpop.permute.xlu0 %2151
      %2153 = vrot.lane.b32.xlu0 %v1937, 124
      %v2154 = vpop.permute.xlu0 %2153
      %2155 = vrot.lane.b32.xlu0 %v1938, 124
      %v2156 = vpop.permute.xlu0 %2155
      %2157 = vrot.lane.b32.xlu0 %v1939, 124
      %v2158 = vpop.permute.xlu0 %2157
      %2159 = vrot.lane.b32.xlu0 %v1940, 124
      %v2160 = vpop.permute.xlu0 %2159
      %v2185 = vadd.f32 %v1993, %v2114
      %v2186 = vadd.f32 %v1994, %v2116
      %v2187 = vadd.f32 %v1995, %v2118
      %v2188 = vadd.f32 %v1996, %v2120
      %v2189 = vadd.f32 %v1997, %v2122
      %v2190 = vadd.f32 %v1998, %v2124
      %v2191 = vadd.f32 %v1999, %v2126
      %v2192 = vadd.f32 %v2000, %v2128
      %v2193 = vadd.f32 %v2001, %v2130
      %v2194 = vadd.f32 %v2002, %v2132
      %v2195 = vadd.f32 %v2003, %v2134
      %v2196 = vadd.f32 %v2004, %v2136
      %v2197 = vadd.f32 %v2005, %v2138
      %v2198 = vadd.f32 %v2006, %v2140
      %v2199 = vadd.f32 %v2007, %v2142
      %v2200 = vadd.f32 %v2008, %v2144
      %v2201 = vadd.f32 %v2009, %v2146
      %v2202 = vadd.f32 %v2010, %v2148
      %v2203 = vadd.f32 %v2011, %v2150
      %v2204 = vadd.f32 %v2012, %v2152
      %v2205 = vadd.f32 %v2013, %v2154
      %v2206 = vadd.f32 %v2014, %v2156
      %v2207 = vadd.f32 %v2015, %v2158
      %v2208 = vadd.f32 %v2016, %v2160
      %2233 = vrot.lane.b32.xlu0 %v2065, 120
      %v2234 = vpop.permute.xlu0 %2233
      %2235 = vrot.lane.b32.xlu0 %v2066, 120
      %v2236 = vpop.permute.xlu0 %2235
      %2237 = vrot.lane.b32.xlu0 %v2067, 120
      %v2238 = vpop.permute.xlu0 %2237
      %2239 = vrot.lane.b32.xlu0 %v2068, 120
      %v2240 = vpop.permute.xlu0 %2239
      %2241 = vrot.lane.b32.xlu0 %v2069, 120
      %v2242 = vpop.permute.xlu0 %2241
      %2243 = vrot.lane.b32.xlu0 %v2070, 120
      %v2244 = vpop.permute.xlu0 %2243
      %2245 = vrot.lane.b32.xlu0 %v2071, 120
      %v2246 = vpop.permute.xlu0 %2245
      %2247 = vrot.lane.b32.xlu0 %v2072, 120
      %v2248 = vpop.permute.xlu0 %2247
      %2249 = vrot.lane.b32.xlu0 %v2073, 120
      %v2250 = vpop.permute.xlu0 %2249
      %2251 = vrot.lane.b32.xlu0 %v2074, 120
      %v2252 = vpop.permute.xlu0 %2251
      %2253 = vrot.lane.b32.xlu0 %v2075, 120
      %v2254 = vpop.permute.xlu0 %2253
      %2255 = vrot.lane.b32.xlu0 %v2076, 120
      %v2256 = vpop.permute.xlu0 %2255
      %2257 = vrot.lane.b32.xlu0 %v2077, 120
      %v2258 = vpop.permute.xlu0 %2257
      %2259 = vrot.lane.b32.xlu0 %v2078, 120
      %v2260 = vpop.permute.xlu0 %2259
      %2261 = vrot.lane.b32.xlu0 %v2079, 120
      %v2262 = vpop.permute.xlu0 %2261
      %2263 = vrot.lane.b32.xlu0 %v2080, 120
      %v2264 = vpop.permute.xlu0 %2263
      %2265 = vrot.lane.b32.xlu0 %v2081, 120
      %v2266 = vpop.permute.xlu0 %2265
      %2267 = vrot.lane.b32.xlu0 %v2082, 120
      %v2268 = vpop.permute.xlu0 %2267
      %2269 = vrot.lane.b32.xlu0 %v2083, 120
      %v2270 = vpop.permute.xlu0 %2269
      %2271 = vrot.lane.b32.xlu0 %v2084, 120
      %v2272 = vpop.permute.xlu0 %2271
      %2273 = vrot.lane.b32.xlu0 %v2085, 120
      %v2274 = vpop.permute.xlu0 %2273
      %2275 = vrot.lane.b32.xlu0 %v2086, 120
      %v2276 = vpop.permute.xlu0 %2275
      %2277 = vrot.lane.b32.xlu0 %v2087, 120
      %v2278 = vpop.permute.xlu0 %2277
      %2279 = vrot.lane.b32.xlu0 %v2088, 120
      %v2280 = vpop.permute.xlu0 %2279
      %v2305 = vadd.f32 %v2185, %v2234
      %v2306 = vadd.f32 %v2186, %v2236
      %v2307 = vadd.f32 %v2187, %v2238
      %v2308 = vadd.f32 %v2188, %v2240
      %v2309 = vadd.f32 %v2189, %v2242
      %v2310 = vadd.f32 %v2190, %v2244
      %v2311 = vadd.f32 %v2191, %v2246
      %v2312 = vadd.f32 %v2192, %v2248
      %v2313 = vadd.f32 %v2193, %v2250
      %v2314 = vadd.f32 %v2194, %v2252
      %v2315 = vadd.f32 %v2195, %v2254
      %v2316 = vadd.f32 %v2196, %v2256
      %v2317 = vadd.f32 %v2197, %v2258
      %v2318 = vadd.f32 %v2198, %v2260
      %v2319 = vadd.f32 %v2199, %v2262
      %v2320 = vadd.f32 %v2200, %v2264
      %v2321 = vadd.f32 %v2201, %v2266
      %v2322 = vadd.f32 %v2202, %v2268
      %v2323 = vadd.f32 %v2203, %v2270
      %v2324 = vadd.f32 %v2204, %v2272
      %v2325 = vadd.f32 %v2205, %v2274
      %v2326 = vadd.f32 %v2206, %v2276
      %v2327 = vadd.f32 %v2207, %v2278
      %v2328 = vadd.f32 %v2208, %v2280
      %v2329 = vld [vmem:[%s6] sm:$0x1]
      %v2331 = vperm.slane %v2329, 0
      %v2333 = vadd.f32 %v2305, %v2331
      %v2334 = vadd.f32 %v2306, %v2331
      %v2335 = vadd.f32 %v2307, %v2331
      %v2336 = vadd.f32 %v2308, %v2331
      %v2337 = vadd.f32 %v2309, %v2331
      %v2338 = vadd.f32 %v2310, %v2331
      %v2339 = vadd.f32 %v2311, %v2331
      %v2340 = vadd.f32 %v2312, %v2331
      %v2341 = vadd.f32 %v2313, %v2331
      %v2342 = vadd.f32 %v2314, %v2331
      %v2343 = vadd.f32 %v2315, %v2331
      %v2344 = vadd.f32 %v2316, %v2331
      %v2345 = vadd.f32 %v2317, %v2331
      %v2346 = vadd.f32 %v2318, %v2331
      %v2347 = vadd.f32 %v2319, %v2331
      %v2348 = vadd.f32 %v2320, %v2331
      %v2349 = vadd.f32 %v2321, %v2331
      %v2350 = vadd.f32 %v2322, %v2331
      %v2351 = vadd.f32 %v2323, %v2331
      %v2352 = vadd.f32 %v2324, %v2331
      %v2353 = vadd.f32 %v2325, %v2331
      %v2354 = vadd.f32 %v2326, %v2331
      %v2355 = vadd.f32 %v2327, %v2331
      %v2356 = vadd.f32 %v2328, %v2331
      %v2357 = vxor.u32 %v2333, 2147483648
      %v2358 = vxor.u32 %v2334, 2147483648
      %v2359 = vxor.u32 %v2335, 2147483648
      %v2360 = vxor.u32 %v2336, 2147483648
      %v2361 = vxor.u32 %v2337, 2147483648
      %v2362 = vxor.u32 %v2338, 2147483648
      %v2363 = vxor.u32 %v2339, 2147483648
      %v2364 = vxor.u32 %v2340, 2147483648
      %v2365 = vxor.u32 %v2341, 2147483648
      %v2366 = vxor.u32 %v2342, 2147483648
      %v2367 = vxor.u32 %v2343, 2147483648
      %v2368 = vxor.u32 %v2344, 2147483648
      %v2369 = vxor.u32 %v2345, 2147483648
      %v2370 = vxor.u32 %v2346, 2147483648
      %v2371 = vxor.u32 %v2347, 2147483648
      %v2372 = vxor.u32 %v2348, 2147483648
      %v2373 = vxor.u32 %v2349, 2147483648
      %v2374 = vxor.u32 %v2350, 2147483648
      %v2375 = vxor.u32 %v2351, 2147483648
      %v2376 = vxor.u32 %v2352, 2147483648
      %v2377 = vxor.u32 %v2353, 2147483648
      %v2378 = vxor.u32 %v2354, 2147483648
      %v2379 = vxor.u32 %v2355, 2147483648
      %v2380 = vxor.u32 %v2356, 2147483648
      %v2381 = vmul.f32 %v2357, 1.442695
      %v2382 = vpow.pop %v2381
      %v2383 = vmul.f32 %v2358, 1.442695
      %v2384 = vpow.pop %v2383
      %v2385 = vmul.f32 %v2359, 1.442695
      %v2386 = vpow.pop %v2385
      %v2387 = vmul.f32 %v2360, 1.442695
      %v2388 = vpow.pop %v2387
      %v2389 = vmul.f32 %v2361, 1.442695
      %v2390 = vpow.pop %v2389
      %v2391 = vmul.f32 %v2362, 1.442695
      %v2392 = vpow.pop %v2391
      %v2393 = vmul.f32 %v2363, 1.442695
      %v2394 = vpow.pop %v2393
      %v2395 = vmul.f32 %v2364, 1.442695
      %v2396 = vpow.pop %v2395
      %v2397 = vmul.f32 %v2365, 1.442695
      %v2398 = vpow.pop %v2397
      %v2399 = vmul.f32 %v2366, 1.442695
      %v2400 = vpow.pop %v2399
      %v2401 = vmul.f32 %v2367, 1.442695
      %v2402 = vpow.pop %v2401
      %v2403 = vmul.f32 %v2368, 1.442695
      %v2404 = vpow.pop %v2403
      %v2405 = vmul.f32 %v2369, 1.442695
      %v2406 = vpow.pop %v2405
      %v2407 = vmul.f32 %v2370, 1.442695
      %v2408 = vpow.pop %v2407
      %v2409 = vmul.f32 %v2371, 1.442695
      %v2410 = vpow.pop %v2409
      %v2411 = vmul.f32 %v2372, 1.442695
      %v2412 = vpow.pop %v2411
      %v2413 = vmul.f32 %v2373, 1.442695
      %v2414 = vpow.pop %v2413
      %v2415 = vmul.f32 %v2374, 1.442695
      %v2416 = vpow.pop %v2415
      %v2417 = vmul.f32 %v2375, 1.442695
      %v2418 = vpow.pop %v2417
      %v2419 = vmul.f32 %v2376, 1.442695
      %v2420 = vpow.pop %v2419
      %v2421 = vmul.f32 %v2377, 1.442695
      %v2422 = vpow.pop %v2421
      %v2423 = vmul.f32 %v2378, 1.442695
      %v2424 = vpow.pop %v2423
      %v2425 = vmul.f32 %v2379, 1.442695
      %v2426 = vpow.pop %v2425
      %v2427 = vmul.f32 %v2380, 1.442695
      %v2428 = vpow.pop %v2427
      %v2429 = vadd.f32 %v2382, 1.0
      %v2430 = vadd.f32 %v2384, 1.0
      %v2431 = vadd.f32 %v2386, 1.0
      %v2432 = vadd.f32 %v2388, 1.0
      %v2433 = vadd.f32 %v2390, 1.0
      %v2434 = vadd.f32 %v2392, 1.0
      %v2435 = vadd.f32 %v2394, 1.0
      %v2436 = vadd.f32 %v2396, 1.0
      %v2437 = vadd.f32 %v2398, 1.0
      %v2438 = vadd.f32 %v2400, 1.0
      %v2439 = vadd.f32 %v2402, 1.0
      %v2440 = vadd.f32 %v2404, 1.0
      %v2441 = vadd.f32 %v2406, 1.0
      %v2442 = vadd.f32 %v2408, 1.0
      %v2443 = vadd.f32 %v2410, 1.0
      %v2444 = vadd.f32 %v2412, 1.0
      %v2445 = vadd.f32 %v2414, 1.0
      %v2446 = vadd.f32 %v2416, 1.0
      %v2447 = vadd.f32 %v2418, 1.0
      %v2448 = vadd.f32 %v2420, 1.0
      %v2449 = vadd.f32 %v2422, 1.0
      %v2450 = vadd.f32 %v2424, 1.0
      %v2451 = vadd.f32 %v2426, 1.0
      %v2452 = vadd.f32 %v2428, 1.0
      %v2453 = vrcp.pop %v2429
      %v2454 = vmul.f32 %v2429, %v2453
      %v2455 = vsub.f32 1.0, %v2454
      %v2456 = vmul.f32 %v2453, %v2455
      %v2457 = vadd.f32 %v2453, %v2456
      %vm2458 = vweird.f32 %v2429
      %vm2459 = vweird.f32 %v2453
      %vm2460 = vmor %vm2458, %vm2459
      %v2461 = vsel %vm2460, %v2453, %v2457
      %v2462 = vand.u32 2147483647, %v2429
      %vm2463 = vcmp.eq.f32.partialorder %v2462, 8.507059e+37
      %v2464 = vand.u32 %v2429, 2147483648
      %v2465 = vor.u32 1.1754944e-38, %v2464
      %v2466 = vsel %vm2463, %v2465, %v2461
      %v2467 = vmul.f32 1.0, %v2466
      %v2468 = vrcp.pop %v2430
      %v2469 = vmul.f32 %v2430, %v2468
      %v2470 = vsub.f32 1.0, %v2469
      %v2471 = vmul.f32 %v2468, %v2470
      %v2472 = vadd.f32 %v2468, %v2471
      %vm2473 = vweird.f32 %v2430
      %vm2474 = vweird.f32 %v2468
      %vm2475 = vmor %vm2473, %vm2474
      %v2476 = vsel %vm2475, %v2468, %v2472
      %v2477 = vand.u32 2147483647, %v2430
      %vm2478 = vcmp.eq.f32.partialorder %v2477, 8.507059e+37
      %v2479 = vand.u32 %v2430, 2147483648
      %v2480 = vor.u32 1.1754944e-38, %v2479
      %v2481 = vsel %vm2478, %v2480, %v2476
      %v2482 = vmul.f32 1.0, %v2481
      %v2483 = vrcp.pop %v2431
      %v2484 = vmul.f32 %v2431, %v2483
      %v2485 = vsub.f32 1.0, %v2484
      %v2486 = vmul.f32 %v2483, %v2485
      %v2487 = vadd.f32 %v2483, %v2486
      %vm2488 = vweird.f32 %v2431
      %vm2489 = vweird.f32 %v2483
      %vm2490 = vmor %vm2488, %vm2489
      %v2491 = vsel %vm2490, %v2483, %v2487
      %v2492 = vand.u32 2147483647, %v2431
      %vm2493 = vcmp.eq.f32.partialorder %v2492, 8.507059e+37
      %v2494 = vand.u32 %v2431, 2147483648
      %v2495 = vor.u32 1.1754944e-38, %v2494
      %v2496 = vsel %vm2493, %v2495, %v2491
      %v2497 = vmul.f32 1.0, %v2496
      %v2498 = vrcp.pop %v2432
      %v2499 = vmul.f32 %v2432, %v2498
      %v2500 = vsub.f32 1.0, %v2499
      %v2501 = vmul.f32 %v2498, %v2500
      %v2502 = vadd.f32 %v2498, %v2501
      %vm2503 = vweird.f32 %v2432
      %vm2504 = vweird.f32 %v2498
      %vm2505 = vmor %vm2503, %vm2504
      %v2506 = vsel %vm2505, %v2498, %v2502
      %v2507 = vand.u32 2147483647, %v2432
      %vm2508 = vcmp.eq.f32.partialorder %v2507, 8.507059e+37
      %v2509 = vand.u32 %v2432, 2147483648
      %v2510 = vor.u32 1.1754944e-38, %v2509
      %v2511 = vsel %vm2508, %v2510, %v2506
      %v2512 = vmul.f32 1.0, %v2511
      %v2513 = vrcp.pop %v2433
      %v2514 = vmul.f32 %v2433, %v2513
      %v2515 = vsub.f32 1.0, %v2514
      %v2516 = vmul.f32 %v2513, %v2515
      %v2517 = vadd.f32 %v2513, %v2516
      %vm2518 = vweird.f32 %v2433
      %vm2519 = vweird.f32 %v2513
      %vm2520 = vmor %vm2518, %vm2519
      %v2521 = vsel %vm2520, %v2513, %v2517
      %v2522 = vand.u32 2147483647, %v2433
      %vm2523 = vcmp.eq.f32.partialorder %v2522, 8.507059e+37
      %v2524 = vand.u32 %v2433, 2147483648
      %v2525 = vor.u32 1.1754944e-38, %v2524
      %v2526 = vsel %vm2523, %v2525, %v2521
      %v2527 = vmul.f32 1.0, %v2526
      %v2528 = vrcp.pop %v2434
      %v2529 = vmul.f32 %v2434, %v2528
      %v2530 = vsub.f32 1.0, %v2529
      %v2531 = vmul.f32 %v2528, %v2530
      %v2532 = vadd.f32 %v2528, %v2531
      %vm2533 = vweird.f32 %v2434
      %vm2534 = vweird.f32 %v2528
      %vm2535 = vmor %vm2533, %vm2534
      %v2536 = vsel %vm2535, %v2528, %v2532
      %v2537 = vand.u32 2147483647, %v2434
      %vm2538 = vcmp.eq.f32.partialorder %v2537, 8.507059e+37
      %v2539 = vand.u32 %v2434, 2147483648
      %v2540 = vor.u32 1.1754944e-38, %v2539
      %v2541 = vsel %vm2538, %v2540, %v2536
      %v2542 = vmul.f32 1.0, %v2541
      %v2543 = vrcp.pop %v2435
      %v2544 = vmul.f32 %v2435, %v2543
      %v2545 = vsub.f32 1.0, %v2544
      %v2546 = vmul.f32 %v2543, %v2545
      %v2547 = vadd.f32 %v2543, %v2546
      %vm2548 = vweird.f32 %v2435
      %vm2549 = vweird.f32 %v2543
      %vm2550 = vmor %vm2548, %vm2549
      %v2551 = vsel %vm2550, %v2543, %v2547
      %v2552 = vand.u32 2147483647, %v2435
      %vm2553 = vcmp.eq.f32.partialorder %v2552, 8.507059e+37
      %v2554 = vand.u32 %v2435, 2147483648
      %v2555 = vor.u32 1.1754944e-38, %v2554
      %v2556 = vsel %vm2553, %v2555, %v2551
      %v2557 = vmul.f32 1.0, %v2556
      %v2558 = vrcp.pop %v2436
      %v2559 = vmul.f32 %v2436, %v2558
      %v2560 = vsub.f32 1.0, %v2559
      %v2561 = vmul.f32 %v2558, %v2560
      %v2562 = vadd.f32 %v2558, %v2561
      %vm2563 = vweird.f32 %v2436
      %vm2564 = vweird.f32 %v2558
      %vm2565 = vmor %vm2563, %vm2564
      %v2566 = vsel %vm2565, %v2558, %v2562
      %v2567 = vand.u32 2147483647, %v2436
      %vm2568 = vcmp.eq.f32.partialorder %v2567, 8.507059e+37
      %v2569 = vand.u32 %v2436, 2147483648
      %v2570 = vor.u32 1.1754944e-38, %v2569
      %v2571 = vsel %vm2568, %v2570, %v2566
      %v2572 = vmul.f32 1.0, %v2571
      %v2573 = vrcp.pop %v2437
      %v2574 = vmul.f32 %v2437, %v2573
      %v2575 = vsub.f32 1.0, %v2574
      %v2576 = vmul.f32 %v2573, %v2575
      %v2577 = vadd.f32 %v2573, %v2576
      %vm2578 = vweird.f32 %v2437
      %vm2579 = vweird.f32 %v2573
      %vm2580 = vmor %vm2578, %vm2579
      %v2581 = vsel %vm2580, %v2573, %v2577
      %v2582 = vand.u32 2147483647, %v2437
      %vm2583 = vcmp.eq.f32.partialorder %v2582, 8.507059e+37
      %v2584 = vand.u32 %v2437, 2147483648
      %v2585 = vor.u32 1.1754944e-38, %v2584
      %v2586 = vsel %vm2583, %v2585, %v2581
      %v2587 = vmul.f32 1.0, %v2586
      %v2588 = vrcp.pop %v2438
      %v2589 = vmul.f32 %v2438, %v2588
      %v2590 = vsub.f32 1.0, %v2589
      %v2591 = vmul.f32 %v2588, %v2590
      %v2592 = vadd.f32 %v2588, %v2591
      %vm2593 = vweird.f32 %v2438
      %vm2594 = vweird.f32 %v2588
      %vm2595 = vmor %vm2593, %vm2594
      %v2596 = vsel %vm2595, %v2588, %v2592
      %v2597 = vand.u32 2147483647, %v2438
      %vm2598 = vcmp.eq.f32.partialorder %v2597, 8.507059e+37
      %v2599 = vand.u32 %v2438, 2147483648
      %v2600 = vor.u32 1.1754944e-38, %v2599
      %v2601 = vsel %vm2598, %v2600, %v2596
      %v2602 = vmul.f32 1.0, %v2601
      %v2603 = vrcp.pop %v2439
      %v2604 = vmul.f32 %v2439, %v2603
      %v2605 = vsub.f32 1.0, %v2604
      %v2606 = vmul.f32 %v2603, %v2605
      %v2607 = vadd.f32 %v2603, %v2606
      %vm2608 = vweird.f32 %v2439
      %vm2609 = vweird.f32 %v2603
      %vm2610 = vmor %vm2608, %vm2609
      %v2611 = vsel %vm2610, %v2603, %v2607
      %v2612 = vand.u32 2147483647, %v2439
      %vm2613 = vcmp.eq.f32.partialorder %v2612, 8.507059e+37
      %v2614 = vand.u32 %v2439, 2147483648
      %v2615 = vor.u32 1.1754944e-38, %v2614
      %v2616 = vsel %vm2613, %v2615, %v2611
      %v2617 = vmul.f32 1.0, %v2616
      %v2618 = vrcp.pop %v2440
      %v2619 = vmul.f32 %v2440, %v2618
      %v2620 = vsub.f32 1.0, %v2619
      %v2621 = vmul.f32 %v2618, %v2620
      %v2622 = vadd.f32 %v2618, %v2621
      %vm2623 = vweird.f32 %v2440
      %vm2624 = vweird.f32 %v2618
      %vm2625 = vmor %vm2623, %vm2624
      %v2626 = vsel %vm2625, %v2618, %v2622
      %v2627 = vand.u32 2147483647, %v2440
      %vm2628 = vcmp.eq.f32.partialorder %v2627, 8.507059e+37
      %v2629 = vand.u32 %v2440, 2147483648
      %v2630 = vor.u32 1.1754944e-38, %v2629
      %v2631 = vsel %vm2628, %v2630, %v2626
      %v2632 = vmul.f32 1.0, %v2631
      %v2633 = vrcp.pop %v2441
      %v2634 = vmul.f32 %v2441, %v2633
      %v2635 = vsub.f32 1.0, %v2634
      %v2636 = vmul.f32 %v2633, %v2635
      %v2637 = vadd.f32 %v2633, %v2636
      %vm2638 = vweird.f32 %v2441
      %vm2639 = vweird.f32 %v2633
      %vm2640 = vmor %vm2638, %vm2639
      %v2641 = vsel %vm2640, %v2633, %v2637
      %v2642 = vand.u32 2147483647, %v2441
      %vm2643 = vcmp.eq.f32.partialorder %v2642, 8.507059e+37
      %v2644 = vand.u32 %v2441, 2147483648
      %v2645 = vor.u32 1.1754944e-38, %v2644
      %v2646 = vsel %vm2643, %v2645, %v2641
      %v2647 = vmul.f32 1.0, %v2646
      %v2648 = vrcp.pop %v2442
      %v2649 = vmul.f32 %v2442, %v2648
      %v2650 = vsub.f32 1.0, %v2649
      %v2651 = vmul.f32 %v2648, %v2650
      %v2652 = vadd.f32 %v2648, %v2651
      %vm2653 = vweird.f32 %v2442
      %vm2654 = vweird.f32 %v2648
      %vm2655 = vmor %vm2653, %vm2654
      %v2656 = vsel %vm2655, %v2648, %v2652
      %v2657 = vand.u32 2147483647, %v2442
      %vm2658 = vcmp.eq.f32.partialorder %v2657, 8.507059e+37
      %v2659 = vand.u32 %v2442, 2147483648
      %v2660 = vor.u32 1.1754944e-38, %v2659
      %v2661 = vsel %vm2658, %v2660, %v2656
      %v2662 = vmul.f32 1.0, %v2661
      %v2663 = vrcp.pop %v2443
      %v2664 = vmul.f32 %v2443, %v2663
      %v2665 = vsub.f32 1.0, %v2664
      %v2666 = vmul.f32 %v2663, %v2665
      %v2667 = vadd.f32 %v2663, %v2666
      %vm2668 = vweird.f32 %v2443
      %vm2669 = vweird.f32 %v2663
      %vm2670 = vmor %vm2668, %vm2669
      %v2671 = vsel %vm2670, %v2663, %v2667
      %v2672 = vand.u32 2147483647, %v2443
      %vm2673 = vcmp.eq.f32.partialorder %v2672, 8.507059e+37
      %v2674 = vand.u32 %v2443, 2147483648
      %v2675 = vor.u32 1.1754944e-38, %v2674
      %v2676 = vsel %vm2673, %v2675, %v2671
      %v2677 = vmul.f32 1.0, %v2676
      %v2678 = vrcp.pop %v2444
      %v2679 = vmul.f32 %v2444, %v2678
      %v2680 = vsub.f32 1.0, %v2679
      %v2681 = vmul.f32 %v2678, %v2680
      %v2682 = vadd.f32 %v2678, %v2681
      %vm2683 = vweird.f32 %v2444
      %vm2684 = vweird.f32 %v2678
      %vm2685 = vmor %vm2683, %vm2684
      %v2686 = vsel %vm2685, %v2678, %v2682
      %v2687 = vand.u32 2147483647, %v2444
      %vm2688 = vcmp.eq.f32.partialorder %v2687, 8.507059e+37
      %v2689 = vand.u32 %v2444, 2147483648
      %v2690 = vor.u32 1.1754944e-38, %v2689
      %v2691 = vsel %vm2688, %v2690, %v2686
      %v2692 = vmul.f32 1.0, %v2691
      %v2693 = vrcp.pop %v2445
      %v2694 = vmul.f32 %v2445, %v2693
      %v2695 = vsub.f32 1.0, %v2694
      %v2696 = vmul.f32 %v2693, %v2695
      %v2697 = vadd.f32 %v2693, %v2696
      %vm2698 = vweird.f32 %v2445
      %vm2699 = vweird.f32 %v2693
      %vm2700 = vmor %vm2698, %vm2699
      %v2701 = vsel %vm2700, %v2693, %v2697
      %v2702 = vand.u32 2147483647, %v2445
      %vm2703 = vcmp.eq.f32.partialorder %v2702, 8.507059e+37
      %v2704 = vand.u32 %v2445, 2147483648
      %v2705 = vor.u32 1.1754944e-38, %v2704
      %v2706 = vsel %vm2703, %v2705, %v2701
      %v2707 = vmul.f32 1.0, %v2706
      %v2708 = vrcp.pop %v2446
      %v2709 = vmul.f32 %v2446, %v2708
      %v2710 = vsub.f32 1.0, %v2709
      %v2711 = vmul.f32 %v2708, %v2710
      %v2712 = vadd.f32 %v2708, %v2711
      %vm2713 = vweird.f32 %v2446
      %vm2714 = vweird.f32 %v2708
      %vm2715 = vmor %vm2713, %vm2714
      %v2716 = vsel %vm2715, %v2708, %v2712
      %v2717 = vand.u32 2147483647, %v2446
      %vm2718 = vcmp.eq.f32.partialorder %v2717, 8.507059e+37
      %v2719 = vand.u32 %v2446, 2147483648
      %v2720 = vor.u32 1.1754944e-38, %v2719
      %v2721 = vsel %vm2718, %v2720, %v2716
      %v2722 = vmul.f32 1.0, %v2721
      %v2723 = vrcp.pop %v2447
      %v2724 = vmul.f32 %v2447, %v2723
      %v2725 = vsub.f32 1.0, %v2724
      %v2726 = vmul.f32 %v2723, %v2725
      %v2727 = vadd.f32 %v2723, %v2726
      %vm2728 = vweird.f32 %v2447
      %vm2729 = vweird.f32 %v2723
      %vm2730 = vmor %vm2728, %vm2729
      %v2731 = vsel %vm2730, %v2723, %v2727
      %v2732 = vand.u32 2147483647, %v2447
      %vm2733 = vcmp.eq.f32.partialorder %v2732, 8.507059e+37
      %v2734 = vand.u32 %v2447, 2147483648
      %v2735 = vor.u32 1.1754944e-38, %v2734
      %v2736 = vsel %vm2733, %v2735, %v2731
      %v2737 = vmul.f32 1.0, %v2736
      %v2738 = vrcp.pop %v2448
      %v2739 = vmul.f32 %v2448, %v2738
      %v2740 = vsub.f32 1.0, %v2739
      %v2741 = vmul.f32 %v2738, %v2740
      %v2742 = vadd.f32 %v2738, %v2741
      %vm2743 = vweird.f32 %v2448
      %vm2744 = vweird.f32 %v2738
      %vm2745 = vmor %vm2743, %vm2744
      %v2746 = vsel %vm2745, %v2738, %v2742
      %v2747 = vand.u32 2147483647, %v2448
      %vm2748 = vcmp.eq.f32.partialorder %v2747, 8.507059e+37
      %v2749 = vand.u32 %v2448, 2147483648
      %v2750 = vor.u32 1.1754944e-38, %v2749
      %v2751 = vsel %vm2748, %v2750, %v2746
      %v2752 = vmul.f32 1.0, %v2751
      %v2753 = vrcp.pop %v2449
      %v2754 = vmul.f32 %v2449, %v2753
      %v2755 = vsub.f32 1.0, %v2754
      %v2756 = vmul.f32 %v2753, %v2755
      %v2757 = vadd.f32 %v2753, %v2756
      %vm2758 = vweird.f32 %v2449
      %vm2759 = vweird.f32 %v2753
      %vm2760 = vmor %vm2758, %vm2759
      %v2761 = vsel %vm2760, %v2753, %v2757
      %v2762 = vand.u32 2147483647, %v2449
      %vm2763 = vcmp.eq.f32.partialorder %v2762, 8.507059e+37
      %v2764 = vand.u32 %v2449, 2147483648
      %v2765 = vor.u32 1.1754944e-38, %v2764
      %v2766 = vsel %vm2763, %v2765, %v2761
      %v2767 = vmul.f32 1.0, %v2766
      %v2768 = vrcp.pop %v2450
      %v2769 = vmul.f32 %v2450, %v2768
      %v2770 = vsub.f32 1.0, %v2769
      %v2771 = vmul.f32 %v2768, %v2770
      %v2772 = vadd.f32 %v2768, %v2771
      %vm2773 = vweird.f32 %v2450
      %vm2774 = vweird.f32 %v2768
      %vm2775 = vmor %vm2773, %vm2774
      %v2776 = vsel %vm2775, %v2768, %v2772
      %v2777 = vand.u32 2147483647, %v2450
      %vm2778 = vcmp.eq.f32.partialorder %v2777, 8.507059e+37
      %v2779 = vand.u32 %v2450, 2147483648
      %v2780 = vor.u32 1.1754944e-38, %v2779
      %v2781 = vsel %vm2778, %v2780, %v2776
      %v2782 = vmul.f32 1.0, %v2781
      %v2783 = vrcp.pop %v2451
      %v2784 = vmul.f32 %v2451, %v2783
      %v2785 = vsub.f32 1.0, %v2784
      %v2786 = vmul.f32 %v2783, %v2785
      %v2787 = vadd.f32 %v2783, %v2786
      %vm2788 = vweird.f32 %v2451
      %vm2789 = vweird.f32 %v2783
      %vm2790 = vmor %vm2788, %vm2789
      %v2791 = vsel %vm2790, %v2783, %v2787
      %v2792 = vand.u32 2147483647, %v2451
      %vm2793 = vcmp.eq.f32.partialorder %v2792, 8.507059e+37
      %v2794 = vand.u32 %v2451, 2147483648
      %v2795 = vor.u32 1.1754944e-38, %v2794
      %v2796 = vsel %vm2793, %v2795, %v2791
      %v2797 = vmul.f32 1.0, %v2796
      %v2798 = vrcp.pop %v2452
      %v2799 = vmul.f32 %v2452, %v2798
      %v2800 = vsub.f32 1.0, %v2799
      %v2801 = vmul.f32 %v2798, %v2800
      %v2802 = vadd.f32 %v2798, %v2801
      %vm2803 = vweird.f32 %v2452
      %vm2804 = vweird.f32 %v2798
      %vm2805 = vmor %vm2803, %vm2804
      %v2806 = vsel %vm2805, %v2798, %v2802
      %v2807 = vand.u32 2147483647, %v2452
      %vm2808 = vcmp.eq.f32.partialorder %v2807, 8.507059e+37
      %v2809 = vand.u32 %v2452, 2147483648
      %v2810 = vor.u32 1.1754944e-38, %v2809
      %v2811 = vsel %vm2808, %v2810, %v2806
      %v2812 = vmul.f32 1.0, %v2811
      %v2813 = vunpack.c.l.bf16 %v716
      %v2814 = vunpack.c.l.bf16 %v717
      %v2815 = vunpack.c.l.bf16 %v718
      %v2816 = vunpack.c.l.bf16 %v719
      %v2817 = vunpack.c.l.bf16 %v720
      %v2818 = vunpack.c.l.bf16 %v721
      %v2819 = vunpack.c.l.bf16 %v722
      %v2820 = vunpack.c.l.bf16 %v723
      %v2821 = vunpack.c.l.bf16 %v724
      %v2822 = vunpack.c.l.bf16 %v725
      %v2823 = vunpack.c.l.bf16 %v726
      %v2824 = vunpack.c.l.bf16 %v727
      %v2825 = vunpack.c.l.bf16 %v728
      %v2826 = vunpack.c.l.bf16 %v729
      %v2827 = vunpack.c.l.bf16 %v730
      %v2828 = vunpack.c.l.bf16 %v731
      %v2829 = vunpack.c.l.bf16 %v732
      %v2830 = vunpack.c.l.bf16 %v733
      %v2831 = vunpack.c.l.bf16 %v734
      %v2832 = vunpack.c.l.bf16 %v735
      %v2833 = vunpack.c.l.bf16 %v736
      %v2834 = vunpack.c.l.bf16 %v737
      %v2835 = vunpack.c.l.bf16 %v738
      %v2836 = vunpack.c.l.bf16 %v739
      %2838 = vset.pattern.permute.xlu0 0
      %2839 = vperm.xlu0 %2838, %v2467
      %v2840 = vpop.permute.xlu0 %2839
      %2843 = vset.pattern.permute.xlu0 0
      %2844 = vperm.xlu0 %2843, %v2482
      %v2845 = vpop.permute.xlu0 %2844
      %2848 = vset.pattern.permute.xlu0 0
      %2849 = vperm.xlu0 %2848, %v2497
      %v2850 = vpop.permute.xlu0 %2849
      %2853 = vset.pattern.permute.xlu0 0
      %2854 = vperm.xlu0 %2853, %v2512
      %v2855 = vpop.permute.xlu0 %2854
      %2858 = vset.pattern.permute.xlu0 0
      %2859 = vperm.xlu0 %2858, %v2527
      %v2860 = vpop.permute.xlu0 %2859
      %2863 = vset.pattern.permute.xlu0 0
      %2864 = vperm.xlu0 %2863, %v2542
      %v2865 = vpop.permute.xlu0 %2864
      %2868 = vset.pattern.permute.xlu0 0
      %2869 = vperm.xlu0 %2868, %v2557
      %v2870 = vpop.permute.xlu0 %2869
      %2873 = vset.pattern.permute.xlu0 0
      %2874 = vperm.xlu0 %2873, %v2572
      %v2875 = vpop.permute.xlu0 %2874
      %2878 = vset.pattern.permute.xlu0 0
      %2879 = vperm.xlu0 %2878, %v2587
      %v2880 = vpop.permute.xlu0 %2879
      %2883 = vset.pattern.permute.xlu0 0
      %2884 = vperm.xlu0 %2883, %v2602
      %v2885 = vpop.permute.xlu0 %2884
      %2888 = vset.pattern.permute.xlu0 0
      %2889 = vperm.xlu0 %2888, %v2617
      %v2890 = vpop.permute.xlu0 %2889
      %2893 = vset.pattern.permute.xlu0 0
      %2894 = vperm.xlu0 %2893, %v2632
      %v2895 = vpop.permute.xlu0 %2894
      %2898 = vset.pattern.permute.xlu0 0
      %2899 = vperm.xlu0 %2898, %v2647
      %v2900 = vpop.permute.xlu0 %2899
      %2903 = vset.pattern.permute.xlu0 0
      %2904 = vperm.xlu0 %2903, %v2662
      %v2905 = vpop.permute.xlu0 %2904
      %2908 = vset.pattern.permute.xlu0 0
      %2909 = vperm.xlu0 %2908, %v2677
      %v2910 = vpop.permute.xlu0 %2909
      %2913 = vset.pattern.permute.xlu0 0
      %2914 = vperm.xlu0 %2913, %v2692
      %v2915 = vpop.permute.xlu0 %2914
      %2918 = vset.pattern.permute.xlu0 0
      %2919 = vperm.xlu0 %2918, %v2707
      %v2920 = vpop.permute.xlu0 %2919
      %2923 = vset.pattern.permute.xlu0 0
      %2924 = vperm.xlu0 %2923, %v2722
      %v2925 = vpop.permute.xlu0 %2924
      %2928 = vset.pattern.permute.xlu0 0
      %2929 = vperm.xlu0 %2928, %v2737
      %v2930 = vpop.permute.xlu0 %2929
      %2933 = vset.pattern.permute.xlu0 0
      %2934 = vperm.xlu0 %2933, %v2752
      %v2935 = vpop.permute.xlu0 %2934
      %2938 = vset.pattern.permute.xlu0 0
      %2939 = vperm.xlu0 %2938, %v2767
      %v2940 = vpop.permute.xlu0 %2939
      %2943 = vset.pattern.permute.xlu0 0
      %2944 = vperm.xlu0 %2943, %v2782
      %v2945 = vpop.permute.xlu0 %2944
      %2948 = vset.pattern.permute.xlu0 0
      %2949 = vperm.xlu0 %2948, %v2797
      %v2950 = vpop.permute.xlu0 %2949
      %2953 = vset.pattern.permute.xlu0 0
      %2954 = vperm.xlu0 %2953, %v2812
      %v2955 = vpop.permute.xlu0 %2954
      %v2957 = vmul.f32 %v2813, %v2840
      %v2958 = vmul.f32 %v2814, %v2845
      %v2959 = vmul.f32 %v2815, %v2850
      %v2960 = vmul.f32 %v2816, %v2855
      %v2961 = vmul.f32 %v2817, %v2860
      %v2962 = vmul.f32 %v2818, %v2865
      %v2963 = vmul.f32 %v2819, %v2870
      %v2964 = vmul.f32 %v2820, %v2875
      %v2965 = vmul.f32 %v2821, %v2880
      %v2966 = vmul.f32 %v2822, %v2885
      %v2967 = vmul.f32 %v2823, %v2890
      %v2968 = vmul.f32 %v2824, %v2895
      %v2969 = vmul.f32 %v2825, %v2900
      %v2970 = vmul.f32 %v2826, %v2905
      %v2971 = vmul.f32 %v2827, %v2910
      %v2972 = vmul.f32 %v2828, %v2915
      %v2973 = vmul.f32 %v2829, %v2920
      %v2974 = vmul.f32 %v2830, %v2925
      %v2975 = vmul.f32 %v2831, %v2930
      %v2976 = vmul.f32 %v2832, %v2935
      %v2977 = vmul.f32 %v2833, %v2940
      %v2978 = vmul.f32 %v2834, %v2945
      %v2979 = vmul.f32 %v2835, %v2950
      %v2980 = vmul.f32 %v2836, %v2955
      %v2981 = vpack.c.bf16 %v2958, %v2957
      %v2982 = vpack.c.bf16 %v2960, %v2959
      %v2983 = vpack.c.bf16 %v2962, %v2961
      %v2984 = vpack.c.bf16 %v2964, %v2963
      %v2985 = vpack.c.bf16 %v2966, %v2965
      %v2986 = vpack.c.bf16 %v2968, %v2967
      %v2987 = vpack.c.bf16 %v2970, %v2969
      %v2988 = vpack.c.bf16 %v2972, %v2971
      %v2989 = vpack.c.bf16 %v2974, %v2973
      %v2990 = vpack.c.bf16 %v2976, %v2975
      %v2991 = vpack.c.bf16 %v2978, %v2977
      %v2992 = vpack.c.bf16 %v2980, %v2979
      %v2993 = vld [vmem:[%s7] sm:$0xff]
      %v2994 = vld [vmem:[%s7 + $0x8] sm:$0xff]
      %2995 = vset.pattern.permute.xlu0 1
      %2996 = vperm.xlu0 %2995, %v2467
      %v2997 = vpop.permute.xlu0 %2996
      %2999 = vset.pattern.permute.xlu0 1
      %3000 = vperm.xlu0 %2999, %v2482
      %v3001 = vpop.permute.xlu0 %3000
      %3003 = vset.pattern.permute.xlu0 1
      %3004 = vperm.xlu0 %3003, %v2497
      %v3005 = vpop.permute.xlu0 %3004
      %3007 = vset.pattern.permute.xlu0 1
      %3008 = vperm.xlu0 %3007, %v2512
      %v3009 = vpop.permute.xlu0 %3008
      %3011 = vset.pattern.permute.xlu0 1
      %3012 = vperm.xlu0 %3011, %v2527
      %v3013 = vpop.permute.xlu0 %3012
      %3015 = vset.pattern.permute.xlu0 1
      %3016 = vperm.xlu0 %3015, %v2542
      %v3017 = vpop.permute.xlu0 %3016
      %3019 = vset.pattern.permute.xlu0 1
      %3020 = vperm.xlu0 %3019, %v2557
      %v3021 = vpop.permute.xlu0 %3020
      %3023 = vset.pattern.permute.xlu0 1
      %3024 = vperm.xlu0 %3023, %v2572
      %v3025 = vpop.permute.xlu0 %3024
      %3027 = vset.pattern.permute.xlu0 1
      %3028 = vperm.xlu0 %3027, %v2587
      %v3029 = vpop.permute.xlu0 %3028
      %3031 = vset.pattern.permute.xlu0 1
      %3032 = vperm.xlu0 %3031, %v2602
      %v3033 = vpop.permute.xlu0 %3032
      %3035 = vset.pattern.permute.xlu0 1
      %3036 = vperm.xlu0 %3035, %v2617
      %v3037 = vpop.permute.xlu0 %3036
      %3039 = vset.pattern.permute.xlu0 1
      %3040 = vperm.xlu0 %3039, %v2632
      %v3041 = vpop.permute.xlu0 %3040
      %3043 = vset.pattern.permute.xlu0 1
      %3044 = vperm.xlu0 %3043, %v2647
      %v3045 = vpop.permute.xlu0 %3044
      %3047 = vset.pattern.permute.xlu0 1
      %3048 = vperm.xlu0 %3047, %v2662
      %v3049 = vpop.permute.xlu0 %3048
      %3051 = vset.pattern.permute.xlu0 1
      %3052 = vperm.xlu0 %3051, %v2677
      %v3053 = vpop.permute.xlu0 %3052
      %3055 = vset.pattern.permute.xlu0 1
      %3056 = vperm.xlu0 %3055, %v2692
      %v3057 = vpop.permute.xlu0 %3056
      %3059 = vset.pattern.permute.xlu0 1
      %3060 = vperm.xlu0 %3059, %v2707
      %v3061 = vpop.permute.xlu0 %3060
      %3063 = vset.pattern.permute.xlu0 1
      %3064 = vperm.xlu0 %3063, %v2722
      %v3065 = vpop.permute.xlu0 %3064
      %3067 = vset.pattern.permute.xlu0 1
      %3068 = vperm.xlu0 %3067, %v2737
      %v3069 = vpop.permute.xlu0 %3068
      %3071 = vset.pattern.permute.xlu0 1
      %3072 = vperm.xlu0 %3071, %v2752
      %v3073 = vpop.permute.xlu0 %3072
      %3075 = vset.pattern.permute.xlu0 1
      %3076 = vperm.xlu0 %3075, %v2767
      %v3077 = vpop.permute.xlu0 %3076
      %3079 = vset.pattern.permute.xlu0 1
      %3080 = vperm.xlu0 %3079, %v2782
      %v3081 = vpop.permute.xlu0 %3080
      %3083 = vset.pattern.permute.xlu0 1
      %3084 = vperm.xlu0 %3083, %v2797
      %v3085 = vpop.permute.xlu0 %3084
      %3087 = vset.pattern.permute.xlu0 1
      %3088 = vperm.xlu0 %3087, %v2812
      %v3089 = vpop.permute.xlu0 %3088
      %v3091 = vmul.f32 %v2813, %v2997
      %v3092 = vmul.f32 %v2814, %v3001
      %v3093 = vmul.f32 %v2815, %v3005
      %v3094 = vmul.f32 %v2816, %v3009
      %v3095 = vmul.f32 %v2817, %v3013
      %v3096 = vmul.f32 %v2818, %v3017
      %v3097 = vmul.f32 %v2819, %v3021
      %v3098 = vmul.f32 %v2820, %v3025
      %v3099 = vmul.f32 %v2821, %v3029
      %v3100 = vmul.f32 %v2822, %v3033
      %v3101 = vmul.f32 %v2823, %v3037
      %v3102 = vmul.f32 %v2824, %v3041
      %v3103 = vmul.f32 %v2825, %v3045
      %v3104 = vmul.f32 %v2826, %v3049
      %v3105 = vmul.f32 %v2827, %v3053
      %v3106 = vmul.f32 %v2828, %v3057
      %v3107 = vmul.f32 %v2829, %v3061
      %v3108 = vmul.f32 %v2830, %v3065
      %v3109 = vmul.f32 %v2831, %v3069
      %v3110 = vmul.f32 %v2832, %v3073
      %v3111 = vmul.f32 %v2833, %v3077
      %v3112 = vmul.f32 %v2834, %v3081
      %v3113 = vmul.f32 %v2835, %v3085
      %v3114 = vmul.f32 %v2836, %v3089
      %v3115 = vpack.c.bf16 %v3092, %v3091
      %v3116 = vpack.c.bf16 %v3094, %v3093
      %v3117 = vpack.c.bf16 %v3096, %v3095
      %v3118 = vpack.c.bf16 %v3098, %v3097
      %v3119 = vpack.c.bf16 %v3100, %v3099
      %v3120 = vpack.c.bf16 %v3102, %v3101
      %v3121 = vpack.c.bf16 %v3104, %v3103
      %v3122 = vpack.c.bf16 %v3106, %v3105
      %v3123 = vpack.c.bf16 %v3108, %v3107
      %v3124 = vpack.c.bf16 %v3110, %v3109
      %v3125 = vpack.c.bf16 %v3112, %v3111
      %v3126 = vpack.c.bf16 %v3114, %v3113
      %v3127 = vld [vmem:[%s7 + $0x10] sm:$0xff]
      %v3128 = vld [vmem:[%s7 + $0x18] sm:$0xff]
      %3141 = vrot.lane.b32.xlu0 %v3115, 112
      %v3142 = vpop.permute.xlu0 %3141
      %3143 = vrot.lane.b32.xlu0 %v3116, 112
      %v3144 = vpop.permute.xlu0 %3143
      %3145 = vrot.lane.b32.xlu0 %v3117, 112
      %v3146 = vpop.permute.xlu0 %3145
      %3147 = vrot.lane.b32.xlu0 %v3118, 112
      %v3148 = vpop.permute.xlu0 %3147
      %3149 = vrot.lane.b32.xlu0 %v3119, 112
      %v3150 = vpop.permute.xlu0 %3149
      %3151 = vrot.lane.b32.xlu0 %v3120, 112
      %v3152 = vpop.permute.xlu0 %3151
      %3153 = vrot.lane.b32.xlu0 %v3121, 112
      %v3154 = vpop.permute.xlu0 %3153
      %3155 = vrot.lane.b32.xlu0 %v3122, 112
      %v3156 = vpop.permute.xlu0 %3155
      %3157 = vrot.lane.b32.xlu0 %v3123, 112
      %v3158 = vpop.permute.xlu0 %3157
      %3159 = vrot.lane.b32.xlu0 %v3124, 112
      %v3160 = vpop.permute.xlu0 %3159
      %3161 = vrot.lane.b32.xlu0 %v3125, 112
      %v3162 = vpop.permute.xlu0 %3161
      %3163 = vrot.lane.b32.xlu0 %v3126, 112
      %v3164 = vpop.permute.xlu0 %3163
      %v3167 = vunpack.c.l.b16 %v3127
      %v3168 = vunpack.c.h.b16 %v3127
      %v3169 = vunpack.c.l.b16 %v3128
      %v3170 = vunpack.c.h.b16 %v3128
      %v3171 = vpack.c.b16 %v3169, %v3167
      %v3172 = vpack.c.b16 %v3170, %v3168
      %vm3175 = vcmask 130048
      %v3177 = vsel %vm3175, %v3142, 0
      %v3180 = vsel %vm3175, %v3144, 0
      %v3183 = vsel %vm3175, %v3146, 0
      %v3186 = vsel %vm3175, %v3148, 0
      %v3189 = vsel %vm3175, %v3150, 0
      %v3192 = vsel %vm3175, %v3152, 0
      %v3195 = vsel %vm3175, %v3154, 0
      %v3198 = vsel %vm3175, %v3156, 0
      %v3201 = vsel %vm3175, %v3158, 0
      %v3204 = vsel %vm3175, %v3160, 0
      %v3207 = vsel %vm3175, %v3162, 0
      %v3210 = vsel %vm3175, %v3164, 0
      %3212 = vmatpush.bf16.msra.mxu0 0
      %3213 = vmatpush.bf16.msra.mxu0 0
      %3214 = vmatpush.bf16.msra.mxu0 0
      %3215 = vmatpush.bf16.msra.mxu0 0
      %3216 = vmatpush.bf16.msra.mxu0 0
      %3217 = vmatpush.bf16.msra.mxu0 0
      %3218 = vmatpush.bf16.msra.mxu0 0
      %3219 = vmatpush.bf16.msra.mxu0 %v3171
      %3220 = vmatmul.bf16.gmra.mxu0 %v3177
      %v3221 = vpop.f32.mrf.mxu0
      %v3222 = vadd.f32 0.0, %v3221
      %v3223 = vpop.f32.mrf.mxu0
      %v3224 = vadd.f32 0.0, %v3223
      %3225 = vmatmul.bf16.gmra.mxu0 %v3180
      %v3226 = vpop.f32.mrf.mxu0
      %v3227 = vadd.f32 0.0, %v3226
      %v3228 = vpop.f32.mrf.mxu0
      %v3229 = vadd.f32 0.0, %v3228
      %3230 = vmatmul.bf16.gmra.mxu0 %v3183
      %v3231 = vpop.f32.mrf.mxu0
      %v3232 = vadd.f32 0.0, %v3231
      %v3233 = vpop.f32.mrf.mxu0
      %v3234 = vadd.f32 0.0, %v3233
      %3235 = vmatmul.bf16.gmra.mxu0 %v3186
      %v3236 = vpop.f32.mrf.mxu0
      %v3237 = vadd.f32 0.0, %v3236
      %v3238 = vpop.f32.mrf.mxu0
      %v3239 = vadd.f32 0.0, %v3238
      %3240 = vmatmul.bf16.gmra.mxu0 %v3189
      %v3241 = vpop.f32.mrf.mxu0
      %v3242 = vadd.f32 0.0, %v3241
      %v3243 = vpop.f32.mrf.mxu0
      %v3244 = vadd.f32 0.0, %v3243
      %3245 = vmatmul.bf16.gmra.mxu0 %v3192
      %v3246 = vpop.f32.mrf.mxu0
      %v3247 = vadd.f32 0.0, %v3246
      %v3248 = vpop.f32.mrf.mxu0
      %v3249 = vadd.f32 0.0, %v3248
      %3250 = vmatmul.bf16.gmra.mxu0 %v3195
      %v3251 = vpop.f32.mrf.mxu0
      %v3252 = vadd.f32 0.0, %v3251
      %v3253 = vpop.f32.mrf.mxu0
      %v3254 = vadd.f32 0.0, %v3253
      %3255 = vmatmul.bf16.gmra.mxu0 %v3198
      %v3256 = vpop.f32.mrf.mxu0
      %v3257 = vadd.f32 0.0, %v3256
      %v3258 = vpop.f32.mrf.mxu0
      %v3259 = vadd.f32 0.0, %v3258
      %3260 = vmatmul.bf16.gmra.mxu0 %v3201
      %v3261 = vpop.f32.mrf.mxu0
      %v3262 = vadd.f32 0.0, %v3261
      %v3263 = vpop.f32.mrf.mxu0
      %v3264 = vadd.f32 0.0, %v3263
      %3265 = vmatmul.bf16.gmra.mxu0 %v3204
      %v3266 = vpop.f32.mrf.mxu0
      %v3267 = vadd.f32 0.0, %v3266
      %v3268 = vpop.f32.mrf.mxu0
      %v3269 = vadd.f32 0.0, %v3268
      %3270 = vmatmul.bf16.gmra.mxu0 %v3207
      %v3271 = vpop.f32.mrf.mxu0
      %v3272 = vadd.f32 0.0, %v3271
      %v3273 = vpop.f32.mrf.mxu0
      %v3274 = vadd.f32 0.0, %v3273
      %3275 = vmatmul.bf16.gmra.mxu0 %v3210
      %v3276 = vpop.f32.mrf.mxu0
      %v3277 = vadd.f32 0.0, %v3276
      %v3278 = vpop.f32.mrf.mxu0
      %v3279 = vadd.f32 0.0, %v3278
      %3280 = vdwg.mxu0
      %3281 = vmatpush.bf16.msra.mxu0 0
      %3282 = vmatpush.bf16.msra.mxu0 0
      %3283 = vmatpush.bf16.msra.mxu0 0
      %3284 = vmatpush.bf16.msra.mxu0 0
      %3285 = vmatpush.bf16.msra.mxu0 0
      %3286 = vmatpush.bf16.msra.mxu0 0
      %3287 = vmatpush.bf16.msra.mxu0 0
      %3288 = vmatpush.bf16.msra.mxu0 %v3172
      %3289 = vmatmul.bf16.gmra.mxu0 %v3177
      %v3290 = vpop.f32.mrf.mxu0
      %v3291 = vadd.f32 0.0, %v3290
      %v3292 = vpop.f32.mrf.mxu0
      %v3293 = vadd.f32 0.0, %v3292
      %3294 = vmatmul.bf16.gmra.mxu0 %v3180
      %v3295 = vpop.f32.mrf.mxu0
      %v3296 = vadd.f32 0.0, %v3295
      %v3297 = vpop.f32.mrf.mxu0
      %v3298 = vadd.f32 0.0, %v3297
      %3299 = vmatmul.bf16.gmra.mxu0 %v3183
      %v3300 = vpop.f32.mrf.mxu0
      %v3301 = vadd.f32 0.0, %v3300
      %v3302 = vpop.f32.mrf.mxu0
      %v3303 = vadd.f32 0.0, %v3302
      %3304 = vmatmul.bf16.gmra.mxu0 %v3186
      %v3305 = vpop.f32.mrf.mxu0
      %v3306 = vadd.f32 0.0, %v3305
      %v3307 = vpop.f32.mrf.mxu0
      %v3308 = vadd.f32 0.0, %v3307
      %3309 = vmatmul.bf16.gmra.mxu0 %v3189
      %v3310 = vpop.f32.mrf.mxu0
      %v3311 = vadd.f32 0.0, %v3310
      %v3312 = vpop.f32.mrf.mxu0
      %v3313 = vadd.f32 0.0, %v3312
      %3314 = vmatmul.bf16.gmra.mxu0 %v3192
      %v3315 = vpop.f32.mrf.mxu0
      %v3316 = vadd.f32 0.0, %v3315
      %v3317 = vpop.f32.mrf.mxu0
      %v3318 = vadd.f32 0.0, %v3317
      %3319 = vmatmul.bf16.gmra.mxu0 %v3195
      %v3320 = vpop.f32.mrf.mxu0
      %v3321 = vadd.f32 0.0, %v3320
      %v3322 = vpop.f32.mrf.mxu0
      %v3323 = vadd.f32 0.0, %v3322
      %3324 = vmatmul.bf16.gmra.mxu0 %v3198
      %v3325 = vpop.f32.mrf.mxu0
      %v3326 = vadd.f32 0.0, %v3325
      %v3327 = vpop.f32.mrf.mxu0
      %v3328 = vadd.f32 0.0, %v3327
      %3329 = vmatmul.bf16.gmra.mxu0 %v3201
      %v3330 = vpop.f32.mrf.mxu0
      %v3331 = vadd.f32 0.0, %v3330
      %v3332 = vpop.f32.mrf.mxu0
      %v3333 = vadd.f32 0.0, %v3332
      %3334 = vmatmul.bf16.gmra.mxu0 %v3204
      %v3335 = vpop.f32.mrf.mxu0
      %v3336 = vadd.f32 0.0, %v3335
      %v3337 = vpop.f32.mrf.mxu0
      %v3338 = vadd.f32 0.0, %v3337
      %3339 = vmatmul.bf16.gmra.mxu0 %v3207
      %v3340 = vpop.f32.mrf.mxu0
      %v3341 = vadd.f32 0.0, %v3340
      %v3342 = vpop.f32.mrf.mxu0
      %v3343 = vadd.f32 0.0, %v3342
      %3344 = vmatmul.bf16.gmra.mxu0 %v3210
      %v3345 = vpop.f32.mrf.mxu0
      %v3346 = vadd.f32 0.0, %v3345
      %v3347 = vpop.f32.mrf.mxu0
      %v3348 = vadd.f32 0.0, %v3347
      %3349 = vdwg.mxu0
      %v3352 = vunpack.c.l.b16 %v2993
      %v3353 = vunpack.c.h.b16 %v2993
      %v3354 = vunpack.c.l.b16 %v2994
      %v3355 = vunpack.c.h.b16 %v2994
      %v3356 = vpack.c.b16 %v3354, %v3352
      %v3357 = vpack.c.b16 %v3355, %v3353
      %v3361 = vsel %vm3175, %v2981, 0
      %v3364 = vsel %vm3175, %v2982, 0
      %v3367 = vsel %vm3175, %v2983, 0
      %v3370 = vsel %vm3175, %v2984, 0
      %v3373 = vsel %vm3175, %v2985, 0
      %v3376 = vsel %vm3175, %v2986, 0
      %v3379 = vsel %vm3175, %v2987, 0
      %v3382 = vsel %vm3175, %v2988, 0
      %v3385 = vsel %vm3175, %v2989, 0
      %v3388 = vsel %vm3175, %v2990, 0
      %v3391 = vsel %vm3175, %v2991, 0
      %v3394 = vsel %vm3175, %v2992, 0
      %3396 = vmatpush.bf16.msra.mxu0 0
      %3397 = vmatpush.bf16.msra.mxu0 0
      %3398 = vmatpush.bf16.msra.mxu0 0
      %3399 = vmatpush.bf16.msra.mxu0 0
      %3400 = vmatpush.bf16.msra.mxu0 0
      %3401 = vmatpush.bf16.msra.mxu0 0
      %3402 = vmatpush.bf16.msra.mxu0 0
      %3403 = vmatpush.bf16.msra.mxu0 %v3356
      %3404 = vmatmul.bf16.gmra.mxu0 %v3361
      %v3405 = vpop.f32.mrf.mxu0
      %v3406 = vadd.f32 %v3222, %v3405
      %v3407 = vpop.f32.mrf.mxu0
      %v3408 = vadd.f32 %v3224, %v3407
      %3409 = vmatmul.bf16.gmra.mxu0 %v3364
      %v3410 = vpop.f32.mrf.mxu0
      %v3411 = vadd.f32 %v3227, %v3410
      %v3412 = vpop.f32.mrf.mxu0
      %v3413 = vadd.f32 %v3229, %v3412
      %3414 = vmatmul.bf16.gmra.mxu0 %v3367
      %v3415 = vpop.f32.mrf.mxu0
      %v3416 = vadd.f32 %v3232, %v3415
      %v3417 = vpop.f32.mrf.mxu0
      %v3418 = vadd.f32 %v3234, %v3417
      %3419 = vmatmul.bf16.gmra.mxu0 %v3370
      %v3420 = vpop.f32.mrf.mxu0
      %v3421 = vadd.f32 %v3237, %v3420
      %v3422 = vpop.f32.mrf.mxu0
      %v3423 = vadd.f32 %v3239, %v3422
      %3424 = vmatmul.bf16.gmra.mxu0 %v3373
      %v3425 = vpop.f32.mrf.mxu0
      %v3426 = vadd.f32 %v3242, %v3425
      %v3427 = vpop.f32.mrf.mxu0
      %v3428 = vadd.f32 %v3244, %v3427
      %3429 = vmatmul.bf16.gmra.mxu0 %v3376
      %v3430 = vpop.f32.mrf.mxu0
      %v3431 = vadd.f32 %v3247, %v3430
      %v3432 = vpop.f32.mrf.mxu0
      %v3433 = vadd.f32 %v3249, %v3432
      %3434 = vmatmul.bf16.gmra.mxu0 %v3379
      %v3435 = vpop.f32.mrf.mxu0
      %v3436 = vadd.f32 %v3252, %v3435
      %v3437 = vpop.f32.mrf.mxu0
      %v3438 = vadd.f32 %v3254, %v3437
      %3439 = vmatmul.bf16.gmra.mxu0 %v3382
      %v3440 = vpop.f32.mrf.mxu0
      %v3441 = vadd.f32 %v3257, %v3440
      %v3442 = vpop.f32.mrf.mxu0
      %v3443 = vadd.f32 %v3259, %v3442
      %3444 = vmatmul.bf16.gmra.mxu0 %v3385
      %v3445 = vpop.f32.mrf.mxu0
      %v3446 = vadd.f32 %v3262, %v3445
      %v3447 = vpop.f32.mrf.mxu0
      %v3448 = vadd.f32 %v3264, %v3447
      %3449 = vmatmul.bf16.gmra.mxu0 %v3388
      %v3450 = vpop.f32.mrf.mxu0
      %v3451 = vadd.f32 %v3267, %v3450
      %v3452 = vpop.f32.mrf.mxu0
      %v3453 = vadd.f32 %v3269, %v3452
      %3454 = vmatmul.bf16.gmra.mxu0 %v3391
      %v3455 = vpop.f32.mrf.mxu0
      %v3456 = vadd.f32 %v3272, %v3455
      %v3457 = vpop.f32.mrf.mxu0
      %v3458 = vadd.f32 %v3274, %v3457
      %3459 = vmatmul.bf16.gmra.mxu0 %v3394
      %v3460 = vpop.f32.mrf.mxu0
      %v3461 = vadd.f32 %v3277, %v3460
      %v3462 = vpop.f32.mrf.mxu0
      %v3463 = vadd.f32 %v3279, %v3462
      %3464 = vdwg.mxu0
      %3465 = vmatpush.bf16.msra.mxu0 0
      %3466 = vmatpush.bf16.msra.mxu0 0
      %3467 = vmatpush.bf16.msra.mxu0 0
      %3468 = vmatpush.bf16.msra.mxu0 0
      %3469 = vmatpush.bf16.msra.mxu0 0
      %3470 = vmatpush.bf16.msra.mxu0 0
      %3471 = vmatpush.bf16.msra.mxu0 0
      %3472 = vmatpush.bf16.msra.mxu0 %v3357
      %3473 = vmatmul.bf16.gmra.mxu0 %v3361
      %v3474 = vpop.f32.mrf.mxu0
      %v3475 = vadd.f32 %v3291, %v3474
      %v3476 = vpop.f32.mrf.mxu0
      %v3477 = vadd.f32 %v3293, %v3476
      %3478 = vmatmul.bf16.gmra.mxu0 %v3364
      %v3479 = vpop.f32.mrf.mxu0
      %v3480 = vadd.f32 %v3296, %v3479
      %v3481 = vpop.f32.mrf.mxu0
      %v3482 = vadd.f32 %v3298, %v3481
      %3483 = vmatmul.bf16.gmra.mxu0 %v3367
      %v3484 = vpop.f32.mrf.mxu0
      %v3485 = vadd.f32 %v3301, %v3484
      %v3486 = vpop.f32.mrf.mxu0
      %v3487 = vadd.f32 %v3303, %v3486
      %3488 = vmatmul.bf16.gmra.mxu0 %v3370
      %v3489 = vpop.f32.mrf.mxu0
      %v3490 = vadd.f32 %v3306, %v3489
      %v3491 = vpop.f32.mrf.mxu0
      %v3492 = vadd.f32 %v3308, %v3491
      %3493 = vmatmul.bf16.gmra.mxu0 %v3373
      %v3494 = vpop.f32.mrf.mxu0
      %v3495 = vadd.f32 %v3311, %v3494
      %v3496 = vpop.f32.mrf.mxu0
      %v3497 = vadd.f32 %v3313, %v3496
      %3498 = vmatmul.bf16.gmra.mxu0 %v3376
      %v3499 = vpop.f32.mrf.mxu0
      %v3500 = vadd.f32 %v3316, %v3499
      %v3501 = vpop.f32.mrf.mxu0
      %v3502 = vadd.f32 %v3318, %v3501
      %3503 = vmatmul.bf16.gmra.mxu0 %v3379
      %v3504 = vpop.f32.mrf.mxu0
      %v3505 = vadd.f32 %v3321, %v3504
      %v3506 = vpop.f32.mrf.mxu0
      %v3507 = vadd.f32 %v3323, %v3506
      %3508 = vmatmul.bf16.gmra.mxu0 %v3382
      %v3509 = vpop.f32.mrf.mxu0
      %v3510 = vadd.f32 %v3326, %v3509
      %v3511 = vpop.f32.mrf.mxu0
      %v3512 = vadd.f32 %v3328, %v3511
      %3513 = vmatmul.bf16.gmra.mxu0 %v3385
      %v3514 = vpop.f32.mrf.mxu0
      %v3515 = vadd.f32 %v3331, %v3514
      %v3516 = vpop.f32.mrf.mxu0
      %v3517 = vadd.f32 %v3333, %v3516
      %3518 = vmatmul.bf16.gmra.mxu0 %v3388
      %v3519 = vpop.f32.mrf.mxu0
      %v3520 = vadd.f32 %v3336, %v3519
      %v3521 = vpop.f32.mrf.mxu0
      %v3522 = vadd.f32 %v3338, %v3521
      %3523 = vmatmul.bf16.gmra.mxu0 %v3391
      %v3524 = vpop.f32.mrf.mxu0
      %v3525 = vadd.f32 %v3341, %v3524
      %v3526 = vpop.f32.mrf.mxu0
      %v3527 = vadd.f32 %v3343, %v3526
      %3528 = vmatmul.bf16.gmra.mxu0 %v3394
      %v3529 = vpop.f32.mrf.mxu0
      %v3530 = vadd.f32 %v3346, %v3529
      %v3531 = vpop.f32.mrf.mxu0
      %v3532 = vadd.f32 %v3348, %v3531
      %3533 = vdwg.mxu0
      %3534 = vset.pattern.permute.xlu0 2
      %3535 = vperm.xlu0 %3534, %v2467
      %v3536 = vpop.permute.xlu0 %3535
      %3538 = vset.pattern.permute.xlu0 2
      %3539 = vperm.xlu0 %3538, %v2482
      %v3540 = vpop.permute.xlu0 %3539
      %3542 = vset.pattern.permute.xlu0 2
      %3543 = vperm.xlu0 %3542, %v2497
      %v3544 = vpop.permute.xlu0 %3543
      %3546 = vset.pattern.permute.xlu0 2
      %3547 = vperm.xlu0 %3546, %v2512
      %v3548 = vpop.permute.xlu0 %3547
      %3550 = vset.pattern.permute.xlu0 2
      %3551 = vperm.xlu0 %3550, %v2527
      %v3552 = vpop.permute.xlu0 %3551
      %3554 = vset.pattern.permute.xlu0 2
      %3555 = vperm.xlu0 %3554, %v2542
      %v3556 = vpop.permute.xlu0 %3555
      %3558 = vset.pattern.permute.xlu0 2
      %3559 = vperm.xlu0 %3558, %v2557
      %v3560 = vpop.permute.xlu0 %3559
      %3562 = vset.pattern.permute.xlu0 2
      %3563 = vperm.xlu0 %3562, %v2572
      %v3564 = vpop.permute.xlu0 %3563
      %3566 = vset.pattern.permute.xlu0 2
      %3567 = vperm.xlu0 %3566, %v2587
      %v3568 = vpop.permute.xlu0 %3567
      %3570 = vset.pattern.permute.xlu0 2
      %3571 = vperm.xlu0 %3570, %v2602
      %v3572 = vpop.permute.xlu0 %3571
      %3574 = vset.pattern.permute.xlu0 2
      %3575 = vperm.xlu0 %3574, %v2617
      %v3576 = vpop.permute.xlu0 %3575
      %3578 = vset.pattern.permute.xlu0 2
      %3579 = vperm.xlu0 %3578, %v2632
      %v3580 = vpop.permute.xlu0 %3579
      %3582 = vset.pattern.permute.xlu0 2
      %3583 = vperm.xlu0 %3582, %v2647
      %v3584 = vpop.permute.xlu0 %3583
      %3586 = vset.pattern.permute.xlu0 2
      %3587 = vperm.xlu0 %3586, %v2662
      %v3588 = vpop.permute.xlu0 %3587
      %3590 = vset.pattern.permute.xlu0 2
      %3591 = vperm.xlu0 %3590, %v2677
      %v3592 = vpop.permute.xlu0 %3591
      %3594 = vset.pattern.permute.xlu0 2
      %3595 = vperm.xlu0 %3594, %v2692
      %v3596 = vpop.permute.xlu0 %3595
      %3598 = vset.pattern.permute.xlu0 2
      %3599 = vperm.xlu0 %3598, %v2707
      %v3600 = vpop.permute.xlu0 %3599
      %3602 = vset.pattern.permute.xlu0 2
      %3603 = vperm.xlu0 %3602, %v2722
      %v3604 = vpop.permute.xlu0 %3603
      %3606 = vset.pattern.permute.xlu0 2
      %3607 = vperm.xlu0 %3606, %v2737
      %v3608 = vpop.permute.xlu0 %3607
      %3610 = vset.pattern.permute.xlu0 2
      %3611 = vperm.xlu0 %3610, %v2752
      %v3612 = vpop.permute.xlu0 %3611
      %3614 = vset.pattern.permute.xlu0 2
      %3615 = vperm.xlu0 %3614, %v2767
      %v3616 = vpop.permute.xlu0 %3615
      %3618 = vset.pattern.permute.xlu0 2
      %3619 = vperm.xlu0 %3618, %v2782
      %v3620 = vpop.permute.xlu0 %3619
      %3622 = vset.pattern.permute.xlu0 2
      %3623 = vperm.xlu0 %3622, %v2797
      %v3624 = vpop.permute.xlu0 %3623
      %3626 = vset.pattern.permute.xlu0 2
      %3627 = vperm.xlu0 %3626, %v2812
      %v3628 = vpop.permute.xlu0 %3627
      %v3630 = vmul.f32 %v2813, %v3536
      %v3631 = vmul.f32 %v2814, %v3540
      %v3632 = vmul.f32 %v2815, %v3544
      %v3633 = vmul.f32 %v2816, %v3548
      %v3634 = vmul.f32 %v2817, %v3552
      %v3635 = vmul.f32 %v2818, %v3556
      %v3636 = vmul.f32 %v2819, %v3560
      %v3637 = vmul.f32 %v2820, %v3564
      %v3638 = vmul.f32 %v2821, %v3568
      %v3639 = vmul.f32 %v2822, %v3572
      %v3640 = vmul.f32 %v2823, %v3576
      %v3641 = vmul.f32 %v2824, %v3580
      %v3642 = vmul.f32 %v2825, %v3584
      %v3643 = vmul.f32 %v2826, %v3588
      %v3644 = vmul.f32 %v2827, %v3592
      %v3645 = vmul.f32 %v2828, %v3596
      %v3646 = vmul.f32 %v2829, %v3600
      %v3647 = vmul.f32 %v2830, %v3604
      %v3648 = vmul.f32 %v2831, %v3608
      %v3649 = vmul.f32 %v2832, %v3612
      %v3650 = vmul.f32 %v2833, %v3616
      %v3651 = vmul.f32 %v2834, %v3620
      %v3652 = vmul.f32 %v2835, %v3624
      %v3653 = vmul.f32 %v2836, %v3628
      %v3654 = vpack.c.bf16 %v3631, %v3630
      %v3655 = vpack.c.bf16 %v3633, %v3632
      %v3656 = vpack.c.bf16 %v3635, %v3634
      %v3657 = vpack.c.bf16 %v3637, %v3636
      %v3658 = vpack.c.bf16 %v3639, %v3638
      %v3659 = vpack.c.bf16 %v3641, %v3640
      %v3660 = vpack.c.bf16 %v3643, %v3642
      %v3661 = vpack.c.bf16 %v3645, %v3644
      %v3662 = vpack.c.bf16 %v3647, %v3646
      %v3663 = vpack.c.bf16 %v3649, %v3648
      %v3664 = vpack.c.bf16 %v3651, %v3650
      %v3665 = vpack.c.bf16 %v3653, %v3652
      %v3666 = vld [vmem:[%s7 + $0x20] sm:$0xff]
      %v3667 = vld [vmem:[%s7 + $0x28] sm:$0xff]
      %3680 = vrot.lane.b32.xlu0 %v3654, 96
      %v3681 = vpop.permute.xlu0 %3680
      %3682 = vrot.lane.b32.xlu0 %v3655, 96
      %v3683 = vpop.permute.xlu0 %3682
      %3684 = vrot.lane.b32.xlu0 %v3656, 96
      %v3685 = vpop.permute.xlu0 %3684
      %3686 = vrot.lane.b32.xlu0 %v3657, 96
      %v3687 = vpop.permute.xlu0 %3686
      %3688 = vrot.lane.b32.xlu0 %v3658, 96
      %v3689 = vpop.permute.xlu0 %3688
      %3690 = vrot.lane.b32.xlu0 %v3659, 96
      %v3691 = vpop.permute.xlu0 %3690
      %3692 = vrot.lane.b32.xlu0 %v3660, 96
      %v3693 = vpop.permute.xlu0 %3692
      %3694 = vrot.lane.b32.xlu0 %v3661, 96
      %v3695 = vpop.permute.xlu0 %3694
      %3696 = vrot.lane.b32.xlu0 %v3662, 96
      %v3697 = vpop.permute.xlu0 %3696
      %3698 = vrot.lane.b32.xlu0 %v3663, 96
      %v3699 = vpop.permute.xlu0 %3698
      %3700 = vrot.lane.b32.xlu0 %v3664, 96
      %v3701 = vpop.permute.xlu0 %3700
      %3702 = vrot.lane.b32.xlu0 %v3665, 96
      %v3703 = vpop.permute.xlu0 %3702
      %v3706 = vunpack.c.l.b16 %v3666
      %v3707 = vunpack.c.h.b16 %v3666
      %v3708 = vunpack.c.l.b16 %v3667
      %v3709 = vunpack.c.h.b16 %v3667
      %v3710 = vpack.c.b16 %v3708, %v3706
      %v3711 = vpack.c.b16 %v3709, %v3707
      %v3715 = vsel %vm3175, %v3681, 0
      %v3718 = vsel %vm3175, %v3683, 0
      %v3721 = vsel %vm3175, %v3685, 0
      %v3724 = vsel %vm3175, %v3687, 0
      %v3727 = vsel %vm3175, %v3689, 0
      %v3730 = vsel %vm3175, %v3691, 0
      %v3733 = vsel %vm3175, %v3693, 0
      %v3736 = vsel %vm3175, %v3695, 0
      %v3739 = vsel %vm3175, %v3697, 0
      %v3742 = vsel %vm3175, %v3699, 0
      %v3745 = vsel %vm3175, %v3701, 0
      %v3748 = vsel %vm3175, %v3703, 0
      %3750 = vmatpush.bf16.msra.mxu0 0
      %3751 = vmatpush.bf16.msra.mxu0 0
      %3752 = vmatpush.bf16.msra.mxu0 0
      %3753 = vmatpush.bf16.msra.mxu0 0
      %3754 = vmatpush.bf16.msra.mxu0 0
      %3755 = vmatpush.bf16.msra.mxu0 0
      %3756 = vmatpush.bf16.msra.mxu0 0
      %3757 = vmatpush.bf16.msra.mxu0 %v3710
      %3758 = vmatmul.bf16.gmra.mxu0 %v3715
      %v3759 = vpop.f32.mrf.mxu0
      %v3760 = vadd.f32 0.0, %v3759
      %v3761 = vpop.f32.mrf.mxu0
      %v3762 = vadd.f32 0.0, %v3761
      %3763 = vmatmul.bf16.gmra.mxu0 %v3718
      %v3764 = vpop.f32.mrf.mxu0
      %v3765 = vadd.f32 0.0, %v3764
      %v3766 = vpop.f32.mrf.mxu0
      %v3767 = vadd.f32 0.0, %v3766
      %3768 = vmatmul.bf16.gmra.mxu0 %v3721
      %v3769 = vpop.f32.mrf.mxu0
      %v3770 = vadd.f32 0.0, %v3769
      %v3771 = vpop.f32.mrf.mxu0
      %v3772 = vadd.f32 0.0, %v3771
      %3773 = vmatmul.bf16.gmra.mxu0 %v3724
      %v3774 = vpop.f32.mrf.mxu0
      %v3775 = vadd.f32 0.0, %v3774
      %v3776 = vpop.f32.mrf.mxu0
      %v3777 = vadd.f32 0.0, %v3776
      %3778 = vmatmul.bf16.gmra.mxu0 %v3727
      %v3779 = vpop.f32.mrf.mxu0
      %v3780 = vadd.f32 0.0, %v3779
      %v3781 = vpop.f32.mrf.mxu0
      %v3782 = vadd.f32 0.0, %v3781
      %3783 = vmatmul.bf16.gmra.mxu0 %v3730
      %v3784 = vpop.f32.mrf.mxu0
      %v3785 = vadd.f32 0.0, %v3784
      %v3786 = vpop.f32.mrf.mxu0
      %v3787 = vadd.f32 0.0, %v3786
      %3788 = vmatmul.bf16.gmra.mxu0 %v3733
      %v3789 = vpop.f32.mrf.mxu0
      %v3790 = vadd.f32 0.0, %v3789
      %v3791 = vpop.f32.mrf.mxu0
      %v3792 = vadd.f32 0.0, %v3791
      %3793 = vmatmul.bf16.gmra.mxu0 %v3736
      %v3794 = vpop.f32.mrf.mxu0
      %v3795 = vadd.f32 0.0, %v3794
      %v3796 = vpop.f32.mrf.mxu0
      %v3797 = vadd.f32 0.0, %v3796
      %3798 = vmatmul.bf16.gmra.mxu0 %v3739
      %v3799 = vpop.f32.mrf.mxu0
      %v3800 = vadd.f32 0.0, %v3799
      %v3801 = vpop.f32.mrf.mxu0
      %v3802 = vadd.f32 0.0, %v3801
      %3803 = vmatmul.bf16.gmra.mxu0 %v3742
      %v3804 = vpop.f32.mrf.mxu0
      %v3805 = vadd.f32 0.0, %v3804
      %v3806 = vpop.f32.mrf.mxu0
      %v3807 = vadd.f32 0.0, %v3806
      %3808 = vmatmul.bf16.gmra.mxu0 %v3745
      %v3809 = vpop.f32.mrf.mxu0
      %v3810 = vadd.f32 0.0, %v3809
      %v3811 = vpop.f32.mrf.mxu0
      %v3812 = vadd.f32 0.0, %v3811
      %3813 = vmatmul.bf16.gmra.mxu0 %v3748
      %v3814 = vpop.f32.mrf.mxu0
      %v3815 = vadd.f32 0.0, %v3814
      %v3816 = vpop.f32.mrf.mxu0
      %v3817 = vadd.f32 0.0, %v3816
      %3818 = vdwg.mxu0
      %3819 = vmatpush.bf16.msra.mxu0 0
      %3820 = vmatpush.bf16.msra.mxu0 0
      %3821 = vmatpush.bf16.msra.mxu0 0
      %3822 = vmatpush.bf16.msra.mxu0 0
      %3823 = vmatpush.bf16.msra.mxu0 0
      %3824 = vmatpush.bf16.msra.mxu0 0
      %3825 = vmatpush.bf16.msra.mxu0 0
      %3826 = vmatpush.bf16.msra.mxu0 %v3711
      %3827 = vmatmul.bf16.gmra.mxu0 %v3715
      %v3828 = vpop.f32.mrf.mxu0
      %v3829 = vadd.f32 0.0, %v3828
      %v3830 = vpop.f32.mrf.mxu0
      %v3831 = vadd.f32 0.0, %v3830
      %3832 = vmatmul.bf16.gmra.mxu0 %v3718
      %v3833 = vpop.f32.mrf.mxu0
      %v3834 = vadd.f32 0.0, %v3833
      %v3835 = vpop.f32.mrf.mxu0
      %v3836 = vadd.f32 0.0, %v3835
      %3837 = vmatmul.bf16.gmra.mxu0 %v3721
      %v3838 = vpop.f32.mrf.mxu0
      %v3839 = vadd.f32 0.0, %v3838
      %v3840 = vpop.f32.mrf.mxu0
      %v3841 = vadd.f32 0.0, %v3840
      %3842 = vmatmul.bf16.gmra.mxu0 %v3724
      %v3843 = vpop.f32.mrf.mxu0
      %v3844 = vadd.f32 0.0, %v3843
      %v3845 = vpop.f32.mrf.mxu0
      %v3846 = vadd.f32 0.0, %v3845
      %3847 = vmatmul.bf16.gmra.mxu0 %v3727
      %v3848 = vpop.f32.mrf.mxu0
      %v3849 = vadd.f32 0.0, %v3848
      %v3850 = vpop.f32.mrf.mxu0
      %v3851 = vadd.f32 0.0, %v3850
      %3852 = vmatmul.bf16.gmra.mxu0 %v3730
      %v3853 = vpop.f32.mrf.mxu0
      %v3854 = vadd.f32 0.0, %v3853
      %v3855 = vpop.f32.mrf.mxu0
      %v3856 = vadd.f32 0.0, %v3855
      %3857 = vmatmul.bf16.gmra.mxu0 %v3733
      %v3858 = vpop.f32.mrf.mxu0
      %v3859 = vadd.f32 0.0, %v3858
      %v3860 = vpop.f32.mrf.mxu0
      %v3861 = vadd.f32 0.0, %v3860
      %3862 = vmatmul.bf16.gmra.mxu0 %v3736
      %v3863 = vpop.f32.mrf.mxu0
      %v3864 = vadd.f32 0.0, %v3863
      %v3865 = vpop.f32.mrf.mxu0
      %v3866 = vadd.f32 0.0, %v3865
      %3867 = vmatmul.bf16.gmra.mxu0 %v3739
      %v3868 = vpop.f32.mrf.mxu0
      %v3869 = vadd.f32 0.0, %v3868
      %v3870 = vpop.f32.mrf.mxu0
      %v3871 = vadd.f32 0.0, %v3870
      %3872 = vmatmul.bf16.gmra.mxu0 %v3742
      %v3873 = vpop.f32.mrf.mxu0
      %v3874 = vadd.f32 0.0, %v3873
      %v3875 = vpop.f32.mrf.mxu0
      %v3876 = vadd.f32 0.0, %v3875
      %3877 = vmatmul.bf16.gmra.mxu0 %v3745
      %v3878 = vpop.f32.mrf.mxu0
      %v3879 = vadd.f32 0.0, %v3878
      %v3880 = vpop.f32.mrf.mxu0
      %v3881 = vadd.f32 0.0, %v3880
      %3882 = vmatmul.bf16.gmra.mxu0 %v3748
      %v3883 = vpop.f32.mrf.mxu0
      %v3884 = vadd.f32 0.0, %v3883
      %v3885 = vpop.f32.mrf.mxu0
      %v3886 = vadd.f32 0.0, %v3885
      %3887 = vdwg.mxu0
      %v3888 = vadd.f32 %v3406, %v3760
      %v3889 = vadd.f32 %v3475, %v3829
      %v3890 = vadd.f32 %v3408, %v3762
      %v3891 = vadd.f32 %v3477, %v3831
      %v3892 = vadd.f32 %v3411, %v3765
      %v3893 = vadd.f32 %v3480, %v3834
      %v3894 = vadd.f32 %v3413, %v3767
      %v3895 = vadd.f32 %v3482, %v3836
      %v3896 = vadd.f32 %v3416, %v3770
      %v3897 = vadd.f32 %v3485, %v3839
      %v3898 = vadd.f32 %v3418, %v3772
      %v3899 = vadd.f32 %v3487, %v3841
      %v3900 = vadd.f32 %v3421, %v3775
      %v3901 = vadd.f32 %v3490, %v3844
      %v3902 = vadd.f32 %v3423, %v3777
      %v3903 = vadd.f32 %v3492, %v3846
      %v3904 = vadd.f32 %v3426, %v3780
      %v3905 = vadd.f32 %v3495, %v3849
      %v3906 = vadd.f32 %v3428, %v3782
      %v3907 = vadd.f32 %v3497, %v3851
      %v3908 = vadd.f32 %v3431, %v3785
      %v3909 = vadd.f32 %v3500, %v3854
      %v3910 = vadd.f32 %v3433, %v3787
      %v3911 = vadd.f32 %v3502, %v3856
      %v3912 = vadd.f32 %v3436, %v3790
      %v3913 = vadd.f32 %v3505, %v3859
      %v3914 = vadd.f32 %v3438, %v3792
      %v3915 = vadd.f32 %v3507, %v3861
      %v3916 = vadd.f32 %v3441, %v3795
      %v3917 = vadd.f32 %v3510, %v3864
      %v3918 = vadd.f32 %v3443, %v3797
      %v3919 = vadd.f32 %v3512, %v3866
      %v3920 = vadd.f32 %v3446, %v3800
      %v3921 = vadd.f32 %v3515, %v3869
      %v3922 = vadd.f32 %v3448, %v3802
      %v3923 = vadd.f32 %v3517, %v3871
      %v3924 = vadd.f32 %v3451, %v3805
      %v3925 = vadd.f32 %v3520, %v3874
      %v3926 = vadd.f32 %v3453, %v3807
      %v3927 = vadd.f32 %v3522, %v3876
      %v3928 = vadd.f32 %v3456, %v3810
      %v3929 = vadd.f32 %v3525, %v3879
      %v3930 = vadd.f32 %v3458, %v3812
      %v3931 = vadd.f32 %v3527, %v3881
      %v3932 = vadd.f32 %v3461, %v3815
      %v3933 = vadd.f32 %v3530, %v3884
      %v3934 = vadd.f32 %v3463, %v3817
      %v3935 = vadd.f32 %v3532, %v3886
      %3936 = vset.pattern.permute.xlu0 3
      %3937 = vperm.xlu0 %3936, %v2467
      %v3938 = vpop.permute.xlu0 %3937
      %3940 = vset.pattern.permute.xlu0 3
      %3941 = vperm.xlu0 %3940, %v2482
      %v3942 = vpop.permute.xlu0 %3941
      %3944 = vset.pattern.permute.xlu0 3
      %3945 = vperm.xlu0 %3944, %v2497
      %v3946 = vpop.permute.xlu0 %3945
      %3948 = vset.pattern.permute.xlu0 3
      %3949 = vperm.xlu0 %3948, %v2512
      %v3950 = vpop.permute.xlu0 %3949
      %3952 = vset.pattern.permute.xlu0 3
      %3953 = vperm.xlu0 %3952, %v2527
      %v3954 = vpop.permute.xlu0 %3953
      %3956 = vset.pattern.permute.xlu0 3
      %3957 = vperm.xlu0 %3956, %v2542
      %v3958 = vpop.permute.xlu0 %3957
      %3960 = vset.pattern.permute.xlu0 3
      %3961 = vperm.xlu0 %3960, %v2557
      %v3962 = vpop.permute.xlu0 %3961
      %3964 = vset.pattern.permute.xlu0 3
      %3965 = vperm.xlu0 %3964, %v2572
      %v3966 = vpop.permute.xlu0 %3965
      %3968 = vset.pattern.permute.xlu0 3
      %3969 = vperm.xlu0 %3968, %v2587
      %v3970 = vpop.permute.xlu0 %3969
      %3972 = vset.pattern.permute.xlu0 3
      %3973 = vperm.xlu0 %3972, %v2602
      %v3974 = vpop.permute.xlu0 %3973
      %3976 = vset.pattern.permute.xlu0 3
      %3977 = vperm.xlu0 %3976, %v2617
      %v3978 = vpop.permute.xlu0 %3977
      %3980 = vset.pattern.permute.xlu0 3
      %3981 = vperm.xlu0 %3980, %v2632
      %v3982 = vpop.permute.xlu0 %3981
      %3984 = vset.pattern.permute.xlu0 3
      %3985 = vperm.xlu0 %3984, %v2647
      %v3986 = vpop.permute.xlu0 %3985
      %3988 = vset.pattern.permute.xlu0 3
      %3989 = vperm.xlu0 %3988, %v2662
      %v3990 = vpop.permute.xlu0 %3989
      %3992 = vset.pattern.permute.xlu0 3
      %3993 = vperm.xlu0 %3992, %v2677
      %v3994 = vpop.permute.xlu0 %3993
      %3996 = vset.pattern.permute.xlu0 3
      %3997 = vperm.xlu0 %3996, %v2692
      %v3998 = vpop.permute.xlu0 %3997
      %4000 = vset.pattern.permute.xlu0 3
      %4001 = vperm.xlu0 %4000, %v2707
      %v4002 = vpop.permute.xlu0 %4001
      %4004 = vset.pattern.permute.xlu0 3
      %4005 = vperm.xlu0 %4004, %v2722
      %v4006 = vpop.permute.xlu0 %4005
      %4008 = vset.pattern.permute.xlu0 3
      %4009 = vperm.xlu0 %4008, %v2737
      %v4010 = vpop.permute.xlu0 %4009
      %4012 = vset.pattern.permute.xlu0 3
      %4013 = vperm.xlu0 %4012, %v2752
      %v4014 = vpop.permute.xlu0 %4013
      %4016 = vset.pattern.permute.xlu0 3
      %4017 = vperm.xlu0 %4016, %v2767
      %v4018 = vpop.permute.xlu0 %4017
      %4020 = vset.pattern.permute.xlu0 3
      %4021 = vperm.xlu0 %4020, %v2782
      %v4022 = vpop.permute.xlu0 %4021
      %4024 = vset.pattern.permute.xlu0 3
      %4025 = vperm.xlu0 %4024, %v2797
      %v4026 = vpop.permute.xlu0 %4025
      %4028 = vset.pattern.permute.xlu0 3
      %4029 = vperm.xlu0 %4028, %v2812
      %v4030 = vpop.permute.xlu0 %4029
      %v4032 = vmul.f32 %v2813, %v3938
      %v4033 = vmul.f32 %v2814, %v3942
      %v4034 = vmul.f32 %v2815, %v3946
      %v4035 = vmul.f32 %v2816, %v3950
      %v4036 = vmul.f32 %v2817, %v3954
      %v4037 = vmul.f32 %v2818, %v3958
      %v4038 = vmul.f32 %v2819, %v3962
      %v4039 = vmul.f32 %v2820, %v3966
      %v4040 = vmul.f32 %v2821, %v3970
      %v4041 = vmul.f32 %v2822, %v3974
      %v4042 = vmul.f32 %v2823, %v3978
      %v4043 = vmul.f32 %v2824, %v3982
      %v4044 = vmul.f32 %v2825, %v3986
      %v4045 = vmul.f32 %v2826, %v3990
      %v4046 = vmul.f32 %v2827, %v3994
      %v4047 = vmul.f32 %v2828, %v3998
      %v4048 = vmul.f32 %v2829, %v4002
      %v4049 = vmul.f32 %v2830, %v4006
      %v4050 = vmul.f32 %v2831, %v4010
      %v4051 = vmul.f32 %v2832, %v4014
      %v4052 = vmul.f32 %v2833, %v4018
      %v4053 = vmul.f32 %v2834, %v4022
      %v4054 = vmul.f32 %v2835, %v4026
      %v4055 = vmul.f32 %v2836, %v4030
      %v4056 = vpack.c.bf16 %v4033, %v4032
      %v4057 = vpack.c.bf16 %v4035, %v4034
      %v4058 = vpack.c.bf16 %v4037, %v4036
      %v4059 = vpack.c.bf16 %v4039, %v4038
      %v4060 = vpack.c.bf16 %v4041, %v4040
      %v4061 = vpack.c.bf16 %v4043, %v4042
      %v4062 = vpack.c.bf16 %v4045, %v4044
      %v4063 = vpack.c.bf16 %v4047, %v4046
      %v4064 = vpack.c.bf16 %v4049, %v4048
      %v4065 = vpack.c.bf16 %v4051, %v4050
      %v4066 = vpack.c.bf16 %v4053, %v4052
      %v4067 = vpack.c.bf16 %v4055, %v4054
      %v4068 = vld [vmem:[%s7 + $0x30] sm:$0xff]
      %v4069 = vld [vmem:[%s7 + $0x38] sm:$0xff]
      %4082 = vrot.lane.b32.xlu0 %v4056, 80
      %v4083 = vpop.permute.xlu0 %4082
      %4084 = vrot.lane.b32.xlu0 %v4057, 80
      %v4085 = vpop.permute.xlu0 %4084
      %4086 = vrot.lane.b32.xlu0 %v4058, 80
      %v4087 = vpop.permute.xlu0 %4086
      %4088 = vrot.lane.b32.xlu0 %v4059, 80
      %v4089 = vpop.permute.xlu0 %4088
      %4090 = vrot.lane.b32.xlu0 %v4060, 80
      %v4091 = vpop.permute.xlu0 %4090
      %4092 = vrot.lane.b32.xlu0 %v4061, 80
      %v4093 = vpop.permute.xlu0 %4092
      %4094 = vrot.lane.b32.xlu0 %v4062, 80
      %v4095 = vpop.permute.xlu0 %4094
      %4096 = vrot.lane.b32.xlu0 %v4063, 80
      %v4097 = vpop.permute.xlu0 %4096
      %4098 = vrot.lane.b32.xlu0 %v4064, 80
      %v4099 = vpop.permute.xlu0 %4098
      %4100 = vrot.lane.b32.xlu0 %v4065, 80
      %v4101 = vpop.permute.xlu0 %4100
      %4102 = vrot.lane.b32.xlu0 %v4066, 80
      %v4103 = vpop.permute.xlu0 %4102
      %4104 = vrot.lane.b32.xlu0 %v4067, 80
      %v4105 = vpop.permute.xlu0 %4104
      %v4108 = vunpack.c.l.b16 %v4068
      %v4109 = vunpack.c.h.b16 %v4068
      %v4110 = vunpack.c.l.b16 %v4069
      %v4111 = vunpack.c.h.b16 %v4069
      %v4112 = vpack.c.b16 %v4110, %v4108
      %v4113 = vpack.c.b16 %v4111, %v4109
      %v4117 = vsel %vm3175, %v4083, 0
      %v4120 = vsel %vm3175, %v4085, 0
      %v4123 = vsel %vm3175, %v4087, 0
      %v4126 = vsel %vm3175, %v4089, 0
      %v4129 = vsel %vm3175, %v4091, 0
      %v4132 = vsel %vm3175, %v4093, 0
      %v4135 = vsel %vm3175, %v4095, 0
      %v4138 = vsel %vm3175, %v4097, 0
      %v4141 = vsel %vm3175, %v4099, 0
      %v4144 = vsel %vm3175, %v4101, 0
      %v4147 = vsel %vm3175, %v4103, 0
      %v4150 = vsel %vm3175, %v4105, 0
      %4152 = vmatpush.bf16.msra.mxu0 0
      %4153 = vmatpush.bf16.msra.mxu0 0
      %4154 = vmatpush.bf16.msra.mxu0 0
      %4155 = vmatpush.bf16.msra.mxu0 0
      %4156 = vmatpush.bf16.msra.mxu0 0
      %4157 = vmatpush.bf16.msra.mxu0 0
      %4158 = vmatpush.bf16.msra.mxu0 0
      %4159 = vmatpush.bf16.msra.mxu0 %v4112
      %4160 = vmatmul.bf16.gmra.mxu0 %v4117
      %v4161 = vpop.f32.mrf.mxu0
      %v4162 = vadd.f32 0.0, %v4161
      %v4163 = vpop.f32.mrf.mxu0
      %v4164 = vadd.f32 0.0, %v4163
      %4165 = vmatmul.bf16.gmra.mxu0 %v4120
      %v4166 = vpop.f32.mrf.mxu0
      %v4167 = vadd.f32 0.0, %v4166
      %v4168 = vpop.f32.mrf.mxu0
      %v4169 = vadd.f32 0.0, %v4168
      %4170 = vmatmul.bf16.gmra.mxu0 %v4123
      %v4171 = vpop.f32.mrf.mxu0
      %v4172 = vadd.f32 0.0, %v4171
      %v4173 = vpop.f32.mrf.mxu0
      %v4174 = vadd.f32 0.0, %v4173
      %4175 = vmatmul.bf16.gmra.mxu0 %v4126
      %v4176 = vpop.f32.mrf.mxu0
      %v4177 = vadd.f32 0.0, %v4176
      %v4178 = vpop.f32.mrf.mxu0
      %v4179 = vadd.f32 0.0, %v4178
      %4180 = vmatmul.bf16.gmra.mxu0 %v4129
      %v4181 = vpop.f32.mrf.mxu0
      %v4182 = vadd.f32 0.0, %v4181
      %v4183 = vpop.f32.mrf.mxu0
      %v4184 = vadd.f32 0.0, %v4183
      %4185 = vmatmul.bf16.gmra.mxu0 %v4132
      %v4186 = vpop.f32.mrf.mxu0
      %v4187 = vadd.f32 0.0, %v4186
      %v4188 = vpop.f32.mrf.mxu0
      %v4189 = vadd.f32 0.0, %v4188
      %4190 = vmatmul.bf16.gmra.mxu0 %v4135
      %v4191 = vpop.f32.mrf.mxu0
      %v4192 = vadd.f32 0.0, %v4191
      %v4193 = vpop.f32.mrf.mxu0
      %v4194 = vadd.f32 0.0, %v4193
      %4195 = vmatmul.bf16.gmra.mxu0 %v4138
      %v4196 = vpop.f32.mrf.mxu0
      %v4197 = vadd.f32 0.0, %v4196
      %v4198 = vpop.f32.mrf.mxu0
      %v4199 = vadd.f32 0.0, %v4198
      %4200 = vmatmul.bf16.gmra.mxu0 %v4141
      %v4201 = vpop.f32.mrf.mxu0
      %v4202 = vadd.f32 0.0, %v4201
      %v4203 = vpop.f32.mrf.mxu0
      %v4204 = vadd.f32 0.0, %v4203
      %4205 = vmatmul.bf16.gmra.mxu0 %v4144
      %v4206 = vpop.f32.mrf.mxu0
      %v4207 = vadd.f32 0.0, %v4206
      %v4208 = vpop.f32.mrf.mxu0
      %v4209 = vadd.f32 0.0, %v4208
      %4210 = vmatmul.bf16.gmra.mxu0 %v4147
      %v4211 = vpop.f32.mrf.mxu0
      %v4212 = vadd.f32 0.0, %v4211
      %v4213 = vpop.f32.mrf.mxu0
      %v4214 = vadd.f32 0.0, %v4213
      %4215 = vmatmul.bf16.gmra.mxu0 %v4150
      %v4216 = vpop.f32.mrf.mxu0
      %v4217 = vadd.f32 0.0, %v4216
      %v4218 = vpop.f32.mrf.mxu0
      %v4219 = vadd.f32 0.0, %v4218
      %4220 = vdwg.mxu0
      %4221 = vmatpush.bf16.msra.mxu0 0
      %4222 = vmatpush.bf16.msra.mxu0 0
      %4223 = vmatpush.bf16.msra.mxu0 0
      %4224 = vmatpush.bf16.msra.mxu0 0
      %4225 = vmatpush.bf16.msra.mxu0 0
      %4226 = vmatpush.bf16.msra.mxu0 0
      %4227 = vmatpush.bf16.msra.mxu0 0
      %4228 = vmatpush.bf16.msra.mxu0 %v4113
      %4229 = vmatmul.bf16.gmra.mxu0 %v4117
      %v4230 = vpop.f32.mrf.mxu0
      %v4231 = vadd.f32 0.0, %v4230
      %v4232 = vpop.f32.mrf.mxu0
      %v4233 = vadd.f32 0.0, %v4232
      %4234 = vmatmul.bf16.gmra.mxu0 %v4120
      %v4235 = vpop.f32.mrf.mxu0
      %v4236 = vadd.f32 0.0, %v4235
      %v4237 = vpop.f32.mrf.mxu0
      %v4238 = vadd.f32 0.0, %v4237
      %4239 = vmatmul.bf16.gmra.mxu0 %v4123
      %v4240 = vpop.f32.mrf.mxu0
      %v4241 = vadd.f32 0.0, %v4240
      %v4242 = vpop.f32.mrf.mxu0
      %v4243 = vadd.f32 0.0, %v4242
      %4244 = vmatmul.bf16.gmra.mxu0 %v4126
      %v4245 = vpop.f32.mrf.mxu0
      %v4246 = vadd.f32 0.0, %v4245
      %v4247 = vpop.f32.mrf.mxu0
      %v4248 = vadd.f32 0.0, %v4247
      %4249 = vmatmul.bf16.gmra.mxu0 %v4129
      %v4250 = vpop.f32.mrf.mxu0
      %v4251 = vadd.f32 0.0, %v4250
      %v4252 = vpop.f32.mrf.mxu0
      %v4253 = vadd.f32 0.0, %v4252
      %4254 = vmatmul.bf16.gmra.mxu0 %v4132
      %v4255 = vpop.f32.mrf.mxu0
      %v4256 = vadd.f32 0.0, %v4255
      %v4257 = vpop.f32.mrf.mxu0
      %v4258 = vadd.f32 0.0, %v4257
      %4259 = vmatmul.bf16.gmra.mxu0 %v4135
      %v4260 = vpop.f32.mrf.mxu0
      %v4261 = vadd.f32 0.0, %v4260
      %v4262 = vpop.f32.mrf.mxu0
      %v4263 = vadd.f32 0.0, %v4262
      %4264 = vmatmul.bf16.gmra.mxu0 %v4138
      %v4265 = vpop.f32.mrf.mxu0
      %v4266 = vadd.f32 0.0, %v4265
      %v4267 = vpop.f32.mrf.mxu0
      %v4268 = vadd.f32 0.0, %v4267
      %4269 = vmatmul.bf16.gmra.mxu0 %v4141
      %v4270 = vpop.f32.mrf.mxu0
      %v4271 = vadd.f32 0.0, %v4270
      %v4272 = vpop.f32.mrf.mxu0
      %v4273 = vadd.f32 0.0, %v4272
      %4274 = vmatmul.bf16.gmra.mxu0 %v4144
      %v4275 = vpop.f32.mrf.mxu0
      %v4276 = vadd.f32 0.0, %v4275
      %v4277 = vpop.f32.mrf.mxu0
      %v4278 = vadd.f32 0.0, %v4277
      %4279 = vmatmul.bf16.gmra.mxu0 %v4147
      %v4280 = vpop.f32.mrf.mxu0
      %v4281 = vadd.f32 0.0, %v4280
      %v4282 = vpop.f32.mrf.mxu0
      %v4283 = vadd.f32 0.0, %v4282
      %4284 = vmatmul.bf16.gmra.mxu0 %v4150
      %v4285 = vpop.f32.mrf.mxu0
      %v4286 = vadd.f32 0.0, %v4285
      %v4287 = vpop.f32.mrf.mxu0
      %v4288 = vadd.f32 0.0, %v4287
      %4289 = vdwg.mxu0
      %v4290 = vadd.f32 %v3888, %v4162
      %v4291 = vadd.f32 %v3889, %v4231
      %v4292 = vadd.f32 %v3890, %v4164
      %v4293 = vadd.f32 %v3891, %v4233
      %v4294 = vadd.f32 %v3892, %v4167
      %v4295 = vadd.f32 %v3893, %v4236
      %v4296 = vadd.f32 %v3894, %v4169
      %v4297 = vadd.f32 %v3895, %v4238
      %v4298 = vadd.f32 %v3896, %v4172
      %v4299 = vadd.f32 %v3897, %v4241
      %v4300 = vadd.f32 %v3898, %v4174
      %v4301 = vadd.f32 %v3899, %v4243
      %v4302 = vadd.f32 %v3900, %v4177
      %v4303 = vadd.f32 %v3901, %v4246
      %v4304 = vadd.f32 %v3902, %v4179
      %v4305 = vadd.f32 %v3903, %v4248
      %v4306 = vadd.f32 %v3904, %v4182
      %v4307 = vadd.f32 %v3905, %v4251
      %v4308 = vadd.f32 %v3906, %v4184
      %v4309 = vadd.f32 %v3907, %v4253
      %v4310 = vadd.f32 %v3908, %v4187
      %v4311 = vadd.f32 %v3909, %v4256
      %v4312 = vadd.f32 %v3910, %v4189
      %v4313 = vadd.f32 %v3911, %v4258
      %v4314 = vadd.f32 %v3912, %v4192
      %v4315 = vadd.f32 %v3913, %v4261
      %v4316 = vadd.f32 %v3914, %v4194
      %v4317 = vadd.f32 %v3915, %v4263
      %v4318 = vadd.f32 %v3916, %v4197
      %v4319 = vadd.f32 %v3917, %v4266
      %v4320 = vadd.f32 %v3918, %v4199
      %v4321 = vadd.f32 %v3919, %v4268
      %v4322 = vadd.f32 %v3920, %v4202
      %v4323 = vadd.f32 %v3921, %v4271
      %v4324 = vadd.f32 %v3922, %v4204
      %v4325 = vadd.f32 %v3923, %v4273
      %v4326 = vadd.f32 %v3924, %v4207
      %v4327 = vadd.f32 %v3925, %v4276
      %v4328 = vadd.f32 %v3926, %v4209
      %v4329 = vadd.f32 %v3927, %v4278
      %v4330 = vadd.f32 %v3928, %v4212
      %v4331 = vadd.f32 %v3929, %v4281
      %v4332 = vadd.f32 %v3930, %v4214
      %v4333 = vadd.f32 %v3931, %v4283
      %v4334 = vadd.f32 %v3932, %v4217
      %v4335 = vadd.f32 %v3933, %v4286
      %v4336 = vadd.f32 %v3934, %v4219
      %v4337 = vadd.f32 %v3935, %v4288
      %v4338 = vrot.slane %v4290, 7
      %v4339 = vrot.slane %v4292, 7
      %v4340 = vrot.slane %v4294, 7
      %v4341 = vrot.slane %v4296, 7
      %v4342 = vrot.slane %v4298, 7
      %v4343 = vrot.slane %v4300, 7
      %v4344 = vrot.slane %v4302, 7
      %v4345 = vrot.slane %v4304, 7
      %v4346 = vrot.slane %v4306, 7
      %v4347 = vrot.slane %v4308, 7
      %v4348 = vrot.slane %v4310, 7
      %v4349 = vrot.slane %v4312, 7
      %v4350 = vrot.slane %v4314, 7
      %v4351 = vrot.slane %v4316, 7
      %v4352 = vrot.slane %v4318, 7
      %v4353 = vrot.slane %v4320, 7
      %v4354 = vrot.slane %v4322, 7
      %v4355 = vrot.slane %v4324, 7
      %v4356 = vrot.slane %v4326, 7
      %v4357 = vrot.slane %v4328, 7
      %v4358 = vrot.slane %v4330, 7
      %v4359 = vrot.slane %v4332, 7
      %v4360 = vrot.slane %v4334, 7
      %v4361 = vrot.slane %v4336, 7
      %v4362 = vsel %vm1207, %v4360, %v4361
      %v4363 = vsel %vm1207, %v4359, %v4360
      %v4364 = vsel %vm1207, %v4358, %v4359
      %v4365 = vsel %vm1207, %v4357, %v4358
      %v4366 = vsel %vm1207, %v4356, %v4357
      %v4367 = vsel %vm1207, %v4355, %v4356
      %v4368 = vsel %vm1207, %v4354, %v4355
      %v4369 = vsel %vm1207, %v4353, %v4354
      %v4370 = vsel %vm1207, %v4352, %v4353
      %v4371 = vsel %vm1207, %v4351, %v4352
      %v4372 = vsel %vm1207, %v4350, %v4351
      %v4373 = vsel %vm1207, %v4349, %v4350
      %v4374 = vsel %vm1207, %v4348, %v4349
      %v4375 = vsel %vm1207, %v4347, %v4348
      %v4376 = vsel %vm1207, %v4346, %v4347
      %v4377 = vsel %vm1207, %v4345, %v4346
      %v4378 = vsel %vm1207, %v4344, %v4345
      %v4379 = vsel %vm1207, %v4343, %v4344
      %v4380 = vsel %vm1207, %v4342, %v4343
      %v4381 = vsel %vm1207, %v4341, %v4342
      %v4382 = vsel %vm1207, %v4340, %v4341
      %v4383 = vsel %vm1207, %v4339, %v4340
      %v4384 = vsel %vm1207, %v4338, %v4339
      %v4385 = vsel %vm1207, %v4361, %v4338
      %v4386 = vsel %vm1368, %v4385, 0.0
      %v4387 = vsel %vm1369, %v4384, 0.0
      %v4388 = vsel %vm1370, %v4383, 0.0
      %v4389 = vsel %vm1371, %v4382, 0.0
      %v4390 = vsel %vm1372, %v4381, 0.0
      %v4391 = vsel %vm1373, %v4380, 0.0
      %v4392 = vsel %vm1374, %v4379, 0.0
      %v4393 = vsel %vm1375, %v4378, 0.0
      %v4394 = vsel %vm1376, %v4377, 0.0
      %v4395 = vsel %vm1377, %v4376, 0.0
      %v4396 = vsel %vm1378, %v4375, 0.0
      %v4397 = vsel %vm1379, %v4374, 0.0
      %v4398 = vsel %vm1380, %v4373, 0.0
      %v4399 = vsel %vm1381, %v4372, 0.0
      %v4400 = vsel %vm1382, %v4371, 0.0
      %v4401 = vsel %vm1383, %v4370, 0.0
      %v4402 = vsel %vm1384, %v4369, 0.0
      %v4403 = vsel %vm1385, %v4368, 0.0
      %v4404 = vsel %vm1386, %v4367, 0.0
      %v4405 = vsel %vm1387, %v4366, 0.0
      %v4406 = vsel %vm1388, %v4365, 0.0
      %v4407 = vsel %vm1389, %v4364, 0.0
      %v4408 = vsel %vm1390, %v4363, 0.0
      %v4409 = vsel %vm1391, %v4362, 0.0
      %4458 = vrot.lane.b32.xlu0 %v4290, 32
      %v4459 = vpop.permute.xlu0 %4458
      %4460 = vrot.lane.b32.xlu0 %v4291, 32
      %v4461 = vpop.permute.xlu0 %4460
      %4462 = vrot.lane.b32.xlu0 %v4292, 32
      %v4463 = vpop.permute.xlu0 %4462
      %4464 = vrot.lane.b32.xlu0 %v4293, 32
      %v4465 = vpop.permute.xlu0 %4464
      %4466 = vrot.lane.b32.xlu0 %v4294, 32
      %v4467 = vpop.permute.xlu0 %4466
      %4468 = vrot.lane.b32.xlu0 %v4295, 32
      %v4469 = vpop.permute.xlu0 %4468
      %4470 = vrot.lane.b32.xlu0 %v4296, 32
      %v4471 = vpop.permute.xlu0 %4470
      %4472 = vrot.lane.b32.xlu0 %v4297, 32
      %v4473 = vpop.permute.xlu0 %4472
      %4474 = vrot.lane.b32.xlu0 %v4298, 32
      %v4475 = vpop.permute.xlu0 %4474
      %4476 = vrot.lane.b32.xlu0 %v4299, 32
      %v4477 = vpop.permute.xlu0 %4476
      %4478 = vrot.lane.b32.xlu0 %v4300, 32
      %v4479 = vpop.permute.xlu0 %4478
      %4480 = vrot.lane.b32.xlu0 %v4301, 32
      %v4481 = vpop.permute.xlu0 %4480
      %4482 = vrot.lane.b32.xlu0 %v4302, 32
      %v4483 = vpop.permute.xlu0 %4482
      %4484 = vrot.lane.b32.xlu0 %v4303, 32
      %v4485 = vpop.permute.xlu0 %4484
      %4486 = vrot.lane.b32.xlu0 %v4304, 32
      %v4487 = vpop.permute.xlu0 %4486
      %4488 = vrot.lane.b32.xlu0 %v4305, 32
      %v4489 = vpop.permute.xlu0 %4488
      %4490 = vrot.lane.b32.xlu0 %v4306, 32
      %v4491 = vpop.permute.xlu0 %4490
      %4492 = vrot.lane.b32.xlu0 %v4307, 32
      %v4493 = vpop.permute.xlu0 %4492
      %4494 = vrot.lane.b32.xlu0 %v4308, 32
      %v4495 = vpop.permute.xlu0 %4494
      %4496 = vrot.lane.b32.xlu0 %v4309, 32
      %v4497 = vpop.permute.xlu0 %4496
      %4498 = vrot.lane.b32.xlu0 %v4310, 32
      %v4499 = vpop.permute.xlu0 %4498
      %4500 = vrot.lane.b32.xlu0 %v4311, 32
      %v4501 = vpop.permute.xlu0 %4500
      %4502 = vrot.lane.b32.xlu0 %v4312, 32
      %v4503 = vpop.permute.xlu0 %4502
      %4504 = vrot.lane.b32.xlu0 %v4313, 32
      %v4505 = vpop.permute.xlu0 %4504
      %4506 = vrot.lane.b32.xlu0 %v4314, 32
      %v4507 = vpop.permute.xlu0 %4506
      %4508 = vrot.lane.b32.xlu0 %v4315, 32
      %v4509 = vpop.permute.xlu0 %4508
      %4510 = vrot.lane.b32.xlu0 %v4316, 32
      %v4511 = vpop.permute.xlu0 %4510
      %4512 = vrot.lane.b32.xlu0 %v4317, 32
      %v4513 = vpop.permute.xlu0 %4512
      %4514 = vrot.lane.b32.xlu0 %v4318, 32
      %v4515 = vpop.permute.xlu0 %4514
      %4516 = vrot.lane.b32.xlu0 %v4319, 32
      %v4517 = vpop.permute.xlu0 %4516
      %4518 = vrot.lane.b32.xlu0 %v4320, 32
      %v4519 = vpop.permute.xlu0 %4518
      %4520 = vrot.lane.b32.xlu0 %v4321, 32
      %v4521 = vpop.permute.xlu0 %4520
      %4522 = vrot.lane.b32.xlu0 %v4322, 32
      %v4523 = vpop.permute.xlu0 %4522
      %4524 = vrot.lane.b32.xlu0 %v4323, 32
      %v4525 = vpop.permute.xlu0 %4524
      %4526 = vrot.lane.b32.xlu0 %v4324, 32
      %v4527 = vpop.permute.xlu0 %4526
      %4528 = vrot.lane.b32.xlu0 %v4325, 32
      %v4529 = vpop.permute.xlu0 %4528
      %4530 = vrot.lane.b32.xlu0 %v4326, 32
      %v4531 = vpop.permute.xlu0 %4530
      %4532 = vrot.lane.b32.xlu0 %v4327, 32
      %v4533 = vpop.permute.xlu0 %4532
      %4534 = vrot.lane.b32.xlu0 %v4328, 32
      %v4535 = vpop.permute.xlu0 %4534
      %4536 = vrot.lane.b32.xlu0 %v4329, 32
      %v4537 = vpop.permute.xlu0 %4536
      %4538 = vrot.lane.b32.xlu0 %v4330, 32
      %v4539 = vpop.permute.xlu0 %4538
      %4540 = vrot.lane.b32.xlu0 %v4331, 32
      %v4541 = vpop.permute.xlu0 %4540
      %4542 = vrot.lane.b32.xlu0 %v4332, 32
      %v4543 = vpop.permute.xlu0 %4542
      %4544 = vrot.lane.b32.xlu0 %v4333, 32
      %v4545 = vpop.permute.xlu0 %4544
      %4546 = vrot.lane.b32.xlu0 %v4334, 32
      %v4547 = vpop.permute.xlu0 %4546
      %4548 = vrot.lane.b32.xlu0 %v4335, 32
      %v4549 = vpop.permute.xlu0 %4548
      %4550 = vrot.lane.b32.xlu0 %v4336, 32
      %v4551 = vpop.permute.xlu0 %4550
      %4552 = vrot.lane.b32.xlu0 %v4337, 32
      %v4553 = vpop.permute.xlu0 %4552
      %vm4554 = vcmask 261120
      %v4555 = vsel %vm4554, %v4459, %v4461
      %v4556 = vsel %vm4554, %v4463, %v4465
      %v4557 = vsel %vm4554, %v4467, %v4469
      %v4558 = vsel %vm4554, %v4471, %v4473
      %v4559 = vsel %vm4554, %v4475, %v4477
      %v4560 = vsel %vm4554, %v4479, %v4481
      %v4561 = vsel %vm4554, %v4483, %v4485
      %v4562 = vsel %vm4554, %v4487, %v4489
      %v4563 = vsel %vm4554, %v4491, %v4493
      %v4564 = vsel %vm4554, %v4495, %v4497
      %v4565 = vsel %vm4554, %v4499, %v4501
      %v4566 = vsel %vm4554, %v4503, %v4505
      %v4567 = vsel %vm4554, %v4507, %v4509
      %v4568 = vsel %vm4554, %v4511, %v4513
      %v4569 = vsel %vm4554, %v4515, %v4517
      %v4570 = vsel %vm4554, %v4519, %v4521
      %v4571 = vsel %vm4554, %v4523, %v4525
      %v4572 = vsel %vm4554, %v4527, %v4529
      %v4573 = vsel %vm4554, %v4531, %v4533
      %v4574 = vsel %vm4554, %v4535, %v4537
      %v4575 = vsel %vm4554, %v4539, %v4541
      %v4576 = vsel %vm4554, %v4543, %v4545
      %v4577 = vsel %vm4554, %v4547, %v4549
      %v4578 = vsel %vm4554, %v4551, %v4553
      %v4603 = vrot.slane %v4555, 1
      %v4604 = vrot.slane %v4556, 1
      %v4605 = vrot.slane %v4557, 1
      %v4606 = vrot.slane %v4558, 1
      %v4607 = vrot.slane %v4559, 1
      %v4608 = vrot.slane %v4560, 1
      %v4609 = vrot.slane %v4561, 1
      %v4610 = vrot.slane %v4562, 1
      %v4611 = vrot.slane %v4563, 1
      %v4612 = vrot.slane %v4564, 1
      %v4613 = vrot.slane %v4565, 1
      %v4614 = vrot.slane %v4566, 1
      %v4615 = vrot.slane %v4567, 1
      %v4616 = vrot.slane %v4568, 1
      %v4617 = vrot.slane %v4569, 1
      %v4618 = vrot.slane %v4570, 1
      %v4619 = vrot.slane %v4571, 1
      %v4620 = vrot.slane %v4572, 1
      %v4621 = vrot.slane %v4573, 1
      %v4622 = vrot.slane %v4574, 1
      %v4623 = vrot.slane %v4575, 1
      %v4624 = vrot.slane %v4576, 1
      %v4625 = vrot.slane %v4577, 1
      %v4626 = vrot.slane %v4578, 1
      %v4627 = vsel %vm1592, %v4625, %v4626
      %v4628 = vsel %vm1592, %v4624, %v4625
      %v4629 = vsel %vm1592, %v4623, %v4624
      %v4630 = vsel %vm1592, %v4622, %v4623
      %v4631 = vsel %vm1592, %v4621, %v4622
      %v4632 = vsel %vm1592, %v4620, %v4621
      %v4633 = vsel %vm1592, %v4619, %v4620
      %v4634 = vsel %vm1592, %v4618, %v4619
      %v4635 = vsel %vm1592, %v4617, %v4618
      %v4636 = vsel %vm1592, %v4616, %v4617
      %v4637 = vsel %vm1592, %v4615, %v4616
      %v4638 = vsel %vm1592, %v4614, %v4615
      %v4639 = vsel %vm1592, %v4613, %v4614
      %v4640 = vsel %vm1592, %v4612, %v4613
      %v4641 = vsel %vm1592, %v4611, %v4612
      %v4642 = vsel %vm1592, %v4610, %v4611
      %v4643 = vsel %vm1592, %v4609, %v4610
      %v4644 = vsel %vm1592, %v4608, %v4609
      %v4645 = vsel %vm1592, %v4607, %v4608
      %v4646 = vsel %vm1592, %v4606, %v4607
      %v4647 = vsel %vm1592, %v4605, %v4606
      %v4648 = vsel %vm1592, %v4604, %v4605
      %v4649 = vsel %vm1592, %v4603, %v4604
      %v4650 = vsel %vm1592, %v4626, %v4603
      %v4651 = vsel %vm1721, %v4649, 0.0
      %v4652 = vsel %vm1722, %v4648, 0.0
      %v4653 = vsel %vm1723, %v4647, 0.0
      %v4654 = vsel %vm1724, %v4646, 0.0
      %v4655 = vsel %vm1725, %v4645, 0.0
      %v4656 = vsel %vm1726, %v4644, 0.0
      %v4657 = vsel %vm1727, %v4643, 0.0
      %v4658 = vsel %vm1728, %v4642, 0.0
      %v4659 = vsel %vm1729, %v4641, 0.0
      %v4660 = vsel %vm1730, %v4640, 0.0
      %v4661 = vsel %vm1731, %v4639, 0.0
      %v4662 = vsel %vm1732, %v4638, 0.0
      %v4663 = vsel %vm1733, %v4637, 0.0
      %v4664 = vsel %vm1734, %v4636, 0.0
      %v4665 = vsel %vm1735, %v4635, 0.0
      %v4666 = vsel %vm1736, %v4634, 0.0
      %v4667 = vsel %vm1737, %v4633, 0.0
      %v4668 = vsel %vm1738, %v4632, 0.0
      %v4669 = vsel %vm1739, %v4631, 0.0
      %v4670 = vsel %vm1740, %v4630, 0.0
      %v4671 = vsel %vm1741, %v4629, 0.0
      %v4672 = vsel %vm1742, %v4628, 0.0
      %v4673 = vsel %vm1743, %v4627, 0.0
      %v4674 = vsel %vm1744, %v4650, 0.0
      %4675 = vrot.lane.b32.xlu0 %v4290, 80
      %v4676 = vpop.permute.xlu0 %4675
      %4677 = vrot.lane.b32.xlu0 %v4292, 80
      %v4678 = vpop.permute.xlu0 %4677
      %4679 = vrot.lane.b32.xlu0 %v4294, 80
      %v4680 = vpop.permute.xlu0 %4679
      %4681 = vrot.lane.b32.xlu0 %v4296, 80
      %v4682 = vpop.permute.xlu0 %4681
      %4683 = vrot.lane.b32.xlu0 %v4298, 80
      %v4684 = vpop.permute.xlu0 %4683
      %4685 = vrot.lane.b32.xlu0 %v4300, 80
      %v4686 = vpop.permute.xlu0 %4685
      %4687 = vrot.lane.b32.xlu0 %v4302, 80
      %v4688 = vpop.permute.xlu0 %4687
      %4689 = vrot.lane.b32.xlu0 %v4304, 80
      %v4690 = vpop.permute.xlu0 %4689
      %4691 = vrot.lane.b32.xlu0 %v4306, 80
      %v4692 = vpop.permute.xlu0 %4691
      %4693 = vrot.lane.b32.xlu0 %v4308, 80
      %v4694 = vpop.permute.xlu0 %4693
      %4695 = vrot.lane.b32.xlu0 %v4310, 80
      %v4696 = vpop.permute.xlu0 %4695
      %4697 = vrot.lane.b32.xlu0 %v4312, 80
      %v4698 = vpop.permute.xlu0 %4697
      %4699 = vrot.lane.b32.xlu0 %v4314, 80
      %v4700 = vpop.permute.xlu0 %4699
      %4701 = vrot.lane.b32.xlu0 %v4316, 80
      %v4702 = vpop.permute.xlu0 %4701
      %4703 = vrot.lane.b32.xlu0 %v4318, 80
      %v4704 = vpop.permute.xlu0 %4703
      %4705 = vrot.lane.b32.xlu0 %v4320, 80
      %v4706 = vpop.permute.xlu0 %4705
      %4707 = vrot.lane.b32.xlu0 %v4322, 80
      %v4708 = vpop.permute.xlu0 %4707
      %4709 = vrot.lane.b32.xlu0 %v4324, 80
      %v4710 = vpop.permute.xlu0 %4709
      %4711 = vrot.lane.b32.xlu0 %v4326, 80
      %v4712 = vpop.permute.xlu0 %4711
      %4713 = vrot.lane.b32.xlu0 %v4328, 80
      %v4714 = vpop.permute.xlu0 %4713
      %4715 = vrot.lane.b32.xlu0 %v4330, 80
      %v4716 = vpop.permute.xlu0 %4715
      %4717 = vrot.lane.b32.xlu0 %v4332, 80
      %v4718 = vpop.permute.xlu0 %4717
      %4719 = vrot.lane.b32.xlu0 %v4334, 80
      %v4720 = vpop.permute.xlu0 %4719
      %4721 = vrot.lane.b32.xlu0 %v4336, 80
      %v4722 = vpop.permute.xlu0 %4721
      %v4747 = vadd.f32 %v4386, %v4676
      %v4748 = vadd.f32 %v4387, %v4678
      %v4749 = vadd.f32 %v4388, %v4680
      %v4750 = vadd.f32 %v4389, %v4682
      %v4751 = vadd.f32 %v4390, %v4684
      %v4752 = vadd.f32 %v4391, %v4686
      %v4753 = vadd.f32 %v4392, %v4688
      %v4754 = vadd.f32 %v4393, %v4690
      %v4755 = vadd.f32 %v4394, %v4692
      %v4756 = vadd.f32 %v4395, %v4694
      %v4757 = vadd.f32 %v4396, %v4696
      %v4758 = vadd.f32 %v4397, %v4698
      %v4759 = vadd.f32 %v4398, %v4700
      %v4760 = vadd.f32 %v4399, %v4702
      %v4761 = vadd.f32 %v4400, %v4704
      %v4762 = vadd.f32 %v4401, %v4706
      %v4763 = vadd.f32 %v4402, %v4708
      %v4764 = vadd.f32 %v4403, %v4710
      %v4765 = vadd.f32 %v4404, %v4712
      %v4766 = vadd.f32 %v4405, %v4714
      %v4767 = vadd.f32 %v4406, %v4716
      %v4768 = vadd.f32 %v4407, %v4718
      %v4769 = vadd.f32 %v4408, %v4720
      %v4770 = vadd.f32 %v4409, %v4722
      %v4771 = vadd.f32 %v4747, %v4651
      %v4772 = vadd.f32 %v4748, %v4652
      %v4773 = vadd.f32 %v4749, %v4653
      %v4774 = vadd.f32 %v4750, %v4654
      %v4775 = vadd.f32 %v4751, %v4655
      %v4776 = vadd.f32 %v4752, %v4656
      %v4777 = vadd.f32 %v4753, %v4657
      %v4778 = vadd.f32 %v4754, %v4658
      %v4779 = vadd.f32 %v4755, %v4659
      %v4780 = vadd.f32 %v4756, %v4660
      %v4781 = vadd.f32 %v4757, %v4661
      %v4782 = vadd.f32 %v4758, %v4662
      %v4783 = vadd.f32 %v4759, %v4663
      %v4784 = vadd.f32 %v4760, %v4664
      %v4785 = vadd.f32 %v4761, %v4665
      %v4786 = vadd.f32 %v4762, %v4666
      %v4787 = vadd.f32 %v4763, %v4667
      %v4788 = vadd.f32 %v4764, %v4668
      %v4789 = vadd.f32 %v4765, %v4669
      %v4790 = vadd.f32 %v4766, %v4670
      %v4791 = vadd.f32 %v4767, %v4671
      %v4792 = vadd.f32 %v4768, %v4672
      %v4793 = vadd.f32 %v4769, %v4673
      %v4794 = vadd.f32 %v4770, %v4674
      %v4795 = vsel %vm890, 1, 0
      %v4796 = vsel %vm891, 1, 0
      %v4797 = vsel %vm892, 1, 0
      %v4798 = vsel %vm893, 1, 0
      %v4799 = vsel %vm894, 1, 0
      %v4800 = vsel %vm895, 1, 0
      %v4801 = vsel %vm896, 1, 0
      %v4802 = vsel %vm897, 1, 0
      %v4803 = vsel %vm898, 1, 0
      %v4804 = vsel %vm899, 1, 0
      %v4805 = vsel %vm900, 1, 0
      %v4806 = vsel %vm901, 1, 0
      %v4807 = vsel %vm902, 1, 0
      %v4808 = vsel %vm903, 1, 0
      %v4809 = vsel %vm904, 1, 0
      %v4810 = vsel %vm905, 1, 0
      %vm4811 = vcmp.eq.s32.totalorder %v4795, 1
      %vm4812 = vcmp.eq.s32.totalorder %v4796, 1
      %vm4813 = vcmp.eq.s32.totalorder %v4797, 1
      %vm4814 = vcmp.eq.s32.totalorder %v4798, 1
      %vm4815 = vcmp.eq.s32.totalorder %v4799, 1
      %vm4816 = vcmp.eq.s32.totalorder %v4800, 1
      %vm4817 = vcmp.eq.s32.totalorder %v4801, 1
      %vm4818 = vcmp.eq.s32.totalorder %v4802, 1
      %vm4819 = vcmp.eq.s32.totalorder %v4803, 1
      %vm4820 = vcmp.eq.s32.totalorder %v4804, 1
      %vm4821 = vcmp.eq.s32.totalorder %v4805, 1
      %vm4822 = vcmp.eq.s32.totalorder %v4806, 1
      %vm4823 = vcmp.eq.s32.totalorder %v4807, 1
      %vm4824 = vcmp.eq.s32.totalorder %v4808, 1
      %vm4825 = vcmp.eq.s32.totalorder %v4809, 1
      %vm4826 = vcmp.eq.s32.totalorder %v4810, 1
      %v4827 = vsel %vm4811, %v4771, 0.0
      %v4828 = vsel %vm4812, %v4772, 0.0
      %v4829 = vsel %vm4813, %v4773, 0.0
      %v4830 = vsel %vm4814, %v4774, 0.0
      %v4831 = vsel %vm4815, %v4775, 0.0
      %v4832 = vsel %vm4816, %v4776, 0.0
      %v4833 = vsel %vm4817, %v4777, 0.0
      %v4834 = vsel %vm4818, %v4778, 0.0
      %v4835 = vsel %vm4819, %v4779, 0.0
      %v4836 = vsel %vm4820, %v4780, 0.0
      %v4837 = vsel %vm4821, %v4781, 0.0
      %v4838 = vsel %vm4822, %v4782, 0.0
      %v4839 = vsel %vm4823, %v4783, 0.0
      %v4840 = vsel %vm4824, %v4784, 0.0
      %v4841 = vsel %vm4825, %v4785, 0.0
      %v4842 = vsel %vm4826, %v4786, 0.0
      %v4843 = vsel %vm909, 1, 0
      %v4844 = vsel %vm910, 1, 0
      %v4845 = vsel %vm911, 1, 0
      %v4846 = vsel %vm912, 1, 0
      %v4847 = vsel %vm913, 1, 0
      %v4848 = vsel %vm914, 1, 0
      %v4849 = vsel %vm915, 1, 0
      %v4850 = vsel %vm916, 1, 0
      %v4851 = vsel %vm917, 1, 0
      %v4852 = vsel %vm918, 1, 0
      %v4853 = vsel %vm919, 1, 0
      %v4854 = vsel %vm920, 1, 0
      %v4855 = vsel %vm921, 1, 0
      %v4856 = vsel %vm922, 1, 0
      %v4857 = vsel %vm923, 1, 0
      %v4858 = vsel %vm924, 1, 0
      %vm4859 = vcmp.eq.s32.totalorder %v4843, 1
      %vm4860 = vcmp.eq.s32.totalorder %v4844, 1
      %vm4861 = vcmp.eq.s32.totalorder %v4845, 1
      %vm4862 = vcmp.eq.s32.totalorder %v4846, 1
      %vm4863 = vcmp.eq.s32.totalorder %v4847, 1
      %vm4864 = vcmp.eq.s32.totalorder %v4848, 1
      %vm4865 = vcmp.eq.s32.totalorder %v4849, 1
      %vm4866 = vcmp.eq.s32.totalorder %v4850, 1
      %vm4867 = vcmp.eq.s32.totalorder %v4851, 1
      %vm4868 = vcmp.eq.s32.totalorder %v4852, 1
      %vm4869 = vcmp.eq.s32.totalorder %v4853, 1
      %vm4870 = vcmp.eq.s32.totalorder %v4854, 1
      %vm4871 = vcmp.eq.s32.totalorder %v4855, 1
      %vm4872 = vcmp.eq.s32.totalorder %v4856, 1
      %vm4873 = vcmp.eq.s32.totalorder %v4857, 1
      %vm4874 = vcmp.eq.s32.totalorder %v4858, 1
      %v4875 = vsel %vm4859, %v4779, 0.0
      %v4876 = vsel %vm4860, %v4780, 0.0
      %v4877 = vsel %vm4861, %v4781, 0.0
      %v4878 = vsel %vm4862, %v4782, 0.0
      %v4879 = vsel %vm4863, %v4783, 0.0
      %v4880 = vsel %vm4864, %v4784, 0.0
      %v4881 = vsel %vm4865, %v4785, 0.0
      %v4882 = vsel %vm4866, %v4786, 0.0
      %v4883 = vsel %vm4867, %v4787, 0.0
      %v4884 = vsel %vm4868, %v4788, 0.0
      %v4885 = vsel %vm4869, %v4789, 0.0
      %v4886 = vsel %vm4870, %v4790, 0.0
      %v4887 = vsel %vm4871, %v4791, 0.0
      %v4888 = vsel %vm4872, %v4792, 0.0
      %v4889 = vsel %vm4873, %v4793, 0.0
      %v4890 = vsel %vm4874, %v4794, 0.0
      %4907 = vrot.lane.b32.xlu0 %v4775, 112
      %v4908 = vpop.permute.xlu0 %4907
      %4909 = vrot.lane.b32.xlu0 %v4776, 112
      %v4910 = vpop.permute.xlu0 %4909
      %4911 = vrot.lane.b32.xlu0 %v4777, 112
      %v4912 = vpop.permute.xlu0 %4911
      %4913 = vrot.lane.b32.xlu0 %v4778, 112
      %v4914 = vpop.permute.xlu0 %4913
      %4915 = vrot.lane.b32.xlu0 %v4779, 112
      %v4916 = vpop.permute.xlu0 %4915
      %4917 = vrot.lane.b32.xlu0 %v4780, 112
      %v4918 = vpop.permute.xlu0 %4917
      %4919 = vrot.lane.b32.xlu0 %v4781, 112
      %v4920 = vpop.permute.xlu0 %4919
      %4921 = vrot.lane.b32.xlu0 %v4782, 112
      %v4922 = vpop.permute.xlu0 %4921
      %4923 = vrot.lane.b32.xlu0 %v4783, 112
      %v4924 = vpop.permute.xlu0 %4923
      %4925 = vrot.lane.b32.xlu0 %v4784, 112
      %v4926 = vpop.permute.xlu0 %4925
      %4927 = vrot.lane.b32.xlu0 %v4785, 112
      %v4928 = vpop.permute.xlu0 %4927
      %4929 = vrot.lane.b32.xlu0 %v4786, 112
      %v4930 = vpop.permute.xlu0 %4929
      %4931 = vrot.lane.b32.xlu0 %v4787, 112
      %v4932 = vpop.permute.xlu0 %4931
      %4933 = vrot.lane.b32.xlu0 %v4788, 112
      %v4934 = vpop.permute.xlu0 %4933
      %4935 = vrot.lane.b32.xlu0 %v4789, 112
      %v4936 = vpop.permute.xlu0 %4935
      %4937 = vrot.lane.b32.xlu0 %v4790, 112
      %v4938 = vpop.permute.xlu0 %4937
      %v4955 = vadd.f32 %v4827, %v4908
      %v4956 = vadd.f32 %v4828, %v4910
      %v4957 = vadd.f32 %v4829, %v4912
      %v4958 = vadd.f32 %v4830, %v4914
      %v4959 = vadd.f32 %v4831, %v4916
      %v4960 = vadd.f32 %v4832, %v4918
      %v4961 = vadd.f32 %v4833, %v4920
      %v4962 = vadd.f32 %v4834, %v4922
      %v4963 = vadd.f32 %v4835, %v4924
      %v4964 = vadd.f32 %v4836, %v4926
      %v4965 = vadd.f32 %v4837, %v4928
      %v4966 = vadd.f32 %v4838, %v4930
      %v4967 = vadd.f32 %v4839, %v4932
      %v4968 = vadd.f32 %v4840, %v4934
      %v4969 = vadd.f32 %v4841, %v4936
      %v4970 = vadd.f32 %v4842, %v4938
      %4987 = vrot.lane.b32.xlu0 %v4875, 96
      %v4988 = vpop.permute.xlu0 %4987
      %4989 = vrot.lane.b32.xlu0 %v4876, 96
      %v4990 = vpop.permute.xlu0 %4989
      %4991 = vrot.lane.b32.xlu0 %v4877, 96
      %v4992 = vpop.permute.xlu0 %4991
      %4993 = vrot.lane.b32.xlu0 %v4878, 96
      %v4994 = vpop.permute.xlu0 %4993
      %4995 = vrot.lane.b32.xlu0 %v4879, 96
      %v4996 = vpop.permute.xlu0 %4995
      %4997 = vrot.lane.b32.xlu0 %v4880, 96
      %v4998 = vpop.permute.xlu0 %4997
      %4999 = vrot.lane.b32.xlu0 %v4881, 96
      %v5000 = vpop.permute.xlu0 %4999
      %5001 = vrot.lane.b32.xlu0 %v4882, 96
      %v5002 = vpop.permute.xlu0 %5001
      %5003 = vrot.lane.b32.xlu0 %v4883, 96
      %v5004 = vpop.permute.xlu0 %5003
      %5005 = vrot.lane.b32.xlu0 %v4884, 96
      %v5006 = vpop.permute.xlu0 %5005
      %5007 = vrot.lane.b32.xlu0 %v4885, 96
      %v5008 = vpop.permute.xlu0 %5007
      %5009 = vrot.lane.b32.xlu0 %v4886, 96
      %v5010 = vpop.permute.xlu0 %5009
      %5011 = vrot.lane.b32.xlu0 %v4887, 96
      %v5012 = vpop.permute.xlu0 %5011
      %5013 = vrot.lane.b32.xlu0 %v4888, 96
      %v5014 = vpop.permute.xlu0 %5013
      %5015 = vrot.lane.b32.xlu0 %v4889, 96
      %v5016 = vpop.permute.xlu0 %5015
      %5017 = vrot.lane.b32.xlu0 %v4890, 96
      %v5018 = vpop.permute.xlu0 %5017
      %v5035 = vadd.f32 %v4955, %v4988
      %v5036 = vadd.f32 %v4956, %v4990
      %v5037 = vadd.f32 %v4957, %v4992
      %v5038 = vadd.f32 %v4958, %v4994
      %v5039 = vadd.f32 %v4959, %v4996
      %v5040 = vadd.f32 %v4960, %v4998
      %v5041 = vadd.f32 %v4961, %v5000
      %v5042 = vadd.f32 %v4962, %v5002
      %v5043 = vadd.f32 %v4963, %v5004
      %v5044 = vadd.f32 %v4964, %v5006
      %v5045 = vadd.f32 %v4965, %v5008
      %v5046 = vadd.f32 %v4966, %v5010
      %v5047 = vadd.f32 %v4967, %v5012
      %v5048 = vadd.f32 %v4968, %v5014
      %v5049 = vadd.f32 %v4969, %v5016
      %v5050 = vadd.f32 %v4970, %v5018
      %v5051 = vld [vmem:[%s8] sm:$0x1]
      %v5053 = vperm.slane %v5051, 0
      %v5055 = vadd.f32 %v5035, %v5053
      %v5056 = vadd.f32 %v5036, %v5053
      %v5057 = vadd.f32 %v5037, %v5053
      %v5058 = vadd.f32 %v5038, %v5053
      %v5059 = vadd.f32 %v5039, %v5053
      %v5060 = vadd.f32 %v5040, %v5053
      %v5061 = vadd.f32 %v5041, %v5053
      %v5062 = vadd.f32 %v5042, %v5053
      %v5063 = vadd.f32 %v5043, %v5053
      %v5064 = vadd.f32 %v5044, %v5053
      %v5065 = vadd.f32 %v5045, %v5053
      %v5066 = vadd.f32 %v5046, %v5053
      %v5067 = vadd.f32 %v5047, %v5053
      %v5068 = vadd.f32 %v5048, %v5053
      %v5069 = vadd.f32 %v5049, %v5053
      %v5070 = vadd.f32 %v5050, %v5053
      %v5071 = vmax.f32 %v5055, 0.0
      %v5072 = vmax.f32 %v5056, 0.0
      %v5073 = vmax.f32 %v5057, 0.0
      %v5074 = vmax.f32 %v5058, 0.0
      %v5075 = vmax.f32 %v5059, 0.0
      %v5076 = vmax.f32 %v5060, 0.0
      %v5077 = vmax.f32 %v5061, 0.0
      %v5078 = vmax.f32 %v5062, 0.0
      %v5079 = vmax.f32 %v5063, 0.0
      %v5080 = vmax.f32 %v5064, 0.0
      %v5081 = vmax.f32 %v5065, 0.0
      %v5082 = vmax.f32 %v5066, 0.0
      %v5083 = vmax.f32 %v5067, 0.0
      %v5084 = vmax.f32 %v5068, 0.0
      %v5085 = vmax.f32 %v5069, 0.0
      %v5086 = vmax.f32 %v5070, 0.0
      %5087 = vst.msk [vmem:[%s512] sm:$0xff] %vm3175, %v5071
      %5088 = vst.msk [vmem:[%s512 + $0x8] sm:$0xff] %vm3175, %v5072
      %5089 = vst.msk [vmem:[%s512 + $0x10] sm:$0xff] %vm3175, %v5073
      %5090 = vst.msk [vmem:[%s512 + $0x18] sm:$0xff] %vm3175, %v5074
      %5091 = vst.msk [vmem:[%s512 + $0x20] sm:$0xff] %vm3175, %v5075
      %5092 = vst.msk [vmem:[%s512 + $0x28] sm:$0xff] %vm3175, %v5076
      %5093 = vst.msk [vmem:[%s512 + $0x30] sm:$0xff] %vm3175, %v5077
      %5094 = vst.msk [vmem:[%s512 + $0x38] sm:$0xff] %vm3175, %v5078
      %5095 = vst.msk [vmem:[%s512 + $0x40] sm:$0xff] %vm3175, %v5079
      %5096 = vst.msk [vmem:[%s512 + $0x48] sm:$0xff] %vm3175, %v5080
      %5097 = vst.msk [vmem:[%s512 + $0x50] sm:$0xff] %vm3175, %v5081
      %5098 = vst.msk [vmem:[%s512 + $0x58] sm:$0xff] %vm3175, %v5082
      %5099 = vst.msk [vmem:[%s512 + $0x60] sm:$0xff] %vm3175, %v5083
      %5100 = vst.msk [vmem:[%s512 + $0x68] sm:$0xff] %vm3175, %v5084
      %5101 = vst.msk [vmem:[%s512 + $0x70] sm:$0xff] %vm3175, %v5085
      %5102 = vst.msk [vmem:[%s512 + $0x78] sm:$0xff] %vm3175, %v5086
      %s5103 = smul.u32 16, %s25
      %p5104 = scmp.lt.s32.totalorder %s24, 1
      %s5105 = scalar_select %p5104, %s24, 1
      %p5106 = scmp.lt.s32.totalorder %s5103, 127
      %s5107 = scalar_select %p5106, %s5103, 127
      %s5108 = smul.addr %s5105, 128
      %s5109 = sadd.s32 %s5107, %s5108
      %s5110 = smul.addr %s5109, 8
      %s5111 = scalar_lea.vmem %s9, %s5110
      // Predicated region
      $region57: #{tpu_custom_call.1} parent=55 // pred_check
        %p5112 = pneg %p283
      $region58: #{tpu_custom_call.1} parent=55 // pred_check_branch
        %5114 = sbr.rel (%p5112) target = $region60
      $region59: #{tpu_custom_call.1} parent=55 // pred_region
        %s5115 = smul.u32 16, %s25
      $region60: #{tpu_custom_call.1} parent=55 // pred_fallthru
        _
    $region56: #{tpu_custom_call.1} parent=5 // pred_fallthru
      _
    %p5116 = scmp.le.s32.totalorder 2, %s15
    // Predicated region
    $region61: #{tpu_custom_call.1} parent=5 // pred_check
      %p5117 = pneg %p5116
    $region62: #{tpu_custom_call.1} parent=5 // pred_check_branch
      %5119 = sbr.rel (%p5117) target = $region64
    $region63: #{tpu_custom_call.1} parent=5 // pred_region
      %s5120 = ssub.s32 %s15, 2
      // Predicated region
      $region65: #{tpu_custom_call.1} parent=63 // pred_check
        %p5121 = pneg %p289
      $region66: #{tpu_custom_call.1} parent=63 // pred_check_branch
        %5123 = sbr.rel (%p5121) target = $region68
      $region67: #{tpu_custom_call.1} parent=63 // pred_region
        %s5124 = smul.u32 16, %s27
        %p5125 = scmp.lt.s32.totalorder %s26, 1
        %s5126 = scalar_select %p5125, %s26, 1
        %p5127 = scmp.lt.s32.totalorder %s5124, 127
        %s5128 = scalar_select %p5127, %s5124, 127
        %s5129 = smul.addr %s5126, 128
        %s5130 = sadd.s32 %s5128, %s5129
        %s5131 = smul.addr %s5130, 8
        %s5132 = scalar_lea.vmem %s9, %s5131
      $region68: #{tpu_custom_call.1} parent=63 // pred_fallthru
        _
    $region64: #{tpu_custom_call.1} parent=5 // pred_fallthru
      _
  $region6: #{tpu_custom_call.1} parent=0 // loop_footer
    %s19 = sadd.s32 1, %s15
  $region7: #{tpu_custom_call.1} parent=0 // loop_footer_branch
    %14 = sbr.rel target = $region3
  $region8: #{tpu_custom_call.1} parent=0 // loop_exit
    _

</llo_original>
